<compile_context>
chip_gen: v7x
topology: tpu7x:2x2x1
jax: 0.10.0
libtpu: 0.0.40
codegen_flags: <defaults>
</compile_context>

<pallas_src>
import functools
import math

import jax
import jax.numpy as jnp
import numpy as np
from jax.experimental import pallas as pl
from jax.experimental.pallas import tpu as pltpu  # noqa: F401  (TPU backend)

EMBED_DIM = 32          # embedding_dim
NUM_HEADS = 4           # num_heads
MLP_DIM = 64            # mlp_dim (kept small)
DOWNSAMPLE = 2          # attention_downsample_rate
LN_EPS = 1e-5           # nn.LayerNorm default eps
N_Q = 8                 # sparse (point) tokens
N_K = 64                # dense (image) tokens, e.g. 8x8 flattened
BATCH = 2


# ---------------------------------------------------------------------------
# Fused kernel: whole TwoWayAttentionBlock in one invocation (no grid; every
# operand is a full-array VMEM block, all intermediates stay on-chip).
# ---------------------------------------------------------------------------
def _two_way_block_kernel(
    q_ref, k_ref, qpe_ref, kpe_ref,
    # self-attention (wq/bq pre-scaled by 1/sqrt(dh) on the host)
    sa_wq, sa_bq, sa_wk, sa_bk, sa_wv, sa_bv, sa_wo, sa_bo,
    # cross attention: tokens -> image
    ct_wq, ct_bq, ct_wk, ct_bk, ct_wv, ct_bv, ct_wo, ct_bo,
    # cross attention: image -> tokens
    ci_wq, ci_bq, ci_wk, ci_bk, ci_wv, ci_bv, ci_wo, ci_bo,
    # MLP
    mlp_w1, mlp_b1, mlp_w2, mlp_b2,
    # layer norms
    n1g, n1b, n2g, n2b, n3g, n3b, n4g, n4b,
    # outputs
    q_out_ref, k_out_ref,
    *, num_heads, skip_first_layer_pe, eps):
  B, Nq, E = q_ref.shape
  Nk = k_ref.shape[1]

  queries = q_ref[...]          # (B, Nq, E) f32
  keys = k_ref[...]             # (B, Nk, E)
  qpe = qpe_ref[...]
  kpe = kpe_ref[...]

  def attention(qv, kv, vv, wq_r, bq_r, wk_r, bk_r, wv_r, bv_r, wo_r, bo_r):
    """MHA: qv (B,Sq,E), kv/vv (B,Sk,E) -> (B*Sq, E_out).
    No head concat: each head's PV output is folded into the out projection."""
    Sq, Sk = qv.shape[1], kv.shape[1]
    wo = wo_r[...]                          # (D_int, E_out)
    D = wo.shape[0]
    dh = D // num_heads
    e_out = wo.shape[1]
    # Batch folded into the sublane axis -> one fat matmul per projection.
    qp = jnp.dot(qv.reshape(B * Sq, E), wq_r[...],
                 preferred_element_type=jnp.float32) + bq_r[...]
    kp = jnp.dot(kv.reshape(B * Sk, E), wk_r[...],
                 preferred_element_type=jnp.float32) + bk_r[...]
    vp = jnp.dot(vv.reshape(B * Sk, E), wv_r[...],
                 preferred_element_type=jnp.float32) + bv_r[...]
    qp = qp.reshape(B, Sq, D)
    kp = kp.reshape(B, Sk, D)
    vp = vp.reshape(B, Sk, D)
    acc = jnp.zeros((B * Sq, e_out), jnp.float32)
    for h in range(num_heads):              # static unroll over heads
      lo = h * dh
      qh = qp[:, :, lo:lo + dh]             # (B, Sq, dh)
      kh = kp[:, :, lo:lo + dh]             # (B, Sk, dh)
      vh = vp[:, :, lo:lo + dh]
      # softmax scale already folded into wq/bq; scores batched over B.
      s = jnp.einsum('bqd,bkd->bqk', qh, kh,
                     preferred_element_type=jnp.float32)       # (B, Sq, Sk)
      s = s - jnp.max(s, axis=-1, keepdims=True)
      p = jnp.exp(s)
      # Exact softmax normalization (the approx EUP reciprocal caused the
      # previous accuracy failure; exact divide is free here — VPU has slack).
      p = p / jnp.sum(p, axis=-1, keepdims=True)
      oh = jnp.einsum('bqk,bkd->bqd', p, vh,
                      preferred_element_type=jnp.float32)      # (B, Sq, dh)
      acc = acc + jnp.dot(oh.reshape(B * Sq, dh), wo[lo:lo + dh, :],
                          preferred_element_type=jnp.float32)
    return acc + bo_r[...]                  # (B*Sq, E_out)

  def layernorm(x2d, g_r, b_r):
    mean = jnp.mean(x2d, axis=-1, keepdims=True)
    xc = x2d - mean
    var = jnp.mean(xc * xc, axis=-1, keepdims=True)
    return xc * jax.lax.rsqrt(var + eps) * g_r[...] + b_r[...]

  def mlp(x2d):
    h = jnp.dot(x2d, mlp_w1[...], preferred_element_type=jnp.float32) + mlp_b1[...]
    h = jnp.maximum(h, 0.0)
    return jnp.dot(h, mlp_w2[...], preferred_element_type=jnp.float32) + mlp_b2[...]

  q2d = queries.reshape(B * Nq, E)          # (B*Nq, E) working slab
  k2d = keys.reshape(B * Nk, E)             # (B*Nk, E) working slab

  # (1) self-attention on sparse tokens
  if skip_first_layer_pe:
    attn_out = attention(queries, queries, queries,
                         sa_wq, sa_bq, sa_wk, sa_bk, sa_wv, sa_bv, sa_wo, sa_bo)
    q2d = layernorm(attn_out, n1g, n1b)     # no residual in this branch
  else:
    q_pe = queries + qpe
    attn_out = attention(q_pe, q_pe, queries,
                         sa_wq, sa_bq, sa_wk, sa_bk, sa_wv, sa_bv, sa_wo, sa_bo)
    q2d = layernorm(q2d + attn_out, n1g, n1b)

  # (2) cross attention, tokens -> image
  q_pe = q2d.reshape(B, Nq, E) + qpe
  k_pe = keys + kpe                          # keys unchanged until step (4)
  attn_out = attention(q_pe, k_pe, keys,
                       ct_wq, ct_bq, ct_wk, ct_bk, ct_wv, ct_bv, ct_wo, ct_bo)
  q2d = layernorm(q2d + attn_out, n2g, n2b)

  # (3) MLP on sparse tokens
  q2d = layernorm(q2d + mlp(q2d), n3g, n3b)

  # (4) cross attention, image -> tokens
  q_pe = q2d.reshape(B, Nq, E) + qpe
  attn_out = attention(k_pe, q_pe, q2d.reshape(B, Nq, E),
                       ci_wq, ci_bq, ci_wk, ci_bk, ci_wv, ci_bv, ci_wo, ci_bo)
  k2d = layernorm(k2d + attn_out, n4g, n4b)

  # Only HBM writes of the whole block: two consolidated slabs.
  q_out_ref[...] = q2d.reshape(B, Nq, E).astype(q_out_ref.dtype)
  k_out_ref[...] = k2d.reshape(B, Nk, E).astype(k_out_ref.dtype)


# ---------------------------------------------------------------------------
# Wrapper: one fused pallas_call
# ---------------------------------------------------------------------------
@functools.partial(jax.jit, static_argnames=("num_heads", "skip_first_layer_pe"))
def two_way_attention_block(queries, keys, query_pe, key_pe, params,
                            num_heads=NUM_HEADS, skip_first_layer_pe=False):
  def _fold_scale(p):
    # Fold the 1/sqrt(dh) softmax scale into the q projection (host-side).
    dh = p["wq"].shape[1] // num_heads
    s = jnp.float32(1.0 / math.sqrt(dh))
    return dict(p, wq=p["wq"] * s, bq=p["bq"] * s)

  sa = _fold_scale(params["self_attn"])
  ct = _fold_scale(params["cross_t2i"])
  ci = _fold_scale(params["cross_i2t"])
  mp = params["mlp"]
  n1, n2, n3, n4 = (params["norm1"], params["norm2"],
                    params["norm3"], params["norm4"])

  b, nq, e = queries.shape
  nk = keys.shape[1]
  kernel = functools.partial(_two_way_block_kernel, num_heads=num_heads,
                             skip_first_layer_pe=skip_first_layer_pe,
                             eps=LN_EPS)
  # No grid: the whole (<100 KB) working set lives in VMEM for one invocation.
  # On v7x a (2,)-grid batch axis marked "parallel" (or pl.core_map) could
  # split across the 2 TensorCores; kept single-core as the block is tiny.
  q_out, k_out = pl.pallas_call(
      kernel,
      out_shape=(jax.ShapeDtypeStruct((b, nq, e), queries.dtype),
                 jax.ShapeDtypeStruct((b, nk, e), keys.dtype)),
  )(queries, keys, query_pe, key_pe,
    sa["wq"], sa["bq"], sa["wk"], sa["bk"], sa["wv"], sa["bv"], sa["wo"], sa["bo"],
    ct["wq"], ct["bq"], ct["wk"], ct["bk"], ct["wv"], ct["bv"], ct["wo"], ct["bo"],
    ci["wq"], ci["bq"], ci["wk"], ci["bk"], ci["wv"], ci["bv"], ci["wo"], ci["bo"],
    mp["w1"], mp["b1"], mp["w2"], mp["b2"],
    n1["g"], n1["b"], n2["g"], n2["b"], n3["g"], n3["b"], n4["g"], n4["b"])
  return q_out, k_out


# ---------------------------------------------------------------------------
# Pure-JAX reference (for verification)
# ---------------------------------------------------------------------------
def _attention_ref(q, k, v, p, num_heads):
  qp = q @ p["wq"] + p["bq"][0]
  kp = k @ p["wk"] + p["bk"][0]
  vp = v @ p["wv"] + p["bv"][0]
  b, nq, d = qp.shape
  nk = kp.shape[1]
  dh = d // num_heads
  qh = qp.reshape(b, nq, num_heads, dh).transpose(0, 2, 1, 3)
  kh = kp.reshape(b, nk, num_heads, dh).transpose(0, 2, 1, 3)
  vh = vp.reshape(b, nk, num_heads, dh).transpose(0, 2, 1, 3)
  attn = (qh @ kh.transpose(0, 1, 3, 2)) / math.sqrt(dh)
  attn = jax.nn.softmax(attn, axis=-1)
  out = (attn @ vh).transpose(0, 2, 1, 3).reshape(b, nq, d)
  return out @ p["wo"] + p["bo"][0]


def _layernorm_ref(x, g, b, eps=LN_EPS):
  mean = jnp.mean(x, axis=-1, keepdims=True)
  var = jnp.mean((x - mean) ** 2, axis=-1, keepdims=True)
  return (x - mean) * jax.lax.rsqrt(var + eps) * g[0] + b[0]


def _block_ref(queries, keys, query_pe, key_pe, params, num_heads,
               skip_first_layer_pe=False):
  if skip_first_layer_pe:
    attn_out = _attention_ref(queries, queries, queries,
                              params["self_attn"], num_heads)
    queries = _layernorm_ref(attn_out, params["norm1"]["g"], params["norm1"]["b"])
  else:
    q = queries + query_pe
    attn_out = _attention_ref(q, q, queries, params["self_attn"], num_heads)
    queries = _layernorm_ref(queries + attn_out,
                             params["norm1"]["g"], params["norm1"]["b"])
  q = queries + query_pe
  k = keys + key_pe
  attn_out = _attention_ref(q, k, keys, params["cross_t2i"], num_heads)
  queries = _layernorm_ref(queries + attn_out,
                           params["norm2"]["g"], params["norm2"]["b"])
  h = jnp.maximum(queries @ params["mlp"]["w1"] + params["mlp"]["b1"][0], 0.0)
  mlp_out = h @ params["mlp"]["w2"] + params["mlp"]["b2"][0]
  queries = _layernorm_ref(queries + mlp_out,
                           params["norm3"]["g"], params["norm3"]["b"])
  q = queries + query_pe
  k = keys + key_pe
  attn_out = _attention_ref(k, q, queries, params["cross_i2t"], num_heads)
  keys = _layernorm_ref(keys + attn_out,
                        params["norm4"]["g"], params["norm4"]["b"])
  return queries, keys


# ---------------------------------------------------------------------------
# Deterministic parameter init
# ---------------------------------------------------------------------------
def _init_linear(key, din, dout, scale=0.05):
  kw, kb = jax.random.split(key)
  w = scale * jax.random.normal(kw, (din, dout), jnp.float32)
  b = scale * jax.random.normal(kb, (1, dout), jnp.float32)
  return w, b


def _init_attention(key, embed_dim, internal_dim):
  ks = jax.random.split(key, 4)
  wq, bq = _init_linear(ks[0], embed_dim, internal_dim)
  wk, bk = _init_linear(ks[1], embed_dim, internal_dim)
  wv, bv = _init_linear(ks[2], embed_dim, internal_dim)
  wo, bo = _init_linear(ks[3], internal_dim, embed_dim)
  return dict(wq=wq, bq=bq, wk=wk, bk=bk, wv=wv, bv=bv, wo=wo, bo=bo)


def _init_layernorm(key, dim):
  kg, kb = jax.random.split(key)
  g = 1.0 + 0.1 * jax.random.normal(kg, (1, dim), jnp.float32)
  b = 0.1 * jax.random.normal(kb, (1, dim), jnp.float32)
  return dict(g=g, b=b)


def init_params(key):
  ks = jax.random.split(key, 8)
  internal_cross = EMBED_DIM // DOWNSAMPLE
  w1, b1 = _init_linear(ks[6], EMBED_DIM, MLP_DIM)
  w2, b2 = _init_linear(ks[7], MLP_DIM, EMBED_DIM)
  return dict(
      self_attn=_init_attention(ks[0], EMBED_DIM, EMBED_DIM),
      cross_t2i=_init_attention(ks[1], EMBED_DIM, internal_cross),
      cross_i2t=_init_attention(ks[2], EMBED_DIM, internal_cross),
      norm1=_init_layernorm(ks[3], EMBED_DIM),
      norm2=_init_layernorm(ks[4], EMBED_DIM),
      norm3=_init_layernorm(ks[5], EMBED_DIM),
      norm4=_init_layernorm(jax.random.fold_in(key, 99), EMBED_DIM),
      mlp=dict(w1=w1, b1=b1, w2=w2, b2=b2),
  )


# ---------------------------------------------------------------------------
if __name__ == "__main__":
  root = jax.random.PRNGKey(0)
  k_params, k_q, k_k, k_qpe, k_kpe = jax.random.split(root, 5)

  params = init_params(k_params)
  queries = jax.random.normal(k_q, (BATCH, N_Q, EMBED_DIM), jnp.float32)
  keys = jax.random.normal(k_k, (BATCH, N_K, EMBED_DIM), jnp.float32)
  query_pe = jax.random.normal(k_qpe, (BATCH, N_Q, EMBED_DIM), jnp.float32)
  key_pe = jax.random.normal(k_kpe, (BATCH, N_K, EMBED_DIM), jnp.float32)

  for skip in (False, True):
    out_q, out_k = two_way_attention_block(
        queries, keys, query_pe, key_pe, params, skip_first_layer_pe=skip)
    out_q = jax.block_until_ready(out_q)
    out_k = jax.block_until_ready(out_k)

    ref_q, ref_k = _block_ref(queries, keys, query_pe, key_pe, params,
                              NUM_HEADS, skip_first_layer_pe=skip)
    # Exact softmax normalization in-kernel; residual differences come only
    # from the (harmless) reassociation of the 1/sqrt(dh) scale fold and the
    # per-head out-projection accumulation order.
    np.testing.assert_allclose(np.asarray(out_q), np.asarray(ref_q),
                               rtol=2e-3, atol=2e-3)
    np.testing.assert_allclose(np.asarray(out_k), np.asarray(ref_k),
                               rtol=2e-3, atol=2e-3)

  print("KERNEL_OK")
</pallas_src>

<mosaic_0001>
module attributes {stable_mosaic.version = 11 : i64} {
  func.func @_two_way_block_kernel(%arg0: memref<2x8x32xf32, #tpu.memory_space<vmem>>, %arg1: memref<2x64x32xf32, #tpu.memory_space<vmem>>, %arg2: memref<2x8x32xf32, #tpu.memory_space<vmem>>, %arg3: memref<2x64x32xf32, #tpu.memory_space<vmem>>, %arg4: memref<32x32xf32, #tpu.memory_space<vmem>>, %arg5: memref<1x32xf32, #tpu.memory_space<vmem>>, %arg6: memref<32x32xf32, #tpu.memory_space<vmem>>, %arg7: memref<1x32xf32, #tpu.memory_space<vmem>>, %arg8: memref<32x32xf32, #tpu.memory_space<vmem>>, %arg9: memref<1x32xf32, #tpu.memory_space<vmem>>, %arg10: memref<32x32xf32, #tpu.memory_space<vmem>>, %arg11: memref<1x32xf32, #tpu.memory_space<vmem>>, %arg12: memref<32x16xf32, #tpu.memory_space<vmem>>, %arg13: memref<1x16xf32, #tpu.memory_space<vmem>>, %arg14: memref<32x16xf32, #tpu.memory_space<vmem>>, %arg15: memref<1x16xf32, #tpu.memory_space<vmem>>, %arg16: memref<32x16xf32, #tpu.memory_space<vmem>>, %arg17: memref<1x16xf32, #tpu.memory_space<vmem>>, %arg18: memref<16x32xf32, #tpu.memory_space<vmem>>, %arg19: memref<1x32xf32, #tpu.memory_space<vmem>>, %arg20: memref<32x16xf32, #tpu.memory_space<vmem>>, %arg21: memref<1x16xf32, #tpu.memory_space<vmem>>, %arg22: memref<32x16xf32, #tpu.memory_space<vmem>>, %arg23: memref<1x16xf32, #tpu.memory_space<vmem>>, %arg24: memref<32x16xf32, #tpu.memory_space<vmem>>, %arg25: memref<1x16xf32, #tpu.memory_space<vmem>>, %arg26: memref<16x32xf32, #tpu.memory_space<vmem>>, %arg27: memref<1x32xf32, #tpu.memory_space<vmem>>, %arg28: memref<32x64xf32, #tpu.memory_space<vmem>>, %arg29: memref<1x64xf32, #tpu.memory_space<vmem>>, %arg30: memref<64x32xf32, #tpu.memory_space<vmem>>, %arg31: memref<1x32xf32, #tpu.memory_space<vmem>>, %arg32: memref<1x32xf32, #tpu.memory_space<vmem>>, %arg33: memref<1x32xf32, #tpu.memory_space<vmem>>, %arg34: memref<1x32xf32, #tpu.memory_space<vmem>>, %arg35: memref<1x32xf32, #tpu.memory_space<vmem>>, %arg36: memref<1x32xf32, #tpu.memory_space<vmem>>, %arg37: memref<1x32xf32, #tpu.memory_space<vmem>>, %arg38: memref<1x32xf32, #tpu.memory_space<vmem>>, %arg39: memref<1x32xf32, #tpu.memory_space<vmem>>, %arg40: memref<2x8x32xf32, #tpu.memory_space<vmem>>, %arg41: memref<2x64x32xf32, #tpu.memory_space<vmem>>) attributes {dimension_semantics = [], scalar_prefetch = 0 : i64, scratch_operands = 0 : i64, tpu.core_type = #tpu.core_type<tc>} {
    %c0 = arith.constant 0 : index
    %c0_0 = arith.constant 0 : index
    %c0_1 = arith.constant 0 : index
    %0 = vector.load %arg0[%c0, %c0_0, %c0_1] : memref<2x8x32xf32, #tpu.memory_space<vmem>>, vector<2x8x32xf32>
    %c0_2 = arith.constant 0 : index
    %c0_3 = arith.constant 0 : index
    %c0_4 = arith.constant 0 : index
    %1 = vector.load %arg1[%c0_2, %c0_3, %c0_4] : memref<2x64x32xf32, #tpu.memory_space<vmem>>, vector<2x64x32xf32>
    %c0_5 = arith.constant 0 : index
    %c0_6 = arith.constant 0 : index
    %c0_7 = arith.constant 0 : index
    %2 = vector.load %arg2[%c0_5, %c0_6, %c0_7] : memref<2x8x32xf32, #tpu.memory_space<vmem>>, vector<2x8x32xf32>
    %c0_8 = arith.constant 0 : index
    %c0_9 = arith.constant 0 : index
    %c0_10 = arith.constant 0 : index
    %3 = vector.load %arg3[%c0_8, %c0_9, %c0_10] : memref<2x64x32xf32, #tpu.memory_space<vmem>>, vector<2x64x32xf32>
    %4 = vector.shape_cast %0 : vector<2x8x32xf32> to vector<16x32xf32>
    %5 = vector.shape_cast %1 : vector<2x64x32xf32> to vector<128x32xf32>
    %6 = arith.addf %0, %2 : vector<2x8x32xf32>
    %c0_11 = arith.constant 0 : index
    %c0_12 = arith.constant 0 : index
    %7 = vector.load %arg10[%c0_11, %c0_12] : memref<32x32xf32, #tpu.memory_space<vmem>>, vector<32x32xf32>
    %8 = vector.shape_cast %6 : vector<2x8x32xf32> to vector<16x32xf32>
    %c0_13 = arith.constant 0 : index
    %c0_14 = arith.constant 0 : index
    %9 = vector.load %arg4[%c0_13, %c0_14] : memref<32x32xf32, #tpu.memory_space<vmem>>, vector<32x32xf32>
    %cst = arith.constant dense<0.000000e+00> : vector<16x32xf32>
    %10 = tpu.matmul %8, %9, %cst {dimension_numbers = #tpu.dot_dimension_numbers<[1], [0], [0], [1], [0, 0, 1, 1], [], []>} : vector<16x32xf32>, vector<32x32xf32>, vector<16x32xf32> -> vector<16x32xf32>
    %c0_15 = arith.constant 0 : index
    %c0_16 = arith.constant 0 : index
    %11 = vector.load %arg5[%c0_15, %c0_16] : memref<1x32xf32, #tpu.memory_space<vmem>>, vector<1x32xf32>
    %12 = vector.broadcast %11 : vector<1x32xf32> to vector<16x32xf32>
    %13 = arith.addf %10, %12 : vector<16x32xf32>
    %14 = vector.shape_cast %6 : vector<2x8x32xf32> to vector<16x32xf32>
    %c0_17 = arith.constant 0 : index
    %c0_18 = arith.constant 0 : index
    %15 = vector.load %arg6[%c0_17, %c0_18] : memref<32x32xf32, #tpu.memory_space<vmem>>, vector<32x32xf32>
    %cst_19 = arith.constant dense<0.000000e+00> : vector<16x32xf32>
    %16 = tpu.matmul %14, %15, %cst_19 {dimension_numbers = #tpu.dot_dimension_numbers<[1], [0], [0], [1], [0, 0, 1, 1], [], []>} : vector<16x32xf32>, vector<32x32xf32>, vector<16x32xf32> -> vector<16x32xf32>
    %c0_20 = arith.constant 0 : index
    %c0_21 = arith.constant 0 : index
    %17 = vector.load %arg7[%c0_20, %c0_21] : memref<1x32xf32, #tpu.memory_space<vmem>>, vector<1x32xf32>
    %18 = vector.broadcast %17 : vector<1x32xf32> to vector<16x32xf32>
    %19 = arith.addf %16, %18 : vector<16x32xf32>
    %20 = vector.shape_cast %0 : vector<2x8x32xf32> to vector<16x32xf32>
    %c0_22 = arith.constant 0 : index
    %c0_23 = arith.constant 0 : index
    %21 = vector.load %arg8[%c0_22, %c0_23] : memref<32x32xf32, #tpu.memory_space<vmem>>, vector<32x32xf32>
    %cst_24 = arith.constant dense<0.000000e+00> : vector<16x32xf32>
    %22 = tpu.matmul %20, %21, %cst_24 {dimension_numbers = #tpu.dot_dimension_numbers<[1], [0], [0], [1], [0, 0, 1, 1], [], []>} : vector<16x32xf32>, vector<32x32xf32>, vector<16x32xf32> -> vector<16x32xf32>
    %c0_25 = arith.constant 0 : index
    %c0_26 = arith.constant 0 : index
    %23 = vector.load %arg9[%c0_25, %c0_26] : memref<1x32xf32, #tpu.memory_space<vmem>>, vector<1x32xf32>
    %24 = vector.broadcast %23 : vector<1x32xf32> to vector<16x32xf32>
    %25 = arith.addf %22, %24 : vector<16x32xf32>
    %26 = vector.shape_cast %13 : vector<16x32xf32> to vector<2x8x32xf32>
    %27 = vector.shape_cast %19 : vector<16x32xf32> to vector<2x8x32xf32>
    %28 = vector.shape_cast %25 : vector<16x32xf32> to vector<2x8x32xf32>
    %cst_27 = arith.constant 0.000000e+00 : f32
    %29 = vector.broadcast %cst_27 : f32 to vector<16x32xf32>
    %30 = vector.extract_strided_slice %26 {offsets = [0, 0, 0], sizes = [2, 8, 8], strides = [1, 1, 1]} : vector<2x8x32xf32> to vector<2x8x8xf32>
    %31 = vector.extract_strided_slice %27 {offsets = [0, 0, 0], sizes = [2, 8, 8], strides = [1, 1, 1]} : vector<2x8x32xf32> to vector<2x8x8xf32>
    %32 = vector.extract_strided_slice %28 {offsets = [0, 0, 0], sizes = [2, 8, 8], strides = [1, 1, 1]} : vector<2x8x32xf32> to vector<2x8x8xf32>
    "tpu.trace_start"() <{level = 10 : i32, message = "bqd,bkd->bqk"}> : () -> ()
    %cst_28 = arith.constant dense<0.000000e+00> : vector<2x8x8xf32>
    %33 = tpu.matmul %30, %31, %cst_28 {dimension_numbers = #tpu.dot_dimension_numbers<[2], [2], [1], [1], [0, 0, 0, 1, 1, 1], [0], [0]>} : vector<2x8x8xf32>, vector<2x8x8xf32>, vector<2x8x8xf32> -> vector<2x8x8xf32>
    "tpu.trace_stop"() : () -> ()
    %cst_29 = arith.constant dense<0xFF800000> : vector<2x8xf32>
    %34 = vector.multi_reduction <maximumf>, %33, %cst_29 [2] : vector<2x8x8xf32> to vector<2x8xf32>
    %35 = vector.shape_cast %34 : vector<2x8xf32> to vector<2x8x1xf32>
    %36 = vector.broadcast %35 : vector<2x8x1xf32> to vector<2x8x8xf32>
    %37 = arith.subf %33, %36 : vector<2x8x8xf32>
    %38 = math.exp %37 : vector<2x8x8xf32>
    %cst_30 = arith.constant dense<0.000000e+00> : vector<2x8xf32>
    %39 = vector.multi_reduction <add>, %38, %cst_30 [2] : vector<2x8x8xf32> to vector<2x8xf32>
    %40 = vector.shape_cast %39 : vector<2x8xf32> to vector<2x8x1xf32>
    %41 = vector.broadcast %40 : vector<2x8x1xf32> to vector<2x8x8xf32>
    %42 = arith.divf %38, %41 : vector<2x8x8xf32>
    "tpu.trace_start"() <{level = 10 : i32, message = "bqk,bkd->bqd"}> : () -> ()
    %cst_31 = arith.constant dense<0.000000e+00> : vector<2x8x8xf32>
    %43 = tpu.matmul %42, %32, %cst_31 {dimension_numbers = #tpu.dot_dimension_numbers<[2], [1], [1], [2], [0, 0, 0, 1, 1, 2], [0], [0]>} : vector<2x8x8xf32>, vector<2x8x8xf32>, vector<2x8x8xf32> -> vector<2x8x8xf32>
    "tpu.trace_stop"() : () -> ()
    %44 = vector.shape_cast %43 : vector<2x8x8xf32> to vector<16x8xf32>
    %45 = vector.extract_strided_slice %7 {offsets = [0, 0], sizes = [8, 32], strides = [1, 1]} : vector<32x32xf32> to vector<8x32xf32>
    %cst_32 = arith.constant dense<0.000000e+00> : vector<16x32xf32>
    %46 = tpu.matmul %44, %45, %cst_32 {dimension_numbers = #tpu.dot_dimension_numbers<[1], [0], [0], [1], [0, 0, 1, 1], [], []>} : vector<16x8xf32>, vector<8x32xf32>, vector<16x32xf32> -> vector<16x32xf32>
    %47 = arith.addf %29, %46 : vector<16x32xf32>
    %48 = vector.extract_strided_slice %26 {offsets = [0, 0, 8], sizes = [2, 8, 8], strides = [1, 1, 1]} : vector<2x8x32xf32> to vector<2x8x8xf32>
    %49 = vector.extract_strided_slice %27 {offsets = [0, 0, 8], sizes = [2, 8, 8], strides = [1, 1, 1]} : vector<2x8x32xf32> to vector<2x8x8xf32>
    %50 = vector.extract_strided_slice %28 {offsets = [0, 0, 8], sizes = [2, 8, 8], strides = [1, 1, 1]} : vector<2x8x32xf32> to vector<2x8x8xf32>
    "tpu.trace_start"() <{level = 10 : i32, message = "bqd,bkd->bqk"}> : () -> ()
    %cst_33 = arith.constant dense<0.000000e+00> : vector<2x8x8xf32>
    %51 = tpu.matmul %48, %49, %cst_33 {dimension_numbers = #tpu.dot_dimension_numbers<[2], [2], [1], [1], [0, 0, 0, 1, 1, 1], [0], [0]>} : vector<2x8x8xf32>, vector<2x8x8xf32>, vector<2x8x8xf32> -> vector<2x8x8xf32>
    "tpu.trace_stop"() : () -> ()
    %cst_34 = arith.constant dense<0xFF800000> : vector<2x8xf32>
    %52 = vector.multi_reduction <maximumf>, %51, %cst_34 [2] : vector<2x8x8xf32> to vector<2x8xf32>
    %53 = vector.shape_cast %52 : vector<2x8xf32> to vector<2x8x1xf32>
    %54 = vector.broadcast %53 : vector<2x8x1xf32> to vector<2x8x8xf32>
    %55 = arith.subf %51, %54 : vector<2x8x8xf32>
    %56 = math.exp %55 : vector<2x8x8xf32>
    %cst_35 = arith.constant dense<0.000000e+00> : vector<2x8xf32>
    %57 = vector.multi_reduction <add>, %56, %cst_35 [2] : vector<2x8x8xf32> to vector<2x8xf32>
    %58 = vector.shape_cast %57 : vector<2x8xf32> to vector<2x8x1xf32>
    %59 = vector.broadcast %58 : vector<2x8x1xf32> to vector<2x8x8xf32>
    %60 = arith.divf %56, %59 : vector<2x8x8xf32>
    "tpu.trace_start"() <{level = 10 : i32, message = "bqk,bkd->bqd"}> : () -> ()
    %cst_36 = arith.constant dense<0.000000e+00> : vector<2x8x8xf32>
    %61 = tpu.matmul %60, %50, %cst_36 {dimension_numbers = #tpu.dot_dimension_numbers<[2], [1], [1], [2], [0, 0, 0, 1, 1, 2], [0], [0]>} : vector<2x8x8xf32>, vector<2x8x8xf32>, vector<2x8x8xf32> -> vector<2x8x8xf32>
    "tpu.trace_stop"() : () -> ()
    %62 = vector.shape_cast %61 : vector<2x8x8xf32> to vector<16x8xf32>
    %63 = vector.extract_strided_slice %7 {offsets = [8, 0], sizes = [8, 32], strides = [1, 1]} : vector<32x32xf32> to vector<8x32xf32>
    %cst_37 = arith.constant dense<0.000000e+00> : vector<16x32xf32>
    %64 = tpu.matmul %62, %63, %cst_37 {dimension_numbers = #tpu.dot_dimension_numbers<[1], [0], [0], [1], [0, 0, 1, 1], [], []>} : vector<16x8xf32>, vector<8x32xf32>, vector<16x32xf32> -> vector<16x32xf32>
    %65 = arith.addf %47, %64 : vector<16x32xf32>
    %66 = vector.extract_strided_slice %26 {offsets = [0, 0, 16], sizes = [2, 8, 8], strides = [1, 1, 1]} : vector<2x8x32xf32> to vector<2x8x8xf32>
    %67 = vector.extract_strided_slice %27 {offsets = [0, 0, 16], sizes = [2, 8, 8], strides = [1, 1, 1]} : vector<2x8x32xf32> to vector<2x8x8xf32>
    %68 = vector.extract_strided_slice %28 {offsets = [0, 0, 16], sizes = [2, 8, 8], strides = [1, 1, 1]} : vector<2x8x32xf32> to vector<2x8x8xf32>
    "tpu.trace_start"() <{level = 10 : i32, message = "bqd,bkd->bqk"}> : () -> ()
    %cst_38 = arith.constant dense<0.000000e+00> : vector<2x8x8xf32>
    %69 = tpu.matmul %66, %67, %cst_38 {dimension_numbers = #tpu.dot_dimension_numbers<[2], [2], [1], [1], [0, 0, 0, 1, 1, 1], [0], [0]>} : vector<2x8x8xf32>, vector<2x8x8xf32>, vector<2x8x8xf32> -> vector<2x8x8xf32>
    "tpu.trace_stop"() : () -> ()
    %cst_39 = arith.constant dense<0xFF800000> : vector<2x8xf32>
    %70 = vector.multi_reduction <maximumf>, %69, %cst_39 [2] : vector<2x8x8xf32> to vector<2x8xf32>
    %71 = vector.shape_cast %70 : vector<2x8xf32> to vector<2x8x1xf32>
    %72 = vector.broadcast %71 : vector<2x8x1xf32> to vector<2x8x8xf32>
    %73 = arith.subf %69, %72 : vector<2x8x8xf32>
    %74 = math.exp %73 : vector<2x8x8xf32>
    %cst_40 = arith.constant dense<0.000000e+00> : vector<2x8xf32>
    %75 = vector.multi_reduction <add>, %74, %cst_40 [2] : vector<2x8x8xf32> to vector<2x8xf32>
    %76 = vector.shape_cast %75 : vector<2x8xf32> to vector<2x8x1xf32>
    %77 = vector.broadcast %76 : vector<2x8x1xf32> to vector<2x8x8xf32>
    %78 = arith.divf %74, %77 : vector<2x8x8xf32>
    "tpu.trace_start"() <{level = 10 : i32, message = "bqk,bkd->bqd"}> : () -> ()
    %cst_41 = arith.constant dense<0.000000e+00> : vector<2x8x8xf32>
    %79 = tpu.matmul %78, %68, %cst_41 {dimension_numbers = #tpu.dot_dimension_numbers<[2], [1], [1], [2], [0, 0, 0, 1, 1, 2], [0], [0]>} : vector<2x8x8xf32>, vector<2x8x8xf32>, vector<2x8x8xf32> -> vector<2x8x8xf32>
    "tpu.trace_stop"() : () -> ()
    %80 = vector.shape_cast %79 : vector<2x8x8xf32> to vector<16x8xf32>
    %81 = vector.extract_strided_slice %7 {offsets = [16, 0], sizes = [8, 32], strides = [1, 1]} : vector<32x32xf32> to vector<8x32xf32>
    %cst_42 = arith.constant dense<0.000000e+00> : vector<16x32xf32>
    %82 = tpu.matmul %80, %81, %cst_42 {dimension_numbers = #tpu.dot_dimension_numbers<[1], [0], [0], [1], [0, 0, 1, 1], [], []>} : vector<16x8xf32>, vector<8x32xf32>, vector<16x32xf32> -> vector<16x32xf32>
    %83 = arith.addf %65, %82 : vector<16x32xf32>
    %84 = vector.extract_strided_slice %26 {offsets = [0, 0, 24], sizes = [2, 8, 8], strides = [1, 1, 1]} : vector<2x8x32xf32> to vector<2x8x8xf32>
    %85 = vector.extract_strided_slice %27 {offsets = [0, 0, 24], sizes = [2, 8, 8], strides = [1, 1, 1]} : vector<2x8x32xf32> to vector<2x8x8xf32>
    %86 = vector.extract_strided_slice %28 {offsets = [0, 0, 24], sizes = [2, 8, 8], strides = [1, 1, 1]} : vector<2x8x32xf32> to vector<2x8x8xf32>
    "tpu.trace_start"() <{level = 10 : i32, message = "bqd,bkd->bqk"}> : () -> ()
    %cst_43 = arith.constant dense<0.000000e+00> : vector<2x8x8xf32>
    %87 = tpu.matmul %84, %85, %cst_43 {dimension_numbers = #tpu.dot_dimension_numbers<[2], [2], [1], [1], [0, 0, 0, 1, 1, 1], [0], [0]>} : vector<2x8x8xf32>, vector<2x8x8xf32>, vector<2x8x8xf32> -> vector<2x8x8xf32>
    "tpu.trace_stop"() : () -> ()
    %cst_44 = arith.constant dense<0xFF800000> : vector<2x8xf32>
    %88 = vector.multi_reduction <maximumf>, %87, %cst_44 [2] : vector<2x8x8xf32> to vector<2x8xf32>
    %89 = vector.shape_cast %88 : vector<2x8xf32> to vector<2x8x1xf32>
    %90 = vector.broadcast %89 : vector<2x8x1xf32> to vector<2x8x8xf32>
    %91 = arith.subf %87, %90 : vector<2x8x8xf32>
    %92 = math.exp %91 : vector<2x8x8xf32>
    %cst_45 = arith.constant dense<0.000000e+00> : vector<2x8xf32>
    %93 = vector.multi_reduction <add>, %92, %cst_45 [2] : vector<2x8x8xf32> to vector<2x8xf32>
    %94 = vector.shape_cast %93 : vector<2x8xf32> to vector<2x8x1xf32>
    %95 = vector.broadcast %94 : vector<2x8x1xf32> to vector<2x8x8xf32>
    %96 = arith.divf %92, %95 : vector<2x8x8xf32>
    "tpu.trace_start"() <{level = 10 : i32, message = "bqk,bkd->bqd"}> : () -> ()
    %cst_46 = arith.constant dense<0.000000e+00> : vector<2x8x8xf32>
    %97 = tpu.matmul %96, %86, %cst_46 {dimension_numbers = #tpu.dot_dimension_numbers<[2], [1], [1], [2], [0, 0, 0, 1, 1, 2], [0], [0]>} : vector<2x8x8xf32>, vector<2x8x8xf32>, vector<2x8x8xf32> -> vector<2x8x8xf32>
    "tpu.trace_stop"() : () -> ()
    %98 = vector.shape_cast %97 : vector<2x8x8xf32> to vector<16x8xf32>
    %99 = vector.extract_strided_slice %7 {offsets = [24, 0], sizes = [8, 32], strides = [1, 1]} : vector<32x32xf32> to vector<8x32xf32>
    %cst_47 = arith.constant dense<0.000000e+00> : vector<16x32xf32>
    %100 = tpu.matmul %98, %99, %cst_47 {dimension_numbers = #tpu.dot_dimension_numbers<[1], [0], [0], [1], [0, 0, 1, 1], [], []>} : vector<16x8xf32>, vector<8x32xf32>, vector<16x32xf32> -> vector<16x32xf32>
    %101 = arith.addf %83, %100 : vector<16x32xf32>
    %c0_48 = arith.constant 0 : index
    %c0_49 = arith.constant 0 : index
    %102 = vector.load %arg11[%c0_48, %c0_49] : memref<1x32xf32, #tpu.memory_space<vmem>>, vector<1x32xf32>
    %103 = vector.broadcast %102 : vector<1x32xf32> to vector<16x32xf32>
    %104 = arith.addf %101, %103 : vector<16x32xf32>
    %105 = arith.addf %4, %104 : vector<16x32xf32>
    %cst_50 = arith.constant dense<0.000000e+00> : vector<16xf32>
    %106 = vector.multi_reduction <add>, %105, %cst_50 [1] : vector<16x32xf32> to vector<16xf32>
    %107 = vector.shape_cast %106 : vector<16xf32> to vector<16x1xf32>
    %cst_51 = arith.constant 3.200000e+01 : f32
    %108 = vector.broadcast %cst_51 : f32 to vector<16x1xf32>
    %109 = arith.divf %107, %108 : vector<16x1xf32>
    %110 = vector.broadcast %109 : vector<16x1xf32> to vector<16x32xf32>
    %111 = arith.subf %105, %110 : vector<16x32xf32>
    %112 = arith.mulf %111, %111 : vector<16x32xf32>
    %cst_52 = arith.constant dense<0.000000e+00> : vector<16xf32>
    %113 = vector.multi_reduction <add>, %112, %cst_52 [1] : vector<16x32xf32> to vector<16xf32>
    %114 = vector.shape_cast %113 : vector<16xf32> to vector<16x1xf32>
    %cst_53 = arith.constant 3.200000e+01 : f32
    %115 = vector.broadcast %cst_53 : f32 to vector<16x1xf32>
    %116 = arith.divf %114, %115 : vector<16x1xf32>
    %cst_54 = arith.constant 9.99999974E-6 : f32
    %117 = vector.broadcast %cst_54 : f32 to vector<16x1xf32>
    %118 = arith.addf %116, %117 : vector<16x1xf32>
    %119 = math.rsqrt %118 : vector<16x1xf32>
    %120 = vector.broadcast %119 : vector<16x1xf32> to vector<16x32xf32>
    %121 = arith.mulf %111, %120 : vector<16x32xf32>
    %c0_55 = arith.constant 0 : index
    %c0_56 = arith.constant 0 : index
    %122 = vector.load %arg32[%c0_55, %c0_56] : memref<1x32xf32, #tpu.memory_space<vmem>>, vector<1x32xf32>
    %123 = vector.broadcast %122 : vector<1x32xf32> to vector<16x32xf32>
    %124 = arith.mulf %121, %123 : vector<16x32xf32>
    %c0_57 = arith.constant 0 : index
    %c0_58 = arith.constant 0 : index
    %125 = vector.load %arg33[%c0_57, %c0_58] : memref<1x32xf32, #tpu.memory_space<vmem>>, vector<1x32xf32>
    %126 = vector.broadcast %125 : vector<1x32xf32> to vector<16x32xf32>
    %127 = arith.addf %124, %126 : vector<16x32xf32>
    %128 = vector.shape_cast %127 : vector<16x32xf32> to vector<2x8x32xf32>
    %129 = arith.addf %128, %2 : vector<2x8x32xf32>
    %130 = arith.addf %1, %3 : vector<2x64x32xf32>
    %c0_59 = arith.constant 0 : index
    %c0_60 = arith.constant 0 : index
    %131 = vector.load %arg18[%c0_59, %c0_60] : memref<16x32xf32, #tpu.memory_space<vmem>>, vector<16x32xf32>
    %132 = vector.shape_cast %129 : vector<2x8x32xf32> to vector<16x32xf32>
    %c0_61 = arith.constant 0 : index
    %c0_62 = arith.constant 0 : index
    %133 = vector.load %arg12[%c0_61, %c0_62] : memref<32x16xf32, #tpu.memory_space<vmem>>, vector<32x16xf32>
    %cst_63 = arith.constant dense<0.000000e+00> : vector<16x16xf32>
    %134 = tpu.matmul %132, %133, %cst_63 {dimension_numbers = #tpu.dot_dimension_numbers<[1], [0], [0], [1], [0, 0, 1, 1], [], []>} : vector<16x32xf32>, vector<32x16xf32>, vector<16x16xf32> -> vector<16x16xf32>
    %c0_64 = arith.constant 0 : index
    %c0_65 = arith.constant 0 : index
    %135 = vector.load %arg13[%c0_64, %c0_65] : memref<1x16xf32, #tpu.memory_space<vmem>>, vector<1x16xf32>
    %136 = vector.broadcast %135 : vector<1x16xf32> to vector<16x16xf32>
    %137 = arith.addf %134, %136 : vector<16x16xf32>
    %138 = vector.shape_cast %130 : vector<2x64x32xf32> to vector<128x32xf32>
    %c0_66 = arith.constant 0 : index
    %c0_67 = arith.constant 0 : index
    %139 = vector.load %arg14[%c0_66, %c0_67] : memref<32x16xf32, #tpu.memory_space<vmem>>, vector<32x16xf32>
    %cst_68 = arith.constant dense<0.000000e+00> : vector<128x16xf32>
    %140 = tpu.matmul %138, %139, %cst_68 {dimension_numbers = #tpu.dot_dimension_numbers<[1], [0], [0], [1], [0, 0, 1, 1], [], []>} : vector<128x32xf32>, vector<32x16xf32>, vector<128x16xf32> -> vector<128x16xf32>
    %c0_69 = arith.constant 0 : index
    %c0_70 = arith.constant 0 : index
    %141 = vector.load %arg15[%c0_69, %c0_70] : memref<1x16xf32, #tpu.memory_space<vmem>>, vector<1x16xf32>
    %142 = vector.broadcast %141 : vector<1x16xf32> to vector<128x16xf32>
    %143 = arith.addf %140, %142 : vector<128x16xf32>
    %144 = vector.shape_cast %1 : vector<2x64x32xf32> to vector<128x32xf32>
    %c0_71 = arith.constant 0 : index
    %c0_72 = arith.constant 0 : index
    %145 = vector.load %arg16[%c0_71, %c0_72] : memref<32x16xf32, #tpu.memory_space<vmem>>, vector<32x16xf32>
    %cst_73 = arith.constant dense<0.000000e+00> : vector<128x16xf32>
    %146 = tpu.matmul %144, %145, %cst_73 {dimension_numbers = #tpu.dot_dimension_numbers<[1], [0], [0], [1], [0, 0, 1, 1], [], []>} : vector<128x32xf32>, vector<32x16xf32>, vector<128x16xf32> -> vector<128x16xf32>
    %c0_74 = arith.constant 0 : index
    %c0_75 = arith.constant 0 : index
    %147 = vector.load %arg17[%c0_74, %c0_75] : memref<1x16xf32, #tpu.memory_space<vmem>>, vector<1x16xf32>
    %148 = vector.broadcast %147 : vector<1x16xf32> to vector<128x16xf32>
    %149 = arith.addf %146, %148 : vector<128x16xf32>
    %150 = vector.shape_cast %137 : vector<16x16xf32> to vector<2x8x16xf32>
    %151 = vector.shape_cast %143 : vector<128x16xf32> to vector<2x64x16xf32>
    %152 = vector.shape_cast %149 : vector<128x16xf32> to vector<2x64x16xf32>
    %cst_76 = arith.constant 0.000000e+00 : f32
    %153 = vector.broadcast %cst_76 : f32 to vector<16x32xf32>
    %154 = vector.extract_strided_slice %150 {offsets = [0, 0, 0], sizes = [2, 8, 4], strides = [1, 1, 1]} : vector<2x8x16xf32> to vector<2x8x4xf32>
    %155 = vector.extract_strided_slice %151 {offsets = [0, 0, 0], sizes = [2, 64, 4], strides = [1, 1, 1]} : vector<2x64x16xf32> to vector<2x64x4xf32>
    %156 = vector.extract_strided_slice %152 {offsets = [0, 0, 0], sizes = [2, 64, 4], strides = [1, 1, 1]} : vector<2x64x16xf32> to vector<2x64x4xf32>
    "tpu.trace_start"() <{level = 10 : i32, message = "bqd,bkd->bqk"}> : () -> ()
    %cst_77 = arith.constant dense<0.000000e+00> : vector<2x8x64xf32>
    %157 = tpu.matmul %154, %155, %cst_77 {dimension_numbers = #tpu.dot_dimension_numbers<[2], [2], [1], [1], [0, 0, 0, 1, 1, 1], [0], [0]>} : vector<2x8x4xf32>, vector<2x64x4xf32>, vector<2x8x64xf32> -> vector<2x8x64xf32>
    "tpu.trace_stop"() : () -> ()
    %cst_78 = arith.constant dense<0xFF800000> : vector<2x8xf32>
    %158 = vector.multi_reduction <maximumf>, %157, %cst_78 [2] : vector<2x8x64xf32> to vector<2x8xf32>
    %159 = vector.shape_cast %158 : vector<2x8xf32> to vector<2x8x1xf32>
    %160 = vector.broadcast %159 : vector<2x8x1xf32> to vector<2x8x64xf32>
    %161 = arith.subf %157, %160 : vector<2x8x64xf32>
    %162 = math.exp %161 : vector<2x8x64xf32>
    %cst_79 = arith.constant dense<0.000000e+00> : vector<2x8xf32>
    %163 = vector.multi_reduction <add>, %162, %cst_79 [2] : vector<2x8x64xf32> to vector<2x8xf32>
    %164 = vector.shape_cast %163 : vector<2x8xf32> to vector<2x8x1xf32>
    %165 = vector.broadcast %164 : vector<2x8x1xf32> to vector<2x8x64xf32>
    %166 = arith.divf %162, %165 : vector<2x8x64xf32>
    "tpu.trace_start"() <{level = 10 : i32, message = "bqk,bkd->bqd"}> : () -> ()
    %cst_80 = arith.constant dense<0.000000e+00> : vector<2x8x4xf32>
    %167 = tpu.matmul %166, %156, %cst_80 {dimension_numbers = #tpu.dot_dimension_numbers<[2], [1], [1], [2], [0, 0, 0, 1, 1, 2], [0], [0]>} : vector<2x8x64xf32>, vector<2x64x4xf32>, vector<2x8x4xf32> -> vector<2x8x4xf32>
    "tpu.trace_stop"() : () -> ()
    %168 = vector.shape_cast %167 : vector<2x8x4xf32> to vector<16x4xf32>
    %169 = vector.extract_strided_slice %131 {offsets = [0, 0], sizes = [4, 32], strides = [1, 1]} : vector<16x32xf32> to vector<4x32xf32>
    %cst_81 = arith.constant dense<0.000000e+00> : vector<16x32xf32>
    %170 = tpu.matmul %168, %169, %cst_81 {dimension_numbers = #tpu.dot_dimension_numbers<[1], [0], [0], [1], [0, 0, 1, 1], [], []>} : vector<16x4xf32>, vector<4x32xf32>, vector<16x32xf32> -> vector<16x32xf32>
    %171 = arith.addf %153, %170 : vector<16x32xf32>
    %172 = vector.extract_strided_slice %150 {offsets = [0, 0, 4], sizes = [2, 8, 4], strides = [1, 1, 1]} : vector<2x8x16xf32> to vector<2x8x4xf32>
    %173 = vector.extract_strided_slice %151 {offsets = [0, 0, 4], sizes = [2, 64, 4], strides = [1, 1, 1]} : vector<2x64x16xf32> to vector<2x64x4xf32>
    %174 = vector.extract_strided_slice %152 {offsets = [0, 0, 4], sizes = [2, 64, 4], strides = [1, 1, 1]} : vector<2x64x16xf32> to vector<2x64x4xf32>
    "tpu.trace_start"() <{level = 10 : i32, message = "bqd,bkd->bqk"}> : () -> ()
    %cst_82 = arith.constant dense<0.000000e+00> : vector<2x8x64xf32>
    %175 = tpu.matmul %172, %173, %cst_82 {dimension_numbers = #tpu.dot_dimension_numbers<[2], [2], [1], [1], [0, 0, 0, 1, 1, 1], [0], [0]>} : vector<2x8x4xf32>, vector<2x64x4xf32>, vector<2x8x64xf32> -> vector<2x8x64xf32>
    "tpu.trace_stop"() : () -> ()
    %cst_83 = arith.constant dense<0xFF800000> : vector<2x8xf32>
    %176 = vector.multi_reduction <maximumf>, %175, %cst_83 [2] : vector<2x8x64xf32> to vector<2x8xf32>
    %177 = vector.shape_cast %176 : vector<2x8xf32> to vector<2x8x1xf32>
    %178 = vector.broadcast %177 : vector<2x8x1xf32> to vector<2x8x64xf32>
    %179 = arith.subf %175, %178 : vector<2x8x64xf32>
    %180 = math.exp %179 : vector<2x8x64xf32>
    %cst_84 = arith.constant dense<0.000000e+00> : vector<2x8xf32>
    %181 = vector.multi_reduction <add>, %180, %cst_84 [2] : vector<2x8x64xf32> to vector<2x8xf32>
    %182 = vector.shape_cast %181 : vector<2x8xf32> to vector<2x8x1xf32>
    %183 = vector.broadcast %182 : vector<2x8x1xf32> to vector<2x8x64xf32>
    %184 = arith.divf %180, %183 : vector<2x8x64xf32>
    "tpu.trace_start"() <{level = 10 : i32, message = "bqk,bkd->bqd"}> : () -> ()
    %cst_85 = arith.constant dense<0.000000e+00> : vector<2x8x4xf32>
    %185 = tpu.matmul %184, %174, %cst_85 {dimension_numbers = #tpu.dot_dimension_numbers<[2], [1], [1], [2], [0, 0, 0, 1, 1, 2], [0], [0]>} : vector<2x8x64xf32>, vector<2x64x4xf32>, vector<2x8x4xf32> -> vector<2x8x4xf32>
    "tpu.trace_stop"() : () -> ()
    %186 = vector.shape_cast %185 : vector<2x8x4xf32> to vector<16x4xf32>
    %187 = vector.extract_strided_slice %131 {offsets = [4, 0], sizes = [4, 32], strides = [1, 1]} : vector<16x32xf32> to vector<4x32xf32>
    %cst_86 = arith.constant dense<0.000000e+00> : vector<16x32xf32>
    %188 = tpu.matmul %186, %187, %cst_86 {dimension_numbers = #tpu.dot_dimension_numbers<[1], [0], [0], [1], [0, 0, 1, 1], [], []>} : vector<16x4xf32>, vector<4x32xf32>, vector<16x32xf32> -> vector<16x32xf32>
    %189 = arith.addf %171, %188 : vector<16x32xf32>
    %190 = vector.extract_strided_slice %150 {offsets = [0, 0, 8], sizes = [2, 8, 4], strides = [1, 1, 1]} : vector<2x8x16xf32> to vector<2x8x4xf32>
    %191 = vector.extract_strided_slice %151 {offsets = [0, 0, 8], sizes = [2, 64, 4], strides = [1, 1, 1]} : vector<2x64x16xf32> to vector<2x64x4xf32>
    %192 = vector.extract_strided_slice %152 {offsets = [0, 0, 8], sizes = [2, 64, 4], strides = [1, 1, 1]} : vector<2x64x16xf32> to vector<2x64x4xf32>
    "tpu.trace_start"() <{level = 10 : i32, message = "bqd,bkd->bqk"}> : () -> ()
    %cst_87 = arith.constant dense<0.000000e+00> : vector<2x8x64xf32>
    %193 = tpu.matmul %190, %191, %cst_87 {dimension_numbers = #tpu.dot_dimension_numbers<[2], [2], [1], [1], [0, 0, 0, 1, 1, 1], [0], [0]>} : vector<2x8x4xf32>, vector<2x64x4xf32>, vector<2x8x64xf32> -> vector<2x8x64xf32>
    "tpu.trace_stop"() : () -> ()
    %cst_88 = arith.constant dense<0xFF800000> : vector<2x8xf32>
    %194 = vector.multi_reduction <maximumf>, %193, %cst_88 [2] : vector<2x8x64xf32> to vector<2x8xf32>
    %195 = vector.shape_cast %194 : vector<2x8xf32> to vector<2x8x1xf32>
    %196 = vector.broadcast %195 : vector<2x8x1xf32> to vector<2x8x64xf32>
    %197 = arith.subf %193, %196 : vector<2x8x64xf32>
    %198 = math.exp %197 : vector<2x8x64xf32>
    %cst_89 = arith.constant dense<0.000000e+00> : vector<2x8xf32>
    %199 = vector.multi_reduction <add>, %198, %cst_89 [2] : vector<2x8x64xf32> to vector<2x8xf32>
    %200 = vector.shape_cast %199 : vector<2x8xf32> to vector<2x8x1xf32>
    %201 = vector.broadcast %200 : vector<2x8x1xf32> to vector<2x8x64xf32>
    %202 = arith.divf %198, %201 : vector<2x8x64xf32>
    "tpu.trace_start"() <{level = 10 : i32, message = "bqk,bkd->bqd"}> : () -> ()
    %cst_90 = arith.constant dense<0.000000e+00> : vector<2x8x4xf32>
    %203 = tpu.matmul %202, %192, %cst_90 {dimension_numbers = #tpu.dot_dimension_numbers<[2], [1], [1], [2], [0, 0, 0, 1, 1, 2], [0], [0]>} : vector<2x8x64xf32>, vector<2x64x4xf32>, vector<2x8x4xf32> -> vector<2x8x4xf32>
    "tpu.trace_stop"() : () -> ()
    %204 = vector.shape_cast %203 : vector<2x8x4xf32> to vector<16x4xf32>
    %205 = vector.extract_strided_slice %131 {offsets = [8, 0], sizes = [4, 32], strides = [1, 1]} : vector<16x32xf32> to vector<4x32xf32>
    %cst_91 = arith.constant dense<0.000000e+00> : vector<16x32xf32>
    %206 = tpu.matmul %204, %205, %cst_91 {dimension_numbers = #tpu.dot_dimension_numbers<[1], [0], [0], [1], [0, 0, 1, 1], [], []>} : vector<16x4xf32>, vector<4x32xf32>, vector<16x32xf32> -> vector<16x32xf32>
    %207 = arith.addf %189, %206 : vector<16x32xf32>
    %208 = vector.extract_strided_slice %150 {offsets = [0, 0, 12], sizes = [2, 8, 4], strides = [1, 1, 1]} : vector<2x8x16xf32> to vector<2x8x4xf32>
    %209 = vector.extract_strided_slice %151 {offsets = [0, 0, 12], sizes = [2, 64, 4], strides = [1, 1, 1]} : vector<2x64x16xf32> to vector<2x64x4xf32>
    %210 = vector.extract_strided_slice %152 {offsets = [0, 0, 12], sizes = [2, 64, 4], strides = [1, 1, 1]} : vector<2x64x16xf32> to vector<2x64x4xf32>
    "tpu.trace_start"() <{level = 10 : i32, message = "bqd,bkd->bqk"}> : () -> ()
    %cst_92 = arith.constant dense<0.000000e+00> : vector<2x8x64xf32>
    %211 = tpu.matmul %208, %209, %cst_92 {dimension_numbers = #tpu.dot_dimension_numbers<[2], [2], [1], [1], [0, 0, 0, 1, 1, 1], [0], [0]>} : vector<2x8x4xf32>, vector<2x64x4xf32>, vector<2x8x64xf32> -> vector<2x8x64xf32>
    "tpu.trace_stop"() : () -> ()
    %cst_93 = arith.constant dense<0xFF800000> : vector<2x8xf32>
    %212 = vector.multi_reduction <maximumf>, %211, %cst_93 [2] : vector<2x8x64xf32> to vector<2x8xf32>
    %213 = vector.shape_cast %212 : vector<2x8xf32> to vector<2x8x1xf32>
    %214 = vector.broadcast %213 : vector<2x8x1xf32> to vector<2x8x64xf32>
    %215 = arith.subf %211, %214 : vector<2x8x64xf32>
    %216 = math.exp %215 : vector<2x8x64xf32>
    %cst_94 = arith.constant dense<0.000000e+00> : vector<2x8xf32>
    %217 = vector.multi_reduction <add>, %216, %cst_94 [2] : vector<2x8x64xf32> to vector<2x8xf32>
    %218 = vector.shape_cast %217 : vector<2x8xf32> to vector<2x8x1xf32>
    %219 = vector.broadcast %218 : vector<2x8x1xf32> to vector<2x8x64xf32>
    %220 = arith.divf %216, %219 : vector<2x8x64xf32>
    "tpu.trace_start"() <{level = 10 : i32, message = "bqk,bkd->bqd"}> : () -> ()
    %cst_95 = arith.constant dense<0.000000e+00> : vector<2x8x4xf32>
    %221 = tpu.matmul %220, %210, %cst_95 {dimension_numbers = #tpu.dot_dimension_numbers<[2], [1], [1], [2], [0, 0, 0, 1, 1, 2], [0], [0]>} : vector<2x8x64xf32>, vector<2x64x4xf32>, vector<2x8x4xf32> -> vector<2x8x4xf32>
    "tpu.trace_stop"() : () -> ()
    %222 = vector.shape_cast %221 : vector<2x8x4xf32> to vector<16x4xf32>
    %223 = vector.extract_strided_slice %131 {offsets = [12, 0], sizes = [4, 32], strides = [1, 1]} : vector<16x32xf32> to vector<4x32xf32>
    %cst_96 = arith.constant dense<0.000000e+00> : vector<16x32xf32>
    %224 = tpu.matmul %222, %223, %cst_96 {dimension_numbers = #tpu.dot_dimension_numbers<[1], [0], [0], [1], [0, 0, 1, 1], [], []>} : vector<16x4xf32>, vector<4x32xf32>, vector<16x32xf32> -> vector<16x32xf32>
    %225 = arith.addf %207, %224 : vector<16x32xf32>
    %c0_97 = arith.constant 0 : index
    %c0_98 = arith.constant 0 : index
    %226 = vector.load %arg19[%c0_97, %c0_98] : memref<1x32xf32, #tpu.memory_space<vmem>>, vector<1x32xf32>
    %227 = vector.broadcast %226 : vector<1x32xf32> to vector<16x32xf32>
    %228 = arith.addf %225, %227 : vector<16x32xf32>
    %229 = arith.addf %127, %228 : vector<16x32xf32>
    %cst_99 = arith.constant dense<0.000000e+00> : vector<16xf32>
    %230 = vector.multi_reduction <add>, %229, %cst_99 [1] : vector<16x32xf32> to vector<16xf32>
    %231 = vector.shape_cast %230 : vector<16xf32> to vector<16x1xf32>
    %cst_100 = arith.constant 3.200000e+01 : f32
    %232 = vector.broadcast %cst_100 : f32 to vector<16x1xf32>
    %233 = arith.divf %231, %232 : vector<16x1xf32>
    %234 = vector.broadcast %233 : vector<16x1xf32> to vector<16x32xf32>
    %235 = arith.subf %229, %234 : vector<16x32xf32>
    %236 = arith.mulf %235, %235 : vector<16x32xf32>
    %cst_101 = arith.constant dense<0.000000e+00> : vector<16xf32>
    %237 = vector.multi_reduction <add>, %236, %cst_101 [1] : vector<16x32xf32> to vector<16xf32>
    %238 = vector.shape_cast %237 : vector<16xf32> to vector<16x1xf32>
    %cst_102 = arith.constant 3.200000e+01 : f32
    %239 = vector.broadcast %cst_102 : f32 to vector<16x1xf32>
    %240 = arith.divf %238, %239 : vector<16x1xf32>
    %cst_103 = arith.constant 9.99999974E-6 : f32
    %241 = vector.broadcast %cst_103 : f32 to vector<16x1xf32>
    %242 = arith.addf %240, %241 : vector<16x1xf32>
    %243 = math.rsqrt %242 : vector<16x1xf32>
    %244 = vector.broadcast %243 : vector<16x1xf32> to vector<16x32xf32>
    %245 = arith.mulf %235, %244 : vector<16x32xf32>
    %c0_104 = arith.constant 0 : index
    %c0_105 = arith.constant 0 : index
    %246 = vector.load %arg34[%c0_104, %c0_105] : memref<1x32xf32, #tpu.memory_space<vmem>>, vector<1x32xf32>
    %247 = vector.broadcast %246 : vector<1x32xf32> to vector<16x32xf32>
    %248 = arith.mulf %245, %247 : vector<16x32xf32>
    %c0_106 = arith.constant 0 : index
    %c0_107 = arith.constant 0 : index
    %249 = vector.load %arg35[%c0_106, %c0_107] : memref<1x32xf32, #tpu.memory_space<vmem>>, vector<1x32xf32>
    %250 = vector.broadcast %249 : vector<1x32xf32> to vector<16x32xf32>
    %251 = arith.addf %248, %250 : vector<16x32xf32>
    %c0_108 = arith.constant 0 : index
    %c0_109 = arith.constant 0 : index
    %252 = vector.load %arg28[%c0_108, %c0_109] : memref<32x64xf32, #tpu.memory_space<vmem>>, vector<32x64xf32>
    %cst_110 = arith.constant dense<0.000000e+00> : vector<16x64xf32>
    %253 = tpu.matmul %251, %252, %cst_110 {dimension_numbers = #tpu.dot_dimension_numbers<[1], [0], [0], [1], [0, 0, 1, 1], [], []>} : vector<16x32xf32>, vector<32x64xf32>, vector<16x64xf32> -> vector<16x64xf32>
    %c0_111 = arith.constant 0 : index
    %c0_112 = arith.constant 0 : index
    %254 = vector.load %arg29[%c0_111, %c0_112] : memref<1x64xf32, #tpu.memory_space<vmem>>, vector<1x64xf32>
    %255 = vector.broadcast %254 : vector<1x64xf32> to vector<16x64xf32>
    %256 = arith.addf %253, %255 : vector<16x64xf32>
    %cst_113 = arith.constant 0.000000e+00 : f32
    %257 = vector.broadcast %cst_113 : f32 to vector<16x64xf32>
    %258 = arith.maximumf %256, %257 : vector<16x64xf32>
    %c0_114 = arith.constant 0 : index
    %c0_115 = arith.constant 0 : index
    %259 = vector.load %arg30[%c0_114, %c0_115] : memref<64x32xf32, #tpu.memory_space<vmem>>, vector<64x32xf32>
    %cst_116 = arith.constant dense<0.000000e+00> : vector<16x32xf32>
    %260 = tpu.matmul %258, %259, %cst_116 {dimension_numbers = #tpu.dot_dimension_numbers<[1], [0], [0], [1], [0, 0, 1, 1], [], []>} : vector<16x64xf32>, vector<64x32xf32>, vector<16x32xf32> -> vector<16x32xf32>
    %c0_117 = arith.constant 0 : index
    %c0_118 = arith.constant 0 : index
    %261 = vector.load %arg31[%c0_117, %c0_118] : memref<1x32xf32, #tpu.memory_space<vmem>>, vector<1x32xf32>
    %262 = vector.broadcast %261 : vector<1x32xf32> to vector<16x32xf32>
    %263 = arith.addf %260, %262 : vector<16x32xf32>
    %264 = arith.addf %251, %263 : vector<16x32xf32>
    %cst_119 = arith.constant dense<0.000000e+00> : vector<16xf32>
    %265 = vector.multi_reduction <add>, %264, %cst_119 [1] : vector<16x32xf32> to vector<16xf32>
    %266 = vector.shape_cast %265 : vector<16xf32> to vector<16x1xf32>
    %cst_120 = arith.constant 3.200000e+01 : f32
    %267 = vector.broadcast %cst_120 : f32 to vector<16x1xf32>
    %268 = arith.divf %266, %267 : vector<16x1xf32>
    %269 = vector.broadcast %268 : vector<16x1xf32> to vector<16x32xf32>
    %270 = arith.subf %264, %269 : vector<16x32xf32>
    %271 = arith.mulf %270, %270 : vector<16x32xf32>
    %cst_121 = arith.constant dense<0.000000e+00> : vector<16xf32>
    %272 = vector.multi_reduction <add>, %271, %cst_121 [1] : vector<16x32xf32> to vector<16xf32>
    %273 = vector.shape_cast %272 : vector<16xf32> to vector<16x1xf32>
    %cst_122 = arith.constant 3.200000e+01 : f32
    %274 = vector.broadcast %cst_122 : f32 to vector<16x1xf32>
    %275 = arith.divf %273, %274 : vector<16x1xf32>
    %cst_123 = arith.constant 9.99999974E-6 : f32
    %276 = vector.broadcast %cst_123 : f32 to vector<16x1xf32>
    %277 = arith.addf %275, %276 : vector<16x1xf32>
    %278 = math.rsqrt %277 : vector<16x1xf32>
    %279 = vector.broadcast %278 : vector<16x1xf32> to vector<16x32xf32>
    %280 = arith.mulf %270, %279 : vector<16x32xf32>
    %c0_124 = arith.constant 0 : index
    %c0_125 = arith.constant 0 : index
    %281 = vector.load %arg36[%c0_124, %c0_125] : memref<1x32xf32, #tpu.memory_space<vmem>>, vector<1x32xf32>
    %282 = vector.broadcast %281 : vector<1x32xf32> to vector<16x32xf32>
    %283 = arith.mulf %280, %282 : vector<16x32xf32>
    %c0_126 = arith.constant 0 : index
    %c0_127 = arith.constant 0 : index
    %284 = vector.load %arg37[%c0_126, %c0_127] : memref<1x32xf32, #tpu.memory_space<vmem>>, vector<1x32xf32>
    %285 = vector.broadcast %284 : vector<1x32xf32> to vector<16x32xf32>
    %286 = arith.addf %283, %285 : vector<16x32xf32>
    %287 = vector.shape_cast %286 : vector<16x32xf32> to vector<2x8x32xf32>
    %288 = arith.addf %287, %2 : vector<2x8x32xf32>
    %289 = vector.shape_cast %286 : vector<16x32xf32> to vector<2x8x32xf32>
    %c0_128 = arith.constant 0 : index
    %c0_129 = arith.constant 0 : index
    %290 = vector.load %arg26[%c0_128, %c0_129] : memref<16x32xf32, #tpu.memory_space<vmem>>, vector<16x32xf32>
    %291 = vector.shape_cast %130 : vector<2x64x32xf32> to vector<128x32xf32>
    %c0_130 = arith.constant 0 : index
    %c0_131 = arith.constant 0 : index
    %292 = vector.load %arg20[%c0_130, %c0_131] : memref<32x16xf32, #tpu.memory_space<vmem>>, vector<32x16xf32>
    %cst_132 = arith.constant dense<0.000000e+00> : vector<128x16xf32>
    %293 = tpu.matmul %291, %292, %cst_132 {dimension_numbers = #tpu.dot_dimension_numbers<[1], [0], [0], [1], [0, 0, 1, 1], [], []>} : vector<128x32xf32>, vector<32x16xf32>, vector<128x16xf32> -> vector<128x16xf32>
    %c0_133 = arith.constant 0 : index
    %c0_134 = arith.constant 0 : index
    %294 = vector.load %arg21[%c0_133, %c0_134] : memref<1x16xf32, #tpu.memory_space<vmem>>, vector<1x16xf32>
    %295 = vector.broadcast %294 : vector<1x16xf32> to vector<128x16xf32>
    %296 = arith.addf %293, %295 : vector<128x16xf32>
    %297 = vector.shape_cast %288 : vector<2x8x32xf32> to vector<16x32xf32>
    %c0_135 = arith.constant 0 : index
    %c0_136 = arith.constant 0 : index
    %298 = vector.load %arg22[%c0_135, %c0_136] : memref<32x16xf32, #tpu.memory_space<vmem>>, vector<32x16xf32>
    %cst_137 = arith.constant dense<0.000000e+00> : vector<16x16xf32>
    %299 = tpu.matmul %297, %298, %cst_137 {dimension_numbers = #tpu.dot_dimension_numbers<[1], [0], [0], [1], [0, 0, 1, 1], [], []>} : vector<16x32xf32>, vector<32x16xf32>, vector<16x16xf32> -> vector<16x16xf32>
    %c0_138 = arith.constant 0 : index
    %c0_139 = arith.constant 0 : index
    %300 = vector.load %arg23[%c0_138, %c0_139] : memref<1x16xf32, #tpu.memory_space<vmem>>, vector<1x16xf32>
    %301 = vector.broadcast %300 : vector<1x16xf32> to vector<16x16xf32>
    %302 = arith.addf %299, %301 : vector<16x16xf32>
    %303 = vector.shape_cast %289 : vector<2x8x32xf32> to vector<16x32xf32>
    %c0_140 = arith.constant 0 : index
    %c0_141 = arith.constant 0 : index
    %304 = vector.load %arg24[%c0_140, %c0_141] : memref<32x16xf32, #tpu.memory_space<vmem>>, vector<32x16xf32>
    %cst_142 = arith.constant dense<0.000000e+00> : vector<16x16xf32>
    %305 = tpu.matmul %303, %304, %cst_142 {dimension_numbers = #tpu.dot_dimension_numbers<[1], [0], [0], [1], [0, 0, 1, 1], [], []>} : vector<16x32xf32>, vector<32x16xf32>, vector<16x16xf32> -> vector<16x16xf32>
    %c0_143 = arith.constant 0 : index
    %c0_144 = arith.constant 0 : index
    %306 = vector.load %arg25[%c0_143, %c0_144] : memref<1x16xf32, #tpu.memory_space<vmem>>, vector<1x16xf32>
    %307 = vector.broadcast %306 : vector<1x16xf32> to vector<16x16xf32>
    %308 = arith.addf %305, %307 : vector<16x16xf32>
    %309 = vector.shape_cast %296 : vector<128x16xf32> to vector<2x64x16xf32>
    %310 = vector.shape_cast %302 : vector<16x16xf32> to vector<2x8x16xf32>
    %311 = vector.shape_cast %308 : vector<16x16xf32> to vector<2x8x16xf32>
    %cst_145 = arith.constant 0.000000e+00 : f32
    %312 = vector.broadcast %cst_145 : f32 to vector<128x32xf32>
    %313 = vector.extract_strided_slice %309 {offsets = [0, 0, 0], sizes = [2, 64, 4], strides = [1, 1, 1]} : vector<2x64x16xf32> to vector<2x64x4xf32>
    %314 = vector.extract_strided_slice %310 {offsets = [0, 0, 0], sizes = [2, 8, 4], strides = [1, 1, 1]} : vector<2x8x16xf32> to vector<2x8x4xf32>
    %315 = vector.extract_strided_slice %311 {offsets = [0, 0, 0], sizes = [2, 8, 4], strides = [1, 1, 1]} : vector<2x8x16xf32> to vector<2x8x4xf32>
    "tpu.trace_start"() <{level = 10 : i32, message = "bqd,bkd->bqk"}> : () -> ()
    %cst_146 = arith.constant dense<0.000000e+00> : vector<2x64x8xf32>
    %316 = tpu.matmul %313, %314, %cst_146 {dimension_numbers = #tpu.dot_dimension_numbers<[2], [2], [1], [1], [0, 0, 0, 1, 1, 1], [0], [0]>} : vector<2x64x4xf32>, vector<2x8x4xf32>, vector<2x64x8xf32> -> vector<2x64x8xf32>
    "tpu.trace_stop"() : () -> ()
    %cst_147 = arith.constant dense<0xFF800000> : vector<2x64xf32>
    %317 = vector.multi_reduction <maximumf>, %316, %cst_147 [2] : vector<2x64x8xf32> to vector<2x64xf32>
    %318 = vector.shape_cast %317 : vector<2x64xf32> to vector<2x64x1xf32>
    %319 = vector.broadcast %318 : vector<2x64x1xf32> to vector<2x64x8xf32>
    %320 = arith.subf %316, %319 : vector<2x64x8xf32>
    %321 = math.exp %320 : vector<2x64x8xf32>
    %cst_148 = arith.constant dense<0.000000e+00> : vector<2x64xf32>
    %322 = vector.multi_reduction <add>, %321, %cst_148 [2] : vector<2x64x8xf32> to vector<2x64xf32>
    %323 = vector.shape_cast %322 : vector<2x64xf32> to vector<2x64x1xf32>
    %324 = vector.broadcast %323 : vector<2x64x1xf32> to vector<2x64x8xf32>
    %325 = arith.divf %321, %324 : vector<2x64x8xf32>
    "tpu.trace_start"() <{level = 10 : i32, message = "bqk,bkd->bqd"}> : () -> ()
    %cst_149 = arith.constant dense<0.000000e+00> : vector<2x64x4xf32>
    %326 = tpu.matmul %325, %315, %cst_149 {dimension_numbers = #tpu.dot_dimension_numbers<[2], [1], [1], [2], [0, 0, 0, 1, 1, 2], [0], [0]>} : vector<2x64x8xf32>, vector<2x8x4xf32>, vector<2x64x4xf32> -> vector<2x64x4xf32>
    "tpu.trace_stop"() : () -> ()
    %327 = vector.shape_cast %326 : vector<2x64x4xf32> to vector<128x4xf32>
    %328 = vector.extract_strided_slice %290 {offsets = [0, 0], sizes = [4, 32], strides = [1, 1]} : vector<16x32xf32> to vector<4x32xf32>
    %cst_150 = arith.constant dense<0.000000e+00> : vector<128x32xf32>
    %329 = tpu.matmul %327, %328, %cst_150 {dimension_numbers = #tpu.dot_dimension_numbers<[1], [0], [0], [1], [0, 0, 1, 1], [], []>} : vector<128x4xf32>, vector<4x32xf32>, vector<128x32xf32> -> vector<128x32xf32>
    %330 = arith.addf %312, %329 : vector<128x32xf32>
    %331 = vector.extract_strided_slice %309 {offsets = [0, 0, 4], sizes = [2, 64, 4], strides = [1, 1, 1]} : vector<2x64x16xf32> to vector<2x64x4xf32>
    %332 = vector.extract_strided_slice %310 {offsets = [0, 0, 4], sizes = [2, 8, 4], strides = [1, 1, 1]} : vector<2x8x16xf32> to vector<2x8x4xf32>
    %333 = vector.extract_strided_slice %311 {offsets = [0, 0, 4], sizes = [2, 8, 4], strides = [1, 1, 1]} : vector<2x8x16xf32> to vector<2x8x4xf32>
    "tpu.trace_start"() <{level = 10 : i32, message = "bqd,bkd->bqk"}> : () -> ()
    %cst_151 = arith.constant dense<0.000000e+00> : vector<2x64x8xf32>
    %334 = tpu.matmul %331, %332, %cst_151 {dimension_numbers = #tpu.dot_dimension_numbers<[2], [2], [1], [1], [0, 0, 0, 1, 1, 1], [0], [0]>} : vector<2x64x4xf32>, vector<2x8x4xf32>, vector<2x64x8xf32> -> vector<2x64x8xf32>
    "tpu.trace_stop"() : () -> ()
    %cst_152 = arith.constant dense<0xFF800000> : vector<2x64xf32>
    %335 = vector.multi_reduction <maximumf>, %334, %cst_152 [2] : vector<2x64x8xf32> to vector<2x64xf32>
    %336 = vector.shape_cast %335 : vector<2x64xf32> to vector<2x64x1xf32>
    %337 = vector.broadcast %336 : vector<2x64x1xf32> to vector<2x64x8xf32>
    %338 = arith.subf %334, %337 : vector<2x64x8xf32>
    %339 = math.exp %338 : vector<2x64x8xf32>
    %cst_153 = arith.constant dense<0.000000e+00> : vector<2x64xf32>
    %340 = vector.multi_reduction <add>, %339, %cst_153 [2] : vector<2x64x8xf32> to vector<2x64xf32>
    %341 = vector.shape_cast %340 : vector<2x64xf32> to vector<2x64x1xf32>
    %342 = vector.broadcast %341 : vector<2x64x1xf32> to vector<2x64x8xf32>
    %343 = arith.divf %339, %342 : vector<2x64x8xf32>
    "tpu.trace_start"() <{level = 10 : i32, message = "bqk,bkd->bqd"}> : () -> ()
    %cst_154 = arith.constant dense<0.000000e+00> : vector<2x64x4xf32>
    %344 = tpu.matmul %343, %333, %cst_154 {dimension_numbers = #tpu.dot_dimension_numbers<[2], [1], [1], [2], [0, 0, 0, 1, 1, 2], [0], [0]>} : vector<2x64x8xf32>, vector<2x8x4xf32>, vector<2x64x4xf32> -> vector<2x64x4xf32>
    "tpu.trace_stop"() : () -> ()
    %345 = vector.shape_cast %344 : vector<2x64x4xf32> to vector<128x4xf32>
    %346 = vector.extract_strided_slice %290 {offsets = [4, 0], sizes = [4, 32], strides = [1, 1]} : vector<16x32xf32> to vector<4x32xf32>
    %cst_155 = arith.constant dense<0.000000e+00> : vector<128x32xf32>
    %347 = tpu.matmul %345, %346, %cst_155 {dimension_numbers = #tpu.dot_dimension_numbers<[1], [0], [0], [1], [0, 0, 1, 1], [], []>} : vector<128x4xf32>, vector<4x32xf32>, vector<128x32xf32> -> vector<128x32xf32>
    %348 = arith.addf %330, %347 : vector<128x32xf32>
    %349 = vector.extract_strided_slice %309 {offsets = [0, 0, 8], sizes = [2, 64, 4], strides = [1, 1, 1]} : vector<2x64x16xf32> to vector<2x64x4xf32>
    %350 = vector.extract_strided_slice %310 {offsets = [0, 0, 8], sizes = [2, 8, 4], strides = [1, 1, 1]} : vector<2x8x16xf32> to vector<2x8x4xf32>
    %351 = vector.extract_strided_slice %311 {offsets = [0, 0, 8], sizes = [2, 8, 4], strides = [1, 1, 1]} : vector<2x8x16xf32> to vector<2x8x4xf32>
    "tpu.trace_start"() <{level = 10 : i32, message = "bqd,bkd->bqk"}> : () -> ()
    %cst_156 = arith.constant dense<0.000000e+00> : vector<2x64x8xf32>
    %352 = tpu.matmul %349, %350, %cst_156 {dimension_numbers = #tpu.dot_dimension_numbers<[2], [2], [1], [1], [0, 0, 0, 1, 1, 1], [0], [0]>} : vector<2x64x4xf32>, vector<2x8x4xf32>, vector<2x64x8xf32> -> vector<2x64x8xf32>
    "tpu.trace_stop"() : () -> ()
    %cst_157 = arith.constant dense<0xFF800000> : vector<2x64xf32>
    %353 = vector.multi_reduction <maximumf>, %352, %cst_157 [2] : vector<2x64x8xf32> to vector<2x64xf32>
    %354 = vector.shape_cast %353 : vector<2x64xf32> to vector<2x64x1xf32>
    %355 = vector.broadcast %354 : vector<2x64x1xf32> to vector<2x64x8xf32>
    %356 = arith.subf %352, %355 : vector<2x64x8xf32>
    %357 = math.exp %356 : vector<2x64x8xf32>
    %cst_158 = arith.constant dense<0.000000e+00> : vector<2x64xf32>
    %358 = vector.multi_reduction <add>, %357, %cst_158 [2] : vector<2x64x8xf32> to vector<2x64xf32>
    %359 = vector.shape_cast %358 : vector<2x64xf32> to vector<2x64x1xf32>
    %360 = vector.broadcast %359 : vector<2x64x1xf32> to vector<2x64x8xf32>
    %361 = arith.divf %357, %360 : vector<2x64x8xf32>
    "tpu.trace_start"() <{level = 10 : i32, message = "bqk,bkd->bqd"}> : () -> ()
    %cst_159 = arith.constant dense<0.000000e+00> : vector<2x64x4xf32>
    %362 = tpu.matmul %361, %351, %cst_159 {dimension_numbers = #tpu.dot_dimension_numbers<[2], [1], [1], [2], [0, 0, 0, 1, 1, 2], [0], [0]>} : vector<2x64x8xf32>, vector<2x8x4xf32>, vector<2x64x4xf32> -> vector<2x64x4xf32>
    "tpu.trace_stop"() : () -> ()
    %363 = vector.shape_cast %362 : vector<2x64x4xf32> to vector<128x4xf32>
    %364 = vector.extract_strided_slice %290 {offsets = [8, 0], sizes = [4, 32], strides = [1, 1]} : vector<16x32xf32> to vector<4x32xf32>
    %cst_160 = arith.constant dense<0.000000e+00> : vector<128x32xf32>
    %365 = tpu.matmul %363, %364, %cst_160 {dimension_numbers = #tpu.dot_dimension_numbers<[1], [0], [0], [1], [0, 0, 1, 1], [], []>} : vector<128x4xf32>, vector<4x32xf32>, vector<128x32xf32> -> vector<128x32xf32>
    %366 = arith.addf %348, %365 : vector<128x32xf32>
    %367 = vector.extract_strided_slice %309 {offsets = [0, 0, 12], sizes = [2, 64, 4], strides = [1, 1, 1]} : vector<2x64x16xf32> to vector<2x64x4xf32>
    %368 = vector.extract_strided_slice %310 {offsets = [0, 0, 12], sizes = [2, 8, 4], strides = [1, 1, 1]} : vector<2x8x16xf32> to vector<2x8x4xf32>
    %369 = vector.extract_strided_slice %311 {offsets = [0, 0, 12], sizes = [2, 8, 4], strides = [1, 1, 1]} : vector<2x8x16xf32> to vector<2x8x4xf32>
    "tpu.trace_start"() <{level = 10 : i32, message = "bqd,bkd->bqk"}> : () -> ()
    %cst_161 = arith.constant dense<0.000000e+00> : vector<2x64x8xf32>
    %370 = tpu.matmul %367, %368, %cst_161 {dimension_numbers = #tpu.dot_dimension_numbers<[2], [2], [1], [1], [0, 0, 0, 1, 1, 1], [0], [0]>} : vector<2x64x4xf32>, vector<2x8x4xf32>, vector<2x64x8xf32> -> vector<2x64x8xf32>
    "tpu.trace_stop"() : () -> ()
    %cst_162 = arith.constant dense<0xFF800000> : vector<2x64xf32>
    %371 = vector.multi_reduction <maximumf>, %370, %cst_162 [2] : vector<2x64x8xf32> to vector<2x64xf32>
    %372 = vector.shape_cast %371 : vector<2x64xf32> to vector<2x64x1xf32>
    %373 = vector.broadcast %372 : vector<2x64x1xf32> to vector<2x64x8xf32>
    %374 = arith.subf %370, %373 : vector<2x64x8xf32>
    %375 = math.exp %374 : vector<2x64x8xf32>
    %cst_163 = arith.constant dense<0.000000e+00> : vector<2x64xf32>
    %376 = vector.multi_reduction <add>, %375, %cst_163 [2] : vector<2x64x8xf32> to vector<2x64xf32>
    %377 = vector.shape_cast %376 : vector<2x64xf32> to vector<2x64x1xf32>
    %378 = vector.broadcast %377 : vector<2x64x1xf32> to vector<2x64x8xf32>
    %379 = arith.divf %375, %378 : vector<2x64x8xf32>
    "tpu.trace_start"() <{level = 10 : i32, message = "bqk,bkd->bqd"}> : () -> ()
    %cst_164 = arith.constant dense<0.000000e+00> : vector<2x64x4xf32>
    %380 = tpu.matmul %379, %369, %cst_164 {dimension_numbers = #tpu.dot_dimension_numbers<[2], [1], [1], [2], [0, 0, 0, 1, 1, 2], [0], [0]>} : vector<2x64x8xf32>, vector<2x8x4xf32>, vector<2x64x4xf32> -> vector<2x64x4xf32>
    "tpu.trace_stop"() : () -> ()
    %381 = vector.shape_cast %380 : vector<2x64x4xf32> to vector<128x4xf32>
    %382 = vector.extract_strided_slice %290 {offsets = [12, 0], sizes = [4, 32], strides = [1, 1]} : vector<16x32xf32> to vector<4x32xf32>
    %cst_165 = arith.constant dense<0.000000e+00> : vector<128x32xf32>
    %383 = tpu.matmul %381, %382, %cst_165 {dimension_numbers = #tpu.dot_dimension_numbers<[1], [0], [0], [1], [0, 0, 1, 1], [], []>} : vector<128x4xf32>, vector<4x32xf32>, vector<128x32xf32> -> vector<128x32xf32>
    %384 = arith.addf %366, %383 : vector<128x32xf32>
    %c0_166 = arith.constant 0 : index
    %c0_167 = arith.constant 0 : index
    %385 = vector.load %arg27[%c0_166, %c0_167] : memref<1x32xf32, #tpu.memory_space<vmem>>, vector<1x32xf32>
    %386 = vector.broadcast %385 : vector<1x32xf32> to vector<128x32xf32>
    %387 = arith.addf %384, %386 : vector<128x32xf32>
    %388 = arith.addf %5, %387 : vector<128x32xf32>
    %cst_168 = arith.constant dense<0.000000e+00> : vector<128xf32>
    %389 = vector.multi_reduction <add>, %388, %cst_168 [1] : vector<128x32xf32> to vector<128xf32>
    %390 = vector.shape_cast %389 : vector<128xf32> to vector<128x1xf32>
    %cst_169 = arith.constant 3.200000e+01 : f32
    %391 = vector.broadcast %cst_169 : f32 to vector<128x1xf32>
    %392 = arith.divf %390, %391 : vector<128x1xf32>
    %393 = vector.broadcast %392 : vector<128x1xf32> to vector<128x32xf32>
    %394 = arith.subf %388, %393 : vector<128x32xf32>
    %395 = arith.mulf %394, %394 : vector<128x32xf32>
    %cst_170 = arith.constant dense<0.000000e+00> : vector<128xf32>
    %396 = vector.multi_reduction <add>, %395, %cst_170 [1] : vector<128x32xf32> to vector<128xf32>
    %397 = vector.shape_cast %396 : vector<128xf32> to vector<128x1xf32>
    %cst_171 = arith.constant 3.200000e+01 : f32
    %398 = vector.broadcast %cst_171 : f32 to vector<128x1xf32>
    %399 = arith.divf %397, %398 : vector<128x1xf32>
    %cst_172 = arith.constant 9.99999974E-6 : f32
    %400 = vector.broadcast %cst_172 : f32 to vector<128x1xf32>
    %401 = arith.addf %399, %400 : vector<128x1xf32>
    %402 = math.rsqrt %401 : vector<128x1xf32>
    %403 = vector.broadcast %402 : vector<128x1xf32> to vector<128x32xf32>
    %404 = arith.mulf %394, %403 : vector<128x32xf32>
    %c0_173 = arith.constant 0 : index
    %c0_174 = arith.constant 0 : index
    %405 = vector.load %arg38[%c0_173, %c0_174] : memref<1x32xf32, #tpu.memory_space<vmem>>, vector<1x32xf32>
    %406 = vector.broadcast %405 : vector<1x32xf32> to vector<128x32xf32>
    %407 = arith.mulf %404, %406 : vector<128x32xf32>
    %c0_175 = arith.constant 0 : index
    %c0_176 = arith.constant 0 : index
    %408 = vector.load %arg39[%c0_175, %c0_176] : memref<1x32xf32, #tpu.memory_space<vmem>>, vector<1x32xf32>
    %409 = vector.broadcast %408 : vector<1x32xf32> to vector<128x32xf32>
    %410 = arith.addf %407, %409 : vector<128x32xf32>
    %411 = vector.shape_cast %286 : vector<16x32xf32> to vector<2x8x32xf32>
    %c0_177 = arith.constant 0 : index
    %c0_178 = arith.constant 0 : index
    %c0_179 = arith.constant 0 : index
    %412 = vector.load %arg40[%c0_177, %c0_178, %c0_179] : memref<2x8x32xf32, #tpu.memory_space<vmem>>, vector<2x8x32xf32>
    tpu.vector_store %arg40[%c0_177, %c0_178, %c0_179], %411 {strides = array<i32>} : memref<2x8x32xf32, #tpu.memory_space<vmem>>, vector<2x8x32xf32>,
    %413 = vector.shape_cast %410 : vector<128x32xf32> to vector<2x64x32xf32>
    %c0_180 = arith.constant 0 : index
    %c0_181 = arith.constant 0 : index
    %c0_182 = arith.constant 0 : index
    %414 = vector.load %arg41[%c0_180, %c0_181, %c0_182] : memref<2x64x32xf32, #tpu.memory_space<vmem>>, vector<2x64x32xf32>
    tpu.vector_store %arg41[%c0_180, %c0_181, %c0_182], %413 {strides = array<i32>} : memref<2x64x32xf32, #tpu.memory_space<vmem>>, vector<2x64x32xf32>,
    return
  }
}

</mosaic_0001>

<llo_original>
// kernel: two_way_attention_block.1
$region0: #{two_way_attention_block.1}
  #allocation0 [shape = 'u32[]', space=smem, size = 0x4, offset = 0x4, fixed_abs, tag = 'smem constant byte address 0x4 - core index']
  #allocation1 [shape = 'u32[144,128]{1,0:T(1,128)}', space=vmem, size = 0x12000, scoped, tag = 'internal scratch']
  %s0 = inlined_call_operand.smem [shape: u32[42], index: -1, kind: input, shape index: {}]
  %s1 = sld [smem:[%s0]]
  %s2 = scalar_lea.smem %s0, 1
  %s3 = sld [smem:[%s2]]
  %s4 = scalar_lea.smem %s0, 2
  %s5 = sld [smem:[%s4]]
  %s6 = scalar_lea.smem %s0, 3
  %s7 = sld [smem:[%s6]]
  %s8 = scalar_lea.smem %s0, 4
  %s9 = sld [smem:[%s8]]
  %s10 = scalar_lea.smem %s0, 5
  %s11 = sld [smem:[%s10]]
  %s12 = scalar_lea.smem %s0, 6
  %s13 = sld [smem:[%s12]]
  %s14 = scalar_lea.smem %s0, 7
  %s15 = sld [smem:[%s14]]
  %s16 = scalar_lea.smem %s0, 8
  %s17 = sld [smem:[%s16]]
  %s18 = scalar_lea.smem %s0, 9
  %s19 = sld [smem:[%s18]]
  %s20 = scalar_lea.smem %s0, 10
  %s21 = sld [smem:[%s20]]
  %s22 = scalar_lea.smem %s0, 11
  %s23 = sld [smem:[%s22]]
  %s24 = scalar_lea.smem %s0, 12
  %s25 = sld [smem:[%s24]]
  %s26 = scalar_lea.smem %s0, 13
  %s27 = sld [smem:[%s26]]
  %s28 = scalar_lea.smem %s0, 14
  %s29 = sld [smem:[%s28]]
  %s30 = scalar_lea.smem %s0, 15
  %s31 = sld [smem:[%s30]]
  %s32 = scalar_lea.smem %s0, 16
  %s33 = sld [smem:[%s32]]
  %s34 = scalar_lea.smem %s0, 17
  %s35 = sld [smem:[%s34]]
  %s36 = scalar_lea.smem %s0, 18
  %s37 = sld [smem:[%s36]]
  %s38 = scalar_lea.smem %s0, 19
  %s39 = sld [smem:[%s38]]
  %s40 = scalar_lea.smem %s0, 20
  %s41 = sld [smem:[%s40]]
  %s42 = scalar_lea.smem %s0, 21
  %s43 = sld [smem:[%s42]]
  %s44 = scalar_lea.smem %s0, 22
  %s45 = sld [smem:[%s44]]
  %s46 = scalar_lea.smem %s0, 23
  %s47 = sld [smem:[%s46]]
  %s48 = scalar_lea.smem %s0, 24
  %s49 = sld [smem:[%s48]]
  %s50 = scalar_lea.smem %s0, 25
  %s51 = sld [smem:[%s50]]
  %s52 = scalar_lea.smem %s0, 26
  %s53 = sld [smem:[%s52]]
  %s54 = scalar_lea.smem %s0, 27
  %s55 = sld [smem:[%s54]]
  %s56 = scalar_lea.smem %s0, 28
  %s57 = sld [smem:[%s56]]
  %s58 = scalar_lea.smem %s0, 29
  %s59 = sld [smem:[%s58]]
  %s60 = scalar_lea.smem %s0, 30
  %s61 = sld [smem:[%s60]]
  %s62 = scalar_lea.smem %s0, 31
  %s63 = sld [smem:[%s62]]
  %s64 = scalar_lea.smem %s0, 32
  %s65 = sld [smem:[%s64]]
  %s66 = scalar_lea.smem %s0, 33
  %s67 = sld [smem:[%s66]]
  %s68 = scalar_lea.smem %s0, 34
  %s69 = sld [smem:[%s68]]
  %s70 = scalar_lea.smem %s0, 35
  %s71 = sld [smem:[%s70]]
  %s72 = scalar_lea.smem %s0, 36
  %s73 = sld [smem:[%s72]]
  %s74 = scalar_lea.smem %s0, 37
  %s75 = sld [smem:[%s74]]
  %s76 = scalar_lea.smem %s0, 38
  %s77 = sld [smem:[%s76]]
  %s78 = scalar_lea.smem %s0, 39
  %s79 = sld [smem:[%s78]]
  %s80 = scalar_lea.smem %s0, 40
  %s81 = sld [smem:[%s80]]
  %s82 = scalar_lea.smem %s0, 41
  %s83 = sld [smem:[%s82]]
  %84 = xla_tuple %s81, %s83
  %s85 = sld [smem:[#allocation0]]
  $region178: #{two_way_attention_block.1} parent=0
    _
  %s87 = ssub.s32 1, %s85
  %s88 = scalar_select 0, %s87, %s85
  $region1: #{two_way_attention_block.1} parent=0
    #allocation2 [shape = 'u8[8192]{0}', space=vmem, size = 0x2000, scoped, tag = 'output window, operand 0, single buffered']
    #allocation3 [shape = 's32[1]{0}', space=sflag, size = 0x4, scoped, tag = 'scoped memory for two_way_attention_block.1']
    %89 = vsyncpa [#allocation3], 0
    // Predicated region
    $region2: #{two_way_attention_block.1} parent=1 // pred_check
      _
    $region3: #{two_way_attention_block.1} parent=1 // pred_check_branch
      %91 = sbr.rel (0) target = $region5
    $region4: #{two_way_attention_block.1} parent=1 // pred_region
      _
    $region5: #{two_way_attention_block.1} parent=1 // pred_fallthru
      _
    // Predicated region
    $region6: #{two_way_attention_block.1} parent=1 // pred_check
      _
    $region7: #{two_way_attention_block.1} parent=1 // pred_check_branch
      %93 = sbr.rel (0) target = $region9
    $region8: #{two_way_attention_block.1} parent=1 // pred_region
      _
    $region9: #{two_way_attention_block.1} parent=1 // pred_fallthru
      _
    // Predicated region
    $region10: #{two_way_attention_block.1} parent=1 // pred_check
      _
    $region11: #{two_way_attention_block.1} parent=1 // pred_check_branch
      %95 = sbr.rel (0) target = $region13
    $region12: #{two_way_attention_block.1} parent=1 // pred_region
      _
    $region13: #{two_way_attention_block.1} parent=1 // pred_fallthru
      _
    // Predicated region
    $region14: #{two_way_attention_block.1} parent=1 // pred_check
      _
    $region15: #{two_way_attention_block.1} parent=1 // pred_check_branch
      %97 = sbr.rel (0) target = $region17
    $region16: #{two_way_attention_block.1} parent=1 // pred_region
      _
    $region17: #{two_way_attention_block.1} parent=1 // pred_fallthru
      _
    // Predicated region
    $region18: #{two_way_attention_block.1} parent=1 // pred_check
      _
    $region19: #{two_way_attention_block.1} parent=1 // pred_check_branch
      %99 = sbr.rel (0) target = $region21
    $region20: #{two_way_attention_block.1} parent=1 // pred_region
      _
    $region21: #{two_way_attention_block.1} parent=1 // pred_fallthru
      _
    // Predicated region
    $region22: #{two_way_attention_block.1} parent=1 // pred_check
      _
    $region23: #{two_way_attention_block.1} parent=1 // pred_check_branch
      %101 = sbr.rel (0) target = $region25
    $region24: #{two_way_attention_block.1} parent=1 // pred_region
      _
    $region25: #{two_way_attention_block.1} parent=1 // pred_fallthru
      _
    // Predicated region
    $region26: #{two_way_attention_block.1} parent=1 // pred_check
      _
    $region27: #{two_way_attention_block.1} parent=1 // pred_check_branch
      %103 = sbr.rel (0) target = $region29
    $region28: #{two_way_attention_block.1} parent=1 // pred_region
      _
    $region29: #{two_way_attention_block.1} parent=1 // pred_fallthru
      _
    // Predicated region
    $region30: #{two_way_attention_block.1} parent=1 // pred_check
      _
    $region31: #{two_way_attention_block.1} parent=1 // pred_check_branch
      %105 = sbr.rel (0) target = $region33
    $region32: #{two_way_attention_block.1} parent=1 // pred_region
      _
    $region33: #{two_way_attention_block.1} parent=1 // pred_fallthru
      _
    // Predicated region
    $region34: #{two_way_attention_block.1} parent=1 // pred_check
      _
    $region35: #{two_way_attention_block.1} parent=1 // pred_check_branch
      %107 = sbr.rel (0) target = $region37
    $region36: #{two_way_attention_block.1} parent=1 // pred_region
      _
    $region37: #{two_way_attention_block.1} parent=1 // pred_fallthru
      _
    // Predicated region
    $region38: #{two_way_attention_block.1} parent=1 // pred_check
      _
    $region39: #{two_way_attention_block.1} parent=1 // pred_check_branch
      %109 = sbr.rel (0) target = $region41
    $region40: #{two_way_attention_block.1} parent=1 // pred_region
      _
    $region41: #{two_way_attention_block.1} parent=1 // pred_fallthru
      _
    // Predicated region
    $region42: #{two_way_attention_block.1} parent=1 // pred_check
      _
    $region43: #{two_way_attention_block.1} parent=1 // pred_check_branch
      %111 = sbr.rel (0) target = $region45
    $region44: #{two_way_attention_block.1} parent=1 // pred_region
      _
    $region45: #{two_way_attention_block.1} parent=1 // pred_fallthru
      _
    // Predicated region
    $region46: #{two_way_attention_block.1} parent=1 // pred_check
      _
    $region47: #{two_way_attention_block.1} parent=1 // pred_check_branch
      %113 = sbr.rel (0) target = $region49
    $region48: #{two_way_attention_block.1} parent=1 // pred_region
      _
    $region49: #{two_way_attention_block.1} parent=1 // pred_fallthru
      _
    // Predicated region
    $region50: #{two_way_attention_block.1} parent=1 // pred_check
      _
    $region51: #{two_way_attention_block.1} parent=1 // pred_check_branch
      %115 = sbr.rel (0) target = $region53
    $region52: #{two_way_attention_block.1} parent=1 // pred_region
      _
    $region53: #{two_way_attention_block.1} parent=1 // pred_fallthru
      _
    // Predicated region
    $region54: #{two_way_attention_block.1} parent=1 // pred_check
      _
    $region55: #{two_way_attention_block.1} parent=1 // pred_check_branch
      %117 = sbr.rel (0) target = $region57
    $region56: #{two_way_attention_block.1} parent=1 // pred_region
      _
    $region57: #{two_way_attention_block.1} parent=1 // pred_fallthru
      _
    // Predicated region
    $region58: #{two_way_attention_block.1} parent=1 // pred_check
      _
    $region59: #{two_way_attention_block.1} parent=1 // pred_check_branch
      %119 = sbr.rel (0) target = $region61
    $region60: #{two_way_attention_block.1} parent=1 // pred_region
      _
    $region61: #{two_way_attention_block.1} parent=1 // pred_fallthru
      _
    // Predicated region
    $region62: #{two_way_attention_block.1} parent=1 // pred_check
      _
    $region63: #{two_way_attention_block.1} parent=1 // pred_check_branch
      %121 = sbr.rel (0) target = $region65
    $region64: #{two_way_attention_block.1} parent=1 // pred_region
      _
    $region65: #{two_way_attention_block.1} parent=1 // pred_fallthru
      _
    // Predicated region
    $region66: #{two_way_attention_block.1} parent=1 // pred_check
      _
    $region67: #{two_way_attention_block.1} parent=1 // pred_check_branch
      %123 = sbr.rel (0) target = $region69
    $region68: #{two_way_attention_block.1} parent=1 // pred_region
      _
    $region69: #{two_way_attention_block.1} parent=1 // pred_fallthru
      _
    // Predicated region
    $region70: #{two_way_attention_block.1} parent=1 // pred_check
      _
    $region71: #{two_way_attention_block.1} parent=1 // pred_check_branch
      %125 = sbr.rel (0) target = $region73
    $region72: #{two_way_attention_block.1} parent=1 // pred_region
      _
    $region73: #{two_way_attention_block.1} parent=1 // pred_fallthru
      _
    // Predicated region
    $region74: #{two_way_attention_block.1} parent=1 // pred_check
      _
    $region75: #{two_way_attention_block.1} parent=1 // pred_check_branch
      %127 = sbr.rel (0) target = $region77
    $region76: #{two_way_attention_block.1} parent=1 // pred_region
      _
    $region77: #{two_way_attention_block.1} parent=1 // pred_fallthru
      _
    // Predicated region
    $region78: #{two_way_attention_block.1} parent=1 // pred_check
      _
    $region79: #{two_way_attention_block.1} parent=1 // pred_check_branch
      %129 = sbr.rel (0) target = $region81
    $region80: #{two_way_attention_block.1} parent=1 // pred_region
      _
    $region81: #{two_way_attention_block.1} parent=1 // pred_fallthru
      _
    // Predicated region
    $region82: #{two_way_attention_block.1} parent=1 // pred_check
      _
    $region83: #{two_way_attention_block.1} parent=1 // pred_check_branch
      %131 = sbr.rel (0) target = $region85
    $region84: #{two_way_attention_block.1} parent=1 // pred_region
      _
    $region85: #{two_way_attention_block.1} parent=1 // pred_fallthru
      _
    // Predicated region
    $region86: #{two_way_attention_block.1} parent=1 // pred_check
      _
    $region87: #{two_way_attention_block.1} parent=1 // pred_check_branch
      %133 = sbr.rel (0) target = $region89
    $region88: #{two_way_attention_block.1} parent=1 // pred_region
      _
    $region89: #{two_way_attention_block.1} parent=1 // pred_fallthru
      _
    // Predicated region
    $region90: #{two_way_attention_block.1} parent=1 // pred_check
      _
    $region91: #{two_way_attention_block.1} parent=1 // pred_check_branch
      %135 = sbr.rel (0) target = $region93
    $region92: #{two_way_attention_block.1} parent=1 // pred_region
      _
    $region93: #{two_way_attention_block.1} parent=1 // pred_fallthru
      _
    // Predicated region
    $region94: #{two_way_attention_block.1} parent=1 // pred_check
      _
    $region95: #{two_way_attention_block.1} parent=1 // pred_check_branch
      %137 = sbr.rel (0) target = $region97
    $region96: #{two_way_attention_block.1} parent=1 // pred_region
      _
    $region97: #{two_way_attention_block.1} parent=1 // pred_fallthru
      _
    // Predicated region
    $region98: #{two_way_attention_block.1} parent=1 // pred_check
      _
    $region99: #{two_way_attention_block.1} parent=1 // pred_check_branch
      %139 = sbr.rel (0) target = $region101
    $region100: #{two_way_attention_block.1} parent=1 // pred_region
      _
    $region101: #{two_way_attention_block.1} parent=1 // pred_fallthru
      _
    // Predicated region
    $region102: #{two_way_attention_block.1} parent=1 // pred_check
      _
    $region103: #{two_way_attention_block.1} parent=1 // pred_check_branch
      %141 = sbr.rel (0) target = $region105
    $region104: #{two_way_attention_block.1} parent=1 // pred_region
      _
    $region105: #{two_way_attention_block.1} parent=1 // pred_fallthru
      _
    // Predicated region
    $region106: #{two_way_attention_block.1} parent=1 // pred_check
      _
    $region107: #{two_way_attention_block.1} parent=1 // pred_check_branch
      %143 = sbr.rel (0) target = $region109
    $region108: #{two_way_attention_block.1} parent=1 // pred_region
      _
    $region109: #{two_way_attention_block.1} parent=1 // pred_fallthru
      _
    // Predicated region
    $region110: #{two_way_attention_block.1} parent=1 // pred_check
      _
    $region111: #{two_way_attention_block.1} parent=1 // pred_check_branch
      %145 = sbr.rel (0) target = $region113
    $region112: #{two_way_attention_block.1} parent=1 // pred_region
      _
    $region113: #{two_way_attention_block.1} parent=1 // pred_fallthru
      _
    // Predicated region
    $region114: #{two_way_attention_block.1} parent=1 // pred_check
      _
    $region115: #{two_way_attention_block.1} parent=1 // pred_check_branch
      %147 = sbr.rel (0) target = $region117
    $region116: #{two_way_attention_block.1} parent=1 // pred_region
      _
    $region117: #{two_way_attention_block.1} parent=1 // pred_fallthru
      _
    // Predicated region
    $region118: #{two_way_attention_block.1} parent=1 // pred_check
      _
    $region119: #{two_way_attention_block.1} parent=1 // pred_check_branch
      %149 = sbr.rel (0) target = $region121
    $region120: #{two_way_attention_block.1} parent=1 // pred_region
      _
    $region121: #{two_way_attention_block.1} parent=1 // pred_fallthru
      _
    // Predicated region
    $region122: #{two_way_attention_block.1} parent=1 // pred_check
      _
    $region123: #{two_way_attention_block.1} parent=1 // pred_check_branch
      %151 = sbr.rel (0) target = $region125
    $region124: #{two_way_attention_block.1} parent=1 // pred_region
      _
    $region125: #{two_way_attention_block.1} parent=1 // pred_fallthru
      _
    // Predicated region
    $region126: #{two_way_attention_block.1} parent=1 // pred_check
      _
    $region127: #{two_way_attention_block.1} parent=1 // pred_check_branch
      %153 = sbr.rel (0) target = $region129
    $region128: #{two_way_attention_block.1} parent=1 // pred_region
      _
    $region129: #{two_way_attention_block.1} parent=1 // pred_fallthru
      _
    // Predicated region
    $region130: #{two_way_attention_block.1} parent=1 // pred_check
      _
    $region131: #{two_way_attention_block.1} parent=1 // pred_check_branch
      %155 = sbr.rel (0) target = $region133
    $region132: #{two_way_attention_block.1} parent=1 // pred_region
      _
    $region133: #{two_way_attention_block.1} parent=1 // pred_fallthru
      _
    // Predicated region
    $region134: #{two_way_attention_block.1} parent=1 // pred_check
      _
    $region135: #{two_way_attention_block.1} parent=1 // pred_check_branch
      %157 = sbr.rel (0) target = $region137
    $region136: #{two_way_attention_block.1} parent=1 // pred_region
      _
    $region137: #{two_way_attention_block.1} parent=1 // pred_fallthru
      _
    // Predicated region
    $region138: #{two_way_attention_block.1} parent=1 // pred_check
      _
    $region139: #{two_way_attention_block.1} parent=1 // pred_check_branch
      %159 = sbr.rel (0) target = $region141
    $region140: #{two_way_attention_block.1} parent=1 // pred_region
      _
    $region141: #{two_way_attention_block.1} parent=1 // pred_fallthru
      _
    // Predicated region
    $region142: #{two_way_attention_block.1} parent=1 // pred_check
      _
    $region143: #{two_way_attention_block.1} parent=1 // pred_check_branch
      %161 = sbr.rel (0) target = $region145
    $region144: #{two_way_attention_block.1} parent=1 // pred_region
      _
    $region145: #{two_way_attention_block.1} parent=1 // pred_fallthru
      _
    // Predicated region
    $region146: #{two_way_attention_block.1} parent=1 // pred_check
      _
    $region147: #{two_way_attention_block.1} parent=1 // pred_check_branch
      %163 = sbr.rel (0) target = $region149
    $region148: #{two_way_attention_block.1} parent=1 // pred_region
      _
    $region149: #{two_way_attention_block.1} parent=1 // pred_fallthru
      _
    // Predicated region
    $region150: #{two_way_attention_block.1} parent=1 // pred_check
      _
    $region151: #{two_way_attention_block.1} parent=1 // pred_check_branch
      %165 = sbr.rel (0) target = $region153
    $region152: #{two_way_attention_block.1} parent=1 // pred_region
      _
    $region153: #{two_way_attention_block.1} parent=1 // pred_fallthru
      _
    // Predicated region
    $region154: #{two_way_attention_block.1} parent=1 // pred_check
      _
    $region155: #{two_way_attention_block.1} parent=1 // pred_check_branch
      %167 = sbr.rel (0) target = $region157
    $region156: #{two_way_attention_block.1} parent=1 // pred_region
      _
    $region157: #{two_way_attention_block.1} parent=1 // pred_fallthru
      _
    // Predicated region
    $region158: #{two_way_attention_block.1} parent=1 // pred_check
      _
    $region159: #{two_way_attention_block.1} parent=1 // pred_check_branch
      %169 = sbr.rel (0) target = $region161
    $region160: #{two_way_attention_block.1} parent=1 // pred_region
      _
    $region161: #{two_way_attention_block.1} parent=1 // pred_fallthru
      _
    %v170 = vld [vmem:[%s1] sm:$0xff]
    %v171 = vld [vmem:[%s1 + $0x8] sm:$0xff]
    %v172 = vld [vmem:[%s3] sm:$0xff]
    %v173 = vld [vmem:[%s3 + $0x8] sm:$0xff]
    %v174 = vld [vmem:[%s3 + $0x10] sm:$0xff]
    %v175 = vld [vmem:[%s3 + $0x18] sm:$0xff]
    %v176 = vld [vmem:[%s3 + $0x20] sm:$0xff]
    %v177 = vld [vmem:[%s3 + $0x28] sm:$0xff]
    %v178 = vld [vmem:[%s3 + $0x30] sm:$0xff]
    %v179 = vld [vmem:[%s3 + $0x38] sm:$0xff]
    %v180 = vld [vmem:[%s3 + $0x40] sm:$0xff]
    %v181 = vld [vmem:[%s3 + $0x48] sm:$0xff]
    %v182 = vld [vmem:[%s3 + $0x50] sm:$0xff]
    %v183 = vld [vmem:[%s3 + $0x58] sm:$0xff]
    %v184 = vld [vmem:[%s3 + $0x60] sm:$0xff]
    %v185 = vld [vmem:[%s3 + $0x68] sm:$0xff]
    %v186 = vld [vmem:[%s3 + $0x70] sm:$0xff]
    %v187 = vld [vmem:[%s3 + $0x78] sm:$0xff]
    %v188 = vld [vmem:[%s5] sm:$0xff]
    %v189 = vld [vmem:[%s5 + $0x8] sm:$0xff]
    %v190 = vld [vmem:[%s7] sm:$0xff]
    %v191 = vld [vmem:[%s7 + $0x8] sm:$0xff]
    %v192 = vld [vmem:[%s7 + $0x10] sm:$0xff]
    %v193 = vld [vmem:[%s7 + $0x18] sm:$0xff]
    %v194 = vld [vmem:[%s7 + $0x20] sm:$0xff]
    %v195 = vld [vmem:[%s7 + $0x28] sm:$0xff]
    %v196 = vld [vmem:[%s7 + $0x30] sm:$0xff]
    %v197 = vld [vmem:[%s7 + $0x38] sm:$0xff]
    %v198 = vld [vmem:[%s7 + $0x40] sm:$0xff]
    %v199 = vld [vmem:[%s7 + $0x48] sm:$0xff]
    %v200 = vld [vmem:[%s7 + $0x50] sm:$0xff]
    %v201 = vld [vmem:[%s7 + $0x58] sm:$0xff]
    %v202 = vld [vmem:[%s7 + $0x60] sm:$0xff]
    %v203 = vld [vmem:[%s7 + $0x68] sm:$0xff]
    %v204 = vld [vmem:[%s7 + $0x70] sm:$0xff]
    %v205 = vld [vmem:[%s7 + $0x78] sm:$0xff]
    %v206 = vadd.f32 %v170, %v188
    %v207 = vadd.f32 %v171, %v189
    %v208 = vld [vmem:[%s21] sm:$0xff]
    %v209 = vld [vmem:[%s21 + $0x8] sm:$0xff]
    %v210 = vld [vmem:[%s21 + $0x10] sm:$0xff]
    %v211 = vld [vmem:[%s21 + $0x18] sm:$0xff]
    %v212 = vld [vmem:[%s9] sm:$0xff]
    %v213 = vld [vmem:[%s9 + $0x8] sm:$0xff]
    %v214 = vld [vmem:[%s9 + $0x10] sm:$0xff]
    %v215 = vld [vmem:[%s9 + $0x18] sm:$0xff]
    %v216 = vld [vmem:[%s11] sm:$0x1]
    %v218 = vlaneseq
    %v219 = vshrl.u32 %v218, 7
    %v220 = vsub.s32 0, %v219
    %v221 = vrot.slane %v216, %v220
    %vm223 = vcmask 261120
    %v225 = vsel %vm223, %v206, 0
    %v228 = vsel %vm223, %v207, 0
    %230 = vmatprep.subr.mxu0 0.0
    %231 = vmatpush1.msra.mxu0 %v212
    %232 = vmatprep.subr.mxu0 0.0
    %233 = vmatpush1.msra.mxu0 %v213
    %234 = vmatprep.subr.mxu0 0.0
    %235 = vmatpush1.msra.mxu0 %v214
    %236 = vmatprep.subr.mxu0 0.0
    %237 = vmatpush1.msra.mxu0 %v215
    %238 = vmatprep.subr.mxu0 0.0
    %239 = vmatpush1.msra.mxu0 0.0
    %240 = vmatprep.subr.mxu0 0.0
    %241 = vmatpush1.msra.mxu0 0.0
    %242 = vmatprep.subr.mxu0 0.0
    %243 = vmatpush1.msra.mxu0 0.0
    %244 = vmatprep.subr.mxu0 0.0
    %245 = vmatpush1.msra.mxu0 0.0
    %246 = vmatprep.subr.mxu0 0.0
    %247 = vmatpush1.msra.mxu0 0.0
    %248 = vmatprep.subr.mxu0 0.0
    %249 = vmatpush1.msra.mxu0 0.0
    %250 = vmatprep.subr.mxu0 0.0
    %251 = vmatpush1.msra.mxu0 0.0
    %252 = vmatprep.subr.mxu0 0.0
    %253 = vmatpush1.msra.mxu0 0.0
    %254 = vmatprep.subr.mxu0 0.0
    %255 = vmatpush1.msra.mxu0 0.0
    %256 = vmatprep.subr.mxu0 0.0
    %257 = vmatpush1.msra.mxu0 0.0
    %258 = vmatprep.subr.mxu0 0.0
    %259 = vmatpush1.msra.mxu0 0.0
    %260 = vmatprep.subr.mxu0 0.0
    %261 = vmatpush1.msra.mxu0 0.0
    %262 = vmatprep.subr.mxu0 0.0
    %263 = vmatpush1.msra.mxu0 0.0
    %264 = vmatprep.subr.mxu0 0.0
    %265 = vmatpush1.msra.mxu0 0.0
    %266 = vmatprep.subr.mxu0 0.0
    %267 = vmatpush1.msra.mxu0 0.0
    %268 = vmatprep.subr.mxu0 0.0
    %269 = vmatpush1.msra.mxu0 0.0
    %270 = vmatprep.subr.mxu0 0.0
    %271 = vmatpush1.msra.mxu0 0.0
    %272 = vmatprep.subr.mxu0 0.0
    %273 = vmatpush1.msra.mxu0 0.0
    %274 = vmatprep.subr.mxu0 0.0
    %275 = vmatpush1.msra.mxu0 0.0
    %276 = vmatprep.subr.mxu0 0.0
    %277 = vmatpush1.msra.mxu0 0.0
    %278 = vmatprep.subr.mxu0 0.0
    %279 = vmatpush1.msra.mxu0 0.0
    %280 = vmatprep.subr.mxu0 0.0
    %281 = vmatpush1.msra.mxu0 0.0
    %282 = vmatprep.subr.mxu0 0.0
    %283 = vmatpush1.msra.mxu0 0.0
    %284 = vmatprep.subr.mxu0 0.0
    %285 = vmatpush1.msra.mxu0 0.0
    %286 = vmatprep.subr.mxu0 0.0
    %287 = vmatpush1.msra.mxu0 0.0
    %288 = vmatprep.subr.mxu0 0.0
    %289 = vmatpush1.msra.mxu0 0.0
    %290 = vmatprep.subr.mxu0 0.0
    %291 = vmatpush1.msra.mxu0 0.0
    %292 = vmatprep.subr.mxu0 0.0
    %293 = vmatpush1.msra.mxu0 0.0
    %294 = vmatprep.mubr.f32.mxu0 0.0
    %295 = vmatmul.mubr.f32.gmra.mrb[0].mxu0 %v225
    %v296 = vpop.f32.mrb[0].mxu0
    %v297 = vadd.f32 %v221, %v296
    %v298 = vpop.f32.mrb[0].mxu0
    %299 = vmatprep.mubr.f32.mxu0 0.0
    %300 = vmatmul.mubr.f32.gmra.mrb[0].mxu0 %v228
    %v301 = vpop.f32.mrb[0].mxu0
    %v302 = vadd.f32 %v221, %v301
    %v303 = vpop.f32.mrb[0].mxu0
    %304 = vdwg.mxu0
    %v305 = vld [vmem:[%s13] sm:$0xff]
    %v306 = vld [vmem:[%s13 + $0x8] sm:$0xff]
    %v307 = vld [vmem:[%s13 + $0x10] sm:$0xff]
    %v308 = vld [vmem:[%s13 + $0x18] sm:$0xff]
    %v309 = vld [vmem:[%s15] sm:$0x1]
    %v311 = vlaneseq
    %v312 = vshrl.u32 %v311, 7
    %v313 = vsub.s32 0, %v312
    %v314 = vrot.slane %v309, %v313
    %316 = vmatprep.subr.mxu0 0.0
    %317 = vmatpush1.msra.mxu0 %v305
    %318 = vmatprep.subr.mxu0 0.0
    %319 = vmatpush1.msra.mxu0 %v306
    %320 = vmatprep.subr.mxu0 0.0
    %321 = vmatpush1.msra.mxu0 %v307
    %322 = vmatprep.subr.mxu0 0.0
    %323 = vmatpush1.msra.mxu0 %v308
    %324 = vmatprep.subr.mxu0 0.0
    %325 = vmatpush1.msra.mxu0 0.0
    %326 = vmatprep.subr.mxu0 0.0
    %327 = vmatpush1.msra.mxu0 0.0
    %328 = vmatprep.subr.mxu0 0.0
    %329 = vmatpush1.msra.mxu0 0.0
    %330 = vmatprep.subr.mxu0 0.0
    %331 = vmatpush1.msra.mxu0 0.0
    %332 = vmatprep.subr.mxu0 0.0
    %333 = vmatpush1.msra.mxu0 0.0
    %334 = vmatprep.subr.mxu0 0.0
    %335 = vmatpush1.msra.mxu0 0.0
    %336 = vmatprep.subr.mxu0 0.0
    %337 = vmatpush1.msra.mxu0 0.0
    %338 = vmatprep.subr.mxu0 0.0
    %339 = vmatpush1.msra.mxu0 0.0
    %340 = vmatprep.subr.mxu0 0.0
    %341 = vmatpush1.msra.mxu0 0.0
    %342 = vmatprep.subr.mxu0 0.0
    %343 = vmatpush1.msra.mxu0 0.0
    %344 = vmatprep.subr.mxu0 0.0
    %345 = vmatpush1.msra.mxu0 0.0
    %346 = vmatprep.subr.mxu0 0.0
    %347 = vmatpush1.msra.mxu0 0.0
    %348 = vmatprep.subr.mxu0 0.0
    %349 = vmatpush1.msra.mxu0 0.0
    %350 = vmatprep.subr.mxu0 0.0
    %351 = vmatpush1.msra.mxu0 0.0
    %352 = vmatprep.subr.mxu0 0.0
    %353 = vmatpush1.msra.mxu0 0.0
    %354 = vmatprep.subr.mxu0 0.0
    %355 = vmatpush1.msra.mxu0 0.0
    %356 = vmatprep.subr.mxu0 0.0
    %357 = vmatpush1.msra.mxu0 0.0
    %358 = vmatprep.subr.mxu0 0.0
    %359 = vmatpush1.msra.mxu0 0.0
    %360 = vmatprep.subr.mxu0 0.0
    %361 = vmatpush1.msra.mxu0 0.0
    %362 = vmatprep.subr.mxu0 0.0
    %363 = vmatpush1.msra.mxu0 0.0
    %364 = vmatprep.subr.mxu0 0.0
    %365 = vmatpush1.msra.mxu0 0.0
    %366 = vmatprep.subr.mxu0 0.0
    %367 = vmatpush1.msra.mxu0 0.0
    %368 = vmatprep.subr.mxu0 0.0
    %369 = vmatpush1.msra.mxu0 0.0
    %370 = vmatprep.subr.mxu0 0.0
    %371 = vmatpush1.msra.mxu0 0.0
    %372 = vmatprep.subr.mxu0 0.0
    %373 = vmatpush1.msra.mxu0 0.0
    %374 = vmatprep.subr.mxu0 0.0
    %375 = vmatpush1.msra.mxu0 0.0
    %376 = vmatprep.subr.mxu0 0.0
    %377 = vmatpush1.msra.mxu0 0.0
    %378 = vmatprep.subr.mxu0 0.0
    %379 = vmatpush1.msra.mxu0 0.0
    %380 = vmatprep.mubr.f32.mxu0 0.0
    %381 = vmatmul.mubr.f32.gmra.mrb[0].mxu0 %v225
    %v382 = vpop.f32.mrb[0].mxu0
    %v383 = vadd.f32 %v314, %v382
    %v384 = vpop.f32.mrb[0].mxu0
    %385 = vmatprep.mubr.f32.mxu0 0.0
    %386 = vmatmul.mubr.f32.gmra.mrb[0].mxu0 %v228
    %v387 = vpop.f32.mrb[0].mxu0
    %v388 = vadd.f32 %v314, %v387
    %v389 = vpop.f32.mrb[0].mxu0
    %390 = vdwg.mxu0
    %v391 = vld [vmem:[%s17] sm:$0xff]
    %v392 = vld [vmem:[%s17 + $0x8] sm:$0xff]
    %v393 = vld [vmem:[%s17 + $0x10] sm:$0xff]
    %v394 = vld [vmem:[%s17 + $0x18] sm:$0xff]
    %v395 = vld [vmem:[%s19] sm:$0x1]
    %v397 = vlaneseq
    %v398 = vshrl.u32 %v397, 7
    %v399 = vsub.s32 0, %v398
    %v400 = vrot.slane %v395, %v399
    %v403 = vsel %vm223, %v170, 0
    %v406 = vsel %vm223, %v171, 0
    %408 = vmatprep.subr.mxu0 0.0
    %409 = vmatpush1.msra.mxu0 %v391
    %410 = vmatprep.subr.mxu0 0.0
    %411 = vmatpush1.msra.mxu0 %v392
    %412 = vmatprep.subr.mxu0 0.0
    %413 = vmatpush1.msra.mxu0 %v393
    %414 = vmatprep.subr.mxu0 0.0
    %415 = vmatpush1.msra.mxu0 %v394
    %416 = vmatprep.subr.mxu0 0.0
    %417 = vmatpush1.msra.mxu0 0.0
    %418 = vmatprep.subr.mxu0 0.0
    %419 = vmatpush1.msra.mxu0 0.0
    %420 = vmatprep.subr.mxu0 0.0
    %421 = vmatpush1.msra.mxu0 0.0
    %422 = vmatprep.subr.mxu0 0.0
    %423 = vmatpush1.msra.mxu0 0.0
    %424 = vmatprep.subr.mxu0 0.0
    %425 = vmatpush1.msra.mxu0 0.0
    %426 = vmatprep.subr.mxu0 0.0
    %427 = vmatpush1.msra.mxu0 0.0
    %428 = vmatprep.subr.mxu0 0.0
    %429 = vmatpush1.msra.mxu0 0.0
    %430 = vmatprep.subr.mxu0 0.0
    %431 = vmatpush1.msra.mxu0 0.0
    %432 = vmatprep.subr.mxu0 0.0
    %433 = vmatpush1.msra.mxu0 0.0
    %434 = vmatprep.subr.mxu0 0.0
    %435 = vmatpush1.msra.mxu0 0.0
    %436 = vmatprep.subr.mxu0 0.0
    %437 = vmatpush1.msra.mxu0 0.0
    %438 = vmatprep.subr.mxu0 0.0
    %439 = vmatpush1.msra.mxu0 0.0
    %440 = vmatprep.subr.mxu0 0.0
    %441 = vmatpush1.msra.mxu0 0.0
    %442 = vmatprep.subr.mxu0 0.0
    %443 = vmatpush1.msra.mxu0 0.0
    %444 = vmatprep.subr.mxu0 0.0
    %445 = vmatpush1.msra.mxu0 0.0
    %446 = vmatprep.subr.mxu0 0.0
    %447 = vmatpush1.msra.mxu0 0.0
    %448 = vmatprep.subr.mxu0 0.0
    %449 = vmatpush1.msra.mxu0 0.0
    %450 = vmatprep.subr.mxu0 0.0
    %451 = vmatpush1.msra.mxu0 0.0
    %452 = vmatprep.subr.mxu0 0.0
    %453 = vmatpush1.msra.mxu0 0.0
    %454 = vmatprep.subr.mxu0 0.0
    %455 = vmatpush1.msra.mxu0 0.0
    %456 = vmatprep.subr.mxu0 0.0
    %457 = vmatpush1.msra.mxu0 0.0
    %458 = vmatprep.subr.mxu0 0.0
    %459 = vmatpush1.msra.mxu0 0.0
    %460 = vmatprep.subr.mxu0 0.0
    %461 = vmatpush1.msra.mxu0 0.0
    %462 = vmatprep.subr.mxu0 0.0
    %463 = vmatpush1.msra.mxu0 0.0
    %464 = vmatprep.subr.mxu0 0.0
    %465 = vmatpush1.msra.mxu0 0.0
    %466 = vmatprep.subr.mxu0 0.0
    %467 = vmatpush1.msra.mxu0 0.0
    %468 = vmatprep.subr.mxu0 0.0
    %469 = vmatpush1.msra.mxu0 0.0
    %470 = vmatprep.subr.mxu0 0.0
    %471 = vmatpush1.msra.mxu0 0.0
    %472 = vmatprep.mubr.f32.mxu0 0.0
    %473 = vmatmul.mubr.f32.gmra.mrb[0].mxu0 %v403
    %v474 = vpop.f32.mrb[0].mxu0
    %v475 = vadd.f32 %v400, %v474
    %v476 = vpop.f32.mrb[0].mxu0
    %477 = vmatprep.mubr.f32.mxu0 0.0
    %478 = vmatmul.mubr.f32.gmra.mrb[0].mxu0 %v406
    %v479 = vpop.f32.mrb[0].mxu0
    %v480 = vadd.f32 %v400, %v479
    %v481 = vpop.f32.mrb[0].mxu0
    %482 = vdwg.mxu0
    %vm483 = vcmask 64512
    %v485 = vsel %vm483, %v297, 0
    %v488 = vsel %vm483, %v383, 0
    %490 = vmatprep.subr.mxu0 0.0
    %491 = vmatpush1.xpose.msra.mxu0 %v488
    %492 = vmatprep.subr.mxu0 0.0
    %493 = vmatpush1.xpose.msra.mxu0 0.0
    %494 = vmatprep.subr.mxu0 0.0
    %495 = vmatpush1.xpose.msra.mxu0 0.0
    %496 = vmatprep.subr.mxu0 0.0
    %497 = vmatpush1.xpose.msra.mxu0 0.0
    %498 = vmatprep.subr.mxu0 0.0
    %499 = vmatpush1.xpose.msra.mxu0 0.0
    %500 = vmatprep.subr.mxu0 0.0
    %501 = vmatpush1.xpose.msra.mxu0 0.0
    %502 = vmatprep.subr.mxu0 0.0
    %503 = vmatpush1.xpose.msra.mxu0 0.0
    %504 = vmatprep.subr.mxu0 0.0
    %505 = vmatpush1.xpose.msra.mxu0 0.0
    %506 = vmatprep.subr.mxu0 0.0
    %507 = vmatpush1.xpose.msra.mxu0 0.0
    %508 = vmatprep.subr.mxu0 0.0
    %509 = vmatpush1.xpose.msra.mxu0 0.0
    %510 = vmatprep.subr.mxu0 0.0
    %511 = vmatpush1.xpose.msra.mxu0 0.0
    %512 = vmatprep.subr.mxu0 0.0
    %513 = vmatpush1.xpose.msra.mxu0 0.0
    %514 = vmatprep.subr.mxu0 0.0
    %515 = vmatpush1.xpose.msra.mxu0 0.0
    %516 = vmatprep.subr.mxu0 0.0
    %517 = vmatpush1.xpose.msra.mxu0 0.0
    %518 = vmatprep.subr.mxu0 0.0
    %519 = vmatpush1.xpose.msra.mxu0 0.0
    %520 = vmatprep.subr.mxu0 0.0
    %521 = vmatpush1.xpose.msra.mxu0 0.0
    %522 = vmatprep.subr.mxu0 0.0
    %523 = vmatpush1.xpose.msra.mxu0 0.0
    %524 = vmatprep.subr.mxu0 0.0
    %525 = vmatpush1.xpose.msra.mxu0 0.0
    %526 = vmatprep.subr.mxu0 0.0
    %527 = vmatpush1.xpose.msra.mxu0 0.0
    %528 = vmatprep.subr.mxu0 0.0
    %529 = vmatpush1.xpose.msra.mxu0 0.0
    %530 = vmatprep.subr.mxu0 0.0
    %531 = vmatpush1.xpose.msra.mxu0 0.0
    %532 = vmatprep.subr.mxu0 0.0
    %533 = vmatpush1.xpose.msra.mxu0 0.0
    %534 = vmatprep.subr.mxu0 0.0
    %535 = vmatpush1.xpose.msra.mxu0 0.0
    %536 = vmatprep.subr.mxu0 0.0
    %537 = vmatpush1.xpose.msra.mxu0 0.0
    %538 = vmatprep.subr.mxu0 0.0
    %539 = vmatpush1.xpose.msra.mxu0 0.0
    %540 = vmatprep.subr.mxu0 0.0
    %541 = vmatpush1.xpose.msra.mxu0 0.0
    %542 = vmatprep.subr.mxu0 0.0
    %543 = vmatpush1.xpose.msra.mxu0 0.0
    %544 = vmatprep.subr.mxu0 0.0
    %545 = vmatpush1.xpose.msra.mxu0 0.0
    %546 = vmatprep.subr.mxu0 0.0
    %547 = vmatpush1.xpose.msra.mxu0 0.0
    %548 = vmatprep.subr.mxu0 0.0
    %549 = vmatpush1.xpose.msra.mxu0 0.0
    %550 = vmatprep.subr.mxu0 0.0
    %551 = vmatpush1.xpose.msra.mxu0 0.0
    %552 = vmatprep.subr.mxu0 0.0
    %553 = vmatpush1.xpose.msra.mxu0 0.0
    %554 = vmatprep.mubr.f32.mxu0 0.0
    %555 = vmatmul.mubr.f32.gmra.mrb[0].mxu0 %v485
    %v556 = vpop.f32.mrb[0].mxu0
    %v557 = vadd.f32 0.0, %v556
    %v558 = vpop.f32.mrb[0].mxu0
    %559 = vdwg.mxu0
    %v561 = vsel %vm483, %v302, 0
    %v564 = vsel %vm483, %v388, 0
    %566 = vmatprep.subr.mxu0 0.0
    %567 = vmatpush1.xpose.msra.mxu0 %v564
    %568 = vmatprep.subr.mxu0 0.0
    %569 = vmatpush1.xpose.msra.mxu0 0.0
    %570 = vmatprep.subr.mxu0 0.0
    %571 = vmatpush1.xpose.msra.mxu0 0.0
    %572 = vmatprep.subr.mxu0 0.0
    %573 = vmatpush1.xpose.msra.mxu0 0.0
    %574 = vmatprep.subr.mxu0 0.0
    %575 = vmatpush1.xpose.msra.mxu0 0.0
    %576 = vmatprep.subr.mxu0 0.0
    %577 = vmatpush1.xpose.msra.mxu0 0.0
    %578 = vmatprep.subr.mxu0 0.0
    %579 = vmatpush1.xpose.msra.mxu0 0.0
    %580 = vmatprep.subr.mxu0 0.0
    %581 = vmatpush1.xpose.msra.mxu0 0.0
    %582 = vmatprep.subr.mxu0 0.0
    %583 = vmatpush1.xpose.msra.mxu0 0.0
    %584 = vmatprep.subr.mxu0 0.0
    %585 = vmatpush1.xpose.msra.mxu0 0.0
    %586 = vmatprep.subr.mxu0 0.0
    %587 = vmatpush1.xpose.msra.mxu0 0.0
    %588 = vmatprep.subr.mxu0 0.0
    %589 = vmatpush1.xpose.msra.mxu0 0.0
    %590 = vmatprep.subr.mxu0 0.0
    %591 = vmatpush1.xpose.msra.mxu0 0.0
    %592 = vmatprep.subr.mxu0 0.0
    %593 = vmatpush1.xpose.msra.mxu0 0.0
    %594 = vmatprep.subr.mxu0 0.0
    %595 = vmatpush1.xpose.msra.mxu0 0.0
    %596 = vmatprep.subr.mxu0 0.0
    %597 = vmatpush1.xpose.msra.mxu0 0.0
    %598 = vmatprep.subr.mxu0 0.0
    %599 = vmatpush1.xpose.msra.mxu0 0.0
    %600 = vmatprep.subr.mxu0 0.0
    %601 = vmatpush1.xpose.msra.mxu0 0.0
    %602 = vmatprep.subr.mxu0 0.0
    %603 = vmatpush1.xpose.msra.mxu0 0.0
    %604 = vmatprep.subr.mxu0 0.0
    %605 = vmatpush1.xpose.msra.mxu0 0.0
    %606 = vmatprep.subr.mxu0 0.0
    %607 = vmatpush1.xpose.msra.mxu0 0.0
    %608 = vmatprep.subr.mxu0 0.0
    %609 = vmatpush1.xpose.msra.mxu0 0.0
    %610 = vmatprep.subr.mxu0 0.0
    %611 = vmatpush1.xpose.msra.mxu0 0.0
    %612 = vmatprep.subr.mxu0 0.0
    %613 = vmatpush1.xpose.msra.mxu0 0.0
    %614 = vmatprep.subr.mxu0 0.0
    %615 = vmatpush1.xpose.msra.mxu0 0.0
    %616 = vmatprep.subr.mxu0 0.0
    %617 = vmatpush1.xpose.msra.mxu0 0.0
    %618 = vmatprep.subr.mxu0 0.0
    %619 = vmatpush1.xpose.msra.mxu0 0.0
    %620 = vmatprep.subr.mxu0 0.0
    %621 = vmatpush1.xpose.msra.mxu0 0.0
    %622 = vmatprep.subr.mxu0 0.0
    %623 = vmatpush1.xpose.msra.mxu0 0.0
    %624 = vmatprep.subr.mxu0 0.0
    %625 = vmatpush1.xpose.msra.mxu0 0.0
    %626 = vmatprep.subr.mxu0 0.0
    %627 = vmatpush1.xpose.msra.mxu0 0.0
    %628 = vmatprep.subr.mxu0 0.0
    %629 = vmatpush1.xpose.msra.mxu0 0.0
    %630 = vmatprep.mubr.f32.mxu0 0.0
    %631 = vmatmul.mubr.f32.gmra.mrb[0].mxu0 %v561
    %v632 = vpop.f32.mrb[0].mxu0
    %v633 = vadd.f32 0.0, %v632
    %v634 = vpop.f32.mrb[0].mxu0
    %635 = vdwg.mxu0
    %v636 = vsel %vm483, %v557, -inf
    %637 = vmax.xlane.f32.xlu0 %v636
    %v638 = vpop.xlane.xlu0 %637
    %v639 = vsel %vm483, %v633, -inf
    %640 = vmax.xlane.f32.xlu0 %v639
    %v641 = vpop.xlane.xlu0 %640
    %v642 = vsub.f32 %v557, %v638
    %v643 = vsub.f32 %v633, %v641
    %v644 = vmul.f32 %v642, 1.442695
    %v645 = vpow.pop %v644
    %v646 = vmul.f32 %v643, 1.442695
    %v647 = vpow.pop %v646
    %v648 = vsel %vm483, %v645, 0.0
    %649 = vadd.xlane.f32.xlu0 %v648
    %v650 = vpop.xlane.xlu0 %649
    %v651 = vsel %vm483, %v647, 0.0
    %652 = vadd.xlane.f32.xlu0 %v651
    %v653 = vpop.xlane.xlu0 %652
    %v654 = vrcp.pop %v650
    %v655 = vmul.f32 %v645, %v654
    %v656 = vrcp.pop %v653
    %v657 = vmul.f32 %v647, %v656
    %v659 = vsel %vm483, %v655, 0
    %661 = vmatprep.subr.mxu0 0.0
    %662 = vmatpush1.msra.mxu0 %v475
    %663 = vmatprep.subr.mxu0 0.0
    %664 = vmatpush1.msra.mxu0 0.0
    %665 = vmatprep.subr.mxu0 0.0
    %666 = vmatpush1.msra.mxu0 0.0
    %667 = vmatprep.subr.mxu0 0.0
    %668 = vmatpush1.msra.mxu0 0.0
    %669 = vmatprep.subr.mxu0 0.0
    %670 = vmatpush1.msra.mxu0 0.0
    %671 = vmatprep.subr.mxu0 0.0
    %672 = vmatpush1.msra.mxu0 0.0
    %673 = vmatprep.subr.mxu0 0.0
    %674 = vmatpush1.msra.mxu0 0.0
    %675 = vmatprep.subr.mxu0 0.0
    %676 = vmatpush1.msra.mxu0 0.0
    %677 = vmatprep.subr.mxu0 0.0
    %678 = vmatpush1.msra.mxu0 0.0
    %679 = vmatprep.subr.mxu0 0.0
    %680 = vmatpush1.msra.mxu0 0.0
    %681 = vmatprep.subr.mxu0 0.0
    %682 = vmatpush1.msra.mxu0 0.0
    %683 = vmatprep.subr.mxu0 0.0
    %684 = vmatpush1.msra.mxu0 0.0
    %685 = vmatprep.subr.mxu0 0.0
    %686 = vmatpush1.msra.mxu0 0.0
    %687 = vmatprep.subr.mxu0 0.0
    %688 = vmatpush1.msra.mxu0 0.0
    %689 = vmatprep.subr.mxu0 0.0
    %690 = vmatpush1.msra.mxu0 0.0
    %691 = vmatprep.subr.mxu0 0.0
    %692 = vmatpush1.msra.mxu0 0.0
    %693 = vmatprep.subr.mxu0 0.0
    %694 = vmatpush1.msra.mxu0 0.0
    %695 = vmatprep.subr.mxu0 0.0
    %696 = vmatpush1.msra.mxu0 0.0
    %697 = vmatprep.subr.mxu0 0.0
    %698 = vmatpush1.msra.mxu0 0.0
    %699 = vmatprep.subr.mxu0 0.0
    %700 = vmatpush1.msra.mxu0 0.0
    %701 = vmatprep.subr.mxu0 0.0
    %702 = vmatpush1.msra.mxu0 0.0
    %703 = vmatprep.subr.mxu0 0.0
    %704 = vmatpush1.msra.mxu0 0.0
    %705 = vmatprep.subr.mxu0 0.0
    %706 = vmatpush1.msra.mxu0 0.0
    %707 = vmatprep.subr.mxu0 0.0
    %708 = vmatpush1.msra.mxu0 0.0
    %709 = vmatprep.subr.mxu0 0.0
    %710 = vmatpush1.msra.mxu0 0.0
    %711 = vmatprep.subr.mxu0 0.0
    %712 = vmatpush1.msra.mxu0 0.0
    %713 = vmatprep.subr.mxu0 0.0
    %714 = vmatpush1.msra.mxu0 0.0
    %715 = vmatprep.subr.mxu0 0.0
    %716 = vmatpush1.msra.mxu0 0.0
    %717 = vmatprep.subr.mxu0 0.0
    %718 = vmatpush1.msra.mxu0 0.0
    %719 = vmatprep.subr.mxu0 0.0
    %720 = vmatpush1.msra.mxu0 0.0
    %721 = vmatprep.subr.mxu0 0.0
    %722 = vmatpush1.msra.mxu0 0.0
    %723 = vmatprep.subr.mxu0 0.0
    %724 = vmatpush1.msra.mxu0 0.0
    %725 = vmatprep.mubr.f32.mxu0 0.0
    %726 = vmatmul.mubr.f32.gmra.mrb[0].mxu0 %v659
    %v727 = vpop.f32.mrb[0].mxu0
    %v728 = vadd.f32 0.0, %v727
    %v729 = vpop.f32.mrb[0].mxu0
    %730 = vdwg.mxu0
    %v732 = vsel %vm483, %v657, 0
    %734 = vmatprep.subr.mxu0 0.0
    %735 = vmatpush1.msra.mxu0 %v480
    %736 = vmatprep.subr.mxu0 0.0
    %737 = vmatpush1.msra.mxu0 0.0
    %738 = vmatprep.subr.mxu0 0.0
    %739 = vmatpush1.msra.mxu0 0.0
    %740 = vmatprep.subr.mxu0 0.0
    %741 = vmatpush1.msra.mxu0 0.0
    %742 = vmatprep.subr.mxu0 0.0
    %743 = vmatpush1.msra.mxu0 0.0
    %744 = vmatprep.subr.mxu0 0.0
    %745 = vmatpush1.msra.mxu0 0.0
    %746 = vmatprep.subr.mxu0 0.0
    %747 = vmatpush1.msra.mxu0 0.0
    %748 = vmatprep.subr.mxu0 0.0
    %749 = vmatpush1.msra.mxu0 0.0
    %750 = vmatprep.subr.mxu0 0.0
    %751 = vmatpush1.msra.mxu0 0.0
    %752 = vmatprep.subr.mxu0 0.0
    %753 = vmatpush1.msra.mxu0 0.0
    %754 = vmatprep.subr.mxu0 0.0
    %755 = vmatpush1.msra.mxu0 0.0
    %756 = vmatprep.subr.mxu0 0.0
    %757 = vmatpush1.msra.mxu0 0.0
    %758 = vmatprep.subr.mxu0 0.0
    %759 = vmatpush1.msra.mxu0 0.0
    %760 = vmatprep.subr.mxu0 0.0
    %761 = vmatpush1.msra.mxu0 0.0
    %762 = vmatprep.subr.mxu0 0.0
    %763 = vmatpush1.msra.mxu0 0.0
    %764 = vmatprep.subr.mxu0 0.0
    %765 = vmatpush1.msra.mxu0 0.0
    %766 = vmatprep.subr.mxu0 0.0
    %767 = vmatpush1.msra.mxu0 0.0
    %768 = vmatprep.subr.mxu0 0.0
    %769 = vmatpush1.msra.mxu0 0.0
    %770 = vmatprep.subr.mxu0 0.0
    %771 = vmatpush1.msra.mxu0 0.0
    %772 = vmatprep.subr.mxu0 0.0
    %773 = vmatpush1.msra.mxu0 0.0
    %774 = vmatprep.subr.mxu0 0.0
    %775 = vmatpush1.msra.mxu0 0.0
    %776 = vmatprep.subr.mxu0 0.0
    %777 = vmatpush1.msra.mxu0 0.0
    %778 = vmatprep.subr.mxu0 0.0
    %779 = vmatpush1.msra.mxu0 0.0
    %780 = vmatprep.subr.mxu0 0.0
    %781 = vmatpush1.msra.mxu0 0.0
    %782 = vmatprep.subr.mxu0 0.0
    %783 = vmatpush1.msra.mxu0 0.0
    %784 = vmatprep.subr.mxu0 0.0
    %785 = vmatpush1.msra.mxu0 0.0
    %786 = vmatprep.subr.mxu0 0.0
    %787 = vmatpush1.msra.mxu0 0.0
    %788 = vmatprep.subr.mxu0 0.0
    %789 = vmatpush1.msra.mxu0 0.0
    %790 = vmatprep.subr.mxu0 0.0
    %791 = vmatpush1.msra.mxu0 0.0
    %792 = vmatprep.subr.mxu0 0.0
    %793 = vmatpush1.msra.mxu0 0.0
    %794 = vmatprep.subr.mxu0 0.0
    %795 = vmatpush1.msra.mxu0 0.0
    %796 = vmatprep.subr.mxu0 0.0
    %797 = vmatpush1.msra.mxu0 0.0
    %798 = vmatprep.mubr.f32.mxu0 0.0
    %799 = vmatmul.mubr.f32.gmra.mrb[0].mxu0 %v732
    %v800 = vpop.f32.mrb[0].mxu0
    %v801 = vadd.f32 0.0, %v800
    %v802 = vpop.f32.mrb[0].mxu0
    %803 = vdwg.mxu0
    %804 = vrot.lane.b32.xlu0 %v297, 120
    %v805 = vpop.permute.xlu0 %804
    %806 = vrot.lane.b32.xlu0 %v383, 120
    %v807 = vpop.permute.xlu0 %806
    %v808 = vsel %vm483, %v805, 0
    %v810 = vsel %vm483, %v807, 0
    %812 = vmatprep.subr.mxu0 0.0
    %813 = vmatpush1.xpose.msra.mxu0 %v810
    %814 = vmatprep.subr.mxu0 0.0
    %815 = vmatpush1.xpose.msra.mxu0 0.0
    %816 = vmatprep.subr.mxu0 0.0
    %817 = vmatpush1.xpose.msra.mxu0 0.0
    %818 = vmatprep.subr.mxu0 0.0
    %819 = vmatpush1.xpose.msra.mxu0 0.0
    %820 = vmatprep.subr.mxu0 0.0
    %821 = vmatpush1.xpose.msra.mxu0 0.0
    %822 = vmatprep.subr.mxu0 0.0
    %823 = vmatpush1.xpose.msra.mxu0 0.0
    %824 = vmatprep.subr.mxu0 0.0
    %825 = vmatpush1.xpose.msra.mxu0 0.0
    %826 = vmatprep.subr.mxu0 0.0
    %827 = vmatpush1.xpose.msra.mxu0 0.0
    %828 = vmatprep.subr.mxu0 0.0
    %829 = vmatpush1.xpose.msra.mxu0 0.0
    %830 = vmatprep.subr.mxu0 0.0
    %831 = vmatpush1.xpose.msra.mxu0 0.0
    %832 = vmatprep.subr.mxu0 0.0
    %833 = vmatpush1.xpose.msra.mxu0 0.0
    %834 = vmatprep.subr.mxu0 0.0
    %835 = vmatpush1.xpose.msra.mxu0 0.0
    %836 = vmatprep.subr.mxu0 0.0
    %837 = vmatpush1.xpose.msra.mxu0 0.0
    %838 = vmatprep.subr.mxu0 0.0
    %839 = vmatpush1.xpose.msra.mxu0 0.0
    %840 = vmatprep.subr.mxu0 0.0
    %841 = vmatpush1.xpose.msra.mxu0 0.0
    %842 = vmatprep.subr.mxu0 0.0
    %843 = vmatpush1.xpose.msra.mxu0 0.0
    %844 = vmatprep.subr.mxu0 0.0
    %845 = vmatpush1.xpose.msra.mxu0 0.0
    %846 = vmatprep.subr.mxu0 0.0
    %847 = vmatpush1.xpose.msra.mxu0 0.0
    %848 = vmatprep.subr.mxu0 0.0
    %849 = vmatpush1.xpose.msra.mxu0 0.0
    %850 = vmatprep.subr.mxu0 0.0
    %851 = vmatpush1.xpose.msra.mxu0 0.0
    %852 = vmatprep.subr.mxu0 0.0
    %853 = vmatpush1.xpose.msra.mxu0 0.0
    %854 = vmatprep.subr.mxu0 0.0
    %855 = vmatpush1.xpose.msra.mxu0 0.0
    %856 = vmatprep.subr.mxu0 0.0
    %857 = vmatpush1.xpose.msra.mxu0 0.0
    %858 = vmatprep.subr.mxu0 0.0
    %859 = vmatpush1.xpose.msra.mxu0 0.0
    %860 = vmatprep.subr.mxu0 0.0
    %861 = vmatpush1.xpose.msra.mxu0 0.0
    %862 = vmatprep.subr.mxu0 0.0
    %863 = vmatpush1.xpose.msra.mxu0 0.0
    %864 = vmatprep.subr.mxu0 0.0
    %865 = vmatpush1.xpose.msra.mxu0 0.0
    %866 = vmatprep.subr.mxu0 0.0
    %867 = vmatpush1.xpose.msra.mxu0 0.0
    %868 = vmatprep.subr.mxu0 0.0
    %869 = vmatpush1.xpose.msra.mxu0 0.0
    %870 = vmatprep.subr.mxu0 0.0
    %871 = vmatpush1.xpose.msra.mxu0 0.0
    %872 = vmatprep.subr.mxu0 0.0
    %873 = vmatpush1.xpose.msra.mxu0 0.0
    %874 = vmatprep.subr.mxu0 0.0
    %875 = vmatpush1.xpose.msra.mxu0 0.0
    %876 = vmatprep.mubr.f32.mxu0 0.0
    %877 = vmatmul.mubr.f32.gmra.mrb[0].mxu0 %v808
    %v878 = vpop.f32.mrb[0].mxu0
    %v879 = vadd.f32 0.0, %v878
    %v880 = vpop.f32.mrb[0].mxu0
    %881 = vdwg.mxu0
    %882 = vrot.lane.b32.xlu0 %v302, 120
    %v883 = vpop.permute.xlu0 %882
    %884 = vrot.lane.b32.xlu0 %v388, 120
    %v885 = vpop.permute.xlu0 %884
    %v886 = vsel %vm483, %v883, 0
    %v888 = vsel %vm483, %v885, 0
    %890 = vmatprep.subr.mxu0 0.0
    %891 = vmatpush1.xpose.msra.mxu0 %v888
    %892 = vmatprep.subr.mxu0 0.0
    %893 = vmatpush1.xpose.msra.mxu0 0.0
    %894 = vmatprep.subr.mxu0 0.0
    %895 = vmatpush1.xpose.msra.mxu0 0.0
    %896 = vmatprep.subr.mxu0 0.0
    %897 = vmatpush1.xpose.msra.mxu0 0.0
    %898 = vmatprep.subr.mxu0 0.0
    %899 = vmatpush1.xpose.msra.mxu0 0.0
    %900 = vmatprep.subr.mxu0 0.0
    %901 = vmatpush1.xpose.msra.mxu0 0.0
    %902 = vmatprep.subr.mxu0 0.0
    %903 = vmatpush1.xpose.msra.mxu0 0.0
    %904 = vmatprep.subr.mxu0 0.0
    %905 = vmatpush1.xpose.msra.mxu0 0.0
    %906 = vmatprep.subr.mxu0 0.0
    %907 = vmatpush1.xpose.msra.mxu0 0.0
    %908 = vmatprep.subr.mxu0 0.0
    %909 = vmatpush1.xpose.msra.mxu0 0.0
    %910 = vmatprep.subr.mxu0 0.0
    %911 = vmatpush1.xpose.msra.mxu0 0.0
    %912 = vmatprep.subr.mxu0 0.0
    %913 = vmatpush1.xpose.msra.mxu0 0.0
    %914 = vmatprep.subr.mxu0 0.0
    %915 = vmatpush1.xpose.msra.mxu0 0.0
    %916 = vmatprep.subr.mxu0 0.0
    %917 = vmatpush1.xpose.msra.mxu0 0.0
    %918 = vmatprep.subr.mxu0 0.0
    %919 = vmatpush1.xpose.msra.mxu0 0.0
    %920 = vmatprep.subr.mxu0 0.0
    %921 = vmatpush1.xpose.msra.mxu0 0.0
    %922 = vmatprep.subr.mxu0 0.0
    %923 = vmatpush1.xpose.msra.mxu0 0.0
    %924 = vmatprep.subr.mxu0 0.0
    %925 = vmatpush1.xpose.msra.mxu0 0.0
    %926 = vmatprep.subr.mxu0 0.0
    %927 = vmatpush1.xpose.msra.mxu0 0.0
    %928 = vmatprep.subr.mxu0 0.0
    %929 = vmatpush1.xpose.msra.mxu0 0.0
    %930 = vmatprep.subr.mxu0 0.0
    %931 = vmatpush1.xpose.msra.mxu0 0.0
    %932 = vmatprep.subr.mxu0 0.0
    %933 = vmatpush1.xpose.msra.mxu0 0.0
    %934 = vmatprep.subr.mxu0 0.0
    %935 = vmatpush1.xpose.msra.mxu0 0.0
    %936 = vmatprep.subr.mxu0 0.0
    %937 = vmatpush1.xpose.msra.mxu0 0.0
    %938 = vmatprep.subr.mxu0 0.0
    %939 = vmatpush1.xpose.msra.mxu0 0.0
    %940 = vmatprep.subr.mxu0 0.0
    %941 = vmatpush1.xpose.msra.mxu0 0.0
    %942 = vmatprep.subr.mxu0 0.0
    %943 = vmatpush1.xpose.msra.mxu0 0.0
    %944 = vmatprep.subr.mxu0 0.0
    %945 = vmatpush1.xpose.msra.mxu0 0.0
    %946 = vmatprep.subr.mxu0 0.0
    %947 = vmatpush1.xpose.msra.mxu0 0.0
    %948 = vmatprep.subr.mxu0 0.0
    %949 = vmatpush1.xpose.msra.mxu0 0.0
    %950 = vmatprep.subr.mxu0 0.0
    %951 = vmatpush1.xpose.msra.mxu0 0.0
    %952 = vmatprep.subr.mxu0 0.0
    %953 = vmatpush1.xpose.msra.mxu0 0.0
    %954 = vmatprep.mubr.f32.mxu0 0.0
    %955 = vmatmul.mubr.f32.gmra.mrb[0].mxu0 %v886
    %v956 = vpop.f32.mrb[0].mxu0
    %v957 = vadd.f32 0.0, %v956
    %v958 = vpop.f32.mrb[0].mxu0
    %959 = vdwg.mxu0
    %v960 = vsel %vm483, %v879, -inf
    %961 = vmax.xlane.f32.xlu0 %v960
    %v962 = vpop.xlane.xlu0 %961
    %v963 = vsel %vm483, %v957, -inf
    %964 = vmax.xlane.f32.xlu0 %v963
    %v965 = vpop.xlane.xlu0 %964
    %v966 = vsub.f32 %v879, %v962
    %v967 = vsub.f32 %v957, %v965
    %v968 = vmul.f32 %v966, 1.442695
    %v969 = vpow.pop %v968
    %v970 = vmul.f32 %v967, 1.442695
    %v971 = vpow.pop %v970
    %v972 = vsel %vm483, %v969, 0.0
    %973 = vadd.xlane.f32.xlu0 %v972
    %v974 = vpop.xlane.xlu0 %973
    %v975 = vsel %vm483, %v971, 0.0
    %976 = vadd.xlane.f32.xlu0 %v975
    %v977 = vpop.xlane.xlu0 %976
    %v978 = vrcp.pop %v974
    %v979 = vmul.f32 %v969, %v978
    %v980 = vrcp.pop %v977
    %v981 = vmul.f32 %v971, %v980
    %983 = vrot.lane.b32.xlu0 %v475, 120
    %v984 = vpop.permute.xlu0 %983
    %v987 = vsel %vm483, %v979, 0
    %989 = vmatprep.subr.mxu0 0.0
    %990 = vmatpush1.msra.mxu0 %v984
    %991 = vmatprep.subr.mxu0 0.0
    %992 = vmatpush1.msra.mxu0 0.0
    %993 = vmatprep.subr.mxu0 0.0
    %994 = vmatpush1.msra.mxu0 0.0
    %995 = vmatprep.subr.mxu0 0.0
    %996 = vmatpush1.msra.mxu0 0.0
    %997 = vmatprep.subr.mxu0 0.0
    %998 = vmatpush1.msra.mxu0 0.0
    %999 = vmatprep.subr.mxu0 0.0
    %1000 = vmatpush1.msra.mxu0 0.0
    %1001 = vmatprep.subr.mxu0 0.0
    %1002 = vmatpush1.msra.mxu0 0.0
    %1003 = vmatprep.subr.mxu0 0.0
    %1004 = vmatpush1.msra.mxu0 0.0
    %1005 = vmatprep.subr.mxu0 0.0
    %1006 = vmatpush1.msra.mxu0 0.0
    %1007 = vmatprep.subr.mxu0 0.0
    %1008 = vmatpush1.msra.mxu0 0.0
    %1009 = vmatprep.subr.mxu0 0.0
    %1010 = vmatpush1.msra.mxu0 0.0
    %1011 = vmatprep.subr.mxu0 0.0
    %1012 = vmatpush1.msra.mxu0 0.0
    %1013 = vmatprep.subr.mxu0 0.0
    %1014 = vmatpush1.msra.mxu0 0.0
    %1015 = vmatprep.subr.mxu0 0.0
    %1016 = vmatpush1.msra.mxu0 0.0
    %1017 = vmatprep.subr.mxu0 0.0
    %1018 = vmatpush1.msra.mxu0 0.0
    %1019 = vmatprep.subr.mxu0 0.0
    %1020 = vmatpush1.msra.mxu0 0.0
    %1021 = vmatprep.subr.mxu0 0.0
    %1022 = vmatpush1.msra.mxu0 0.0
    %1023 = vmatprep.subr.mxu0 0.0
    %1024 = vmatpush1.msra.mxu0 0.0
    %1025 = vmatprep.subr.mxu0 0.0
    %1026 = vmatpush1.msra.mxu0 0.0
    %1027 = vmatprep.subr.mxu0 0.0
    %1028 = vmatpush1.msra.mxu0 0.0
    %1029 = vmatprep.subr.mxu0 0.0
    %1030 = vmatpush1.msra.mxu0 0.0
    %1031 = vmatprep.subr.mxu0 0.0
    %1032 = vmatpush1.msra.mxu0 0.0
    %1033 = vmatprep.subr.mxu0 0.0
    %1034 = vmatpush1.msra.mxu0 0.0
    %1035 = vmatprep.subr.mxu0 0.0
    %1036 = vmatpush1.msra.mxu0 0.0
    %1037 = vmatprep.subr.mxu0 0.0
    %1038 = vmatpush1.msra.mxu0 0.0
    %1039 = vmatprep.subr.mxu0 0.0
    %1040 = vmatpush1.msra.mxu0 0.0
    %1041 = vmatprep.subr.mxu0 0.0
    %1042 = vmatpush1.msra.mxu0 0.0
    %1043 = vmatprep.subr.mxu0 0.0
    %1044 = vmatpush1.msra.mxu0 0.0
    %1045 = vmatprep.subr.mxu0 0.0
    %1046 = vmatpush1.msra.mxu0 0.0
    %1047 = vmatprep.subr.mxu0 0.0
    %1048 = vmatpush1.msra.mxu0 0.0
    %1049 = vmatprep.subr.mxu0 0.0
    %1050 = vmatpush1.msra.mxu0 0.0
    %1051 = vmatprep.subr.mxu0 0.0
    %1052 = vmatpush1.msra.mxu0 0.0
    %1053 = vmatprep.mubr.f32.mxu0 0.0
    %1054 = vmatmul.mubr.f32.gmra.mrb[0].mxu0 %v987
    %v1055 = vpop.f32.mrb[0].mxu0
    %v1056 = vadd.f32 0.0, %v1055
    %v1057 = vpop.f32.mrb[0].mxu0
    %1058 = vdwg.mxu0
    %1060 = vrot.lane.b32.xlu0 %v480, 120
    %v1061 = vpop.permute.xlu0 %1060
    %v1064 = vsel %vm483, %v981, 0
    %1066 = vmatprep.subr.mxu0 0.0
    %1067 = vmatpush1.msra.mxu0 %v1061
    %1068 = vmatprep.subr.mxu0 0.0
    %1069 = vmatpush1.msra.mxu0 0.0
    %1070 = vmatprep.subr.mxu0 0.0
    %1071 = vmatpush1.msra.mxu0 0.0
    %1072 = vmatprep.subr.mxu0 0.0
    %1073 = vmatpush1.msra.mxu0 0.0
    %1074 = vmatprep.subr.mxu0 0.0
    %1075 = vmatpush1.msra.mxu0 0.0
    %1076 = vmatprep.subr.mxu0 0.0
    %1077 = vmatpush1.msra.mxu0 0.0
    %1078 = vmatprep.subr.mxu0 0.0
    %1079 = vmatpush1.msra.mxu0 0.0
    %1080 = vmatprep.subr.mxu0 0.0
    %1081 = vmatpush1.msra.mxu0 0.0
    %1082 = vmatprep.subr.mxu0 0.0
    %1083 = vmatpush1.msra.mxu0 0.0
    %1084 = vmatprep.subr.mxu0 0.0
    %1085 = vmatpush1.msra.mxu0 0.0
    %1086 = vmatprep.subr.mxu0 0.0
    %1087 = vmatpush1.msra.mxu0 0.0
    %1088 = vmatprep.subr.mxu0 0.0
    %1089 = vmatpush1.msra.mxu0 0.0
    %1090 = vmatprep.subr.mxu0 0.0
    %1091 = vmatpush1.msra.mxu0 0.0
    %1092 = vmatprep.subr.mxu0 0.0
    %1093 = vmatpush1.msra.mxu0 0.0
    %1094 = vmatprep.subr.mxu0 0.0
    %1095 = vmatpush1.msra.mxu0 0.0
    %1096 = vmatprep.subr.mxu0 0.0
    %1097 = vmatpush1.msra.mxu0 0.0
    %1098 = vmatprep.subr.mxu0 0.0
    %1099 = vmatpush1.msra.mxu0 0.0
    %1100 = vmatprep.subr.mxu0 0.0
    %1101 = vmatpush1.msra.mxu0 0.0
    %1102 = vmatprep.subr.mxu0 0.0
    %1103 = vmatpush1.msra.mxu0 0.0
    %1104 = vmatprep.subr.mxu0 0.0
    %1105 = vmatpush1.msra.mxu0 0.0
    %1106 = vmatprep.subr.mxu0 0.0
    %1107 = vmatpush1.msra.mxu0 0.0
    %1108 = vmatprep.subr.mxu0 0.0
    %1109 = vmatpush1.msra.mxu0 0.0
    %1110 = vmatprep.subr.mxu0 0.0
    %1111 = vmatpush1.msra.mxu0 0.0
    %1112 = vmatprep.subr.mxu0 0.0
    %1113 = vmatpush1.msra.mxu0 0.0
    %1114 = vmatprep.subr.mxu0 0.0
    %1115 = vmatpush1.msra.mxu0 0.0
    %1116 = vmatprep.subr.mxu0 0.0
    %1117 = vmatpush1.msra.mxu0 0.0
    %1118 = vmatprep.subr.mxu0 0.0
    %1119 = vmatpush1.msra.mxu0 0.0
    %1120 = vmatprep.subr.mxu0 0.0
    %1121 = vmatpush1.msra.mxu0 0.0
    %1122 = vmatprep.subr.mxu0 0.0
    %1123 = vmatpush1.msra.mxu0 0.0
    %1124 = vmatprep.subr.mxu0 0.0
    %1125 = vmatpush1.msra.mxu0 0.0
    %1126 = vmatprep.subr.mxu0 0.0
    %1127 = vmatpush1.msra.mxu0 0.0
    %1128 = vmatprep.subr.mxu0 0.0
    %1129 = vmatpush1.msra.mxu0 0.0
    %1130 = vmatprep.mubr.f32.mxu0 0.0
    %1131 = vmatmul.mubr.f32.gmra.mrb[0].mxu0 %v1064
    %v1132 = vpop.f32.mrb[0].mxu0
    %v1133 = vadd.f32 0.0, %v1132
    %v1134 = vpop.f32.mrb[0].mxu0
    %1135 = vdwg.mxu0
    %v1137 = vsel %vm483, %v1056, 0
    %v1140 = vsel %vm483, %v1133, 0
    %1142 = vmatprep.subr.mxu0 0.0
    %1143 = vmatpush1.msra.mxu0 %v209
    %1144 = vmatprep.subr.mxu0 0.0
    %1145 = vmatpush1.msra.mxu0 0.0
    %1146 = vmatprep.subr.mxu0 0.0
    %1147 = vmatpush1.msra.mxu0 0.0
    %1148 = vmatprep.subr.mxu0 0.0
    %1149 = vmatpush1.msra.mxu0 0.0
    %1150 = vmatprep.subr.mxu0 0.0
    %1151 = vmatpush1.msra.mxu0 0.0
    %1152 = vmatprep.subr.mxu0 0.0
    %1153 = vmatpush1.msra.mxu0 0.0
    %1154 = vmatprep.subr.mxu0 0.0
    %1155 = vmatpush1.msra.mxu0 0.0
    %1156 = vmatprep.subr.mxu0 0.0
    %1157 = vmatpush1.msra.mxu0 0.0
    %1158 = vmatprep.subr.mxu0 0.0
    %1159 = vmatpush1.msra.mxu0 0.0
    %1160 = vmatprep.subr.mxu0 0.0
    %1161 = vmatpush1.msra.mxu0 0.0
    %1162 = vmatprep.subr.mxu0 0.0
    %1163 = vmatpush1.msra.mxu0 0.0
    %1164 = vmatprep.subr.mxu0 0.0
    %1165 = vmatpush1.msra.mxu0 0.0
    %1166 = vmatprep.subr.mxu0 0.0
    %1167 = vmatpush1.msra.mxu0 0.0
    %1168 = vmatprep.subr.mxu0 0.0
    %1169 = vmatpush1.msra.mxu0 0.0
    %1170 = vmatprep.subr.mxu0 0.0
    %1171 = vmatpush1.msra.mxu0 0.0
    %1172 = vmatprep.subr.mxu0 0.0
    %1173 = vmatpush1.msra.mxu0 0.0
    %1174 = vmatprep.subr.mxu0 0.0
    %1175 = vmatpush1.msra.mxu0 0.0
    %1176 = vmatprep.subr.mxu0 0.0
    %1177 = vmatpush1.msra.mxu0 0.0
    %1178 = vmatprep.subr.mxu0 0.0
    %1179 = vmatpush1.msra.mxu0 0.0
    %1180 = vmatprep.subr.mxu0 0.0
    %1181 = vmatpush1.msra.mxu0 0.0
    %1182 = vmatprep.subr.mxu0 0.0
    %1183 = vmatpush1.msra.mxu0 0.0
    %1184 = vmatprep.subr.mxu0 0.0
    %1185 = vmatpush1.msra.mxu0 0.0
    %1186 = vmatprep.subr.mxu0 0.0
    %1187 = vmatpush1.msra.mxu0 0.0
    %1188 = vmatprep.subr.mxu0 0.0
    %1189 = vmatpush1.msra.mxu0 0.0
    %1190 = vmatprep.subr.mxu0 0.0
    %1191 = vmatpush1.msra.mxu0 0.0
    %1192 = vmatprep.subr.mxu0 0.0
    %1193 = vmatpush1.msra.mxu0 0.0
    %1194 = vmatprep.subr.mxu0 0.0
    %1195 = vmatpush1.msra.mxu0 0.0
    %1196 = vmatprep.subr.mxu0 0.0
    %1197 = vmatpush1.msra.mxu0 0.0
    %1198 = vmatprep.subr.mxu0 0.0
    %1199 = vmatpush1.msra.mxu0 0.0
    %1200 = vmatprep.subr.mxu0 0.0
    %1201 = vmatpush1.msra.mxu0 0.0
    %1202 = vmatprep.subr.mxu0 0.0
    %1203 = vmatpush1.msra.mxu0 0.0
    %1204 = vmatprep.subr.mxu0 0.0
    %1205 = vmatpush1.msra.mxu0 0.0
    %1206 = vmatprep.mubr.f32.mxu0 0.0
    %1207 = vmatmul.mubr.f32.gmra.mrb[0].mxu0 %v1137
    %v1208 = vpop.f32.mrb[0].mxu0
    %v1209 = vadd.f32 0.0, %v1208
    %v1210 = vpop.f32.mrb[0].mxu0
    %1211 = vmatprep.mubr.f32.mxu0 0.0
    %1212 = vmatmul.mubr.f32.gmra.mrb[0].mxu0 %v1140
    %v1213 = vpop.f32.mrb[0].mxu0
    %v1214 = vadd.f32 0.0, %v1213
    %v1215 = vpop.f32.mrb[0].mxu0
    %1216 = vdwg.mxu0
    %v1218 = vsel %vm483, %v728, 0
    %v1221 = vsel %vm483, %v801, 0
    %1223 = vmatprep.subr.mxu0 0.0
    %1224 = vmatpush1.msra.mxu0 %v208
    %1225 = vmatprep.subr.mxu0 0.0
    %1226 = vmatpush1.msra.mxu0 0.0
    %1227 = vmatprep.subr.mxu0 0.0
    %1228 = vmatpush1.msra.mxu0 0.0
    %1229 = vmatprep.subr.mxu0 0.0
    %1230 = vmatpush1.msra.mxu0 0.0
    %1231 = vmatprep.subr.mxu0 0.0
    %1232 = vmatpush1.msra.mxu0 0.0
    %1233 = vmatprep.subr.mxu0 0.0
    %1234 = vmatpush1.msra.mxu0 0.0
    %1235 = vmatprep.subr.mxu0 0.0
    %1236 = vmatpush1.msra.mxu0 0.0
    %1237 = vmatprep.subr.mxu0 0.0
    %1238 = vmatpush1.msra.mxu0 0.0
    %1239 = vmatprep.subr.mxu0 0.0
    %1240 = vmatpush1.msra.mxu0 0.0
    %1241 = vmatprep.subr.mxu0 0.0
    %1242 = vmatpush1.msra.mxu0 0.0
    %1243 = vmatprep.subr.mxu0 0.0
    %1244 = vmatpush1.msra.mxu0 0.0
    %1245 = vmatprep.subr.mxu0 0.0
    %1246 = vmatpush1.msra.mxu0 0.0
    %1247 = vmatprep.subr.mxu0 0.0
    %1248 = vmatpush1.msra.mxu0 0.0
    %1249 = vmatprep.subr.mxu0 0.0
    %1250 = vmatpush1.msra.mxu0 0.0
    %1251 = vmatprep.subr.mxu0 0.0
    %1252 = vmatpush1.msra.mxu0 0.0
    %1253 = vmatprep.subr.mxu0 0.0
    %1254 = vmatpush1.msra.mxu0 0.0
    %1255 = vmatprep.subr.mxu0 0.0
    %1256 = vmatpush1.msra.mxu0 0.0
    %1257 = vmatprep.subr.mxu0 0.0
    %1258 = vmatpush1.msra.mxu0 0.0
    %1259 = vmatprep.subr.mxu0 0.0
    %1260 = vmatpush1.msra.mxu0 0.0
    %1261 = vmatprep.subr.mxu0 0.0
    %1262 = vmatpush1.msra.mxu0 0.0
    %1263 = vmatprep.subr.mxu0 0.0
    %1264 = vmatpush1.msra.mxu0 0.0
    %1265 = vmatprep.subr.mxu0 0.0
    %1266 = vmatpush1.msra.mxu0 0.0
    %1267 = vmatprep.subr.mxu0 0.0
    %1268 = vmatpush1.msra.mxu0 0.0
    %1269 = vmatprep.subr.mxu0 0.0
    %1270 = vmatpush1.msra.mxu0 0.0
    %1271 = vmatprep.subr.mxu0 0.0
    %1272 = vmatpush1.msra.mxu0 0.0
    %1273 = vmatprep.subr.mxu0 0.0
    %1274 = vmatpush1.msra.mxu0 0.0
    %1275 = vmatprep.subr.mxu0 0.0
    %1276 = vmatpush1.msra.mxu0 0.0
    %1277 = vmatprep.subr.mxu0 0.0
    %1278 = vmatpush1.msra.mxu0 0.0
    %1279 = vmatprep.subr.mxu0 0.0
    %1280 = vmatpush1.msra.mxu0 0.0
    %1281 = vmatprep.subr.mxu0 0.0
    %1282 = vmatpush1.msra.mxu0 0.0
    %1283 = vmatprep.subr.mxu0 0.0
    %1284 = vmatpush1.msra.mxu0 0.0
    %1285 = vmatprep.subr.mxu0 0.0
    %1286 = vmatpush1.msra.mxu0 0.0
    %1287 = vmatprep.mubr.f32.mxu0 0.0
    %1288 = vmatmul.mubr.f32.gmra.mrb[0].mxu0 %v1218
    %v1289 = vpop.f32.mrb[0].mxu0
    %v1290 = vadd.f32 %v1209, %v1289
    %v1291 = vpop.f32.mrb[0].mxu0
    %1292 = vmatprep.mubr.f32.mxu0 0.0
    %1293 = vmatmul.mubr.f32.gmra.mrb[0].mxu0 %v1221
    %v1294 = vpop.f32.mrb[0].mxu0
    %v1295 = vadd.f32 %v1214, %v1294
    %v1296 = vpop.f32.mrb[0].mxu0
    %1297 = vdwg.mxu0
    %1298 = vrot.lane.b32.xlu0 %v297, 112
    %v1299 = vpop.permute.xlu0 %1298
    %1300 = vrot.lane.b32.xlu0 %v383, 112
    %v1301 = vpop.permute.xlu0 %1300
    %v1302 = vsel %vm483, %v1299, 0
    %v1304 = vsel %vm483, %v1301, 0
    %1306 = vmatprep.subr.mxu0 0.0
    %1307 = vmatpush1.xpose.msra.mxu0 %v1304
    %1308 = vmatprep.subr.mxu0 0.0
    %1309 = vmatpush1.xpose.msra.mxu0 0.0
    %1310 = vmatprep.subr.mxu0 0.0
    %1311 = vmatpush1.xpose.msra.mxu0 0.0
    %1312 = vmatprep.subr.mxu0 0.0
    %1313 = vmatpush1.xpose.msra.mxu0 0.0
    %1314 = vmatprep.subr.mxu0 0.0
    %1315 = vmatpush1.xpose.msra.mxu0 0.0
    %1316 = vmatprep.subr.mxu0 0.0
    %1317 = vmatpush1.xpose.msra.mxu0 0.0
    %1318 = vmatprep.subr.mxu0 0.0
    %1319 = vmatpush1.xpose.msra.mxu0 0.0
    %1320 = vmatprep.subr.mxu0 0.0
    %1321 = vmatpush1.xpose.msra.mxu0 0.0
    %1322 = vmatprep.subr.mxu0 0.0
    %1323 = vmatpush1.xpose.msra.mxu0 0.0
    %1324 = vmatprep.subr.mxu0 0.0
    %1325 = vmatpush1.xpose.msra.mxu0 0.0
    %1326 = vmatprep.subr.mxu0 0.0
    %1327 = vmatpush1.xpose.msra.mxu0 0.0
    %1328 = vmatprep.subr.mxu0 0.0
    %1329 = vmatpush1.xpose.msra.mxu0 0.0
    %1330 = vmatprep.subr.mxu0 0.0
    %1331 = vmatpush1.xpose.msra.mxu0 0.0
    %1332 = vmatprep.subr.mxu0 0.0
    %1333 = vmatpush1.xpose.msra.mxu0 0.0
    %1334 = vmatprep.subr.mxu0 0.0
    %1335 = vmatpush1.xpose.msra.mxu0 0.0
    %1336 = vmatprep.subr.mxu0 0.0
    %1337 = vmatpush1.xpose.msra.mxu0 0.0
    %1338 = vmatprep.subr.mxu0 0.0
    %1339 = vmatpush1.xpose.msra.mxu0 0.0
    %1340 = vmatprep.subr.mxu0 0.0
    %1341 = vmatpush1.xpose.msra.mxu0 0.0
    %1342 = vmatprep.subr.mxu0 0.0
    %1343 = vmatpush1.xpose.msra.mxu0 0.0
    %1344 = vmatprep.subr.mxu0 0.0
    %1345 = vmatpush1.xpose.msra.mxu0 0.0
    %1346 = vmatprep.subr.mxu0 0.0
    %1347 = vmatpush1.xpose.msra.mxu0 0.0
    %1348 = vmatprep.subr.mxu0 0.0
    %1349 = vmatpush1.xpose.msra.mxu0 0.0
    %1350 = vmatprep.subr.mxu0 0.0
    %1351 = vmatpush1.xpose.msra.mxu0 0.0
    %1352 = vmatprep.subr.mxu0 0.0
    %1353 = vmatpush1.xpose.msra.mxu0 0.0
    %1354 = vmatprep.subr.mxu0 0.0
    %1355 = vmatpush1.xpose.msra.mxu0 0.0
    %1356 = vmatprep.subr.mxu0 0.0
    %1357 = vmatpush1.xpose.msra.mxu0 0.0
    %1358 = vmatprep.subr.mxu0 0.0
    %1359 = vmatpush1.xpose.msra.mxu0 0.0
    %1360 = vmatprep.subr.mxu0 0.0
    %1361 = vmatpush1.xpose.msra.mxu0 0.0
    %1362 = vmatprep.subr.mxu0 0.0
    %1363 = vmatpush1.xpose.msra.mxu0 0.0
    %1364 = vmatprep.subr.mxu0 0.0
    %1365 = vmatpush1.xpose.msra.mxu0 0.0
    %1366 = vmatprep.subr.mxu0 0.0
    %1367 = vmatpush1.xpose.msra.mxu0 0.0
    %1368 = vmatprep.subr.mxu0 0.0
    %1369 = vmatpush1.xpose.msra.mxu0 0.0
    %1370 = vmatprep.mubr.f32.mxu0 0.0
    %1371 = vmatmul.mubr.f32.gmra.mrb[0].mxu0 %v1302
    %v1372 = vpop.f32.mrb[0].mxu0
    %v1373 = vadd.f32 0.0, %v1372
    %v1374 = vpop.f32.mrb[0].mxu0
    %1375 = vdwg.mxu0
    %1376 = vrot.lane.b32.xlu0 %v302, 112
    %v1377 = vpop.permute.xlu0 %1376
    %1378 = vrot.lane.b32.xlu0 %v388, 112
    %v1379 = vpop.permute.xlu0 %1378
    %v1380 = vsel %vm483, %v1377, 0
    %v1382 = vsel %vm483, %v1379, 0
    %1384 = vmatprep.subr.mxu0 0.0
    %1385 = vmatpush1.xpose.msra.mxu0 %v1382
    %1386 = vmatprep.subr.mxu0 0.0
    %1387 = vmatpush1.xpose.msra.mxu0 0.0
    %1388 = vmatprep.subr.mxu0 0.0
    %1389 = vmatpush1.xpose.msra.mxu0 0.0
    %1390 = vmatprep.subr.mxu0 0.0
    %1391 = vmatpush1.xpose.msra.mxu0 0.0
    %1392 = vmatprep.subr.mxu0 0.0
    %1393 = vmatpush1.xpose.msra.mxu0 0.0
    %1394 = vmatprep.subr.mxu0 0.0
    %1395 = vmatpush1.xpose.msra.mxu0 0.0
    %1396 = vmatprep.subr.mxu0 0.0
    %1397 = vmatpush1.xpose.msra.mxu0 0.0
    %1398 = vmatprep.subr.mxu0 0.0
    %1399 = vmatpush1.xpose.msra.mxu0 0.0
    %1400 = vmatprep.subr.mxu0 0.0
    %1401 = vmatpush1.xpose.msra.mxu0 0.0
    %1402 = vmatprep.subr.mxu0 0.0
    %1403 = vmatpush1.xpose.msra.mxu0 0.0
    %1404 = vmatprep.subr.mxu0 0.0
    %1405 = vmatpush1.xpose.msra.mxu0 0.0
    %1406 = vmatprep.subr.mxu0 0.0
    %1407 = vmatpush1.xpose.msra.mxu0 0.0
    %1408 = vmatprep.subr.mxu0 0.0
    %1409 = vmatpush1.xpose.msra.mxu0 0.0
    %1410 = vmatprep.subr.mxu0 0.0
    %1411 = vmatpush1.xpose.msra.mxu0 0.0
    %1412 = vmatprep.subr.mxu0 0.0
    %1413 = vmatpush1.xpose.msra.mxu0 0.0
    %1414 = vmatprep.subr.mxu0 0.0
    %1415 = vmatpush1.xpose.msra.mxu0 0.0
    %1416 = vmatprep.subr.mxu0 0.0
    %1417 = vmatpush1.xpose.msra.mxu0 0.0
    %1418 = vmatprep.subr.mxu0 0.0
    %1419 = vmatpush1.xpose.msra.mxu0 0.0
    %1420 = vmatprep.subr.mxu0 0.0
    %1421 = vmatpush1.xpose.msra.mxu0 0.0
    %1422 = vmatprep.subr.mxu0 0.0
    %1423 = vmatpush1.xpose.msra.mxu0 0.0
    %1424 = vmatprep.subr.mxu0 0.0
    %1425 = vmatpush1.xpose.msra.mxu0 0.0
    %1426 = vmatprep.subr.mxu0 0.0
    %1427 = vmatpush1.xpose.msra.mxu0 0.0
    %1428 = vmatprep.subr.mxu0 0.0
    %1429 = vmatpush1.xpose.msra.mxu0 0.0
    %1430 = vmatprep.subr.mxu0 0.0
    %1431 = vmatpush1.xpose.msra.mxu0 0.0
    %1432 = vmatprep.subr.mxu0 0.0
    %1433 = vmatpush1.xpose.msra.mxu0 0.0
    %1434 = vmatprep.subr.mxu0 0.0
    %1435 = vmatpush1.xpose.msra.mxu0 0.0
    %1436 = vmatprep.subr.mxu0 0.0
    %1437 = vmatpush1.xpose.msra.mxu0 0.0
    %1438 = vmatprep.subr.mxu0 0.0
    %1439 = vmatpush1.xpose.msra.mxu0 0.0
    %1440 = vmatprep.subr.mxu0 0.0
    %1441 = vmatpush1.xpose.msra.mxu0 0.0
    %1442 = vmatprep.subr.mxu0 0.0
    %1443 = vmatpush1.xpose.msra.mxu0 0.0
    %1444 = vmatprep.subr.mxu0 0.0
    %1445 = vmatpush1.xpose.msra.mxu0 0.0
    %1446 = vmatprep.subr.mxu0 0.0
    %1447 = vmatpush1.xpose.msra.mxu0 0.0
    %1448 = vmatprep.mubr.f32.mxu0 0.0
    %1449 = vmatmul.mubr.f32.gmra.mrb[0].mxu0 %v1380
    %v1450 = vpop.f32.mrb[0].mxu0
    %v1451 = vadd.f32 0.0, %v1450
    %v1452 = vpop.f32.mrb[0].mxu0
    %1453 = vdwg.mxu0
    %v1454 = vsel %vm483, %v1373, -inf
    %1455 = vmax.xlane.f32.xlu0 %v1454
    %v1456 = vpop.xlane.xlu0 %1455
    %v1457 = vsel %vm483, %v1451, -inf
    %1458 = vmax.xlane.f32.xlu0 %v1457
    %v1459 = vpop.xlane.xlu0 %1458
    %v1460 = vsub.f32 %v1373, %v1456
    %v1461 = vsub.f32 %v1451, %v1459
    %v1462 = vmul.f32 %v1460, 1.442695
    %v1463 = vpow.pop %v1462
    %v1464 = vmul.f32 %v1461, 1.442695
    %v1465 = vpow.pop %v1464
    %v1466 = vsel %vm483, %v1463, 0.0
    %1467 = vadd.xlane.f32.xlu0 %v1466
    %v1468 = vpop.xlane.xlu0 %1467
    %v1469 = vsel %vm483, %v1465, 0.0
    %1470 = vadd.xlane.f32.xlu0 %v1469
    %v1471 = vpop.xlane.xlu0 %1470
    %v1472 = vrcp.pop %v1468
    %v1473 = vmul.f32 %v1463, %v1472
    %v1474 = vrcp.pop %v1471
    %v1475 = vmul.f32 %v1465, %v1474
    %1476 = vrot.lane.b32.xlu0 %v475, 112
    %v1477 = vpop.permute.xlu0 %1476
    %v1480 = vsel %vm483, %v1473, 0
    %1482 = vmatprep.subr.mxu0 0.0
    %1483 = vmatpush1.msra.mxu0 %v1477
    %1484 = vmatprep.subr.mxu0 0.0
    %1485 = vmatpush1.msra.mxu0 0.0
    %1486 = vmatprep.subr.mxu0 0.0
    %1487 = vmatpush1.msra.mxu0 0.0
    %1488 = vmatprep.subr.mxu0 0.0
    %1489 = vmatpush1.msra.mxu0 0.0
    %1490 = vmatprep.subr.mxu0 0.0
    %1491 = vmatpush1.msra.mxu0 0.0
    %1492 = vmatprep.subr.mxu0 0.0
    %1493 = vmatpush1.msra.mxu0 0.0
    %1494 = vmatprep.subr.mxu0 0.0
    %1495 = vmatpush1.msra.mxu0 0.0
    %1496 = vmatprep.subr.mxu0 0.0
    %1497 = vmatpush1.msra.mxu0 0.0
    %1498 = vmatprep.subr.mxu0 0.0
    %1499 = vmatpush1.msra.mxu0 0.0
    %1500 = vmatprep.subr.mxu0 0.0
    %1501 = vmatpush1.msra.mxu0 0.0
    %1502 = vmatprep.subr.mxu0 0.0
    %1503 = vmatpush1.msra.mxu0 0.0
    %1504 = vmatprep.subr.mxu0 0.0
    %1505 = vmatpush1.msra.mxu0 0.0
    %1506 = vmatprep.subr.mxu0 0.0
    %1507 = vmatpush1.msra.mxu0 0.0
    %1508 = vmatprep.subr.mxu0 0.0
    %1509 = vmatpush1.msra.mxu0 0.0
    %1510 = vmatprep.subr.mxu0 0.0
    %1511 = vmatpush1.msra.mxu0 0.0
    %1512 = vmatprep.subr.mxu0 0.0
    %1513 = vmatpush1.msra.mxu0 0.0
    %1514 = vmatprep.subr.mxu0 0.0
    %1515 = vmatpush1.msra.mxu0 0.0
    %1516 = vmatprep.subr.mxu0 0.0
    %1517 = vmatpush1.msra.mxu0 0.0
    %1518 = vmatprep.subr.mxu0 0.0
    %1519 = vmatpush1.msra.mxu0 0.0
    %1520 = vmatprep.subr.mxu0 0.0
    %1521 = vmatpush1.msra.mxu0 0.0
    %1522 = vmatprep.subr.mxu0 0.0
    %1523 = vmatpush1.msra.mxu0 0.0
    %1524 = vmatprep.subr.mxu0 0.0
    %1525 = vmatpush1.msra.mxu0 0.0
    %1526 = vmatprep.subr.mxu0 0.0
    %1527 = vmatpush1.msra.mxu0 0.0
    %1528 = vmatprep.subr.mxu0 0.0
    %1529 = vmatpush1.msra.mxu0 0.0
    %1530 = vmatprep.subr.mxu0 0.0
    %1531 = vmatpush1.msra.mxu0 0.0
    %1532 = vmatprep.subr.mxu0 0.0
    %1533 = vmatpush1.msra.mxu0 0.0
    %1534 = vmatprep.subr.mxu0 0.0
    %1535 = vmatpush1.msra.mxu0 0.0
    %1536 = vmatprep.subr.mxu0 0.0
    %1537 = vmatpush1.msra.mxu0 0.0
    %1538 = vmatprep.subr.mxu0 0.0
    %1539 = vmatpush1.msra.mxu0 0.0
    %1540 = vmatprep.subr.mxu0 0.0
    %1541 = vmatpush1.msra.mxu0 0.0
    %1542 = vmatprep.subr.mxu0 0.0
    %1543 = vmatpush1.msra.mxu0 0.0
    %1544 = vmatprep.subr.mxu0 0.0
    %1545 = vmatpush1.msra.mxu0 0.0
    %1546 = vmatprep.mubr.f32.mxu0 0.0
    %1547 = vmatmul.mubr.f32.gmra.mrb[0].mxu0 %v1480
    %v1548 = vpop.f32.mrb[0].mxu0
    %v1549 = vadd.f32 0.0, %v1548
    %v1550 = vpop.f32.mrb[0].mxu0
    %1551 = vdwg.mxu0
    %1552 = vrot.lane.b32.xlu0 %v480, 112
    %v1553 = vpop.permute.xlu0 %1552
    %v1556 = vsel %vm483, %v1475, 0
    %1558 = vmatprep.subr.mxu0 0.0
    %1559 = vmatpush1.msra.mxu0 %v1553
    %1560 = vmatprep.subr.mxu0 0.0
    %1561 = vmatpush1.msra.mxu0 0.0
    %1562 = vmatprep.subr.mxu0 0.0
    %1563 = vmatpush1.msra.mxu0 0.0
    %1564 = vmatprep.subr.mxu0 0.0
    %1565 = vmatpush1.msra.mxu0 0.0
    %1566 = vmatprep.subr.mxu0 0.0
    %1567 = vmatpush1.msra.mxu0 0.0
    %1568 = vmatprep.subr.mxu0 0.0
    %1569 = vmatpush1.msra.mxu0 0.0
    %1570 = vmatprep.subr.mxu0 0.0
    %1571 = vmatpush1.msra.mxu0 0.0
    %1572 = vmatprep.subr.mxu0 0.0
    %1573 = vmatpush1.msra.mxu0 0.0
    %1574 = vmatprep.subr.mxu0 0.0
    %1575 = vmatpush1.msra.mxu0 0.0
    %1576 = vmatprep.subr.mxu0 0.0
    %1577 = vmatpush1.msra.mxu0 0.0
    %1578 = vmatprep.subr.mxu0 0.0
    %1579 = vmatpush1.msra.mxu0 0.0
    %1580 = vmatprep.subr.mxu0 0.0
    %1581 = vmatpush1.msra.mxu0 0.0
    %1582 = vmatprep.subr.mxu0 0.0
    %1583 = vmatpush1.msra.mxu0 0.0
    %1584 = vmatprep.subr.mxu0 0.0
    %1585 = vmatpush1.msra.mxu0 0.0
    %1586 = vmatprep.subr.mxu0 0.0
    %1587 = vmatpush1.msra.mxu0 0.0
    %1588 = vmatprep.subr.mxu0 0.0
    %1589 = vmatpush1.msra.mxu0 0.0
    %1590 = vmatprep.subr.mxu0 0.0
    %1591 = vmatpush1.msra.mxu0 0.0
    %1592 = vmatprep.subr.mxu0 0.0
    %1593 = vmatpush1.msra.mxu0 0.0
    %1594 = vmatprep.subr.mxu0 0.0
    %1595 = vmatpush1.msra.mxu0 0.0
    %1596 = vmatprep.subr.mxu0 0.0
    %1597 = vmatpush1.msra.mxu0 0.0
    %1598 = vmatprep.subr.mxu0 0.0
    %1599 = vmatpush1.msra.mxu0 0.0
    %1600 = vmatprep.subr.mxu0 0.0
    %1601 = vmatpush1.msra.mxu0 0.0
    %1602 = vmatprep.subr.mxu0 0.0
    %1603 = vmatpush1.msra.mxu0 0.0
    %1604 = vmatprep.subr.mxu0 0.0
    %1605 = vmatpush1.msra.mxu0 0.0
    %1606 = vmatprep.subr.mxu0 0.0
    %1607 = vmatpush1.msra.mxu0 0.0
    %1608 = vmatprep.subr.mxu0 0.0
    %1609 = vmatpush1.msra.mxu0 0.0
    %1610 = vmatprep.subr.mxu0 0.0
    %1611 = vmatpush1.msra.mxu0 0.0
    %1612 = vmatprep.subr.mxu0 0.0
    %1613 = vmatpush1.msra.mxu0 0.0
    %1614 = vmatprep.subr.mxu0 0.0
    %1615 = vmatpush1.msra.mxu0 0.0
    %1616 = vmatprep.subr.mxu0 0.0
    %1617 = vmatpush1.msra.mxu0 0.0
    %1618 = vmatprep.subr.mxu0 0.0
    %1619 = vmatpush1.msra.mxu0 0.0
    %1620 = vmatprep.subr.mxu0 0.0
    %1621 = vmatpush1.msra.mxu0 0.0
    %1622 = vmatprep.mubr.f32.mxu0 0.0
    %1623 = vmatmul.mubr.f32.gmra.mrb[0].mxu0 %v1556
    %v1624 = vpop.f32.mrb[0].mxu0
    %v1625 = vadd.f32 0.0, %v1624
    %v1626 = vpop.f32.mrb[0].mxu0
    %1627 = vdwg.mxu0
    %v1629 = vsel %vm483, %v1549, 0
    %v1632 = vsel %vm483, %v1625, 0
    %1634 = vmatprep.subr.mxu0 0.0
    %1635 = vmatpush1.msra.mxu0 %v210
    %1636 = vmatprep.subr.mxu0 0.0
    %1637 = vmatpush1.msra.mxu0 0.0
    %1638 = vmatprep.subr.mxu0 0.0
    %1639 = vmatpush1.msra.mxu0 0.0
    %1640 = vmatprep.subr.mxu0 0.0
    %1641 = vmatpush1.msra.mxu0 0.0
    %1642 = vmatprep.subr.mxu0 0.0
    %1643 = vmatpush1.msra.mxu0 0.0
    %1644 = vmatprep.subr.mxu0 0.0
    %1645 = vmatpush1.msra.mxu0 0.0
    %1646 = vmatprep.subr.mxu0 0.0
    %1647 = vmatpush1.msra.mxu0 0.0
    %1648 = vmatprep.subr.mxu0 0.0
    %1649 = vmatpush1.msra.mxu0 0.0
    %1650 = vmatprep.subr.mxu0 0.0
    %1651 = vmatpush1.msra.mxu0 0.0
    %1652 = vmatprep.subr.mxu0 0.0
    %1653 = vmatpush1.msra.mxu0 0.0
    %1654 = vmatprep.subr.mxu0 0.0
    %1655 = vmatpush1.msra.mxu0 0.0
    %1656 = vmatprep.subr.mxu0 0.0
    %1657 = vmatpush1.msra.mxu0 0.0
    %1658 = vmatprep.subr.mxu0 0.0
    %1659 = vmatpush1.msra.mxu0 0.0
    %1660 = vmatprep.subr.mxu0 0.0
    %1661 = vmatpush1.msra.mxu0 0.0
    %1662 = vmatprep.subr.mxu0 0.0
    %1663 = vmatpush1.msra.mxu0 0.0
    %1664 = vmatprep.subr.mxu0 0.0
    %1665 = vmatpush1.msra.mxu0 0.0
    %1666 = vmatprep.subr.mxu0 0.0
    %1667 = vmatpush1.msra.mxu0 0.0
    %1668 = vmatprep.subr.mxu0 0.0
    %1669 = vmatpush1.msra.mxu0 0.0
    %1670 = vmatprep.subr.mxu0 0.0
    %1671 = vmatpush1.msra.mxu0 0.0
    %1672 = vmatprep.subr.mxu0 0.0
    %1673 = vmatpush1.msra.mxu0 0.0
    %1674 = vmatprep.subr.mxu0 0.0
    %1675 = vmatpush1.msra.mxu0 0.0
    %1676 = vmatprep.subr.mxu0 0.0
    %1677 = vmatpush1.msra.mxu0 0.0
    %1678 = vmatprep.subr.mxu0 0.0
    %1679 = vmatpush1.msra.mxu0 0.0
    %1680 = vmatprep.subr.mxu0 0.0
    %1681 = vmatpush1.msra.mxu0 0.0
    %1682 = vmatprep.subr.mxu0 0.0
    %1683 = vmatpush1.msra.mxu0 0.0
    %1684 = vmatprep.subr.mxu0 0.0
    %1685 = vmatpush1.msra.mxu0 0.0
    %1686 = vmatprep.subr.mxu0 0.0
    %1687 = vmatpush1.msra.mxu0 0.0
    %1688 = vmatprep.subr.mxu0 0.0
    %1689 = vmatpush1.msra.mxu0 0.0
    %1690 = vmatprep.subr.mxu0 0.0
    %1691 = vmatpush1.msra.mxu0 0.0
    %1692 = vmatprep.subr.mxu0 0.0
    %1693 = vmatpush1.msra.mxu0 0.0
    %1694 = vmatprep.subr.mxu0 0.0
    %1695 = vmatpush1.msra.mxu0 0.0
    %1696 = vmatprep.subr.mxu0 0.0
    %1697 = vmatpush1.msra.mxu0 0.0
    %1698 = vmatprep.mubr.f32.mxu0 0.0
    %1699 = vmatmul.mubr.f32.gmra.mrb[0].mxu0 %v1629
    %v1700 = vpop.f32.mrb[0].mxu0
    %v1701 = vadd.f32 0.0, %v1700
    %v1702 = vpop.f32.mrb[0].mxu0
    %1703 = vmatprep.mubr.f32.mxu0 0.0
    %1704 = vmatmul.mubr.f32.gmra.mrb[0].mxu0 %v1632
    %v1705 = vpop.f32.mrb[0].mxu0
    %v1706 = vadd.f32 0.0, %v1705
    %v1707 = vpop.f32.mrb[0].mxu0
    %1708 = vdwg.mxu0
    %v1709 = vadd.f32 %v1290, %v1701
    %v1710 = vadd.f32 %v1295, %v1706
    %1711 = vrot.lane.b32.xlu0 %v297, 104
    %v1712 = vpop.permute.xlu0 %1711
    %1713 = vrot.lane.b32.xlu0 %v383, 104
    %v1714 = vpop.permute.xlu0 %1713
    %v1715 = vsel %vm483, %v1712, 0
    %v1717 = vsel %vm483, %v1714, 0
    %1719 = vmatprep.subr.mxu0 0.0
    %1720 = vmatpush1.xpose.msra.mxu0 %v1717
    %1721 = vmatprep.subr.mxu0 0.0
    %1722 = vmatpush1.xpose.msra.mxu0 0.0
    %1723 = vmatprep.subr.mxu0 0.0
    %1724 = vmatpush1.xpose.msra.mxu0 0.0
    %1725 = vmatprep.subr.mxu0 0.0
    %1726 = vmatpush1.xpose.msra.mxu0 0.0
    %1727 = vmatprep.subr.mxu0 0.0
    %1728 = vmatpush1.xpose.msra.mxu0 0.0
    %1729 = vmatprep.subr.mxu0 0.0
    %1730 = vmatpush1.xpose.msra.mxu0 0.0
    %1731 = vmatprep.subr.mxu0 0.0
    %1732 = vmatpush1.xpose.msra.mxu0 0.0
    %1733 = vmatprep.subr.mxu0 0.0
    %1734 = vmatpush1.xpose.msra.mxu0 0.0
    %1735 = vmatprep.subr.mxu0 0.0
    %1736 = vmatpush1.xpose.msra.mxu0 0.0
    %1737 = vmatprep.subr.mxu0 0.0
    %1738 = vmatpush1.xpose.msra.mxu0 0.0
    %1739 = vmatprep.subr.mxu0 0.0
    %1740 = vmatpush1.xpose.msra.mxu0 0.0
    %1741 = vmatprep.subr.mxu0 0.0
    %1742 = vmatpush1.xpose.msra.mxu0 0.0
    %1743 = vmatprep.subr.mxu0 0.0
    %1744 = vmatpush1.xpose.msra.mxu0 0.0
    %1745 = vmatprep.subr.mxu0 0.0
    %1746 = vmatpush1.xpose.msra.mxu0 0.0
    %1747 = vmatprep.subr.mxu0 0.0
    %1748 = vmatpush1.xpose.msra.mxu0 0.0
    %1749 = vmatprep.subr.mxu0 0.0
    %1750 = vmatpush1.xpose.msra.mxu0 0.0
    %1751 = vmatprep.subr.mxu0 0.0
    %1752 = vmatpush1.xpose.msra.mxu0 0.0
    %1753 = vmatprep.subr.mxu0 0.0
    %1754 = vmatpush1.xpose.msra.mxu0 0.0
    %1755 = vmatprep.subr.mxu0 0.0
    %1756 = vmatpush1.xpose.msra.mxu0 0.0
    %1757 = vmatprep.subr.mxu0 0.0
    %1758 = vmatpush1.xpose.msra.mxu0 0.0
    %1759 = vmatprep.subr.mxu0 0.0
    %1760 = vmatpush1.xpose.msra.mxu0 0.0
    %1761 = vmatprep.subr.mxu0 0.0
    %1762 = vmatpush1.xpose.msra.mxu0 0.0
    %1763 = vmatprep.subr.mxu0 0.0
    %1764 = vmatpush1.xpose.msra.mxu0 0.0
    %1765 = vmatprep.subr.mxu0 0.0
    %1766 = vmatpush1.xpose.msra.mxu0 0.0
    %1767 = vmatprep.subr.mxu0 0.0
    %1768 = vmatpush1.xpose.msra.mxu0 0.0
    %1769 = vmatprep.subr.mxu0 0.0
    %1770 = vmatpush1.xpose.msra.mxu0 0.0
    %1771 = vmatprep.subr.mxu0 0.0
    %1772 = vmatpush1.xpose.msra.mxu0 0.0
    %1773 = vmatprep.subr.mxu0 0.0
    %1774 = vmatpush1.xpose.msra.mxu0 0.0
    %1775 = vmatprep.subr.mxu0 0.0
    %1776 = vmatpush1.xpose.msra.mxu0 0.0
    %1777 = vmatprep.subr.mxu0 0.0
    %1778 = vmatpush1.xpose.msra.mxu0 0.0
    %1779 = vmatprep.subr.mxu0 0.0
    %1780 = vmatpush1.xpose.msra.mxu0 0.0
    %1781 = vmatprep.subr.mxu0 0.0
    %1782 = vmatpush1.xpose.msra.mxu0 0.0
    %1783 = vmatprep.mubr.f32.mxu0 0.0
    %1784 = vmatmul.mubr.f32.gmra.mrb[0].mxu0 %v1715
    %v1785 = vpop.f32.mrb[0].mxu0
    %v1786 = vadd.f32 0.0, %v1785
    %v1787 = vpop.f32.mrb[0].mxu0
    %1788 = vdwg.mxu0
    %1789 = vrot.lane.b32.xlu0 %v302, 104
    %v1790 = vpop.permute.xlu0 %1789
    %1791 = vrot.lane.b32.xlu0 %v388, 104
    %v1792 = vpop.permute.xlu0 %1791
    %v1793 = vsel %vm483, %v1790, 0
    %v1795 = vsel %vm483, %v1792, 0
    %1797 = vmatprep.subr.mxu0 0.0
    %1798 = vmatpush1.xpose.msra.mxu0 %v1795
    %1799 = vmatprep.subr.mxu0 0.0
    %1800 = vmatpush1.xpose.msra.mxu0 0.0
    %1801 = vmatprep.subr.mxu0 0.0
    %1802 = vmatpush1.xpose.msra.mxu0 0.0
    %1803 = vmatprep.subr.mxu0 0.0
    %1804 = vmatpush1.xpose.msra.mxu0 0.0
    %1805 = vmatprep.subr.mxu0 0.0
    %1806 = vmatpush1.xpose.msra.mxu0 0.0
    %1807 = vmatprep.subr.mxu0 0.0
    %1808 = vmatpush1.xpose.msra.mxu0 0.0
    %1809 = vmatprep.subr.mxu0 0.0
    %1810 = vmatpush1.xpose.msra.mxu0 0.0
    %1811 = vmatprep.subr.mxu0 0.0
    %1812 = vmatpush1.xpose.msra.mxu0 0.0
    %1813 = vmatprep.subr.mxu0 0.0
    %1814 = vmatpush1.xpose.msra.mxu0 0.0
    %1815 = vmatprep.subr.mxu0 0.0
    %1816 = vmatpush1.xpose.msra.mxu0 0.0
    %1817 = vmatprep.subr.mxu0 0.0
    %1818 = vmatpush1.xpose.msra.mxu0 0.0
    %1819 = vmatprep.subr.mxu0 0.0
    %1820 = vmatpush1.xpose.msra.mxu0 0.0
    %1821 = vmatprep.subr.mxu0 0.0
    %1822 = vmatpush1.xpose.msra.mxu0 0.0
    %1823 = vmatprep.subr.mxu0 0.0
    %1824 = vmatpush1.xpose.msra.mxu0 0.0
    %1825 = vmatprep.subr.mxu0 0.0
    %1826 = vmatpush1.xpose.msra.mxu0 0.0
    %1827 = vmatprep.subr.mxu0 0.0
    %1828 = vmatpush1.xpose.msra.mxu0 0.0
    %1829 = vmatprep.subr.mxu0 0.0
    %1830 = vmatpush1.xpose.msra.mxu0 0.0
    %1831 = vmatprep.subr.mxu0 0.0
    %1832 = vmatpush1.xpose.msra.mxu0 0.0
    %1833 = vmatprep.subr.mxu0 0.0
    %1834 = vmatpush1.xpose.msra.mxu0 0.0
    %1835 = vmatprep.subr.mxu0 0.0
    %1836 = vmatpush1.xpose.msra.mxu0 0.0
    %1837 = vmatprep.subr.mxu0 0.0
    %1838 = vmatpush1.xpose.msra.mxu0 0.0
    %1839 = vmatprep.subr.mxu0 0.0
    %1840 = vmatpush1.xpose.msra.mxu0 0.0
    %1841 = vmatprep.subr.mxu0 0.0
    %1842 = vmatpush1.xpose.msra.mxu0 0.0
    %1843 = vmatprep.subr.mxu0 0.0
    %1844 = vmatpush1.xpose.msra.mxu0 0.0
    %1845 = vmatprep.subr.mxu0 0.0
    %1846 = vmatpush1.xpose.msra.mxu0 0.0
    %1847 = vmatprep.subr.mxu0 0.0
    %1848 = vmatpush1.xpose.msra.mxu0 0.0
    %1849 = vmatprep.subr.mxu0 0.0
    %1850 = vmatpush1.xpose.msra.mxu0 0.0
    %1851 = vmatprep.subr.mxu0 0.0
    %1852 = vmatpush1.xpose.msra.mxu0 0.0
    %1853 = vmatprep.subr.mxu0 0.0
    %1854 = vmatpush1.xpose.msra.mxu0 0.0
    %1855 = vmatprep.subr.mxu0 0.0
    %1856 = vmatpush1.xpose.msra.mxu0 0.0
    %1857 = vmatprep.subr.mxu0 0.0
    %1858 = vmatpush1.xpose.msra.mxu0 0.0
    %1859 = vmatprep.subr.mxu0 0.0
    %1860 = vmatpush1.xpose.msra.mxu0 0.0
    %1861 = vmatprep.mubr.f32.mxu0 0.0
    %1862 = vmatmul.mubr.f32.gmra.mrb[0].mxu0 %v1793
    %v1863 = vpop.f32.mrb[0].mxu0
    %v1864 = vadd.f32 0.0, %v1863
    %v1865 = vpop.f32.mrb[0].mxu0
    %1866 = vdwg.mxu0
    %v1867 = vsel %vm483, %v1786, -inf
    %1868 = vmax.xlane.f32.xlu0 %v1867
    %v1869 = vpop.xlane.xlu0 %1868
    %v1870 = vsel %vm483, %v1864, -inf
    %1871 = vmax.xlane.f32.xlu0 %v1870
    %v1872 = vpop.xlane.xlu0 %1871
    %v1873 = vsub.f32 %v1786, %v1869
    %v1874 = vsub.f32 %v1864, %v1872
    %v1875 = vmul.f32 %v1873, 1.442695
    %v1876 = vpow.pop %v1875
    %v1877 = vmul.f32 %v1874, 1.442695
    %v1878 = vpow.pop %v1877
    %v1879 = vsel %vm483, %v1876, 0.0
    %1880 = vadd.xlane.f32.xlu0 %v1879
    %v1881 = vpop.xlane.xlu0 %1880
    %v1882 = vsel %vm483, %v1878, 0.0
    %1883 = vadd.xlane.f32.xlu0 %v1882
    %v1884 = vpop.xlane.xlu0 %1883
    %v1885 = vrcp.pop %v1881
    %v1886 = vmul.f32 %v1876, %v1885
    %v1887 = vrcp.pop %v1884
    %v1888 = vmul.f32 %v1878, %v1887
    %1889 = vrot.lane.b32.xlu0 %v475, 104
    %v1890 = vpop.permute.xlu0 %1889
    %v1893 = vsel %vm483, %v1886, 0
    %1895 = vmatprep.subr.mxu0 0.0
    %1896 = vmatpush1.msra.mxu0 %v1890
    %1897 = vmatprep.subr.mxu0 0.0
    %1898 = vmatpush1.msra.mxu0 0.0
    %1899 = vmatprep.subr.mxu0 0.0
    %1900 = vmatpush1.msra.mxu0 0.0
    %1901 = vmatprep.subr.mxu0 0.0
    %1902 = vmatpush1.msra.mxu0 0.0
    %1903 = vmatprep.subr.mxu0 0.0
    %1904 = vmatpush1.msra.mxu0 0.0
    %1905 = vmatprep.subr.mxu0 0.0
    %1906 = vmatpush1.msra.mxu0 0.0
    %1907 = vmatprep.subr.mxu0 0.0
    %1908 = vmatpush1.msra.mxu0 0.0
    %1909 = vmatprep.subr.mxu0 0.0
    %1910 = vmatpush1.msra.mxu0 0.0
    %1911 = vmatprep.subr.mxu0 0.0
    %1912 = vmatpush1.msra.mxu0 0.0
    %1913 = vmatprep.subr.mxu0 0.0
    %1914 = vmatpush1.msra.mxu0 0.0
    %1915 = vmatprep.subr.mxu0 0.0
    %1916 = vmatpush1.msra.mxu0 0.0
    %1917 = vmatprep.subr.mxu0 0.0
    %1918 = vmatpush1.msra.mxu0 0.0
    %1919 = vmatprep.subr.mxu0 0.0
    %1920 = vmatpush1.msra.mxu0 0.0
    %1921 = vmatprep.subr.mxu0 0.0
    %1922 = vmatpush1.msra.mxu0 0.0
    %1923 = vmatprep.subr.mxu0 0.0
    %1924 = vmatpush1.msra.mxu0 0.0
    %1925 = vmatprep.subr.mxu0 0.0
    %1926 = vmatpush1.msra.mxu0 0.0
    %1927 = vmatprep.subr.mxu0 0.0
    %1928 = vmatpush1.msra.mxu0 0.0
    %1929 = vmatprep.subr.mxu0 0.0
    %1930 = vmatpush1.msra.mxu0 0.0
    %1931 = vmatprep.subr.mxu0 0.0
    %1932 = vmatpush1.msra.mxu0 0.0
    %1933 = vmatprep.subr.mxu0 0.0
    %1934 = vmatpush1.msra.mxu0 0.0
    %1935 = vmatprep.subr.mxu0 0.0
    %1936 = vmatpush1.msra.mxu0 0.0
    %1937 = vmatprep.subr.mxu0 0.0
    %1938 = vmatpush1.msra.mxu0 0.0
    %1939 = vmatprep.subr.mxu0 0.0
    %1940 = vmatpush1.msra.mxu0 0.0
    %1941 = vmatprep.subr.mxu0 0.0
    %1942 = vmatpush1.msra.mxu0 0.0
    %1943 = vmatprep.subr.mxu0 0.0
    %1944 = vmatpush1.msra.mxu0 0.0
    %1945 = vmatprep.subr.mxu0 0.0
    %1946 = vmatpush1.msra.mxu0 0.0
    %1947 = vmatprep.subr.mxu0 0.0
    %1948 = vmatpush1.msra.mxu0 0.0
    %1949 = vmatprep.subr.mxu0 0.0
    %1950 = vmatpush1.msra.mxu0 0.0
    %1951 = vmatprep.subr.mxu0 0.0
    %1952 = vmatpush1.msra.mxu0 0.0
    %1953 = vmatprep.subr.mxu0 0.0
    %1954 = vmatpush1.msra.mxu0 0.0
    %1955 = vmatprep.subr.mxu0 0.0
    %1956 = vmatpush1.msra.mxu0 0.0
    %1957 = vmatprep.subr.mxu0 0.0
    %1958 = vmatpush1.msra.mxu0 0.0
    %1959 = vmatprep.mubr.f32.mxu0 0.0
    %1960 = vmatmul.mubr.f32.gmra.mrb[0].mxu0 %v1893
    %v1961 = vpop.f32.mrb[0].mxu0
    %v1962 = vadd.f32 0.0, %v1961
    %v1963 = vpop.f32.mrb[0].mxu0
    %1964 = vdwg.mxu0
    %1965 = vrot.lane.b32.xlu0 %v480, 104
    %v1966 = vpop.permute.xlu0 %1965
    %v1969 = vsel %vm483, %v1888, 0
    %1971 = vmatprep.subr.mxu0 0.0
    %1972 = vmatpush1.msra.mxu0 %v1966
    %1973 = vmatprep.subr.mxu0 0.0
    %1974 = vmatpush1.msra.mxu0 0.0
    %1975 = vmatprep.subr.mxu0 0.0
    %1976 = vmatpush1.msra.mxu0 0.0
    %1977 = vmatprep.subr.mxu0 0.0
    %1978 = vmatpush1.msra.mxu0 0.0
    %1979 = vmatprep.subr.mxu0 0.0
    %1980 = vmatpush1.msra.mxu0 0.0
    %1981 = vmatprep.subr.mxu0 0.0
    %1982 = vmatpush1.msra.mxu0 0.0
    %1983 = vmatprep.subr.mxu0 0.0
    %1984 = vmatpush1.msra.mxu0 0.0
    %1985 = vmatprep.subr.mxu0 0.0
    %1986 = vmatpush1.msra.mxu0 0.0
    %1987 = vmatprep.subr.mxu0 0.0
    %1988 = vmatpush1.msra.mxu0 0.0
    %1989 = vmatprep.subr.mxu0 0.0
    %1990 = vmatpush1.msra.mxu0 0.0
    %1991 = vmatprep.subr.mxu0 0.0
    %1992 = vmatpush1.msra.mxu0 0.0
    %1993 = vmatprep.subr.mxu0 0.0
    %1994 = vmatpush1.msra.mxu0 0.0
    %1995 = vmatprep.subr.mxu0 0.0
    %1996 = vmatpush1.msra.mxu0 0.0
    %1997 = vmatprep.subr.mxu0 0.0
    %1998 = vmatpush1.msra.mxu0 0.0
    %1999 = vmatprep.subr.mxu0 0.0
    %2000 = vmatpush1.msra.mxu0 0.0
    %2001 = vmatprep.subr.mxu0 0.0
    %2002 = vmatpush1.msra.mxu0 0.0
    %2003 = vmatprep.subr.mxu0 0.0
    %2004 = vmatpush1.msra.mxu0 0.0
    %2005 = vmatprep.subr.mxu0 0.0
    %2006 = vmatpush1.msra.mxu0 0.0
    %2007 = vmatprep.subr.mxu0 0.0
    %2008 = vmatpush1.msra.mxu0 0.0
    %2009 = vmatprep.subr.mxu0 0.0
    %2010 = vmatpush1.msra.mxu0 0.0
    %2011 = vmatprep.subr.mxu0 0.0
    %2012 = vmatpush1.msra.mxu0 0.0
    %2013 = vmatprep.subr.mxu0 0.0
    %2014 = vmatpush1.msra.mxu0 0.0
    %2015 = vmatprep.subr.mxu0 0.0
    %2016 = vmatpush1.msra.mxu0 0.0
    %2017 = vmatprep.subr.mxu0 0.0
    %2018 = vmatpush1.msra.mxu0 0.0
    %2019 = vmatprep.subr.mxu0 0.0
    %2020 = vmatpush1.msra.mxu0 0.0
    %2021 = vmatprep.subr.mxu0 0.0
    %2022 = vmatpush1.msra.mxu0 0.0
    %2023 = vmatprep.subr.mxu0 0.0
    %2024 = vmatpush1.msra.mxu0 0.0
    %2025 = vmatprep.subr.mxu0 0.0
    %2026 = vmatpush1.msra.mxu0 0.0
    %2027 = vmatprep.subr.mxu0 0.0
    %2028 = vmatpush1.msra.mxu0 0.0
    %2029 = vmatprep.subr.mxu0 0.0
    %2030 = vmatpush1.msra.mxu0 0.0
    %2031 = vmatprep.subr.mxu0 0.0
    %2032 = vmatpush1.msra.mxu0 0.0
    %2033 = vmatprep.subr.mxu0 0.0
    %2034 = vmatpush1.msra.mxu0 0.0
    %2035 = vmatprep.mubr.f32.mxu0 0.0
    %2036 = vmatmul.mubr.f32.gmra.mrb[0].mxu0 %v1969
    %v2037 = vpop.f32.mrb[0].mxu0
    %v2038 = vadd.f32 0.0, %v2037
    %v2039 = vpop.f32.mrb[0].mxu0
    %2040 = vdwg.mxu0
    %v2042 = vsel %vm483, %v1962, 0
    %v2045 = vsel %vm483, %v2038, 0
    %2047 = vmatprep.subr.mxu0 0.0
    %2048 = vmatpush1.msra.mxu0 %v211
    %2049 = vmatprep.subr.mxu0 0.0
    %2050 = vmatpush1.msra.mxu0 0.0
    %2051 = vmatprep.subr.mxu0 0.0
    %2052 = vmatpush1.msra.mxu0 0.0
    %2053 = vmatprep.subr.mxu0 0.0
    %2054 = vmatpush1.msra.mxu0 0.0
    %2055 = vmatprep.subr.mxu0 0.0
    %2056 = vmatpush1.msra.mxu0 0.0
    %2057 = vmatprep.subr.mxu0 0.0
    %2058 = vmatpush1.msra.mxu0 0.0
    %2059 = vmatprep.subr.mxu0 0.0
    %2060 = vmatpush1.msra.mxu0 0.0
    %2061 = vmatprep.subr.mxu0 0.0
    %2062 = vmatpush1.msra.mxu0 0.0
    %2063 = vmatprep.subr.mxu0 0.0
    %2064 = vmatpush1.msra.mxu0 0.0
    %2065 = vmatprep.subr.mxu0 0.0
    %2066 = vmatpush1.msra.mxu0 0.0
    %2067 = vmatprep.subr.mxu0 0.0
    %2068 = vmatpush1.msra.mxu0 0.0
    %2069 = vmatprep.subr.mxu0 0.0
    %2070 = vmatpush1.msra.mxu0 0.0
    %2071 = vmatprep.subr.mxu0 0.0
    %2072 = vmatpush1.msra.mxu0 0.0
    %2073 = vmatprep.subr.mxu0 0.0
    %2074 = vmatpush1.msra.mxu0 0.0
    %2075 = vmatprep.subr.mxu0 0.0
    %2076 = vmatpush1.msra.mxu0 0.0
    %2077 = vmatprep.subr.mxu0 0.0
    %2078 = vmatpush1.msra.mxu0 0.0
    %2079 = vmatprep.subr.mxu0 0.0
    %2080 = vmatpush1.msra.mxu0 0.0
    %2081 = vmatprep.subr.mxu0 0.0
    %2082 = vmatpush1.msra.mxu0 0.0
    %2083 = vmatprep.subr.mxu0 0.0
    %2084 = vmatpush1.msra.mxu0 0.0
    %2085 = vmatprep.subr.mxu0 0.0
    %2086 = vmatpush1.msra.mxu0 0.0
    %2087 = vmatprep.subr.mxu0 0.0
    %2088 = vmatpush1.msra.mxu0 0.0
    %2089 = vmatprep.subr.mxu0 0.0
    %2090 = vmatpush1.msra.mxu0 0.0
    %2091 = vmatprep.subr.mxu0 0.0
    %2092 = vmatpush1.msra.mxu0 0.0
    %2093 = vmatprep.subr.mxu0 0.0
    %2094 = vmatpush1.msra.mxu0 0.0
    %2095 = vmatprep.subr.mxu0 0.0
    %2096 = vmatpush1.msra.mxu0 0.0
    %2097 = vmatprep.subr.mxu0 0.0
    %2098 = vmatpush1.msra.mxu0 0.0
    %2099 = vmatprep.subr.mxu0 0.0
    %2100 = vmatpush1.msra.mxu0 0.0
    %2101 = vmatprep.subr.mxu0 0.0
    %2102 = vmatpush1.msra.mxu0 0.0
    %2103 = vmatprep.subr.mxu0 0.0
    %2104 = vmatpush1.msra.mxu0 0.0
    %2105 = vmatprep.subr.mxu0 0.0
    %2106 = vmatpush1.msra.mxu0 0.0
    %2107 = vmatprep.subr.mxu0 0.0
    %2108 = vmatpush1.msra.mxu0 0.0
    %2109 = vmatprep.subr.mxu0 0.0
    %2110 = vmatpush1.msra.mxu0 0.0
    %2111 = vmatprep.mubr.f32.mxu0 0.0
    %2112 = vmatmul.mubr.f32.gmra.mrb[0].mxu0 %v2042
    %v2113 = vpop.f32.mrb[0].mxu0
    %v2114 = vadd.f32 0.0, %v2113
    %v2115 = vpop.f32.mrb[0].mxu0
    %2116 = vmatprep.mubr.f32.mxu0 0.0
    %2117 = vmatmul.mubr.f32.gmra.mrb[0].mxu0 %v2045
    %v2118 = vpop.f32.mrb[0].mxu0
    %v2119 = vadd.f32 0.0, %v2118
    %v2120 = vpop.f32.mrb[0].mxu0
    %2121 = vdwg.mxu0
    %v2122 = vadd.f32 %v1709, %v2114
    %v2123 = vadd.f32 %v1710, %v2119
    %v2124 = vld [vmem:[%s23] sm:$0x1]
    %v2126 = vlaneseq
    %v2127 = vshrl.u32 %v2126, 7
    %v2128 = vsub.s32 0, %v2127
    %v2129 = vrot.slane %v2124, %v2128
    %v2131 = vadd.f32 %v2122, %v2129
    %v2132 = vadd.f32 %v2123, %v2129
    %v2133 = vadd.f32 %v170, %v2131
    %v2134 = vadd.f32 %v171, %v2132
    %v2135 = vsel %vm223, %v2133, 0.0
    %2136 = vadd.xlane.f32.xlu0 %v2135
    %v2137 = vpop.xlane.xlu0 %2136
    %v2138 = vsel %vm223, %v2134, 0.0
    %2139 = vadd.xlane.f32.xlu0 %v2138
    %v2140 = vpop.xlane.xlu0 %2139
    %v2141 = vrcp.pop 32.0
    %v2142 = vmul.f32 %v2137, %v2141
    %v2143 = vmul.f32 %v2140, %v2141
    %v2144 = vsub.f32 %v2133, %v2142
    %v2145 = vsub.f32 %v2134, %v2143
    %v2146 = vmul.f32 %v2144, %v2144
    %v2147 = vmul.f32 %v2145, %v2145
    %v2148 = vsel %vm223, %v2146, 0.0
    %2149 = vadd.xlane.f32.xlu0 %v2148
    %v2150 = vpop.xlane.xlu0 %2149
    %v2151 = vsel %vm223, %v2147, 0.0
    %2152 = vadd.xlane.f32.xlu0 %v2151
    %v2153 = vpop.xlane.xlu0 %2152
    %v2154 = vmul.f32 %v2150, %v2141
    %v2155 = vmul.f32 %v2153, %v2141
    %v2156 = vadd.f32 %v2154, 1e-05
    %v2157 = vadd.f32 %v2155, 1e-05
    %v2158 = vrsqrt.pop %v2156
    %v2159 = vrsqrt.pop %v2157
    %v2160 = vmul.f32 %v2144, %v2158
    %v2161 = vmul.f32 %v2145, %v2159
    %v2162 = vld [vmem:[%s65] sm:$0x1]
    %v2164 = vlaneseq
    %v2165 = vshrl.u32 %v2164, 7
    %v2166 = vsub.s32 0, %v2165
    %v2167 = vrot.slane %v2162, %v2166
    %v2169 = vmul.f32 %v2160, %v2167
    %v2170 = vmul.f32 %v2161, %v2167
    %v2171 = vld [vmem:[%s67] sm:$0x1]
    %v2173 = vlaneseq
    %v2174 = vshrl.u32 %v2173, 7
    %v2175 = vsub.s32 0, %v2174
    %v2176 = vrot.slane %v2171, %v2175
    %v2178 = vadd.f32 %v2169, %v2176
    %v2179 = vadd.f32 %v2170, %v2176
    %v2180 = vadd.f32 %v2178, %v188
    %v2181 = vadd.f32 %v2179, %v189
    %v2182 = vadd.f32 %v172, %v190
    %v2183 = vadd.f32 %v173, %v191
    %v2184 = vadd.f32 %v174, %v192
    %v2185 = vadd.f32 %v175, %v193
    %v2186 = vadd.f32 %v176, %v194
    %v2187 = vadd.f32 %v177, %v195
    %v2188 = vadd.f32 %v178, %v196
    %v2189 = vadd.f32 %v179, %v197
    %v2190 = vadd.f32 %v180, %v198
    %v2191 = vadd.f32 %v181, %v199
    %v2192 = vadd.f32 %v182, %v200
    %v2193 = vadd.f32 %v183, %v201
    %v2194 = vadd.f32 %v184, %v202
    %v2195 = vadd.f32 %v185, %v203
    %v2196 = vadd.f32 %v186, %v204
    %v2197 = vadd.f32 %v187, %v205
    %v2198 = vld [vmem:[%s37] sm:$0xff]
    %v2199 = vld [vmem:[%s37 + $0x8] sm:$0xff]
    %v2200 = vld [vmem:[%s25] sm:$0xff]
    %v2201 = vld [vmem:[%s25 + $0x8] sm:$0xff]
    %v2202 = vld [vmem:[%s25 + $0x10] sm:$0xff]
    %v2203 = vld [vmem:[%s25 + $0x18] sm:$0xff]
    %v2204 = vld [vmem:[%s27] sm:$0x1]
    %v2206 = vlaneseq
    %v2207 = vshrl.u32 %v2206, 7
    %v2208 = vsub.s32 0, %v2207
    %v2209 = vrot.slane %v2204, %v2208
    %v2212 = vsel %vm223, %v2180, 0
    %v2215 = vsel %vm223, %v2181, 0
    %2217 = vmatprep.subr.mxu0 0.0
    %2218 = vmatpush1.msra.mxu0 %v2200
    %2219 = vmatprep.subr.mxu0 0.0
    %2220 = vmatpush1.msra.mxu0 %v2201
    %2221 = vmatprep.subr.mxu0 0.0
    %2222 = vmatpush1.msra.mxu0 %v2202
    %2223 = vmatprep.subr.mxu0 0.0
    %2224 = vmatpush1.msra.mxu0 %v2203
    %2225 = vmatprep.subr.mxu0 0.0
    %2226 = vmatpush1.msra.mxu0 0.0
    %2227 = vmatprep.subr.mxu0 0.0
    %2228 = vmatpush1.msra.mxu0 0.0
    %2229 = vmatprep.subr.mxu0 0.0
    %2230 = vmatpush1.msra.mxu0 0.0
    %2231 = vmatprep.subr.mxu0 0.0
    %2232 = vmatpush1.msra.mxu0 0.0
    %2233 = vmatprep.subr.mxu0 0.0
    %2234 = vmatpush1.msra.mxu0 0.0
    %2235 = vmatprep.subr.mxu0 0.0
    %2236 = vmatpush1.msra.mxu0 0.0
    %2237 = vmatprep.subr.mxu0 0.0
    %2238 = vmatpush1.msra.mxu0 0.0
    %2239 = vmatprep.subr.mxu0 0.0
    %2240 = vmatpush1.msra.mxu0 0.0
    %2241 = vmatprep.subr.mxu0 0.0
    %2242 = vmatpush1.msra.mxu0 0.0
    %2243 = vmatprep.subr.mxu0 0.0
    %2244 = vmatpush1.msra.mxu0 0.0
    %2245 = vmatprep.subr.mxu0 0.0
    %2246 = vmatpush1.msra.mxu0 0.0
    %2247 = vmatprep.subr.mxu0 0.0
    %2248 = vmatpush1.msra.mxu0 0.0
    %2249 = vmatprep.subr.mxu0 0.0
    %2250 = vmatpush1.msra.mxu0 0.0
    %2251 = vmatprep.subr.mxu0 0.0
    %2252 = vmatpush1.msra.mxu0 0.0
    %2253 = vmatprep.subr.mxu0 0.0
    %2254 = vmatpush1.msra.mxu0 0.0
    %2255 = vmatprep.subr.mxu0 0.0
    %2256 = vmatpush1.msra.mxu0 0.0
    %2257 = vmatprep.subr.mxu0 0.0
    %2258 = vmatpush1.msra.mxu0 0.0
    %2259 = vmatprep.subr.mxu0 0.0
    %2260 = vmatpush1.msra.mxu0 0.0
    %2261 = vmatprep.subr.mxu0 0.0
    %2262 = vmatpush1.msra.mxu0 0.0
    %2263 = vmatprep.subr.mxu0 0.0
    %2264 = vmatpush1.msra.mxu0 0.0
    %2265 = vmatprep.subr.mxu0 0.0
    %2266 = vmatpush1.msra.mxu0 0.0
    %2267 = vmatprep.subr.mxu0 0.0
    %2268 = vmatpush1.msra.mxu0 0.0
    %2269 = vmatprep.subr.mxu0 0.0
    %2270 = vmatpush1.msra.mxu0 0.0
    %2271 = vmatprep.subr.mxu0 0.0
    %2272 = vmatpush1.msra.mxu0 0.0
    %2273 = vmatprep.subr.mxu0 0.0
    %2274 = vmatpush1.msra.mxu0 0.0
    %2275 = vmatprep.subr.mxu0 0.0
    %2276 = vmatpush1.msra.mxu0 0.0
    %2277 = vmatprep.subr.mxu0 0.0
    %2278 = vmatpush1.msra.mxu0 0.0
    %2279 = vmatprep.subr.mxu0 0.0
    %2280 = vmatpush1.msra.mxu0 0.0
    %2281 = vmatprep.mubr.f32.mxu0 0.0
    %2282 = vmatmul.mubr.f32.gmra.mrb[0].mxu0 %v2212
    %v2283 = vpop.f32.mrb[0].mxu0
    %v2284 = vadd.f32 %v2209, %v2283
    %v2285 = vpop.f32.mrb[0].mxu0
    %2286 = vmatprep.mubr.f32.mxu0 0.0
    %2287 = vmatmul.mubr.f32.gmra.mrb[0].mxu0 %v2215
    %v2288 = vpop.f32.mrb[0].mxu0
    %v2289 = vadd.f32 %v2209, %v2288
    %v2290 = vpop.f32.mrb[0].mxu0
    %2291 = vdwg.mxu0
    %v2292 = vld [vmem:[%s29] sm:$0xff]
    %v2293 = vld [vmem:[%s29 + $0x8] sm:$0xff]
    %v2294 = vld [vmem:[%s29 + $0x10] sm:$0xff]
    %v2295 = vld [vmem:[%s29 + $0x18] sm:$0xff]
    %v2296 = vld [vmem:[%s31] sm:$0x1]
    %v2298 = vlaneseq
    %v2299 = vshrl.u32 %v2298, 7
    %v2300 = vsub.s32 0, %v2299
    %v2301 = vrot.slane %v2296, %v2300
    %v2304 = vsel %vm223, %v2182, 0
    %v2307 = vsel %vm223, %v2183, 0
    %v2310 = vsel %vm223, %v2184, 0
    %v2313 = vsel %vm223, %v2185, 0
    %v2316 = vsel %vm223, %v2186, 0
    %v2319 = vsel %vm223, %v2187, 0
    %v2322 = vsel %vm223, %v2188, 0
    %v2325 = vsel %vm223, %v2189, 0
    %v2328 = vsel %vm223, %v2190, 0
    %v2331 = vsel %vm223, %v2191, 0
    %v2334 = vsel %vm223, %v2192, 0
    %v2337 = vsel %vm223, %v2193, 0
    %v2340 = vsel %vm223, %v2194, 0
    %v2343 = vsel %vm223, %v2195, 0
    %v2346 = vsel %vm223, %v2196, 0
    %v2349 = vsel %vm223, %v2197, 0
    %2351 = vmatprep.subr.mxu0 0.0
    %2352 = vmatpush1.msra.mxu0 %v2292
    %2353 = vmatprep.subr.mxu0 0.0
    %2354 = vmatpush1.msra.mxu0 %v2293
    %2355 = vmatprep.subr.mxu0 0.0
    %2356 = vmatpush1.msra.mxu0 %v2294
    %2357 = vmatprep.subr.mxu0 0.0
    %2358 = vmatpush1.msra.mxu0 %v2295
    %2359 = vmatprep.subr.mxu0 0.0
    %2360 = vmatpush1.msra.mxu0 0.0
    %2361 = vmatprep.subr.mxu0 0.0
    %2362 = vmatpush1.msra.mxu0 0.0
    %2363 = vmatprep.subr.mxu0 0.0
    %2364 = vmatpush1.msra.mxu0 0.0
    %2365 = vmatprep.subr.mxu0 0.0
    %2366 = vmatpush1.msra.mxu0 0.0
    %2367 = vmatprep.subr.mxu0 0.0
    %2368 = vmatpush1.msra.mxu0 0.0
    %2369 = vmatprep.subr.mxu0 0.0
    %2370 = vmatpush1.msra.mxu0 0.0
    %2371 = vmatprep.subr.mxu0 0.0
    %2372 = vmatpush1.msra.mxu0 0.0
    %2373 = vmatprep.subr.mxu0 0.0
    %2374 = vmatpush1.msra.mxu0 0.0
    %2375 = vmatprep.subr.mxu0 0.0
    %2376 = vmatpush1.msra.mxu0 0.0
    %2377 = vmatprep.subr.mxu0 0.0
    %2378 = vmatpush1.msra.mxu0 0.0
    %2379 = vmatprep.subr.mxu0 0.0
    %2380 = vmatpush1.msra.mxu0 0.0
    %2381 = vmatprep.subr.mxu0 0.0
    %2382 = vmatpush1.msra.mxu0 0.0
    %2383 = vmatprep.subr.mxu0 0.0
    %2384 = vmatpush1.msra.mxu0 0.0
    %2385 = vmatprep.subr.mxu0 0.0
    %2386 = vmatpush1.msra.mxu0 0.0
    %2387 = vmatprep.subr.mxu0 0.0
    %2388 = vmatpush1.msra.mxu0 0.0
    %2389 = vmatprep.subr.mxu0 0.0
    %2390 = vmatpush1.msra.mxu0 0.0
    %2391 = vmatprep.subr.mxu0 0.0
    %2392 = vmatpush1.msra.mxu0 0.0
    %2393 = vmatprep.subr.mxu0 0.0
    %2394 = vmatpush1.msra.mxu0 0.0
    %2395 = vmatprep.subr.mxu0 0.0
    %2396 = vmatpush1.msra.mxu0 0.0
    %2397 = vmatprep.subr.mxu0 0.0
    %2398 = vmatpush1.msra.mxu0 0.0
    %2399 = vmatprep.subr.mxu0 0.0
    %2400 = vmatpush1.msra.mxu0 0.0
    %2401 = vmatprep.subr.mxu0 0.0
    %2402 = vmatpush1.msra.mxu0 0.0
    %2403 = vmatprep.subr.mxu0 0.0
    %2404 = vmatpush1.msra.mxu0 0.0
    %2405 = vmatprep.subr.mxu0 0.0
    %2406 = vmatpush1.msra.mxu0 0.0
    %2407 = vmatprep.subr.mxu0 0.0
    %2408 = vmatpush1.msra.mxu0 0.0
    %2409 = vmatprep.subr.mxu0 0.0
    %2410 = vmatpush1.msra.mxu0 0.0
    %2411 = vmatprep.subr.mxu0 0.0
    %2412 = vmatpush1.msra.mxu0 0.0
    %2413 = vmatprep.subr.mxu0 0.0
    %2414 = vmatpush1.msra.mxu0 0.0
    %2415 = vmatprep.mubr.f32.mxu0 0.0
    %2416 = vmatmul.mubr.f32.gmra.mrb[0].mxu0 %v2304
    %v2417 = vpop.f32.mrb[0].mxu0
    %v2418 = vadd.f32 %v2301, %v2417
    %v2419 = vpop.f32.mrb[0].mxu0
    %2420 = vmatprep.mubr.f32.mxu0 0.0
    %2421 = vmatmul.mubr.f32.gmra.mrb[0].mxu0 %v2307
    %v2422 = vpop.f32.mrb[0].mxu0
    %v2423 = vadd.f32 %v2301, %v2422
    %v2424 = vpop.f32.mrb[0].mxu0
    %2425 = vmatprep.mubr.f32.mxu0 0.0
    %2426 = vmatmul.mubr.f32.gmra.mrb[0].mxu0 %v2310
    %v2427 = vpop.f32.mrb[0].mxu0
    %v2428 = vadd.f32 %v2301, %v2427
    %v2429 = vpop.f32.mrb[0].mxu0
    %2430 = vmatprep.mubr.f32.mxu0 0.0
    %2431 = vmatmul.mubr.f32.gmra.mrb[0].mxu0 %v2313
    %v2432 = vpop.f32.mrb[0].mxu0
    %v2433 = vadd.f32 %v2301, %v2432
    %v2434 = vpop.f32.mrb[0].mxu0
    %2435 = vmatprep.mubr.f32.mxu0 0.0
    %2436 = vmatmul.mubr.f32.gmra.mrb[0].mxu0 %v2316
    %v2437 = vpop.f32.mrb[0].mxu0
    %v2438 = vadd.f32 %v2301, %v2437
    %v2439 = vpop.f32.mrb[0].mxu0
    %2440 = vmatprep.mubr.f32.mxu0 0.0
    %2441 = vmatmul.mubr.f32.gmra.mrb[0].mxu0 %v2319
    %v2442 = vpop.f32.mrb[0].mxu0
    %v2443 = vadd.f32 %v2301, %v2442
    %v2444 = vpop.f32.mrb[0].mxu0
    %2445 = vmatprep.mubr.f32.mxu0 0.0
    %2446 = vmatmul.mubr.f32.gmra.mrb[0].mxu0 %v2322
    %v2447 = vpop.f32.mrb[0].mxu0
    %v2448 = vadd.f32 %v2301, %v2447
    %v2449 = vpop.f32.mrb[0].mxu0
    %2450 = vmatprep.mubr.f32.mxu0 0.0
    %2451 = vmatmul.mubr.f32.gmra.mrb[0].mxu0 %v2325
    %v2452 = vpop.f32.mrb[0].mxu0
    %v2453 = vadd.f32 %v2301, %v2452
    %v2454 = vpop.f32.mrb[0].mxu0
    %2455 = vmatprep.mubr.f32.mxu0 0.0
    %2456 = vmatmul.mubr.f32.gmra.mrb[0].mxu0 %v2328
    %v2457 = vpop.f32.mrb[0].mxu0
    %v2458 = vadd.f32 %v2301, %v2457
    %v2459 = vpop.f32.mrb[0].mxu0
    %2460 = vmatprep.mubr.f32.mxu0 0.0
    %2461 = vmatmul.mubr.f32.gmra.mrb[0].mxu0 %v2331
    %v2462 = vpop.f32.mrb[0].mxu0
    %v2463 = vadd.f32 %v2301, %v2462
    %v2464 = vpop.f32.mrb[0].mxu0
    %2465 = vmatprep.mubr.f32.mxu0 0.0
    %2466 = vmatmul.mubr.f32.gmra.mrb[0].mxu0 %v2334
    %v2467 = vpop.f32.mrb[0].mxu0
    %v2468 = vadd.f32 %v2301, %v2467
    %v2469 = vpop.f32.mrb[0].mxu0
    %2470 = vmatprep.mubr.f32.mxu0 0.0
    %2471 = vmatmul.mubr.f32.gmra.mrb[0].mxu0 %v2337
    %v2472 = vpop.f32.mrb[0].mxu0
    %v2473 = vadd.f32 %v2301, %v2472
    %v2474 = vpop.f32.mrb[0].mxu0
    %2475 = vmatprep.mubr.f32.mxu0 0.0
    %2476 = vmatmul.mubr.f32.gmra.mrb[0].mxu0 %v2340
    %v2477 = vpop.f32.mrb[0].mxu0
    %v2478 = vadd.f32 %v2301, %v2477
    %v2479 = vpop.f32.mrb[0].mxu0
    %2480 = vmatprep.mubr.f32.mxu0 0.0
    %2481 = vmatmul.mubr.f32.gmra.mrb[0].mxu0 %v2343
    %v2482 = vpop.f32.mrb[0].mxu0
    %v2483 = vadd.f32 %v2301, %v2482
    %v2484 = vpop.f32.mrb[0].mxu0
    %2485 = vmatprep.mubr.f32.mxu0 0.0
    %2486 = vmatmul.mubr.f32.gmra.mrb[0].mxu0 %v2346
    %v2487 = vpop.f32.mrb[0].mxu0
    %v2488 = vadd.f32 %v2301, %v2487
    %v2489 = vpop.f32.mrb[0].mxu0
    %2490 = vmatprep.mubr.f32.mxu0 0.0
    %2491 = vmatmul.mubr.f32.gmra.mrb[0].mxu0 %v2349
    %v2492 = vpop.f32.mrb[0].mxu0
    %v2493 = vadd.f32 %v2301, %v2492
    %v2494 = vpop.f32.mrb[0].mxu0
    %2495 = vdwg.mxu0
    %v2496 = vld [vmem:[%s33] sm:$0xff]
    %v2497 = vld [vmem:[%s33 + $0x8] sm:$0xff]
    %v2498 = vld [vmem:[%s33 + $0x10] sm:$0xff]
    %v2499 = vld [vmem:[%s33 + $0x18] sm:$0xff]
    %v2500 = vld [vmem:[%s35] sm:$0x1]
    %v2502 = vlaneseq
    %v2503 = vshrl.u32 %v2502, 7
    %v2504 = vsub.s32 0, %v2503
    %v2505 = vrot.slane %v2500, %v2504
    %v2508 = vsel %vm223, %v172, 0
    %v2511 = vsel %vm223, %v173, 0
    %v2514 = vsel %vm223, %v174, 0
    %v2517 = vsel %vm223, %v175, 0
    %v2520 = vsel %vm223, %v176, 0
    %v2523 = vsel %vm223, %v177, 0
    %v2526 = vsel %vm223, %v178, 0
    %v2529 = vsel %vm223, %v179, 0
    %v2532 = vsel %vm223, %v180, 0
    %v2535 = vsel %vm223, %v181, 0
    %v2538 = vsel %vm223, %v182, 0
    %v2541 = vsel %vm223, %v183, 0
    %v2544 = vsel %vm223, %v184, 0
    %v2547 = vsel %vm223, %v185, 0
    %v2550 = vsel %vm223, %v186, 0
    %v2553 = vsel %vm223, %v187, 0
    %2555 = vmatprep.subr.mxu0 0.0
    %2556 = vmatpush1.msra.mxu0 %v2496
    %2557 = vmatprep.subr.mxu0 0.0
    %2558 = vmatpush1.msra.mxu0 %v2497
    %2559 = vmatprep.subr.mxu0 0.0
    %2560 = vmatpush1.msra.mxu0 %v2498
    %2561 = vmatprep.subr.mxu0 0.0
    %2562 = vmatpush1.msra.mxu0 %v2499
    %2563 = vmatprep.subr.mxu0 0.0
    %2564 = vmatpush1.msra.mxu0 0.0
    %2565 = vmatprep.subr.mxu0 0.0
    %2566 = vmatpush1.msra.mxu0 0.0
    %2567 = vmatprep.subr.mxu0 0.0
    %2568 = vmatpush1.msra.mxu0 0.0
    %2569 = vmatprep.subr.mxu0 0.0
    %2570 = vmatpush1.msra.mxu0 0.0
    %2571 = vmatprep.subr.mxu0 0.0
    %2572 = vmatpush1.msra.mxu0 0.0
    %2573 = vmatprep.subr.mxu0 0.0
    %2574 = vmatpush1.msra.mxu0 0.0
    %2575 = vmatprep.subr.mxu0 0.0
    %2576 = vmatpush1.msra.mxu0 0.0
    %2577 = vmatprep.subr.mxu0 0.0
    %2578 = vmatpush1.msra.mxu0 0.0
    %2579 = vmatprep.subr.mxu0 0.0
    %2580 = vmatpush1.msra.mxu0 0.0
    %2581 = vmatprep.subr.mxu0 0.0
    %2582 = vmatpush1.msra.mxu0 0.0
    %2583 = vmatprep.subr.mxu0 0.0
    %2584 = vmatpush1.msra.mxu0 0.0
    %2585 = vmatprep.subr.mxu0 0.0
    %2586 = vmatpush1.msra.mxu0 0.0
    %2587 = vmatprep.subr.mxu0 0.0
    %2588 = vmatpush1.msra.mxu0 0.0
    %2589 = vmatprep.subr.mxu0 0.0
    %2590 = vmatpush1.msra.mxu0 0.0
    %2591 = vmatprep.subr.mxu0 0.0
    %2592 = vmatpush1.msra.mxu0 0.0
    %2593 = vmatprep.subr.mxu0 0.0
    %2594 = vmatpush1.msra.mxu0 0.0
    %2595 = vmatprep.subr.mxu0 0.0
    %2596 = vmatpush1.msra.mxu0 0.0
    %2597 = vmatprep.subr.mxu0 0.0
    %2598 = vmatpush1.msra.mxu0 0.0
    %2599 = vmatprep.subr.mxu0 0.0
    %2600 = vmatpush1.msra.mxu0 0.0
    %2601 = vmatprep.subr.mxu0 0.0
    %2602 = vmatpush1.msra.mxu0 0.0
    %2603 = vmatprep.subr.mxu0 0.0
    %2604 = vmatpush1.msra.mxu0 0.0
    %2605 = vmatprep.subr.mxu0 0.0
    %2606 = vmatpush1.msra.mxu0 0.0
    %2607 = vmatprep.subr.mxu0 0.0
    %2608 = vmatpush1.msra.mxu0 0.0
    %2609 = vmatprep.subr.mxu0 0.0
    %2610 = vmatpush1.msra.mxu0 0.0
    %2611 = vmatprep.subr.mxu0 0.0
    %2612 = vmatpush1.msra.mxu0 0.0
    %2613 = vmatprep.subr.mxu0 0.0
    %2614 = vmatpush1.msra.mxu0 0.0
    %2615 = vmatprep.subr.mxu0 0.0
    %2616 = vmatpush1.msra.mxu0 0.0
    %2617 = vmatprep.subr.mxu0 0.0
    %2618 = vmatpush1.msra.mxu0 0.0
    %2619 = vmatprep.mubr.f32.mxu0 0.0
    %2620 = vmatmul.mubr.f32.gmra.mrb[0].mxu0 %v2508
    %v2621 = vpop.f32.mrb[0].mxu0
    %v2622 = vadd.f32 %v2505, %v2621
    %v2623 = vpop.f32.mrb[0].mxu0
    %2624 = vmatprep.mubr.f32.mxu0 0.0
    %2625 = vmatmul.mubr.f32.gmra.mrb[0].mxu0 %v2511
    %v2626 = vpop.f32.mrb[0].mxu0
    %v2627 = vadd.f32 %v2505, %v2626
    %v2628 = vpop.f32.mrb[0].mxu0
    %2629 = vmatprep.mubr.f32.mxu0 0.0
    %2630 = vmatmul.mubr.f32.gmra.mrb[0].mxu0 %v2514
    %v2631 = vpop.f32.mrb[0].mxu0
    %v2632 = vadd.f32 %v2505, %v2631
    %v2633 = vpop.f32.mrb[0].mxu0
    %2634 = vmatprep.mubr.f32.mxu0 0.0
    %2635 = vmatmul.mubr.f32.gmra.mrb[0].mxu0 %v2517
    %v2636 = vpop.f32.mrb[0].mxu0
    %v2637 = vadd.f32 %v2505, %v2636
    %v2638 = vpop.f32.mrb[0].mxu0
    %2639 = vmatprep.mubr.f32.mxu0 0.0
    %2640 = vmatmul.mubr.f32.gmra.mrb[0].mxu0 %v2520
    %v2641 = vpop.f32.mrb[0].mxu0
    %v2642 = vadd.f32 %v2505, %v2641
    %v2643 = vpop.f32.mrb[0].mxu0
    %2644 = vmatprep.mubr.f32.mxu0 0.0
    %2645 = vmatmul.mubr.f32.gmra.mrb[0].mxu0 %v2523
    %v2646 = vpop.f32.mrb[0].mxu0
    %v2647 = vadd.f32 %v2505, %v2646
    %v2648 = vpop.f32.mrb[0].mxu0
    %2649 = vmatprep.mubr.f32.mxu0 0.0
    %2650 = vmatmul.mubr.f32.gmra.mrb[0].mxu0 %v2526
    %v2651 = vpop.f32.mrb[0].mxu0
    %v2652 = vadd.f32 %v2505, %v2651
    %v2653 = vpop.f32.mrb[0].mxu0
    %2654 = vmatprep.mubr.f32.mxu0 0.0
    %2655 = vmatmul.mubr.f32.gmra.mrb[0].mxu0 %v2529
    %v2656 = vpop.f32.mrb[0].mxu0
    %v2657 = vadd.f32 %v2505, %v2656
    %v2658 = vpop.f32.mrb[0].mxu0
    %2659 = vmatprep.mubr.f32.mxu0 0.0
    %2660 = vmatmul.mubr.f32.gmra.mrb[0].mxu0 %v2532
    %v2661 = vpop.f32.mrb[0].mxu0
    %v2662 = vadd.f32 %v2505, %v2661
    %v2663 = vpop.f32.mrb[0].mxu0
    %2664 = vmatprep.mubr.f32.mxu0 0.0
    %2665 = vmatmul.mubr.f32.gmra.mrb[0].mxu0 %v2535
    %v2666 = vpop.f32.mrb[0].mxu0
    %v2667 = vadd.f32 %v2505, %v2666
    %v2668 = vpop.f32.mrb[0].mxu0
    %2669 = vmatprep.mubr.f32.mxu0 0.0
    %2670 = vmatmul.mubr.f32.gmra.mrb[0].mxu0 %v2538
    %v2671 = vpop.f32.mrb[0].mxu0
    %v2672 = vadd.f32 %v2505, %v2671
    %v2673 = vpop.f32.mrb[0].mxu0
    %2674 = vmatprep.mubr.f32.mxu0 0.0
    %2675 = vmatmul.mubr.f32.gmra.mrb[0].mxu0 %v2541
    %v2676 = vpop.f32.mrb[0].mxu0
    %v2677 = vadd.f32 %v2505, %v2676
    %v2678 = vpop.f32.mrb[0].mxu0
    %2679 = vmatprep.mubr.f32.mxu0 0.0
    %2680 = vmatmul.mubr.f32.gmra.mrb[0].mxu0 %v2544
    %v2681 = vpop.f32.mrb[0].mxu0
    %v2682 = vadd.f32 %v2505, %v2681
    %v2683 = vpop.f32.mrb[0].mxu0
    %2684 = vmatprep.mubr.f32.mxu0 0.0
    %2685 = vmatmul.mubr.f32.gmra.mrb[0].mxu0 %v2547
    %v2686 = vpop.f32.mrb[0].mxu0
    %v2687 = vadd.f32 %v2505, %v2686
    %v2688 = vpop.f32.mrb[0].mxu0
    %2689 = vmatprep.mubr.f32.mxu0 0.0
    %2690 = vmatmul.mubr.f32.gmra.mrb[0].mxu0 %v2550
    %v2691 = vpop.f32.mrb[0].mxu0
    %v2692 = vadd.f32 %v2505, %v2691
    %v2693 = vpop.f32.mrb[0].mxu0
    %2694 = vmatprep.mubr.f32.mxu0 0.0
    %2695 = vmatmul.mubr.f32.gmra.mrb[0].mxu0 %v2553
    %v2696 = vpop.f32.mrb[0].mxu0
    %v2697 = vadd.f32 %v2505, %v2696
    %v2698 = vpop.f32.mrb[0].mxu0
    %2699 = vdwg.mxu0
    %vm2700 = vcmask 31744
    %v2702 = vsel %vm2700, %v2284, 0
    %v2705 = vsel %vm2700, %v2418, 0
    %v2708 = vsel %vm2700, %v2423, 0
    %v2711 = vsel %vm2700, %v2428, 0
    %v2714 = vsel %vm2700, %v2433, 0
    %v2717 = vsel %vm2700, %v2438, 0
    %v2720 = vsel %vm2700, %v2443, 0
    %v2723 = vsel %vm2700, %v2448, 0
    %v2726 = vsel %vm2700, %v2453, 0
    %2728 = vmatprep.subr.mxu0 0.0
    %2729 = vmatpush1.xpose.msra.mxu0 %v2705
    %2730 = vmatprep.subr.mxu0 0.0
    %2731 = vmatpush1.xpose.msra.mxu0 %v2708
    %2732 = vmatprep.subr.mxu0 0.0
    %2733 = vmatpush1.xpose.msra.mxu0 %v2711
    %2734 = vmatprep.subr.mxu0 0.0
    %2735 = vmatpush1.xpose.msra.mxu0 %v2714
    %2736 = vmatprep.subr.mxu0 0.0
    %2737 = vmatpush1.xpose.msra.mxu0 %v2717
    %2738 = vmatprep.subr.mxu0 0.0
    %2739 = vmatpush1.xpose.msra.mxu0 %v2720
    %2740 = vmatprep.subr.mxu0 0.0
    %2741 = vmatpush1.xpose.msra.mxu0 %v2723
    %2742 = vmatprep.subr.mxu0 0.0
    %2743 = vmatpush1.xpose.msra.mxu0 %v2726
    %2744 = vmatprep.subr.mxu0 0.0
    %2745 = vmatpush1.xpose.msra.mxu0 0.0
    %2746 = vmatprep.subr.mxu0 0.0
    %2747 = vmatpush1.xpose.msra.mxu0 0.0
    %2748 = vmatprep.subr.mxu0 0.0
    %2749 = vmatpush1.xpose.msra.mxu0 0.0
    %2750 = vmatprep.subr.mxu0 0.0
    %2751 = vmatpush1.xpose.msra.mxu0 0.0
    %2752 = vmatprep.subr.mxu0 0.0
    %2753 = vmatpush1.xpose.msra.mxu0 0.0
    %2754 = vmatprep.subr.mxu0 0.0
    %2755 = vmatpush1.xpose.msra.mxu0 0.0
    %2756 = vmatprep.subr.mxu0 0.0
    %2757 = vmatpush1.xpose.msra.mxu0 0.0
    %2758 = vmatprep.subr.mxu0 0.0
    %2759 = vmatpush1.xpose.msra.mxu0 0.0
    %2760 = vmatprep.subr.mxu0 0.0
    %2761 = vmatpush1.xpose.msra.mxu0 0.0
    %2762 = vmatprep.subr.mxu0 0.0
    %2763 = vmatpush1.xpose.msra.mxu0 0.0
    %2764 = vmatprep.subr.mxu0 0.0
    %2765 = vmatpush1.xpose.msra.mxu0 0.0
    %2766 = vmatprep.subr.mxu0 0.0
    %2767 = vmatpush1.xpose.msra.mxu0 0.0
    %2768 = vmatprep.subr.mxu0 0.0
    %2769 = vmatpush1.xpose.msra.mxu0 0.0
    %2770 = vmatprep.subr.mxu0 0.0
    %2771 = vmatpush1.xpose.msra.mxu0 0.0
    %2772 = vmatprep.subr.mxu0 0.0
    %2773 = vmatpush1.xpose.msra.mxu0 0.0
    %2774 = vmatprep.subr.mxu0 0.0
    %2775 = vmatpush1.xpose.msra.mxu0 0.0
    %2776 = vmatprep.subr.mxu0 0.0
    %2777 = vmatpush1.xpose.msra.mxu0 0.0
    %2778 = vmatprep.subr.mxu0 0.0
    %2779 = vmatpush1.xpose.msra.mxu0 0.0
    %2780 = vmatprep.subr.mxu0 0.0
    %2781 = vmatpush1.xpose.msra.mxu0 0.0
    %2782 = vmatprep.subr.mxu0 0.0
    %2783 = vmatpush1.xpose.msra.mxu0 0.0
    %2784 = vmatprep.subr.mxu0 0.0
    %2785 = vmatpush1.xpose.msra.mxu0 0.0
    %2786 = vmatprep.subr.mxu0 0.0
    %2787 = vmatpush1.xpose.msra.mxu0 0.0
    %2788 = vmatprep.subr.mxu0 0.0
    %2789 = vmatpush1.xpose.msra.mxu0 0.0
    %2790 = vmatprep.subr.mxu0 0.0
    %2791 = vmatpush1.xpose.msra.mxu0 0.0
    %2792 = vmatprep.mubr.f32.mxu0 0.0
    %2793 = vmatmul.mubr.f32.gmra.mrb[0].mxu0 %v2702
    %v2794 = vpop.f32.mrb[0].mxu0
    %v2795 = vadd.f32 0.0, %v2794
    %v2796 = vpop.f32.mrb[0].mxu0
    %2797 = vdwg.mxu0
    %v2799 = vsel %vm2700, %v2289, 0
    %v2802 = vsel %vm2700, %v2458, 0
    %v2805 = vsel %vm2700, %v2463, 0
    %v2808 = vsel %vm2700, %v2468, 0
    %v2811 = vsel %vm2700, %v2473, 0
    %v2814 = vsel %vm2700, %v2478, 0
    %v2817 = vsel %vm2700, %v2483, 0
    %v2820 = vsel %vm2700, %v2488, 0
    %v2823 = vsel %vm2700, %v2493, 0
    %2825 = vmatprep.subr.mxu0 0.0
    %2826 = vmatpush1.xpose.msra.mxu0 %v2802
    %2827 = vmatprep.subr.mxu0 0.0
    %2828 = vmatpush1.xpose.msra.mxu0 %v2805
    %2829 = vmatprep.subr.mxu0 0.0
    %2830 = vmatpush1.xpose.msra.mxu0 %v2808
    %2831 = vmatprep.subr.mxu0 0.0
    %2832 = vmatpush1.xpose.msra.mxu0 %v2811
    %2833 = vmatprep.subr.mxu0 0.0
    %2834 = vmatpush1.xpose.msra.mxu0 %v2814
    %2835 = vmatprep.subr.mxu0 0.0
    %2836 = vmatpush1.xpose.msra.mxu0 %v2817
    %2837 = vmatprep.subr.mxu0 0.0
    %2838 = vmatpush1.xpose.msra.mxu0 %v2820
    %2839 = vmatprep.subr.mxu0 0.0
    %2840 = vmatpush1.xpose.msra.mxu0 %v2823
    %2841 = vmatprep.subr.mxu0 0.0
    %2842 = vmatpush1.xpose.msra.mxu0 0.0
    %2843 = vmatprep.subr.mxu0 0.0
    %2844 = vmatpush1.xpose.msra.mxu0 0.0
    %2845 = vmatprep.subr.mxu0 0.0
    %2846 = vmatpush1.xpose.msra.mxu0 0.0
    %2847 = vmatprep.subr.mxu0 0.0
    %2848 = vmatpush1.xpose.msra.mxu0 0.0
    %2849 = vmatprep.subr.mxu0 0.0
    %2850 = vmatpush1.xpose.msra.mxu0 0.0
    %2851 = vmatprep.subr.mxu0 0.0
    %2852 = vmatpush1.xpose.msra.mxu0 0.0
    %2853 = vmatprep.subr.mxu0 0.0
    %2854 = vmatpush1.xpose.msra.mxu0 0.0
    %2855 = vmatprep.subr.mxu0 0.0
    %2856 = vmatpush1.xpose.msra.mxu0 0.0
    %2857 = vmatprep.subr.mxu0 0.0
    %2858 = vmatpush1.xpose.msra.mxu0 0.0
    %2859 = vmatprep.subr.mxu0 0.0
    %2860 = vmatpush1.xpose.msra.mxu0 0.0
    %2861 = vmatprep.subr.mxu0 0.0
    %2862 = vmatpush1.xpose.msra.mxu0 0.0
    %2863 = vmatprep.subr.mxu0 0.0
    %2864 = vmatpush1.xpose.msra.mxu0 0.0
    %2865 = vmatprep.subr.mxu0 0.0
    %2866 = vmatpush1.xpose.msra.mxu0 0.0
    %2867 = vmatprep.subr.mxu0 0.0
    %2868 = vmatpush1.xpose.msra.mxu0 0.0
    %2869 = vmatprep.subr.mxu0 0.0
    %2870 = vmatpush1.xpose.msra.mxu0 0.0
    %2871 = vmatprep.subr.mxu0 0.0
    %2872 = vmatpush1.xpose.msra.mxu0 0.0
    %2873 = vmatprep.subr.mxu0 0.0
    %2874 = vmatpush1.xpose.msra.mxu0 0.0
    %2875 = vmatprep.subr.mxu0 0.0
    %2876 = vmatpush1.xpose.msra.mxu0 0.0
    %2877 = vmatprep.subr.mxu0 0.0
    %2878 = vmatpush1.xpose.msra.mxu0 0.0
    %2879 = vmatprep.subr.mxu0 0.0
    %2880 = vmatpush1.xpose.msra.mxu0 0.0
    %2881 = vmatprep.subr.mxu0 0.0
    %2882 = vmatpush1.xpose.msra.mxu0 0.0
    %2883 = vmatprep.subr.mxu0 0.0
    %2884 = vmatpush1.xpose.msra.mxu0 0.0
    %2885 = vmatprep.subr.mxu0 0.0
    %2886 = vmatpush1.xpose.msra.mxu0 0.0
    %2887 = vmatprep.subr.mxu0 0.0
    %2888 = vmatpush1.xpose.msra.mxu0 0.0
    %2889 = vmatprep.mubr.f32.mxu0 0.0
    %2890 = vmatmul.mubr.f32.gmra.mrb[0].mxu0 %v2799
    %v2891 = vpop.f32.mrb[0].mxu0
    %v2892 = vadd.f32 0.0, %v2891
    %v2893 = vpop.f32.mrb[0].mxu0
    %2894 = vdwg.mxu0
    %vm2895 = vcmask 523264
    %v2896 = vsel %vm2895, %v2795, -inf
    %2897 = vmax.xlane.f32.xlu0 %v2896
    %v2898 = vpop.xlane.xlu0 %2897
    %v2899 = vsel %vm2895, %v2892, -inf
    %2900 = vmax.xlane.f32.xlu0 %v2899
    %v2901 = vpop.xlane.xlu0 %2900
    %v2902 = vsub.f32 %v2795, %v2898
    %v2903 = vsub.f32 %v2892, %v2901
    %v2904 = vmul.f32 %v2902, 1.442695
    %v2905 = vpow.pop %v2904
    %v2906 = vmul.f32 %v2903, 1.442695
    %v2907 = vpow.pop %v2906
    %v2908 = vsel %vm2895, %v2905, 0.0
    %2909 = vadd.xlane.f32.xlu0 %v2908
    %v2910 = vpop.xlane.xlu0 %2909
    %v2911 = vsel %vm2895, %v2907, 0.0
    %2912 = vadd.xlane.f32.xlu0 %v2911
    %v2913 = vpop.xlane.xlu0 %2912
    %v2914 = vrcp.pop %v2910
    %v2915 = vmul.f32 %v2905, %v2914
    %v2916 = vrcp.pop %v2913
    %v2917 = vmul.f32 %v2907, %v2916
    %v2919 = vsel %vm2895, %v2915, 0
    %2921 = vmatprep.subr.mxu0 0.0
    %2922 = vmatpush1.msra.mxu0 %v2622
    %2923 = vmatprep.subr.mxu0 0.0
    %2924 = vmatpush1.msra.mxu0 %v2627
    %2925 = vmatprep.subr.mxu0 0.0
    %2926 = vmatpush1.msra.mxu0 %v2632
    %2927 = vmatprep.subr.mxu0 0.0
    %2928 = vmatpush1.msra.mxu0 %v2637
    %2929 = vmatprep.subr.mxu0 0.0
    %2930 = vmatpush1.msra.mxu0 %v2642
    %2931 = vmatprep.subr.mxu0 0.0
    %2932 = vmatpush1.msra.mxu0 %v2647
    %2933 = vmatprep.subr.mxu0 0.0
    %2934 = vmatpush1.msra.mxu0 %v2652
    %2935 = vmatprep.subr.mxu0 0.0
    %2936 = vmatpush1.msra.mxu0 %v2657
    %2937 = vmatprep.subr.mxu0 0.0
    %2938 = vmatpush1.msra.mxu0 0.0
    %2939 = vmatprep.subr.mxu0 0.0
    %2940 = vmatpush1.msra.mxu0 0.0
    %2941 = vmatprep.subr.mxu0 0.0
    %2942 = vmatpush1.msra.mxu0 0.0
    %2943 = vmatprep.subr.mxu0 0.0
    %2944 = vmatpush1.msra.mxu0 0.0
    %2945 = vmatprep.subr.mxu0 0.0
    %2946 = vmatpush1.msra.mxu0 0.0
    %2947 = vmatprep.subr.mxu0 0.0
    %2948 = vmatpush1.msra.mxu0 0.0
    %2949 = vmatprep.subr.mxu0 0.0
    %2950 = vmatpush1.msra.mxu0 0.0
    %2951 = vmatprep.subr.mxu0 0.0
    %2952 = vmatpush1.msra.mxu0 0.0
    %2953 = vmatprep.subr.mxu0 0.0
    %2954 = vmatpush1.msra.mxu0 0.0
    %2955 = vmatprep.subr.mxu0 0.0
    %2956 = vmatpush1.msra.mxu0 0.0
    %2957 = vmatprep.subr.mxu0 0.0
    %2958 = vmatpush1.msra.mxu0 0.0
    %2959 = vmatprep.subr.mxu0 0.0
    %2960 = vmatpush1.msra.mxu0 0.0
    %2961 = vmatprep.subr.mxu0 0.0
    %2962 = vmatpush1.msra.mxu0 0.0
    %2963 = vmatprep.subr.mxu0 0.0
    %2964 = vmatpush1.msra.mxu0 0.0
    %2965 = vmatprep.subr.mxu0 0.0
    %2966 = vmatpush1.msra.mxu0 0.0
    %2967 = vmatprep.subr.mxu0 0.0
    %2968 = vmatpush1.msra.mxu0 0.0
    %2969 = vmatprep.subr.mxu0 0.0
    %2970 = vmatpush1.msra.mxu0 0.0
    %2971 = vmatprep.subr.mxu0 0.0
    %2972 = vmatpush1.msra.mxu0 0.0
    %2973 = vmatprep.subr.mxu0 0.0
    %2974 = vmatpush1.msra.mxu0 0.0
    %2975 = vmatprep.subr.mxu0 0.0
    %2976 = vmatpush1.msra.mxu0 0.0
    %2977 = vmatprep.subr.mxu0 0.0
    %2978 = vmatpush1.msra.mxu0 0.0
    %2979 = vmatprep.subr.mxu0 0.0
    %2980 = vmatpush1.msra.mxu0 0.0
    %2981 = vmatprep.subr.mxu0 0.0
    %2982 = vmatpush1.msra.mxu0 0.0
    %2983 = vmatprep.subr.mxu0 0.0
    %2984 = vmatpush1.msra.mxu0 0.0
    %2985 = vmatprep.mubr.f32.mxu0 0.0
    %2986 = vmatmul.mubr.f32.gmra.mrb[0].mxu0 %v2919
    %v2987 = vpop.f32.mrb[0].mxu0
    %v2988 = vadd.f32 0.0, %v2987
    %v2989 = vpop.f32.mrb[0].mxu0
    %2990 = vdwg.mxu0
    %v2992 = vsel %vm2895, %v2917, 0
    %2994 = vmatprep.subr.mxu0 0.0
    %2995 = vmatpush1.msra.mxu0 %v2662
    %2996 = vmatprep.subr.mxu0 0.0
    %2997 = vmatpush1.msra.mxu0 %v2667
    %2998 = vmatprep.subr.mxu0 0.0
    %2999 = vmatpush1.msra.mxu0 %v2672
    %3000 = vmatprep.subr.mxu0 0.0
    %3001 = vmatpush1.msra.mxu0 %v2677
    %3002 = vmatprep.subr.mxu0 0.0
    %3003 = vmatpush1.msra.mxu0 %v2682
    %3004 = vmatprep.subr.mxu0 0.0
    %3005 = vmatpush1.msra.mxu0 %v2687
    %3006 = vmatprep.subr.mxu0 0.0
    %3007 = vmatpush1.msra.mxu0 %v2692
    %3008 = vmatprep.subr.mxu0 0.0
    %3009 = vmatpush1.msra.mxu0 %v2697
    %3010 = vmatprep.subr.mxu0 0.0
    %3011 = vmatpush1.msra.mxu0 0.0
    %3012 = vmatprep.subr.mxu0 0.0
    %3013 = vmatpush1.msra.mxu0 0.0
    %3014 = vmatprep.subr.mxu0 0.0
    %3015 = vmatpush1.msra.mxu0 0.0
    %3016 = vmatprep.subr.mxu0 0.0
    %3017 = vmatpush1.msra.mxu0 0.0
    %3018 = vmatprep.subr.mxu0 0.0
    %3019 = vmatpush1.msra.mxu0 0.0
    %3020 = vmatprep.subr.mxu0 0.0
    %3021 = vmatpush1.msra.mxu0 0.0
    %3022 = vmatprep.subr.mxu0 0.0
    %3023 = vmatpush1.msra.mxu0 0.0
    %3024 = vmatprep.subr.mxu0 0.0
    %3025 = vmatpush1.msra.mxu0 0.0
    %3026 = vmatprep.subr.mxu0 0.0
    %3027 = vmatpush1.msra.mxu0 0.0
    %3028 = vmatprep.subr.mxu0 0.0
    %3029 = vmatpush1.msra.mxu0 0.0
    %3030 = vmatprep.subr.mxu0 0.0
    %3031 = vmatpush1.msra.mxu0 0.0
    %3032 = vmatprep.subr.mxu0 0.0
    %3033 = vmatpush1.msra.mxu0 0.0
    %3034 = vmatprep.subr.mxu0 0.0
    %3035 = vmatpush1.msra.mxu0 0.0
    %3036 = vmatprep.subr.mxu0 0.0
    %3037 = vmatpush1.msra.mxu0 0.0
    %3038 = vmatprep.subr.mxu0 0.0
    %3039 = vmatpush1.msra.mxu0 0.0
    %3040 = vmatprep.subr.mxu0 0.0
    %3041 = vmatpush1.msra.mxu0 0.0
    %3042 = vmatprep.subr.mxu0 0.0
    %3043 = vmatpush1.msra.mxu0 0.0
    %3044 = vmatprep.subr.mxu0 0.0
    %3045 = vmatpush1.msra.mxu0 0.0
    %3046 = vmatprep.subr.mxu0 0.0
    %3047 = vmatpush1.msra.mxu0 0.0
    %3048 = vmatprep.subr.mxu0 0.0
    %3049 = vmatpush1.msra.mxu0 0.0
    %3050 = vmatprep.subr.mxu0 0.0
    %3051 = vmatpush1.msra.mxu0 0.0
    %3052 = vmatprep.subr.mxu0 0.0
    %3053 = vmatpush1.msra.mxu0 0.0
    %3054 = vmatprep.subr.mxu0 0.0
    %3055 = vmatpush1.msra.mxu0 0.0
    %3056 = vmatprep.subr.mxu0 0.0
    %3057 = vmatpush1.msra.mxu0 0.0
    %3058 = vmatprep.mubr.f32.mxu0 0.0
    %3059 = vmatmul.mubr.f32.gmra.mrb[0].mxu0 %v2992
    %v3060 = vpop.f32.mrb[0].mxu0
    %v3061 = vadd.f32 0.0, %v3060
    %v3062 = vpop.f32.mrb[0].mxu0
    %3063 = vdwg.mxu0
    %3064 = vrot.lane.b32.xlu0 %v2284, 124
    %v3065 = vpop.permute.xlu0 %3064
    %3066 = vrot.lane.b32.xlu0 %v2418, 124
    %v3067 = vpop.permute.xlu0 %3066
    %3068 = vrot.lane.b32.xlu0 %v2423, 124
    %v3069 = vpop.permute.xlu0 %3068
    %3070 = vrot.lane.b32.xlu0 %v2428, 124
    %v3071 = vpop.permute.xlu0 %3070
    %3072 = vrot.lane.b32.xlu0 %v2433, 124
    %v3073 = vpop.permute.xlu0 %3072
    %3074 = vrot.lane.b32.xlu0 %v2438, 124
    %v3075 = vpop.permute.xlu0 %3074
    %3076 = vrot.lane.b32.xlu0 %v2443, 124
    %v3077 = vpop.permute.xlu0 %3076
    %3078 = vrot.lane.b32.xlu0 %v2448, 124
    %v3079 = vpop.permute.xlu0 %3078
    %3080 = vrot.lane.b32.xlu0 %v2453, 124
    %v3081 = vpop.permute.xlu0 %3080
    %v3082 = vsel %vm2700, %v3065, 0
    %v3084 = vsel %vm2700, %v3067, 0
    %v3086 = vsel %vm2700, %v3069, 0
    %v3088 = vsel %vm2700, %v3071, 0
    %v3090 = vsel %vm2700, %v3073, 0
    %v3092 = vsel %vm2700, %v3075, 0
    %v3094 = vsel %vm2700, %v3077, 0
    %v3096 = vsel %vm2700, %v3079, 0
    %v3098 = vsel %vm2700, %v3081, 0
    %3100 = vmatprep.subr.mxu0 0.0
    %3101 = vmatpush1.xpose.msra.mxu0 %v3084
    %3102 = vmatprep.subr.mxu0 0.0
    %3103 = vmatpush1.xpose.msra.mxu0 %v3086
    %3104 = vmatprep.subr.mxu0 0.0
    %3105 = vmatpush1.xpose.msra.mxu0 %v3088
    %3106 = vmatprep.subr.mxu0 0.0
    %3107 = vmatpush1.xpose.msra.mxu0 %v3090
    %3108 = vmatprep.subr.mxu0 0.0
    %3109 = vmatpush1.xpose.msra.mxu0 %v3092
    %3110 = vmatprep.subr.mxu0 0.0
    %3111 = vmatpush1.xpose.msra.mxu0 %v3094
    %3112 = vmatprep.subr.mxu0 0.0
    %3113 = vmatpush1.xpose.msra.mxu0 %v3096
    %3114 = vmatprep.subr.mxu0 0.0
    %3115 = vmatpush1.xpose.msra.mxu0 %v3098
    %3116 = vmatprep.subr.mxu0 0.0
    %3117 = vmatpush1.xpose.msra.mxu0 0.0
    %3118 = vmatprep.subr.mxu0 0.0
    %3119 = vmatpush1.xpose.msra.mxu0 0.0
    %3120 = vmatprep.subr.mxu0 0.0
    %3121 = vmatpush1.xpose.msra.mxu0 0.0
    %3122 = vmatprep.subr.mxu0 0.0
    %3123 = vmatpush1.xpose.msra.mxu0 0.0
    %3124 = vmatprep.subr.mxu0 0.0
    %3125 = vmatpush1.xpose.msra.mxu0 0.0
    %3126 = vmatprep.subr.mxu0 0.0
    %3127 = vmatpush1.xpose.msra.mxu0 0.0
    %3128 = vmatprep.subr.mxu0 0.0
    %3129 = vmatpush1.xpose.msra.mxu0 0.0
    %3130 = vmatprep.subr.mxu0 0.0
    %3131 = vmatpush1.xpose.msra.mxu0 0.0
    %3132 = vmatprep.subr.mxu0 0.0
    %3133 = vmatpush1.xpose.msra.mxu0 0.0
    %3134 = vmatprep.subr.mxu0 0.0
    %3135 = vmatpush1.xpose.msra.mxu0 0.0
    %3136 = vmatprep.subr.mxu0 0.0
    %3137 = vmatpush1.xpose.msra.mxu0 0.0
    %3138 = vmatprep.subr.mxu0 0.0
    %3139 = vmatpush1.xpose.msra.mxu0 0.0
    %3140 = vmatprep.subr.mxu0 0.0
    %3141 = vmatpush1.xpose.msra.mxu0 0.0
    %3142 = vmatprep.subr.mxu0 0.0
    %3143 = vmatpush1.xpose.msra.mxu0 0.0
    %3144 = vmatprep.subr.mxu0 0.0
    %3145 = vmatpush1.xpose.msra.mxu0 0.0
    %3146 = vmatprep.subr.mxu0 0.0
    %3147 = vmatpush1.xpose.msra.mxu0 0.0
    %3148 = vmatprep.subr.mxu0 0.0
    %3149 = vmatpush1.xpose.msra.mxu0 0.0
    %3150 = vmatprep.subr.mxu0 0.0
    %3151 = vmatpush1.xpose.msra.mxu0 0.0
    %3152 = vmatprep.subr.mxu0 0.0
    %3153 = vmatpush1.xpose.msra.mxu0 0.0
    %3154 = vmatprep.subr.mxu0 0.0
    %3155 = vmatpush1.xpose.msra.mxu0 0.0
    %3156 = vmatprep.subr.mxu0 0.0
    %3157 = vmatpush1.xpose.msra.mxu0 0.0
    %3158 = vmatprep.subr.mxu0 0.0
    %3159 = vmatpush1.xpose.msra.mxu0 0.0
    %3160 = vmatprep.subr.mxu0 0.0
    %3161 = vmatpush1.xpose.msra.mxu0 0.0
    %3162 = vmatprep.subr.mxu0 0.0
    %3163 = vmatpush1.xpose.msra.mxu0 0.0
    %3164 = vmatprep.mubr.f32.mxu0 0.0
    %3165 = vmatmul.mubr.f32.gmra.mrb[0].mxu0 %v3082
    %v3166 = vpop.f32.mrb[0].mxu0
    %v3167 = vadd.f32 0.0, %v3166
    %v3168 = vpop.f32.mrb[0].mxu0
    %3169 = vdwg.mxu0
    %3170 = vrot.lane.b32.xlu0 %v2289, 124
    %v3171 = vpop.permute.xlu0 %3170
    %3172 = vrot.lane.b32.xlu0 %v2458, 124
    %v3173 = vpop.permute.xlu0 %3172
    %3174 = vrot.lane.b32.xlu0 %v2463, 124
    %v3175 = vpop.permute.xlu0 %3174
    %3176 = vrot.lane.b32.xlu0 %v2468, 124
    %v3177 = vpop.permute.xlu0 %3176
    %3178 = vrot.lane.b32.xlu0 %v2473, 124
    %v3179 = vpop.permute.xlu0 %3178
    %3180 = vrot.lane.b32.xlu0 %v2478, 124
    %v3181 = vpop.permute.xlu0 %3180
    %3182 = vrot.lane.b32.xlu0 %v2483, 124
    %v3183 = vpop.permute.xlu0 %3182
    %3184 = vrot.lane.b32.xlu0 %v2488, 124
    %v3185 = vpop.permute.xlu0 %3184
    %3186 = vrot.lane.b32.xlu0 %v2493, 124
    %v3187 = vpop.permute.xlu0 %3186
    %v3188 = vsel %vm2700, %v3171, 0
    %v3190 = vsel %vm2700, %v3173, 0
    %v3192 = vsel %vm2700, %v3175, 0
    %v3194 = vsel %vm2700, %v3177, 0
    %v3196 = vsel %vm2700, %v3179, 0
    %v3198 = vsel %vm2700, %v3181, 0
    %v3200 = vsel %vm2700, %v3183, 0
    %v3202 = vsel %vm2700, %v3185, 0
    %v3204 = vsel %vm2700, %v3187, 0
    %3206 = vmatprep.subr.mxu0 0.0
    %3207 = vmatpush1.xpose.msra.mxu0 %v3190
    %3208 = vmatprep.subr.mxu0 0.0
    %3209 = vmatpush1.xpose.msra.mxu0 %v3192
    %3210 = vmatprep.subr.mxu0 0.0
    %3211 = vmatpush1.xpose.msra.mxu0 %v3194
    %3212 = vmatprep.subr.mxu0 0.0
    %3213 = vmatpush1.xpose.msra.mxu0 %v3196
    %3214 = vmatprep.subr.mxu0 0.0
    %3215 = vmatpush1.xpose.msra.mxu0 %v3198
    %3216 = vmatprep.subr.mxu0 0.0
    %3217 = vmatpush1.xpose.msra.mxu0 %v3200
    %3218 = vmatprep.subr.mxu0 0.0
    %3219 = vmatpush1.xpose.msra.mxu0 %v3202
    %3220 = vmatprep.subr.mxu0 0.0
    %3221 = vmatpush1.xpose.msra.mxu0 %v3204
    %3222 = vmatprep.subr.mxu0 0.0
    %3223 = vmatpush1.xpose.msra.mxu0 0.0
    %3224 = vmatprep.subr.mxu0 0.0
    %3225 = vmatpush1.xpose.msra.mxu0 0.0
    %3226 = vmatprep.subr.mxu0 0.0
    %3227 = vmatpush1.xpose.msra.mxu0 0.0
    %3228 = vmatprep.subr.mxu0 0.0
    %3229 = vmatpush1.xpose.msra.mxu0 0.0
    %3230 = vmatprep.subr.mxu0 0.0
    %3231 = vmatpush1.xpose.msra.mxu0 0.0
    %3232 = vmatprep.subr.mxu0 0.0
    %3233 = vmatpush1.xpose.msra.mxu0 0.0
    %3234 = vmatprep.subr.mxu0 0.0
    %3235 = vmatpush1.xpose.msra.mxu0 0.0
    %3236 = vmatprep.subr.mxu0 0.0
    %3237 = vmatpush1.xpose.msra.mxu0 0.0
    %3238 = vmatprep.subr.mxu0 0.0
    %3239 = vmatpush1.xpose.msra.mxu0 0.0
    %3240 = vmatprep.subr.mxu0 0.0
    %3241 = vmatpush1.xpose.msra.mxu0 0.0
    %3242 = vmatprep.subr.mxu0 0.0
    %3243 = vmatpush1.xpose.msra.mxu0 0.0
    %3244 = vmatprep.subr.mxu0 0.0
    %3245 = vmatpush1.xpose.msra.mxu0 0.0
    %3246 = vmatprep.subr.mxu0 0.0
    %3247 = vmatpush1.xpose.msra.mxu0 0.0
    %3248 = vmatprep.subr.mxu0 0.0
    %3249 = vmatpush1.xpose.msra.mxu0 0.0
    %3250 = vmatprep.subr.mxu0 0.0
    %3251 = vmatpush1.xpose.msra.mxu0 0.0
    %3252 = vmatprep.subr.mxu0 0.0
    %3253 = vmatpush1.xpose.msra.mxu0 0.0
    %3254 = vmatprep.subr.mxu0 0.0
    %3255 = vmatpush1.xpose.msra.mxu0 0.0
    %3256 = vmatprep.subr.mxu0 0.0
    %3257 = vmatpush1.xpose.msra.mxu0 0.0
    %3258 = vmatprep.subr.mxu0 0.0
    %3259 = vmatpush1.xpose.msra.mxu0 0.0
    %3260 = vmatprep.subr.mxu0 0.0
    %3261 = vmatpush1.xpose.msra.mxu0 0.0
    %3262 = vmatprep.subr.mxu0 0.0
    %3263 = vmatpush1.xpose.msra.mxu0 0.0
    %3264 = vmatprep.subr.mxu0 0.0
    %3265 = vmatpush1.xpose.msra.mxu0 0.0
    %3266 = vmatprep.subr.mxu0 0.0
    %3267 = vmatpush1.xpose.msra.mxu0 0.0
    %3268 = vmatprep.subr.mxu0 0.0
    %3269 = vmatpush1.xpose.msra.mxu0 0.0
    %3270 = vmatprep.mubr.f32.mxu0 0.0
    %3271 = vmatmul.mubr.f32.gmra.mrb[0].mxu0 %v3188
    %v3272 = vpop.f32.mrb[0].mxu0
    %v3273 = vadd.f32 0.0, %v3272
    %v3274 = vpop.f32.mrb[0].mxu0
    %3275 = vdwg.mxu0
    %v3276 = vsel %vm2895, %v3167, -inf
    %3277 = vmax.xlane.f32.xlu0 %v3276
    %v3278 = vpop.xlane.xlu0 %3277
    %v3279 = vsel %vm2895, %v3273, -inf
    %3280 = vmax.xlane.f32.xlu0 %v3279
    %v3281 = vpop.xlane.xlu0 %3280
    %v3282 = vsub.f32 %v3167, %v3278
    %v3283 = vsub.f32 %v3273, %v3281
    %v3284 = vmul.f32 %v3282, 1.442695
    %v3285 = vpow.pop %v3284
    %v3286 = vmul.f32 %v3283, 1.442695
    %v3287 = vpow.pop %v3286
    %v3288 = vsel %vm2895, %v3285, 0.0
    %3289 = vadd.xlane.f32.xlu0 %v3288
    %v3290 = vpop.xlane.xlu0 %3289
    %v3291 = vsel %vm2895, %v3287, 0.0
    %3292 = vadd.xlane.f32.xlu0 %v3291
    %v3293 = vpop.xlane.xlu0 %3292
    %v3294 = vrcp.pop %v3290
    %v3295 = vmul.f32 %v3285, %v3294
    %v3296 = vrcp.pop %v3293
    %v3297 = vmul.f32 %v3287, %v3296
    %3306 = vrot.lane.b32.xlu0 %v2622, 124
    %v3307 = vpop.permute.xlu0 %3306
    %3308 = vrot.lane.b32.xlu0 %v2627, 124
    %v3309 = vpop.permute.xlu0 %3308
    %3310 = vrot.lane.b32.xlu0 %v2632, 124
    %v3311 = vpop.permute.xlu0 %3310
    %3312 = vrot.lane.b32.xlu0 %v2637, 124
    %v3313 = vpop.permute.xlu0 %3312
    %3314 = vrot.lane.b32.xlu0 %v2642, 124
    %v3315 = vpop.permute.xlu0 %3314
    %3316 = vrot.lane.b32.xlu0 %v2647, 124
    %v3317 = vpop.permute.xlu0 %3316
    %3318 = vrot.lane.b32.xlu0 %v2652, 124
    %v3319 = vpop.permute.xlu0 %3318
    %3320 = vrot.lane.b32.xlu0 %v2657, 124
    %v3321 = vpop.permute.xlu0 %3320
    %v3331 = vsel %vm2895, %v3295, 0
    %3333 = vmatprep.subr.mxu0 0.0
    %3334 = vmatpush1.msra.mxu0 %v3307
    %3335 = vmatprep.subr.mxu0 0.0
    %3336 = vmatpush1.msra.mxu0 %v3309
    %3337 = vmatprep.subr.mxu0 0.0
    %3338 = vmatpush1.msra.mxu0 %v3311
    %3339 = vmatprep.subr.mxu0 0.0
    %3340 = vmatpush1.msra.mxu0 %v3313
    %3341 = vmatprep.subr.mxu0 0.0
    %3342 = vmatpush1.msra.mxu0 %v3315
    %3343 = vmatprep.subr.mxu0 0.0
    %3344 = vmatpush1.msra.mxu0 %v3317
    %3345 = vmatprep.subr.mxu0 0.0
    %3346 = vmatpush1.msra.mxu0 %v3319
    %3347 = vmatprep.subr.mxu0 0.0
    %3348 = vmatpush1.msra.mxu0 %v3321
    %3349 = vmatprep.subr.mxu0 0.0
    %3350 = vmatpush1.msra.mxu0 0.0
    %3351 = vmatprep.subr.mxu0 0.0
    %3352 = vmatpush1.msra.mxu0 0.0
    %3353 = vmatprep.subr.mxu0 0.0
    %3354 = vmatpush1.msra.mxu0 0.0
    %3355 = vmatprep.subr.mxu0 0.0
    %3356 = vmatpush1.msra.mxu0 0.0
    %3357 = vmatprep.subr.mxu0 0.0
    %3358 = vmatpush1.msra.mxu0 0.0
    %3359 = vmatprep.subr.mxu0 0.0
    %3360 = vmatpush1.msra.mxu0 0.0
    %3361 = vmatprep.subr.mxu0 0.0
    %3362 = vmatpush1.msra.mxu0 0.0
    %3363 = vmatprep.subr.mxu0 0.0
    %3364 = vmatpush1.msra.mxu0 0.0
    %3365 = vmatprep.subr.mxu0 0.0
    %3366 = vmatpush1.msra.mxu0 0.0
    %3367 = vmatprep.subr.mxu0 0.0
    %3368 = vmatpush1.msra.mxu0 0.0
    %3369 = vmatprep.subr.mxu0 0.0
    %3370 = vmatpush1.msra.mxu0 0.0
    %3371 = vmatprep.subr.mxu0 0.0
    %3372 = vmatpush1.msra.mxu0 0.0
    %3373 = vmatprep.subr.mxu0 0.0
    %3374 = vmatpush1.msra.mxu0 0.0
    %3375 = vmatprep.subr.mxu0 0.0
    %3376 = vmatpush1.msra.mxu0 0.0
    %3377 = vmatprep.subr.mxu0 0.0
    %3378 = vmatpush1.msra.mxu0 0.0
    %3379 = vmatprep.subr.mxu0 0.0
    %3380 = vmatpush1.msra.mxu0 0.0
    %3381 = vmatprep.subr.mxu0 0.0
    %3382 = vmatpush1.msra.mxu0 0.0
    %3383 = vmatprep.subr.mxu0 0.0
    %3384 = vmatpush1.msra.mxu0 0.0
    %3385 = vmatprep.subr.mxu0 0.0
    %3386 = vmatpush1.msra.mxu0 0.0
    %3387 = vmatprep.subr.mxu0 0.0
    %3388 = vmatpush1.msra.mxu0 0.0
    %3389 = vmatprep.subr.mxu0 0.0
    %3390 = vmatpush1.msra.mxu0 0.0
    %3391 = vmatprep.subr.mxu0 0.0
    %3392 = vmatpush1.msra.mxu0 0.0
    %3393 = vmatprep.subr.mxu0 0.0
    %3394 = vmatpush1.msra.mxu0 0.0
    %3395 = vmatprep.subr.mxu0 0.0
    %3396 = vmatpush1.msra.mxu0 0.0
    %3397 = vmatprep.mubr.f32.mxu0 0.0
    %3398 = vmatmul.mubr.f32.gmra.mrb[0].mxu0 %v3331
    %v3399 = vpop.f32.mrb[0].mxu0
    %v3400 = vadd.f32 0.0, %v3399
    %v3401 = vpop.f32.mrb[0].mxu0
    %3402 = vdwg.mxu0
    %3411 = vrot.lane.b32.xlu0 %v2662, 124
    %v3412 = vpop.permute.xlu0 %3411
    %3413 = vrot.lane.b32.xlu0 %v2667, 124
    %v3414 = vpop.permute.xlu0 %3413
    %3415 = vrot.lane.b32.xlu0 %v2672, 124
    %v3416 = vpop.permute.xlu0 %3415
    %3417 = vrot.lane.b32.xlu0 %v2677, 124
    %v3418 = vpop.permute.xlu0 %3417
    %3419 = vrot.lane.b32.xlu0 %v2682, 124
    %v3420 = vpop.permute.xlu0 %3419
    %3421 = vrot.lane.b32.xlu0 %v2687, 124
    %v3422 = vpop.permute.xlu0 %3421
    %3423 = vrot.lane.b32.xlu0 %v2692, 124
    %v3424 = vpop.permute.xlu0 %3423
    %3425 = vrot.lane.b32.xlu0 %v2697, 124
    %v3426 = vpop.permute.xlu0 %3425
    %v3436 = vsel %vm2895, %v3297, 0
    %3438 = vmatprep.subr.mxu0 0.0
    %3439 = vmatpush1.msra.mxu0 %v3412
    %3440 = vmatprep.subr.mxu0 0.0
    %3441 = vmatpush1.msra.mxu0 %v3414
    %3442 = vmatprep.subr.mxu0 0.0
    %3443 = vmatpush1.msra.mxu0 %v3416
    %3444 = vmatprep.subr.mxu0 0.0
    %3445 = vmatpush1.msra.mxu0 %v3418
    %3446 = vmatprep.subr.mxu0 0.0
    %3447 = vmatpush1.msra.mxu0 %v3420
    %3448 = vmatprep.subr.mxu0 0.0
    %3449 = vmatpush1.msra.mxu0 %v3422
    %3450 = vmatprep.subr.mxu0 0.0
    %3451 = vmatpush1.msra.mxu0 %v3424
    %3452 = vmatprep.subr.mxu0 0.0
    %3453 = vmatpush1.msra.mxu0 %v3426
    %3454 = vmatprep.subr.mxu0 0.0
    %3455 = vmatpush1.msra.mxu0 0.0
    %3456 = vmatprep.subr.mxu0 0.0
    %3457 = vmatpush1.msra.mxu0 0.0
    %3458 = vmatprep.subr.mxu0 0.0
    %3459 = vmatpush1.msra.mxu0 0.0
    %3460 = vmatprep.subr.mxu0 0.0
    %3461 = vmatpush1.msra.mxu0 0.0
    %3462 = vmatprep.subr.mxu0 0.0
    %3463 = vmatpush1.msra.mxu0 0.0
    %3464 = vmatprep.subr.mxu0 0.0
    %3465 = vmatpush1.msra.mxu0 0.0
    %3466 = vmatprep.subr.mxu0 0.0
    %3467 = vmatpush1.msra.mxu0 0.0
    %3468 = vmatprep.subr.mxu0 0.0
    %3469 = vmatpush1.msra.mxu0 0.0
    %3470 = vmatprep.subr.mxu0 0.0
    %3471 = vmatpush1.msra.mxu0 0.0
    %3472 = vmatprep.subr.mxu0 0.0
    %3473 = vmatpush1.msra.mxu0 0.0
    %3474 = vmatprep.subr.mxu0 0.0
    %3475 = vmatpush1.msra.mxu0 0.0
    %3476 = vmatprep.subr.mxu0 0.0
    %3477 = vmatpush1.msra.mxu0 0.0
    %3478 = vmatprep.subr.mxu0 0.0
    %3479 = vmatpush1.msra.mxu0 0.0
    %3480 = vmatprep.subr.mxu0 0.0
    %3481 = vmatpush1.msra.mxu0 0.0
    %3482 = vmatprep.subr.mxu0 0.0
    %3483 = vmatpush1.msra.mxu0 0.0
    %3484 = vmatprep.subr.mxu0 0.0
    %3485 = vmatpush1.msra.mxu0 0.0
    %3486 = vmatprep.subr.mxu0 0.0
    %3487 = vmatpush1.msra.mxu0 0.0
    %3488 = vmatprep.subr.mxu0 0.0
    %3489 = vmatpush1.msra.mxu0 0.0
    %3490 = vmatprep.subr.mxu0 0.0
    %3491 = vmatpush1.msra.mxu0 0.0
    %3492 = vmatprep.subr.mxu0 0.0
    %3493 = vmatpush1.msra.mxu0 0.0
    %3494 = vmatprep.subr.mxu0 0.0
    %3495 = vmatpush1.msra.mxu0 0.0
    %3496 = vmatprep.subr.mxu0 0.0
    %3497 = vmatpush1.msra.mxu0 0.0
    %3498 = vmatprep.subr.mxu0 0.0
    %3499 = vmatpush1.msra.mxu0 0.0
    %3500 = vmatprep.subr.mxu0 0.0
    %3501 = vmatpush1.msra.mxu0 0.0
    %3502 = vmatprep.mubr.f32.mxu0 0.0
    %3503 = vmatmul.mubr.f32.gmra.mrb[0].mxu0 %v3436
    %v3504 = vpop.f32.mrb[0].mxu0
    %v3505 = vadd.f32 0.0, %v3504
    %v3506 = vpop.f32.mrb[0].mxu0
    %3507 = vdwg.mxu0
    %v3509 = vrot.slane %v2198, 4
    %v3511 = vsel %vm2700, %v3400, 0
    %v3514 = vsel %vm2700, %v3505, 0
    %vm3516 = vcmask 1043456
    %v3517 = vsel %vm3516, %v3509, 0
    %3519 = vmatprep.subr.mxu0 0.0
    %3520 = vmatpush1.msra.mxu0 %v3517
    %3521 = vmatprep.subr.mxu0 0.0
    %3522 = vmatpush1.msra.mxu0 0.0
    %3523 = vmatprep.subr.mxu0 0.0
    %3524 = vmatpush1.msra.mxu0 0.0
    %3525 = vmatprep.subr.mxu0 0.0
    %3526 = vmatpush1.msra.mxu0 0.0
    %3527 = vmatprep.subr.mxu0 0.0
    %3528 = vmatpush1.msra.mxu0 0.0
    %3529 = vmatprep.subr.mxu0 0.0
    %3530 = vmatpush1.msra.mxu0 0.0
    %3531 = vmatprep.subr.mxu0 0.0
    %3532 = vmatpush1.msra.mxu0 0.0
    %3533 = vmatprep.subr.mxu0 0.0
    %3534 = vmatpush1.msra.mxu0 0.0
    %3535 = vmatprep.subr.mxu0 0.0
    %3536 = vmatpush1.msra.mxu0 0.0
    %3537 = vmatprep.subr.mxu0 0.0
    %3538 = vmatpush1.msra.mxu0 0.0
    %3539 = vmatprep.subr.mxu0 0.0
    %3540 = vmatpush1.msra.mxu0 0.0
    %3541 = vmatprep.subr.mxu0 0.0
    %3542 = vmatpush1.msra.mxu0 0.0
    %3543 = vmatprep.subr.mxu0 0.0
    %3544 = vmatpush1.msra.mxu0 0.0
    %3545 = vmatprep.subr.mxu0 0.0
    %3546 = vmatpush1.msra.mxu0 0.0
    %3547 = vmatprep.subr.mxu0 0.0
    %3548 = vmatpush1.msra.mxu0 0.0
    %3549 = vmatprep.subr.mxu0 0.0
    %3550 = vmatpush1.msra.mxu0 0.0
    %3551 = vmatprep.subr.mxu0 0.0
    %3552 = vmatpush1.msra.mxu0 0.0
    %3553 = vmatprep.subr.mxu0 0.0
    %3554 = vmatpush1.msra.mxu0 0.0
    %3555 = vmatprep.subr.mxu0 0.0
    %3556 = vmatpush1.msra.mxu0 0.0
    %3557 = vmatprep.subr.mxu0 0.0
    %3558 = vmatpush1.msra.mxu0 0.0
    %3559 = vmatprep.subr.mxu0 0.0
    %3560 = vmatpush1.msra.mxu0 0.0
    %3561 = vmatprep.subr.mxu0 0.0
    %3562 = vmatpush1.msra.mxu0 0.0
    %3563 = vmatprep.subr.mxu0 0.0
    %3564 = vmatpush1.msra.mxu0 0.0
    %3565 = vmatprep.subr.mxu0 0.0
    %3566 = vmatpush1.msra.mxu0 0.0
    %3567 = vmatprep.subr.mxu0 0.0
    %3568 = vmatpush1.msra.mxu0 0.0
    %3569 = vmatprep.subr.mxu0 0.0
    %3570 = vmatpush1.msra.mxu0 0.0
    %3571 = vmatprep.subr.mxu0 0.0
    %3572 = vmatpush1.msra.mxu0 0.0
    %3573 = vmatprep.subr.mxu0 0.0
    %3574 = vmatpush1.msra.mxu0 0.0
    %3575 = vmatprep.subr.mxu0 0.0
    %3576 = vmatpush1.msra.mxu0 0.0
    %3577 = vmatprep.subr.mxu0 0.0
    %3578 = vmatpush1.msra.mxu0 0.0
    %3579 = vmatprep.subr.mxu0 0.0
    %3580 = vmatpush1.msra.mxu0 0.0
    %3581 = vmatprep.subr.mxu0 0.0
    %3582 = vmatpush1.msra.mxu0 0.0
    %3583 = vmatprep.mubr.f32.mxu0 0.0
    %3584 = vmatmul.mubr.f32.gmra.mrb[0].mxu0 %v3511
    %v3585 = vpop.f32.mrb[0].mxu0
    %v3586 = vadd.f32 0.0, %v3585
    %v3587 = vpop.f32.mrb[0].mxu0
    %3588 = vmatprep.mubr.f32.mxu0 0.0
    %3589 = vmatmul.mubr.f32.gmra.mrb[0].mxu0 %v3514
    %v3590 = vpop.f32.mrb[0].mxu0
    %v3591 = vadd.f32 0.0, %v3590
    %v3592 = vpop.f32.mrb[0].mxu0
    %3593 = vdwg.mxu0
    %v3595 = vsel %vm2700, %v2988, 0
    %v3598 = vsel %vm2700, %v3061, 0
    %v3600 = vsel %vm3516, %v2198, 0
    %3602 = vmatprep.subr.mxu0 0.0
    %3603 = vmatpush1.msra.mxu0 %v3600
    %3604 = vmatprep.subr.mxu0 0.0
    %3605 = vmatpush1.msra.mxu0 0.0
    %3606 = vmatprep.subr.mxu0 0.0
    %3607 = vmatpush1.msra.mxu0 0.0
    %3608 = vmatprep.subr.mxu0 0.0
    %3609 = vmatpush1.msra.mxu0 0.0
    %3610 = vmatprep.subr.mxu0 0.0
    %3611 = vmatpush1.msra.mxu0 0.0
    %3612 = vmatprep.subr.mxu0 0.0
    %3613 = vmatpush1.msra.mxu0 0.0
    %3614 = vmatprep.subr.mxu0 0.0
    %3615 = vmatpush1.msra.mxu0 0.0
    %3616 = vmatprep.subr.mxu0 0.0
    %3617 = vmatpush1.msra.mxu0 0.0
    %3618 = vmatprep.subr.mxu0 0.0
    %3619 = vmatpush1.msra.mxu0 0.0
    %3620 = vmatprep.subr.mxu0 0.0
    %3621 = vmatpush1.msra.mxu0 0.0
    %3622 = vmatprep.subr.mxu0 0.0
    %3623 = vmatpush1.msra.mxu0 0.0
    %3624 = vmatprep.subr.mxu0 0.0
    %3625 = vmatpush1.msra.mxu0 0.0
    %3626 = vmatprep.subr.mxu0 0.0
    %3627 = vmatpush1.msra.mxu0 0.0
    %3628 = vmatprep.subr.mxu0 0.0
    %3629 = vmatpush1.msra.mxu0 0.0
    %3630 = vmatprep.subr.mxu0 0.0
    %3631 = vmatpush1.msra.mxu0 0.0
    %3632 = vmatprep.subr.mxu0 0.0
    %3633 = vmatpush1.msra.mxu0 0.0
    %3634 = vmatprep.subr.mxu0 0.0
    %3635 = vmatpush1.msra.mxu0 0.0
    %3636 = vmatprep.subr.mxu0 0.0
    %3637 = vmatpush1.msra.mxu0 0.0
    %3638 = vmatprep.subr.mxu0 0.0
    %3639 = vmatpush1.msra.mxu0 0.0
    %3640 = vmatprep.subr.mxu0 0.0
    %3641 = vmatpush1.msra.mxu0 0.0
    %3642 = vmatprep.subr.mxu0 0.0
    %3643 = vmatpush1.msra.mxu0 0.0
    %3644 = vmatprep.subr.mxu0 0.0
    %3645 = vmatpush1.msra.mxu0 0.0
    %3646 = vmatprep.subr.mxu0 0.0
    %3647 = vmatpush1.msra.mxu0 0.0
    %3648 = vmatprep.subr.mxu0 0.0
    %3649 = vmatpush1.msra.mxu0 0.0
    %3650 = vmatprep.subr.mxu0 0.0
    %3651 = vmatpush1.msra.mxu0 0.0
    %3652 = vmatprep.subr.mxu0 0.0
    %3653 = vmatpush1.msra.mxu0 0.0
    %3654 = vmatprep.subr.mxu0 0.0
    %3655 = vmatpush1.msra.mxu0 0.0
    %3656 = vmatprep.subr.mxu0 0.0
    %3657 = vmatpush1.msra.mxu0 0.0
    %3658 = vmatprep.subr.mxu0 0.0
    %3659 = vmatpush1.msra.mxu0 0.0
    %3660 = vmatprep.subr.mxu0 0.0
    %3661 = vmatpush1.msra.mxu0 0.0
    %3662 = vmatprep.subr.mxu0 0.0
    %3663 = vmatpush1.msra.mxu0 0.0
    %3664 = vmatprep.subr.mxu0 0.0
    %3665 = vmatpush1.msra.mxu0 0.0
    %3666 = vmatprep.mubr.f32.mxu0 0.0
    %3667 = vmatmul.mubr.f32.gmra.mrb[0].mxu0 %v3595
    %v3668 = vpop.f32.mrb[0].mxu0
    %v3669 = vadd.f32 %v3586, %v3668
    %v3670 = vpop.f32.mrb[0].mxu0
    %3671 = vmatprep.mubr.f32.mxu0 0.0
    %3672 = vmatmul.mubr.f32.gmra.mrb[0].mxu0 %v3598
    %v3673 = vpop.f32.mrb[0].mxu0
    %v3674 = vadd.f32 %v3591, %v3673
    %v3675 = vpop.f32.mrb[0].mxu0
    %3676 = vdwg.mxu0
    %3677 = vrot.lane.b32.xlu0 %v2284, 120
    %v3678 = vpop.permute.xlu0 %3677
    %3679 = vrot.lane.b32.xlu0 %v2418, 120
    %v3680 = vpop.permute.xlu0 %3679
    %3681 = vrot.lane.b32.xlu0 %v2423, 120
    %v3682 = vpop.permute.xlu0 %3681
    %3683 = vrot.lane.b32.xlu0 %v2428, 120
    %v3684 = vpop.permute.xlu0 %3683
    %3685 = vrot.lane.b32.xlu0 %v2433, 120
    %v3686 = vpop.permute.xlu0 %3685
    %3687 = vrot.lane.b32.xlu0 %v2438, 120
    %v3688 = vpop.permute.xlu0 %3687
    %3689 = vrot.lane.b32.xlu0 %v2443, 120
    %v3690 = vpop.permute.xlu0 %3689
    %3691 = vrot.lane.b32.xlu0 %v2448, 120
    %v3692 = vpop.permute.xlu0 %3691
    %3693 = vrot.lane.b32.xlu0 %v2453, 120
    %v3694 = vpop.permute.xlu0 %3693
    %v3695 = vsel %vm2700, %v3678, 0
    %v3697 = vsel %vm2700, %v3680, 0
    %v3699 = vsel %vm2700, %v3682, 0
    %v3701 = vsel %vm2700, %v3684, 0
    %v3703 = vsel %vm2700, %v3686, 0
    %v3705 = vsel %vm2700, %v3688, 0
    %v3707 = vsel %vm2700, %v3690, 0
    %v3709 = vsel %vm2700, %v3692, 0
    %v3711 = vsel %vm2700, %v3694, 0
    %3713 = vmatprep.subr.mxu0 0.0
    %3714 = vmatpush1.xpose.msra.mxu0 %v3697
    %3715 = vmatprep.subr.mxu0 0.0
    %3716 = vmatpush1.xpose.msra.mxu0 %v3699
    %3717 = vmatprep.subr.mxu0 0.0
    %3718 = vmatpush1.xpose.msra.mxu0 %v3701
    %3719 = vmatprep.subr.mxu0 0.0
    %3720 = vmatpush1.xpose.msra.mxu0 %v3703
    %3721 = vmatprep.subr.mxu0 0.0
    %3722 = vmatpush1.xpose.msra.mxu0 %v3705
    %3723 = vmatprep.subr.mxu0 0.0
    %3724 = vmatpush1.xpose.msra.mxu0 %v3707
    %3725 = vmatprep.subr.mxu0 0.0
    %3726 = vmatpush1.xpose.msra.mxu0 %v3709
    %3727 = vmatprep.subr.mxu0 0.0
    %3728 = vmatpush1.xpose.msra.mxu0 %v3711
    %3729 = vmatprep.subr.mxu0 0.0
    %3730 = vmatpush1.xpose.msra.mxu0 0.0
    %3731 = vmatprep.subr.mxu0 0.0
    %3732 = vmatpush1.xpose.msra.mxu0 0.0
    %3733 = vmatprep.subr.mxu0 0.0
    %3734 = vmatpush1.xpose.msra.mxu0 0.0
    %3735 = vmatprep.subr.mxu0 0.0
    %3736 = vmatpush1.xpose.msra.mxu0 0.0
    %3737 = vmatprep.subr.mxu0 0.0
    %3738 = vmatpush1.xpose.msra.mxu0 0.0
    %3739 = vmatprep.subr.mxu0 0.0
    %3740 = vmatpush1.xpose.msra.mxu0 0.0
    %3741 = vmatprep.subr.mxu0 0.0
    %3742 = vmatpush1.xpose.msra.mxu0 0.0
    %3743 = vmatprep.subr.mxu0 0.0
    %3744 = vmatpush1.xpose.msra.mxu0 0.0
    %3745 = vmatprep.subr.mxu0 0.0
    %3746 = vmatpush1.xpose.msra.mxu0 0.0
    %3747 = vmatprep.subr.mxu0 0.0
    %3748 = vmatpush1.xpose.msra.mxu0 0.0
    %3749 = vmatprep.subr.mxu0 0.0
    %3750 = vmatpush1.xpose.msra.mxu0 0.0
    %3751 = vmatprep.subr.mxu0 0.0
    %3752 = vmatpush1.xpose.msra.mxu0 0.0
    %3753 = vmatprep.subr.mxu0 0.0
    %3754 = vmatpush1.xpose.msra.mxu0 0.0
    %3755 = vmatprep.subr.mxu0 0.0
    %3756 = vmatpush1.xpose.msra.mxu0 0.0
    %3757 = vmatprep.subr.mxu0 0.0
    %3758 = vmatpush1.xpose.msra.mxu0 0.0
    %3759 = vmatprep.subr.mxu0 0.0
    %3760 = vmatpush1.xpose.msra.mxu0 0.0
    %3761 = vmatprep.subr.mxu0 0.0
    %3762 = vmatpush1.xpose.msra.mxu0 0.0
    %3763 = vmatprep.subr.mxu0 0.0
    %3764 = vmatpush1.xpose.msra.mxu0 0.0
    %3765 = vmatprep.subr.mxu0 0.0
    %3766 = vmatpush1.xpose.msra.mxu0 0.0
    %3767 = vmatprep.subr.mxu0 0.0
    %3768 = vmatpush1.xpose.msra.mxu0 0.0
    %3769 = vmatprep.subr.mxu0 0.0
    %3770 = vmatpush1.xpose.msra.mxu0 0.0
    %3771 = vmatprep.subr.mxu0 0.0
    %3772 = vmatpush1.xpose.msra.mxu0 0.0
    %3773 = vmatprep.subr.mxu0 0.0
    %3774 = vmatpush1.xpose.msra.mxu0 0.0
    %3775 = vmatprep.subr.mxu0 0.0
    %3776 = vmatpush1.xpose.msra.mxu0 0.0
    %3777 = vmatprep.mubr.f32.mxu0 0.0
    %3778 = vmatmul.mubr.f32.gmra.mrb[0].mxu0 %v3695
    %v3779 = vpop.f32.mrb[0].mxu0
    %v3780 = vadd.f32 0.0, %v3779
    %v3781 = vpop.f32.mrb[0].mxu0
    %3782 = vdwg.mxu0
    %3783 = vrot.lane.b32.xlu0 %v2289, 120
    %v3784 = vpop.permute.xlu0 %3783
    %3785 = vrot.lane.b32.xlu0 %v2458, 120
    %v3786 = vpop.permute.xlu0 %3785
    %3787 = vrot.lane.b32.xlu0 %v2463, 120
    %v3788 = vpop.permute.xlu0 %3787
    %3789 = vrot.lane.b32.xlu0 %v2468, 120
    %v3790 = vpop.permute.xlu0 %3789
    %3791 = vrot.lane.b32.xlu0 %v2473, 120
    %v3792 = vpop.permute.xlu0 %3791
    %3793 = vrot.lane.b32.xlu0 %v2478, 120
    %v3794 = vpop.permute.xlu0 %3793
    %3795 = vrot.lane.b32.xlu0 %v2483, 120
    %v3796 = vpop.permute.xlu0 %3795
    %3797 = vrot.lane.b32.xlu0 %v2488, 120
    %v3798 = vpop.permute.xlu0 %3797
    %3799 = vrot.lane.b32.xlu0 %v2493, 120
    %v3800 = vpop.permute.xlu0 %3799
    %v3801 = vsel %vm2700, %v3784, 0
    %v3803 = vsel %vm2700, %v3786, 0
    %v3805 = vsel %vm2700, %v3788, 0
    %v3807 = vsel %vm2700, %v3790, 0
    %v3809 = vsel %vm2700, %v3792, 0
    %v3811 = vsel %vm2700, %v3794, 0
    %v3813 = vsel %vm2700, %v3796, 0
    %v3815 = vsel %vm2700, %v3798, 0
    %v3817 = vsel %vm2700, %v3800, 0
    %3819 = vmatprep.subr.mxu0 0.0
    %3820 = vmatpush1.xpose.msra.mxu0 %v3803
    %3821 = vmatprep.subr.mxu0 0.0
    %3822 = vmatpush1.xpose.msra.mxu0 %v3805
    %3823 = vmatprep.subr.mxu0 0.0
    %3824 = vmatpush1.xpose.msra.mxu0 %v3807
    %3825 = vmatprep.subr.mxu0 0.0
    %3826 = vmatpush1.xpose.msra.mxu0 %v3809
    %3827 = vmatprep.subr.mxu0 0.0
    %3828 = vmatpush1.xpose.msra.mxu0 %v3811
    %3829 = vmatprep.subr.mxu0 0.0
    %3830 = vmatpush1.xpose.msra.mxu0 %v3813
    %3831 = vmatprep.subr.mxu0 0.0
    %3832 = vmatpush1.xpose.msra.mxu0 %v3815
    %3833 = vmatprep.subr.mxu0 0.0
    %3834 = vmatpush1.xpose.msra.mxu0 %v3817
    %3835 = vmatprep.subr.mxu0 0.0
    %3836 = vmatpush1.xpose.msra.mxu0 0.0
    %3837 = vmatprep.subr.mxu0 0.0
    %3838 = vmatpush1.xpose.msra.mxu0 0.0
    %3839 = vmatprep.subr.mxu0 0.0
    %3840 = vmatpush1.xpose.msra.mxu0 0.0
    %3841 = vmatprep.subr.mxu0 0.0
    %3842 = vmatpush1.xpose.msra.mxu0 0.0
    %3843 = vmatprep.subr.mxu0 0.0
    %3844 = vmatpush1.xpose.msra.mxu0 0.0
    %3845 = vmatprep.subr.mxu0 0.0
    %3846 = vmatpush1.xpose.msra.mxu0 0.0
    %3847 = vmatprep.subr.mxu0 0.0
    %3848 = vmatpush1.xpose.msra.mxu0 0.0
    %3849 = vmatprep.subr.mxu0 0.0
    %3850 = vmatpush1.xpose.msra.mxu0 0.0
    %3851 = vmatprep.subr.mxu0 0.0
    %3852 = vmatpush1.xpose.msra.mxu0 0.0
    %3853 = vmatprep.subr.mxu0 0.0
    %3854 = vmatpush1.xpose.msra.mxu0 0.0
    %3855 = vmatprep.subr.mxu0 0.0
    %3856 = vmatpush1.xpose.msra.mxu0 0.0
    %3857 = vmatprep.subr.mxu0 0.0
    %3858 = vmatpush1.xpose.msra.mxu0 0.0
    %3859 = vmatprep.subr.mxu0 0.0
    %3860 = vmatpush1.xpose.msra.mxu0 0.0
    %3861 = vmatprep.subr.mxu0 0.0
    %3862 = vmatpush1.xpose.msra.mxu0 0.0
    %3863 = vmatprep.subr.mxu0 0.0
    %3864 = vmatpush1.xpose.msra.mxu0 0.0
    %3865 = vmatprep.subr.mxu0 0.0
    %3866 = vmatpush1.xpose.msra.mxu0 0.0
    %3867 = vmatprep.subr.mxu0 0.0
    %3868 = vmatpush1.xpose.msra.mxu0 0.0
    %3869 = vmatprep.subr.mxu0 0.0
    %3870 = vmatpush1.xpose.msra.mxu0 0.0
    %3871 = vmatprep.subr.mxu0 0.0
    %3872 = vmatpush1.xpose.msra.mxu0 0.0
    %3873 = vmatprep.subr.mxu0 0.0
    %3874 = vmatpush1.xpose.msra.mxu0 0.0
    %3875 = vmatprep.subr.mxu0 0.0
    %3876 = vmatpush1.xpose.msra.mxu0 0.0
    %3877 = vmatprep.subr.mxu0 0.0
    %3878 = vmatpush1.xpose.msra.mxu0 0.0
    %3879 = vmatprep.subr.mxu0 0.0
    %3880 = vmatpush1.xpose.msra.mxu0 0.0
    %3881 = vmatprep.subr.mxu0 0.0
    %3882 = vmatpush1.xpose.msra.mxu0 0.0
    %3883 = vmatprep.mubr.f32.mxu0 0.0
    %3884 = vmatmul.mubr.f32.gmra.mrb[0].mxu0 %v3801
    %v3885 = vpop.f32.mrb[0].mxu0
    %v3886 = vadd.f32 0.0, %v3885
    %v3887 = vpop.f32.mrb[0].mxu0
    %3888 = vdwg.mxu0
    %v3889 = vsel %vm2895, %v3780, -inf
    %3890 = vmax.xlane.f32.xlu0 %v3889
    %v3891 = vpop.xlane.xlu0 %3890
    %v3892 = vsel %vm2895, %v3886, -inf
    %3893 = vmax.xlane.f32.xlu0 %v3892
    %v3894 = vpop.xlane.xlu0 %3893
    %v3895 = vsub.f32 %v3780, %v3891
    %v3896 = vsub.f32 %v3886, %v3894
    %v3897 = vmul.f32 %v3895, 1.442695
    %v3898 = vpow.pop %v3897
    %v3899 = vmul.f32 %v3896, 1.442695
    %v3900 = vpow.pop %v3899
    %v3901 = vsel %vm2895, %v3898, 0.0
    %3902 = vadd.xlane.f32.xlu0 %v3901
    %v3903 = vpop.xlane.xlu0 %3902
    %v3904 = vsel %vm2895, %v3900, 0.0
    %3905 = vadd.xlane.f32.xlu0 %v3904
    %v3906 = vpop.xlane.xlu0 %3905
    %v3907 = vrcp.pop %v3903
    %v3908 = vmul.f32 %v3898, %v3907
    %v3909 = vrcp.pop %v3906
    %v3910 = vmul.f32 %v3900, %v3909
    %3911 = vrot.lane.b32.xlu0 %v2622, 120
    %v3912 = vpop.permute.xlu0 %3911
    %3913 = vrot.lane.b32.xlu0 %v2627, 120
    %v3914 = vpop.permute.xlu0 %3913
    %3915 = vrot.lane.b32.xlu0 %v2632, 120
    %v3916 = vpop.permute.xlu0 %3915
    %3917 = vrot.lane.b32.xlu0 %v2637, 120
    %v3918 = vpop.permute.xlu0 %3917
    %3919 = vrot.lane.b32.xlu0 %v2642, 120
    %v3920 = vpop.permute.xlu0 %3919
    %3921 = vrot.lane.b32.xlu0 %v2647, 120
    %v3922 = vpop.permute.xlu0 %3921
    %3923 = vrot.lane.b32.xlu0 %v2652, 120
    %v3924 = vpop.permute.xlu0 %3923
    %3925 = vrot.lane.b32.xlu0 %v2657, 120
    %v3926 = vpop.permute.xlu0 %3925
    %v3936 = vsel %vm2895, %v3908, 0
    %3938 = vmatprep.subr.mxu0 0.0
    %3939 = vmatpush1.msra.mxu0 %v3912
    %3940 = vmatprep.subr.mxu0 0.0
    %3941 = vmatpush1.msra.mxu0 %v3914
    %3942 = vmatprep.subr.mxu0 0.0
    %3943 = vmatpush1.msra.mxu0 %v3916
    %3944 = vmatprep.subr.mxu0 0.0
    %3945 = vmatpush1.msra.mxu0 %v3918
    %3946 = vmatprep.subr.mxu0 0.0
    %3947 = vmatpush1.msra.mxu0 %v3920
    %3948 = vmatprep.subr.mxu0 0.0
    %3949 = vmatpush1.msra.mxu0 %v3922
    %3950 = vmatprep.subr.mxu0 0.0
    %3951 = vmatpush1.msra.mxu0 %v3924
    %3952 = vmatprep.subr.mxu0 0.0
    %3953 = vmatpush1.msra.mxu0 %v3926
    %3954 = vmatprep.subr.mxu0 0.0
    %3955 = vmatpush1.msra.mxu0 0.0
    %3956 = vmatprep.subr.mxu0 0.0
    %3957 = vmatpush1.msra.mxu0 0.0
    %3958 = vmatprep.subr.mxu0 0.0
    %3959 = vmatpush1.msra.mxu0 0.0
    %3960 = vmatprep.subr.mxu0 0.0
    %3961 = vmatpush1.msra.mxu0 0.0
    %3962 = vmatprep.subr.mxu0 0.0
    %3963 = vmatpush1.msra.mxu0 0.0
    %3964 = vmatprep.subr.mxu0 0.0
    %3965 = vmatpush1.msra.mxu0 0.0
    %3966 = vmatprep.subr.mxu0 0.0
    %3967 = vmatpush1.msra.mxu0 0.0
    %3968 = vmatprep.subr.mxu0 0.0
    %3969 = vmatpush1.msra.mxu0 0.0
    %3970 = vmatprep.subr.mxu0 0.0
    %3971 = vmatpush1.msra.mxu0 0.0
    %3972 = vmatprep.subr.mxu0 0.0
    %3973 = vmatpush1.msra.mxu0 0.0
    %3974 = vmatprep.subr.mxu0 0.0
    %3975 = vmatpush1.msra.mxu0 0.0
    %3976 = vmatprep.subr.mxu0 0.0
    %3977 = vmatpush1.msra.mxu0 0.0
    %3978 = vmatprep.subr.mxu0 0.0
    %3979 = vmatpush1.msra.mxu0 0.0
    %3980 = vmatprep.subr.mxu0 0.0
    %3981 = vmatpush1.msra.mxu0 0.0
    %3982 = vmatprep.subr.mxu0 0.0
    %3983 = vmatpush1.msra.mxu0 0.0
    %3984 = vmatprep.subr.mxu0 0.0
    %3985 = vmatpush1.msra.mxu0 0.0
    %3986 = vmatprep.subr.mxu0 0.0
    %3987 = vmatpush1.msra.mxu0 0.0
    %3988 = vmatprep.subr.mxu0 0.0
    %3989 = vmatpush1.msra.mxu0 0.0
    %3990 = vmatprep.subr.mxu0 0.0
    %3991 = vmatpush1.msra.mxu0 0.0
    %3992 = vmatprep.subr.mxu0 0.0
    %3993 = vmatpush1.msra.mxu0 0.0
    %3994 = vmatprep.subr.mxu0 0.0
    %3995 = vmatpush1.msra.mxu0 0.0
    %3996 = vmatprep.subr.mxu0 0.0
    %3997 = vmatpush1.msra.mxu0 0.0
    %3998 = vmatprep.subr.mxu0 0.0
    %3999 = vmatpush1.msra.mxu0 0.0
    %4000 = vmatprep.subr.mxu0 0.0
    %4001 = vmatpush1.msra.mxu0 0.0
    %4002 = vmatprep.mubr.f32.mxu0 0.0
    %4003 = vmatmul.mubr.f32.gmra.mrb[0].mxu0 %v3936
    %v4004 = vpop.f32.mrb[0].mxu0
    %v4005 = vadd.f32 0.0, %v4004
    %v4006 = vpop.f32.mrb[0].mxu0
    %4007 = vdwg.mxu0
    %4008 = vrot.lane.b32.xlu0 %v2662, 120
    %v4009 = vpop.permute.xlu0 %4008
    %4010 = vrot.lane.b32.xlu0 %v2667, 120
    %v4011 = vpop.permute.xlu0 %4010
    %4012 = vrot.lane.b32.xlu0 %v2672, 120
    %v4013 = vpop.permute.xlu0 %4012
    %4014 = vrot.lane.b32.xlu0 %v2677, 120
    %v4015 = vpop.permute.xlu0 %4014
    %4016 = vrot.lane.b32.xlu0 %v2682, 120
    %v4017 = vpop.permute.xlu0 %4016
    %4018 = vrot.lane.b32.xlu0 %v2687, 120
    %v4019 = vpop.permute.xlu0 %4018
    %4020 = vrot.lane.b32.xlu0 %v2692, 120
    %v4021 = vpop.permute.xlu0 %4020
    %4022 = vrot.lane.b32.xlu0 %v2697, 120
    %v4023 = vpop.permute.xlu0 %4022
    %v4033 = vsel %vm2895, %v3910, 0
    %4035 = vmatprep.subr.mxu0 0.0
    %4036 = vmatpush1.msra.mxu0 %v4009
    %4037 = vmatprep.subr.mxu0 0.0
    %4038 = vmatpush1.msra.mxu0 %v4011
    %4039 = vmatprep.subr.mxu0 0.0
    %4040 = vmatpush1.msra.mxu0 %v4013
    %4041 = vmatprep.subr.mxu0 0.0
    %4042 = vmatpush1.msra.mxu0 %v4015
    %4043 = vmatprep.subr.mxu0 0.0
    %4044 = vmatpush1.msra.mxu0 %v4017
    %4045 = vmatprep.subr.mxu0 0.0
    %4046 = vmatpush1.msra.mxu0 %v4019
    %4047 = vmatprep.subr.mxu0 0.0
    %4048 = vmatpush1.msra.mxu0 %v4021
    %4049 = vmatprep.subr.mxu0 0.0
    %4050 = vmatpush1.msra.mxu0 %v4023
    %4051 = vmatprep.subr.mxu0 0.0
    %4052 = vmatpush1.msra.mxu0 0.0
    %4053 = vmatprep.subr.mxu0 0.0
    %4054 = vmatpush1.msra.mxu0 0.0
    %4055 = vmatprep.subr.mxu0 0.0
    %4056 = vmatpush1.msra.mxu0 0.0
    %4057 = vmatprep.subr.mxu0 0.0
    %4058 = vmatpush1.msra.mxu0 0.0
    %4059 = vmatprep.subr.mxu0 0.0
    %4060 = vmatpush1.msra.mxu0 0.0
    %4061 = vmatprep.subr.mxu0 0.0
    %4062 = vmatpush1.msra.mxu0 0.0
    %4063 = vmatprep.subr.mxu0 0.0
    %4064 = vmatpush1.msra.mxu0 0.0
    %4065 = vmatprep.subr.mxu0 0.0
    %4066 = vmatpush1.msra.mxu0 0.0
    %4067 = vmatprep.subr.mxu0 0.0
    %4068 = vmatpush1.msra.mxu0 0.0
    %4069 = vmatprep.subr.mxu0 0.0
    %4070 = vmatpush1.msra.mxu0 0.0
    %4071 = vmatprep.subr.mxu0 0.0
    %4072 = vmatpush1.msra.mxu0 0.0
    %4073 = vmatprep.subr.mxu0 0.0
    %4074 = vmatpush1.msra.mxu0 0.0
    %4075 = vmatprep.subr.mxu0 0.0
    %4076 = vmatpush1.msra.mxu0 0.0
    %4077 = vmatprep.subr.mxu0 0.0
    %4078 = vmatpush1.msra.mxu0 0.0
    %4079 = vmatprep.subr.mxu0 0.0
    %4080 = vmatpush1.msra.mxu0 0.0
    %4081 = vmatprep.subr.mxu0 0.0
    %4082 = vmatpush1.msra.mxu0 0.0
    %4083 = vmatprep.subr.mxu0 0.0
    %4084 = vmatpush1.msra.mxu0 0.0
    %4085 = vmatprep.subr.mxu0 0.0
    %4086 = vmatpush1.msra.mxu0 0.0
    %4087 = vmatprep.subr.mxu0 0.0
    %4088 = vmatpush1.msra.mxu0 0.0
    %4089 = vmatprep.subr.mxu0 0.0
    %4090 = vmatpush1.msra.mxu0 0.0
    %4091 = vmatprep.subr.mxu0 0.0
    %4092 = vmatpush1.msra.mxu0 0.0
    %4093 = vmatprep.subr.mxu0 0.0
    %4094 = vmatpush1.msra.mxu0 0.0
    %4095 = vmatprep.subr.mxu0 0.0
    %4096 = vmatpush1.msra.mxu0 0.0
    %4097 = vmatprep.subr.mxu0 0.0
    %4098 = vmatpush1.msra.mxu0 0.0
    %4099 = vmatprep.mubr.f32.mxu0 0.0
    %4100 = vmatmul.mubr.f32.gmra.mrb[0].mxu0 %v4033
    %v4101 = vpop.f32.mrb[0].mxu0
    %v4102 = vadd.f32 0.0, %v4101
    %v4103 = vpop.f32.mrb[0].mxu0
    %4104 = vdwg.mxu0
    %v4106 = vsel %vm2700, %v4005, 0
    %v4109 = vsel %vm2700, %v4102, 0
    %v4112 = vsel %vm3516, %v2199, 0
    %4114 = vmatprep.subr.mxu0 0.0
    %4115 = vmatpush1.msra.mxu0 %v4112
    %4116 = vmatprep.subr.mxu0 0.0
    %4117 = vmatpush1.msra.mxu0 0.0
    %4118 = vmatprep.subr.mxu0 0.0
    %4119 = vmatpush1.msra.mxu0 0.0
    %4120 = vmatprep.subr.mxu0 0.0
    %4121 = vmatpush1.msra.mxu0 0.0
    %4122 = vmatprep.subr.mxu0 0.0
    %4123 = vmatpush1.msra.mxu0 0.0
    %4124 = vmatprep.subr.mxu0 0.0
    %4125 = vmatpush1.msra.mxu0 0.0
    %4126 = vmatprep.subr.mxu0 0.0
    %4127 = vmatpush1.msra.mxu0 0.0
    %4128 = vmatprep.subr.mxu0 0.0
    %4129 = vmatpush1.msra.mxu0 0.0
    %4130 = vmatprep.subr.mxu0 0.0
    %4131 = vmatpush1.msra.mxu0 0.0
    %4132 = vmatprep.subr.mxu0 0.0
    %4133 = vmatpush1.msra.mxu0 0.0
    %4134 = vmatprep.subr.mxu0 0.0
    %4135 = vmatpush1.msra.mxu0 0.0
    %4136 = vmatprep.subr.mxu0 0.0
    %4137 = vmatpush1.msra.mxu0 0.0
    %4138 = vmatprep.subr.mxu0 0.0
    %4139 = vmatpush1.msra.mxu0 0.0
    %4140 = vmatprep.subr.mxu0 0.0
    %4141 = vmatpush1.msra.mxu0 0.0
    %4142 = vmatprep.subr.mxu0 0.0
    %4143 = vmatpush1.msra.mxu0 0.0
    %4144 = vmatprep.subr.mxu0 0.0
    %4145 = vmatpush1.msra.mxu0 0.0
    %4146 = vmatprep.subr.mxu0 0.0
    %4147 = vmatpush1.msra.mxu0 0.0
    %4148 = vmatprep.subr.mxu0 0.0
    %4149 = vmatpush1.msra.mxu0 0.0
    %4150 = vmatprep.subr.mxu0 0.0
    %4151 = vmatpush1.msra.mxu0 0.0
    %4152 = vmatprep.subr.mxu0 0.0
    %4153 = vmatpush1.msra.mxu0 0.0
    %4154 = vmatprep.subr.mxu0 0.0
    %4155 = vmatpush1.msra.mxu0 0.0
    %4156 = vmatprep.subr.mxu0 0.0
    %4157 = vmatpush1.msra.mxu0 0.0
    %4158 = vmatprep.subr.mxu0 0.0
    %4159 = vmatpush1.msra.mxu0 0.0
    %4160 = vmatprep.subr.mxu0 0.0
    %4161 = vmatpush1.msra.mxu0 0.0
    %4162 = vmatprep.subr.mxu0 0.0
    %4163 = vmatpush1.msra.mxu0 0.0
    %4164 = vmatprep.subr.mxu0 0.0
    %4165 = vmatpush1.msra.mxu0 0.0
    %4166 = vmatprep.subr.mxu0 0.0
    %4167 = vmatpush1.msra.mxu0 0.0
    %4168 = vmatprep.subr.mxu0 0.0
    %4169 = vmatpush1.msra.mxu0 0.0
    %4170 = vmatprep.subr.mxu0 0.0
    %4171 = vmatpush1.msra.mxu0 0.0
    %4172 = vmatprep.subr.mxu0 0.0
    %4173 = vmatpush1.msra.mxu0 0.0
    %4174 = vmatprep.subr.mxu0 0.0
    %4175 = vmatpush1.msra.mxu0 0.0
    %4176 = vmatprep.subr.mxu0 0.0
    %4177 = vmatpush1.msra.mxu0 0.0
    %4178 = vmatprep.mubr.f32.mxu0 0.0
    %4179 = vmatmul.mubr.f32.gmra.mrb[0].mxu0 %v4106
    %v4180 = vpop.f32.mrb[0].mxu0
    %v4181 = vadd.f32 0.0, %v4180
    %v4182 = vpop.f32.mrb[0].mxu0
    %4183 = vmatprep.mubr.f32.mxu0 0.0
    %4184 = vmatmul.mubr.f32.gmra.mrb[0].mxu0 %v4109
    %v4185 = vpop.f32.mrb[0].mxu0
    %v4186 = vadd.f32 0.0, %v4185
    %v4187 = vpop.f32.mrb[0].mxu0
    %4188 = vdwg.mxu0
    %v4189 = vadd.f32 %v3669, %v4181
    %v4190 = vadd.f32 %v3674, %v4186
    %4191 = vrot.lane.b32.xlu0 %v2284, 116
    %v4192 = vpop.permute.xlu0 %4191
    %4193 = vrot.lane.b32.xlu0 %v2418, 116
    %v4194 = vpop.permute.xlu0 %4193
    %4195 = vrot.lane.b32.xlu0 %v2423, 116
    %v4196 = vpop.permute.xlu0 %4195
    %4197 = vrot.lane.b32.xlu0 %v2428, 116
    %v4198 = vpop.permute.xlu0 %4197
    %4199 = vrot.lane.b32.xlu0 %v2433, 116
    %v4200 = vpop.permute.xlu0 %4199
    %4201 = vrot.lane.b32.xlu0 %v2438, 116
    %v4202 = vpop.permute.xlu0 %4201
    %4203 = vrot.lane.b32.xlu0 %v2443, 116
    %v4204 = vpop.permute.xlu0 %4203
    %4205 = vrot.lane.b32.xlu0 %v2448, 116
    %v4206 = vpop.permute.xlu0 %4205
    %4207 = vrot.lane.b32.xlu0 %v2453, 116
    %v4208 = vpop.permute.xlu0 %4207
    %v4209 = vsel %vm2700, %v4192, 0
    %v4211 = vsel %vm2700, %v4194, 0
    %v4213 = vsel %vm2700, %v4196, 0
    %v4215 = vsel %vm2700, %v4198, 0
    %v4217 = vsel %vm2700, %v4200, 0
    %v4219 = vsel %vm2700, %v4202, 0
    %v4221 = vsel %vm2700, %v4204, 0
    %v4223 = vsel %vm2700, %v4206, 0
    %v4225 = vsel %vm2700, %v4208, 0
    %4227 = vmatprep.subr.mxu0 0.0
    %4228 = vmatpush1.xpose.msra.mxu0 %v4211
    %4229 = vmatprep.subr.mxu0 0.0
    %4230 = vmatpush1.xpose.msra.mxu0 %v4213
    %4231 = vmatprep.subr.mxu0 0.0
    %4232 = vmatpush1.xpose.msra.mxu0 %v4215
    %4233 = vmatprep.subr.mxu0 0.0
    %4234 = vmatpush1.xpose.msra.mxu0 %v4217
    %4235 = vmatprep.subr.mxu0 0.0
    %4236 = vmatpush1.xpose.msra.mxu0 %v4219
    %4237 = vmatprep.subr.mxu0 0.0
    %4238 = vmatpush1.xpose.msra.mxu0 %v4221
    %4239 = vmatprep.subr.mxu0 0.0
    %4240 = vmatpush1.xpose.msra.mxu0 %v4223
    %4241 = vmatprep.subr.mxu0 0.0
    %4242 = vmatpush1.xpose.msra.mxu0 %v4225
    %4243 = vmatprep.subr.mxu0 0.0
    %4244 = vmatpush1.xpose.msra.mxu0 0.0
    %4245 = vmatprep.subr.mxu0 0.0
    %4246 = vmatpush1.xpose.msra.mxu0 0.0
    %4247 = vmatprep.subr.mxu0 0.0
    %4248 = vmatpush1.xpose.msra.mxu0 0.0
    %4249 = vmatprep.subr.mxu0 0.0
    %4250 = vmatpush1.xpose.msra.mxu0 0.0
    %4251 = vmatprep.subr.mxu0 0.0
    %4252 = vmatpush1.xpose.msra.mxu0 0.0
    %4253 = vmatprep.subr.mxu0 0.0
    %4254 = vmatpush1.xpose.msra.mxu0 0.0
    %4255 = vmatprep.subr.mxu0 0.0
    %4256 = vmatpush1.xpose.msra.mxu0 0.0
    %4257 = vmatprep.subr.mxu0 0.0
    %4258 = vmatpush1.xpose.msra.mxu0 0.0
    %4259 = vmatprep.subr.mxu0 0.0
    %4260 = vmatpush1.xpose.msra.mxu0 0.0
    %4261 = vmatprep.subr.mxu0 0.0
    %4262 = vmatpush1.xpose.msra.mxu0 0.0
    %4263 = vmatprep.subr.mxu0 0.0
    %4264 = vmatpush1.xpose.msra.mxu0 0.0
    %4265 = vmatprep.subr.mxu0 0.0
    %4266 = vmatpush1.xpose.msra.mxu0 0.0
    %4267 = vmatprep.subr.mxu0 0.0
    %4268 = vmatpush1.xpose.msra.mxu0 0.0
    %4269 = vmatprep.subr.mxu0 0.0
    %4270 = vmatpush1.xpose.msra.mxu0 0.0
    %4271 = vmatprep.subr.mxu0 0.0
    %4272 = vmatpush1.xpose.msra.mxu0 0.0
    %4273 = vmatprep.subr.mxu0 0.0
    %4274 = vmatpush1.xpose.msra.mxu0 0.0
    %4275 = vmatprep.subr.mxu0 0.0
    %4276 = vmatpush1.xpose.msra.mxu0 0.0
    %4277 = vmatprep.subr.mxu0 0.0
    %4278 = vmatpush1.xpose.msra.mxu0 0.0
    %4279 = vmatprep.subr.mxu0 0.0
    %4280 = vmatpush1.xpose.msra.mxu0 0.0
    %4281 = vmatprep.subr.mxu0 0.0
    %4282 = vmatpush1.xpose.msra.mxu0 0.0
    %4283 = vmatprep.subr.mxu0 0.0
    %4284 = vmatpush1.xpose.msra.mxu0 0.0
    %4285 = vmatprep.subr.mxu0 0.0
    %4286 = vmatpush1.xpose.msra.mxu0 0.0
    %4287 = vmatprep.subr.mxu0 0.0
    %4288 = vmatpush1.xpose.msra.mxu0 0.0
    %4289 = vmatprep.subr.mxu0 0.0
    %4290 = vmatpush1.xpose.msra.mxu0 0.0
    %4291 = vmatprep.mubr.f32.mxu0 0.0
    %4292 = vmatmul.mubr.f32.gmra.mrb[0].mxu0 %v4209
    %v4293 = vpop.f32.mrb[0].mxu0
    %v4294 = vadd.f32 0.0, %v4293
    %v4295 = vpop.f32.mrb[0].mxu0
    %4296 = vdwg.mxu0
    %4297 = vrot.lane.b32.xlu0 %v2289, 116
    %v4298 = vpop.permute.xlu0 %4297
    %4299 = vrot.lane.b32.xlu0 %v2458, 116
    %v4300 = vpop.permute.xlu0 %4299
    %4301 = vrot.lane.b32.xlu0 %v2463, 116
    %v4302 = vpop.permute.xlu0 %4301
    %4303 = vrot.lane.b32.xlu0 %v2468, 116
    %v4304 = vpop.permute.xlu0 %4303
    %4305 = vrot.lane.b32.xlu0 %v2473, 116
    %v4306 = vpop.permute.xlu0 %4305
    %4307 = vrot.lane.b32.xlu0 %v2478, 116
    %v4308 = vpop.permute.xlu0 %4307
    %4309 = vrot.lane.b32.xlu0 %v2483, 116
    %v4310 = vpop.permute.xlu0 %4309
    %4311 = vrot.lane.b32.xlu0 %v2488, 116
    %v4312 = vpop.permute.xlu0 %4311
    %4313 = vrot.lane.b32.xlu0 %v2493, 116
    %v4314 = vpop.permute.xlu0 %4313
    %v4315 = vsel %vm2700, %v4298, 0
    %v4317 = vsel %vm2700, %v4300, 0
    %v4319 = vsel %vm2700, %v4302, 0
    %v4321 = vsel %vm2700, %v4304, 0
    %v4323 = vsel %vm2700, %v4306, 0
    %v4325 = vsel %vm2700, %v4308, 0
    %v4327 = vsel %vm2700, %v4310, 0
    %v4329 = vsel %vm2700, %v4312, 0
    %v4331 = vsel %vm2700, %v4314, 0
    %4333 = vmatprep.subr.mxu0 0.0
    %4334 = vmatpush1.xpose.msra.mxu0 %v4317
    %4335 = vmatprep.subr.mxu0 0.0
    %4336 = vmatpush1.xpose.msra.mxu0 %v4319
    %4337 = vmatprep.subr.mxu0 0.0
    %4338 = vmatpush1.xpose.msra.mxu0 %v4321
    %4339 = vmatprep.subr.mxu0 0.0
    %4340 = vmatpush1.xpose.msra.mxu0 %v4323
    %4341 = vmatprep.subr.mxu0 0.0
    %4342 = vmatpush1.xpose.msra.mxu0 %v4325
    %4343 = vmatprep.subr.mxu0 0.0
    %4344 = vmatpush1.xpose.msra.mxu0 %v4327
    %4345 = vmatprep.subr.mxu0 0.0
    %4346 = vmatpush1.xpose.msra.mxu0 %v4329
    %4347 = vmatprep.subr.mxu0 0.0
    %4348 = vmatpush1.xpose.msra.mxu0 %v4331
    %4349 = vmatprep.subr.mxu0 0.0
    %4350 = vmatpush1.xpose.msra.mxu0 0.0
    %4351 = vmatprep.subr.mxu0 0.0
    %4352 = vmatpush1.xpose.msra.mxu0 0.0
    %4353 = vmatprep.subr.mxu0 0.0
    %4354 = vmatpush1.xpose.msra.mxu0 0.0
    %4355 = vmatprep.subr.mxu0 0.0
    %4356 = vmatpush1.xpose.msra.mxu0 0.0
    %4357 = vmatprep.subr.mxu0 0.0
    %4358 = vmatpush1.xpose.msra.mxu0 0.0
    %4359 = vmatprep.subr.mxu0 0.0
    %4360 = vmatpush1.xpose.msra.mxu0 0.0
    %4361 = vmatprep.subr.mxu0 0.0
    %4362 = vmatpush1.xpose.msra.mxu0 0.0
    %4363 = vmatprep.subr.mxu0 0.0
    %4364 = vmatpush1.xpose.msra.mxu0 0.0
    %4365 = vmatprep.subr.mxu0 0.0
    %4366 = vmatpush1.xpose.msra.mxu0 0.0
    %4367 = vmatprep.subr.mxu0 0.0
    %4368 = vmatpush1.xpose.msra.mxu0 0.0
    %4369 = vmatprep.subr.mxu0 0.0
    %4370 = vmatpush1.xpose.msra.mxu0 0.0
    %4371 = vmatprep.subr.mxu0 0.0
    %4372 = vmatpush1.xpose.msra.mxu0 0.0
    %4373 = vmatprep.subr.mxu0 0.0
    %4374 = vmatpush1.xpose.msra.mxu0 0.0
    %4375 = vmatprep.subr.mxu0 0.0
    %4376 = vmatpush1.xpose.msra.mxu0 0.0
    %4377 = vmatprep.subr.mxu0 0.0
    %4378 = vmatpush1.xpose.msra.mxu0 0.0
    %4379 = vmatprep.subr.mxu0 0.0
    %4380 = vmatpush1.xpose.msra.mxu0 0.0
    %4381 = vmatprep.subr.mxu0 0.0
    %4382 = vmatpush1.xpose.msra.mxu0 0.0
    %4383 = vmatprep.subr.mxu0 0.0
    %4384 = vmatpush1.xpose.msra.mxu0 0.0
    %4385 = vmatprep.subr.mxu0 0.0
    %4386 = vmatpush1.xpose.msra.mxu0 0.0
    %4387 = vmatprep.subr.mxu0 0.0
    %4388 = vmatpush1.xpose.msra.mxu0 0.0
    %4389 = vmatprep.subr.mxu0 0.0
    %4390 = vmatpush1.xpose.msra.mxu0 0.0
    %4391 = vmatprep.subr.mxu0 0.0
    %4392 = vmatpush1.xpose.msra.mxu0 0.0
    %4393 = vmatprep.subr.mxu0 0.0
    %4394 = vmatpush1.xpose.msra.mxu0 0.0
    %4395 = vmatprep.subr.mxu0 0.0
    %4396 = vmatpush1.xpose.msra.mxu0 0.0
    %4397 = vmatprep.mubr.f32.mxu0 0.0
    %4398 = vmatmul.mubr.f32.gmra.mrb[0].mxu0 %v4315
    %v4399 = vpop.f32.mrb[0].mxu0
    %v4400 = vadd.f32 0.0, %v4399
    %v4401 = vpop.f32.mrb[0].mxu0
    %4402 = vdwg.mxu0
    %v4403 = vsel %vm2895, %v4294, -inf
    %4404 = vmax.xlane.f32.xlu0 %v4403
    %v4405 = vpop.xlane.xlu0 %4404
    %v4406 = vsel %vm2895, %v4400, -inf
    %4407 = vmax.xlane.f32.xlu0 %v4406
    %v4408 = vpop.xlane.xlu0 %4407
    %v4409 = vsub.f32 %v4294, %v4405
    %v4410 = vsub.f32 %v4400, %v4408
    %v4411 = vmul.f32 %v4409, 1.442695
    %v4412 = vpow.pop %v4411
    %v4413 = vmul.f32 %v4410, 1.442695
    %v4414 = vpow.pop %v4413
    %v4415 = vsel %vm2895, %v4412, 0.0
    %4416 = vadd.xlane.f32.xlu0 %v4415
    %v4417 = vpop.xlane.xlu0 %4416
    %v4418 = vsel %vm2895, %v4414, 0.0
    %4419 = vadd.xlane.f32.xlu0 %v4418
    %v4420 = vpop.xlane.xlu0 %4419
    %v4421 = vrcp.pop %v4417
    %v4422 = vmul.f32 %v4412, %v4421
    %v4423 = vrcp.pop %v4420
    %v4424 = vmul.f32 %v4414, %v4423
    %4425 = vrot.lane.b32.xlu0 %v2622, 116
    %v4426 = vpop.permute.xlu0 %4425
    %4427 = vrot.lane.b32.xlu0 %v2627, 116
    %v4428 = vpop.permute.xlu0 %4427
    %4429 = vrot.lane.b32.xlu0 %v2632, 116
    %v4430 = vpop.permute.xlu0 %4429
    %4431 = vrot.lane.b32.xlu0 %v2637, 116
    %v4432 = vpop.permute.xlu0 %4431
    %4433 = vrot.lane.b32.xlu0 %v2642, 116
    %v4434 = vpop.permute.xlu0 %4433
    %4435 = vrot.lane.b32.xlu0 %v2647, 116
    %v4436 = vpop.permute.xlu0 %4435
    %4437 = vrot.lane.b32.xlu0 %v2652, 116
    %v4438 = vpop.permute.xlu0 %4437
    %4439 = vrot.lane.b32.xlu0 %v2657, 116
    %v4440 = vpop.permute.xlu0 %4439
    %v4450 = vsel %vm2895, %v4422, 0
    %4452 = vmatprep.subr.mxu0 0.0
    %4453 = vmatpush1.msra.mxu0 %v4426
    %4454 = vmatprep.subr.mxu0 0.0
    %4455 = vmatpush1.msra.mxu0 %v4428
    %4456 = vmatprep.subr.mxu0 0.0
    %4457 = vmatpush1.msra.mxu0 %v4430
    %4458 = vmatprep.subr.mxu0 0.0
    %4459 = vmatpush1.msra.mxu0 %v4432
    %4460 = vmatprep.subr.mxu0 0.0
    %4461 = vmatpush1.msra.mxu0 %v4434
    %4462 = vmatprep.subr.mxu0 0.0
    %4463 = vmatpush1.msra.mxu0 %v4436
    %4464 = vmatprep.subr.mxu0 0.0
    %4465 = vmatpush1.msra.mxu0 %v4438
    %4466 = vmatprep.subr.mxu0 0.0
    %4467 = vmatpush1.msra.mxu0 %v4440
    %4468 = vmatprep.subr.mxu0 0.0
    %4469 = vmatpush1.msra.mxu0 0.0
    %4470 = vmatprep.subr.mxu0 0.0
    %4471 = vmatpush1.msra.mxu0 0.0
    %4472 = vmatprep.subr.mxu0 0.0
    %4473 = vmatpush1.msra.mxu0 0.0
    %4474 = vmatprep.subr.mxu0 0.0
    %4475 = vmatpush1.msra.mxu0 0.0
    %4476 = vmatprep.subr.mxu0 0.0
    %4477 = vmatpush1.msra.mxu0 0.0
    %4478 = vmatprep.subr.mxu0 0.0
    %4479 = vmatpush1.msra.mxu0 0.0
    %4480 = vmatprep.subr.mxu0 0.0
    %4481 = vmatpush1.msra.mxu0 0.0
    %4482 = vmatprep.subr.mxu0 0.0
    %4483 = vmatpush1.msra.mxu0 0.0
    %4484 = vmatprep.subr.mxu0 0.0
    %4485 = vmatpush1.msra.mxu0 0.0
    %4486 = vmatprep.subr.mxu0 0.0
    %4487 = vmatpush1.msra.mxu0 0.0
    %4488 = vmatprep.subr.mxu0 0.0
    %4489 = vmatpush1.msra.mxu0 0.0
    %4490 = vmatprep.subr.mxu0 0.0
    %4491 = vmatpush1.msra.mxu0 0.0
    %4492 = vmatprep.subr.mxu0 0.0
    %4493 = vmatpush1.msra.mxu0 0.0
    %4494 = vmatprep.subr.mxu0 0.0
    %4495 = vmatpush1.msra.mxu0 0.0
    %4496 = vmatprep.subr.mxu0 0.0
    %4497 = vmatpush1.msra.mxu0 0.0
    %4498 = vmatprep.subr.mxu0 0.0
    %4499 = vmatpush1.msra.mxu0 0.0
    %4500 = vmatprep.subr.mxu0 0.0
    %4501 = vmatpush1.msra.mxu0 0.0
    %4502 = vmatprep.subr.mxu0 0.0
    %4503 = vmatpush1.msra.mxu0 0.0
    %4504 = vmatprep.subr.mxu0 0.0
    %4505 = vmatpush1.msra.mxu0 0.0
    %4506 = vmatprep.subr.mxu0 0.0
    %4507 = vmatpush1.msra.mxu0 0.0
    %4508 = vmatprep.subr.mxu0 0.0
    %4509 = vmatpush1.msra.mxu0 0.0
    %4510 = vmatprep.subr.mxu0 0.0
    %4511 = vmatpush1.msra.mxu0 0.0
    %4512 = vmatprep.subr.mxu0 0.0
    %4513 = vmatpush1.msra.mxu0 0.0
    %4514 = vmatprep.subr.mxu0 0.0
    %4515 = vmatpush1.msra.mxu0 0.0
    %4516 = vmatprep.mubr.f32.mxu0 0.0
    %4517 = vmatmul.mubr.f32.gmra.mrb[0].mxu0 %v4450
    %v4518 = vpop.f32.mrb[0].mxu0
    %v4519 = vadd.f32 0.0, %v4518
    %v4520 = vpop.f32.mrb[0].mxu0
    %4521 = vdwg.mxu0
    %4522 = vrot.lane.b32.xlu0 %v2662, 116
    %v4523 = vpop.permute.xlu0 %4522
    %4524 = vrot.lane.b32.xlu0 %v2667, 116
    %v4525 = vpop.permute.xlu0 %4524
    %4526 = vrot.lane.b32.xlu0 %v2672, 116
    %v4527 = vpop.permute.xlu0 %4526
    %4528 = vrot.lane.b32.xlu0 %v2677, 116
    %v4529 = vpop.permute.xlu0 %4528
    %4530 = vrot.lane.b32.xlu0 %v2682, 116
    %v4531 = vpop.permute.xlu0 %4530
    %4532 = vrot.lane.b32.xlu0 %v2687, 116
    %v4533 = vpop.permute.xlu0 %4532
    %4534 = vrot.lane.b32.xlu0 %v2692, 116
    %v4535 = vpop.permute.xlu0 %4534
    %4536 = vrot.lane.b32.xlu0 %v2697, 116
    %v4537 = vpop.permute.xlu0 %4536
    %v4547 = vsel %vm2895, %v4424, 0
    %4549 = vmatprep.subr.mxu0 0.0
    %4550 = vmatpush1.msra.mxu0 %v4523
    %4551 = vmatprep.subr.mxu0 0.0
    %4552 = vmatpush1.msra.mxu0 %v4525
    %4553 = vmatprep.subr.mxu0 0.0
    %4554 = vmatpush1.msra.mxu0 %v4527
    %4555 = vmatprep.subr.mxu0 0.0
    %4556 = vmatpush1.msra.mxu0 %v4529
    %4557 = vmatprep.subr.mxu0 0.0
    %4558 = vmatpush1.msra.mxu0 %v4531
    %4559 = vmatprep.subr.mxu0 0.0
    %4560 = vmatpush1.msra.mxu0 %v4533
    %4561 = vmatprep.subr.mxu0 0.0
    %4562 = vmatpush1.msra.mxu0 %v4535
    %4563 = vmatprep.subr.mxu0 0.0
    %4564 = vmatpush1.msra.mxu0 %v4537
    %4565 = vmatprep.subr.mxu0 0.0
    %4566 = vmatpush1.msra.mxu0 0.0
    %4567 = vmatprep.subr.mxu0 0.0
    %4568 = vmatpush1.msra.mxu0 0.0
    %4569 = vmatprep.subr.mxu0 0.0
    %4570 = vmatpush1.msra.mxu0 0.0
    %4571 = vmatprep.subr.mxu0 0.0
    %4572 = vmatpush1.msra.mxu0 0.0
    %4573 = vmatprep.subr.mxu0 0.0
    %4574 = vmatpush1.msra.mxu0 0.0
    %4575 = vmatprep.subr.mxu0 0.0
    %4576 = vmatpush1.msra.mxu0 0.0
    %4577 = vmatprep.subr.mxu0 0.0
    %4578 = vmatpush1.msra.mxu0 0.0
    %4579 = vmatprep.subr.mxu0 0.0
    %4580 = vmatpush1.msra.mxu0 0.0
    %4581 = vmatprep.subr.mxu0 0.0
    %4582 = vmatpush1.msra.mxu0 0.0
    %4583 = vmatprep.subr.mxu0 0.0
    %4584 = vmatpush1.msra.mxu0 0.0
    %4585 = vmatprep.subr.mxu0 0.0
    %4586 = vmatpush1.msra.mxu0 0.0
    %4587 = vmatprep.subr.mxu0 0.0
    %4588 = vmatpush1.msra.mxu0 0.0
    %4589 = vmatprep.subr.mxu0 0.0
    %4590 = vmatpush1.msra.mxu0 0.0
    %4591 = vmatprep.subr.mxu0 0.0
    %4592 = vmatpush1.msra.mxu0 0.0
    %4593 = vmatprep.subr.mxu0 0.0
    %4594 = vmatpush1.msra.mxu0 0.0
    %4595 = vmatprep.subr.mxu0 0.0
    %4596 = vmatpush1.msra.mxu0 0.0
    %4597 = vmatprep.subr.mxu0 0.0
    %4598 = vmatpush1.msra.mxu0 0.0
    %4599 = vmatprep.subr.mxu0 0.0
    %4600 = vmatpush1.msra.mxu0 0.0
    %4601 = vmatprep.subr.mxu0 0.0
    %4602 = vmatpush1.msra.mxu0 0.0
    %4603 = vmatprep.subr.mxu0 0.0
    %4604 = vmatpush1.msra.mxu0 0.0
    %4605 = vmatprep.subr.mxu0 0.0
    %4606 = vmatpush1.msra.mxu0 0.0
    %4607 = vmatprep.subr.mxu0 0.0
    %4608 = vmatpush1.msra.mxu0 0.0
    %4609 = vmatprep.subr.mxu0 0.0
    %4610 = vmatpush1.msra.mxu0 0.0
    %4611 = vmatprep.subr.mxu0 0.0
    %4612 = vmatpush1.msra.mxu0 0.0
    %4613 = vmatprep.mubr.f32.mxu0 0.0
    %4614 = vmatmul.mubr.f32.gmra.mrb[0].mxu0 %v4547
    %v4615 = vpop.f32.mrb[0].mxu0
    %v4616 = vadd.f32 0.0, %v4615
    %v4617 = vpop.f32.mrb[0].mxu0
    %4618 = vdwg.mxu0
    %v4619 = vrot.slane %v2199, 4
    %v4621 = vsel %vm2700, %v4519, 0
    %v4624 = vsel %vm2700, %v4616, 0
    %v4626 = vsel %vm3516, %v4619, 0
    %4628 = vmatprep.subr.mxu0 0.0
    %4629 = vmatpush1.msra.mxu0 %v4626
    %4630 = vmatprep.subr.mxu0 0.0
    %4631 = vmatpush1.msra.mxu0 0.0
    %4632 = vmatprep.subr.mxu0 0.0
    %4633 = vmatpush1.msra.mxu0 0.0
    %4634 = vmatprep.subr.mxu0 0.0
    %4635 = vmatpush1.msra.mxu0 0.0
    %4636 = vmatprep.subr.mxu0 0.0
    %4637 = vmatpush1.msra.mxu0 0.0
    %4638 = vmatprep.subr.mxu0 0.0
    %4639 = vmatpush1.msra.mxu0 0.0
    %4640 = vmatprep.subr.mxu0 0.0
    %4641 = vmatpush1.msra.mxu0 0.0
    %4642 = vmatprep.subr.mxu0 0.0
    %4643 = vmatpush1.msra.mxu0 0.0
    %4644 = vmatprep.subr.mxu0 0.0
    %4645 = vmatpush1.msra.mxu0 0.0
    %4646 = vmatprep.subr.mxu0 0.0
    %4647 = vmatpush1.msra.mxu0 0.0
    %4648 = vmatprep.subr.mxu0 0.0
    %4649 = vmatpush1.msra.mxu0 0.0
    %4650 = vmatprep.subr.mxu0 0.0
    %4651 = vmatpush1.msra.mxu0 0.0
    %4652 = vmatprep.subr.mxu0 0.0
    %4653 = vmatpush1.msra.mxu0 0.0
    %4654 = vmatprep.subr.mxu0 0.0
    %4655 = vmatpush1.msra.mxu0 0.0
    %4656 = vmatprep.subr.mxu0 0.0
    %4657 = vmatpush1.msra.mxu0 0.0
    %4658 = vmatprep.subr.mxu0 0.0
    %4659 = vmatpush1.msra.mxu0 0.0
    %4660 = vmatprep.subr.mxu0 0.0
    %4661 = vmatpush1.msra.mxu0 0.0
    %4662 = vmatprep.subr.mxu0 0.0
    %4663 = vmatpush1.msra.mxu0 0.0
    %4664 = vmatprep.subr.mxu0 0.0
    %4665 = vmatpush1.msra.mxu0 0.0
    %4666 = vmatprep.subr.mxu0 0.0
    %4667 = vmatpush1.msra.mxu0 0.0
    %4668 = vmatprep.subr.mxu0 0.0
    %4669 = vmatpush1.msra.mxu0 0.0
    %4670 = vmatprep.subr.mxu0 0.0
    %4671 = vmatpush1.msra.mxu0 0.0
    %4672 = vmatprep.subr.mxu0 0.0
    %4673 = vmatpush1.msra.mxu0 0.0
    %4674 = vmatprep.subr.mxu0 0.0
    %4675 = vmatpush1.msra.mxu0 0.0
    %4676 = vmatprep.subr.mxu0 0.0
    %4677 = vmatpush1.msra.mxu0 0.0
    %4678 = vmatprep.subr.mxu0 0.0
    %4679 = vmatpush1.msra.mxu0 0.0
    %4680 = vmatprep.subr.mxu0 0.0
    %4681 = vmatpush1.msra.mxu0 0.0
    %4682 = vmatprep.subr.mxu0 0.0
    %4683 = vmatpush1.msra.mxu0 0.0
    %4684 = vmatprep.subr.mxu0 0.0
    %4685 = vmatpush1.msra.mxu0 0.0
    %4686 = vmatprep.subr.mxu0 0.0
    %4687 = vmatpush1.msra.mxu0 0.0
    %4688 = vmatprep.subr.mxu0 0.0
    %4689 = vmatpush1.msra.mxu0 0.0
    %4690 = vmatprep.subr.mxu0 0.0
    %4691 = vmatpush1.msra.mxu0 0.0
    %4692 = vmatprep.mubr.f32.mxu0 0.0
    %4693 = vmatmul.mubr.f32.gmra.mrb[0].mxu0 %v4621
    %v4694 = vpop.f32.mrb[0].mxu0
    %v4695 = vadd.f32 0.0, %v4694
    %v4696 = vpop.f32.mrb[0].mxu0
    %4697 = vmatprep.mubr.f32.mxu0 0.0
    %4698 = vmatmul.mubr.f32.gmra.mrb[0].mxu0 %v4624
    %v4699 = vpop.f32.mrb[0].mxu0
    %v4700 = vadd.f32 0.0, %v4699
    %v4701 = vpop.f32.mrb[0].mxu0
    %4702 = vdwg.mxu0
    %v4703 = vadd.f32 %v4189, %v4695
    %v4704 = vadd.f32 %v4190, %v4700
    %v4705 = vld [vmem:[%s39] sm:$0x1]
    %v4707 = vlaneseq
    %v4708 = vshrl.u32 %v4707, 7
    %v4709 = vsub.s32 0, %v4708
    %v4710 = vrot.slane %v4705, %v4709
    %v4712 = vadd.f32 %v4703, %v4710
    %v4713 = vadd.f32 %v4704, %v4710
    %v4714 = vadd.f32 %v2178, %v4712
    %v4715 = vadd.f32 %v2179, %v4713
    %v4716 = vsel %vm223, %v4714, 0.0
    %4717 = vadd.xlane.f32.xlu0 %v4716
    %v4718 = vpop.xlane.xlu0 %4717
    %v4719 = vsel %vm223, %v4715, 0.0
    %4720 = vadd.xlane.f32.xlu0 %v4719
    %v4721 = vpop.xlane.xlu0 %4720
    %v4722 = vmul.f32 %v4718, %v2141
    %v4723 = vmul.f32 %v4721, %v2141
    %v4724 = vsub.f32 %v4714, %v4722
    %v4725 = vsub.f32 %v4715, %v4723
    %v4726 = vmul.f32 %v4724, %v4724
    %v4727 = vmul.f32 %v4725, %v4725
    %v4728 = vsel %vm223, %v4726, 0.0
    %4729 = vadd.xlane.f32.xlu0 %v4728
    %v4730 = vpop.xlane.xlu0 %4729
    %v4731 = vsel %vm223, %v4727, 0.0
    %4732 = vadd.xlane.f32.xlu0 %v4731
    %v4733 = vpop.xlane.xlu0 %4732
    %v4734 = vmul.f32 %v4730, %v2141
    %v4735 = vmul.f32 %v4733, %v2141
    %v4736 = vadd.f32 %v4734, 1e-05
    %v4737 = vadd.f32 %v4735, 1e-05
    %v4738 = vrsqrt.pop %v4736
    %v4739 = vrsqrt.pop %v4737
    %v4740 = vmul.f32 %v4724, %v4738
    %v4741 = vmul.f32 %v4725, %v4739
    %v4742 = vld [vmem:[%s69] sm:$0x1]
    %v4744 = vlaneseq
    %v4745 = vshrl.u32 %v4744, 7
    %v4746 = vsub.s32 0, %v4745
    %v4747 = vrot.slane %v4742, %v4746
    %v4749 = vmul.f32 %v4740, %v4747
    %v4750 = vmul.f32 %v4741, %v4747
    %v4751 = vld [vmem:[%s71] sm:$0x1]
    %v4753 = vlaneseq
    %v4754 = vshrl.u32 %v4753, 7
    %v4755 = vsub.s32 0, %v4754
    %v4756 = vrot.slane %v4751, %v4755
    %v4758 = vadd.f32 %v4749, %v4756
    %v4759 = vadd.f32 %v4750, %v4756
    %v4760 = vld [vmem:[%s57] sm:$0xff]
    %v4761 = vld [vmem:[%s57 + $0x8] sm:$0xff]
    %v4762 = vld [vmem:[%s57 + $0x10] sm:$0xff]
    %v4763 = vld [vmem:[%s57 + $0x18] sm:$0xff]
    %v4764 = vld [vmem:[%s59] sm:$0x1]
    %v4766 = vlaneseq
    %v4767 = vshrl.u32 %v4766, 7
    %v4768 = vsub.s32 0, %v4767
    %v4769 = vrot.slane %v4764, %v4768
    %v4772 = vsel %vm223, %v4758, 0
    %v4775 = vsel %vm223, %v4759, 0
    %4777 = vmatprep.subr.mxu0 0.0
    %4778 = vmatpush1.msra.mxu0 %v4760
    %4779 = vmatprep.subr.mxu0 0.0
    %4780 = vmatpush1.msra.mxu0 %v4761
    %4781 = vmatprep.subr.mxu0 0.0
    %4782 = vmatpush1.msra.mxu0 %v4762
    %4783 = vmatprep.subr.mxu0 0.0
    %4784 = vmatpush1.msra.mxu0 %v4763
    %4785 = vmatprep.subr.mxu0 0.0
    %4786 = vmatpush1.msra.mxu0 0.0
    %4787 = vmatprep.subr.mxu0 0.0
    %4788 = vmatpush1.msra.mxu0 0.0
    %4789 = vmatprep.subr.mxu0 0.0
    %4790 = vmatpush1.msra.mxu0 0.0
    %4791 = vmatprep.subr.mxu0 0.0
    %4792 = vmatpush1.msra.mxu0 0.0
    %4793 = vmatprep.subr.mxu0 0.0
    %4794 = vmatpush1.msra.mxu0 0.0
    %4795 = vmatprep.subr.mxu0 0.0
    %4796 = vmatpush1.msra.mxu0 0.0
    %4797 = vmatprep.subr.mxu0 0.0
    %4798 = vmatpush1.msra.mxu0 0.0
    %4799 = vmatprep.subr.mxu0 0.0
    %4800 = vmatpush1.msra.mxu0 0.0
    %4801 = vmatprep.subr.mxu0 0.0
    %4802 = vmatpush1.msra.mxu0 0.0
    %4803 = vmatprep.subr.mxu0 0.0
    %4804 = vmatpush1.msra.mxu0 0.0
    %4805 = vmatprep.subr.mxu0 0.0
    %4806 = vmatpush1.msra.mxu0 0.0
    %4807 = vmatprep.subr.mxu0 0.0
    %4808 = vmatpush1.msra.mxu0 0.0
    %4809 = vmatprep.subr.mxu0 0.0
    %4810 = vmatpush1.msra.mxu0 0.0
    %4811 = vmatprep.subr.mxu0 0.0
    %4812 = vmatpush1.msra.mxu0 0.0
    %4813 = vmatprep.subr.mxu0 0.0
    %4814 = vmatpush1.msra.mxu0 0.0
    %4815 = vmatprep.subr.mxu0 0.0
    %4816 = vmatpush1.msra.mxu0 0.0
    %4817 = vmatprep.subr.mxu0 0.0
    %4818 = vmatpush1.msra.mxu0 0.0
    %4819 = vmatprep.subr.mxu0 0.0
    %4820 = vmatpush1.msra.mxu0 0.0
    %4821 = vmatprep.subr.mxu0 0.0
    %4822 = vmatpush1.msra.mxu0 0.0
    %4823 = vmatprep.subr.mxu0 0.0
    %4824 = vmatpush1.msra.mxu0 0.0
    %4825 = vmatprep.subr.mxu0 0.0
    %4826 = vmatpush1.msra.mxu0 0.0
    %4827 = vmatprep.subr.mxu0 0.0
    %4828 = vmatpush1.msra.mxu0 0.0
    %4829 = vmatprep.subr.mxu0 0.0
    %4830 = vmatpush1.msra.mxu0 0.0
    %4831 = vmatprep.subr.mxu0 0.0
    %4832 = vmatpush1.msra.mxu0 0.0
    %4833 = vmatprep.subr.mxu0 0.0
    %4834 = vmatpush1.msra.mxu0 0.0
    %4835 = vmatprep.subr.mxu0 0.0
    %4836 = vmatpush1.msra.mxu0 0.0
    %4837 = vmatprep.subr.mxu0 0.0
    %4838 = vmatpush1.msra.mxu0 0.0
    %4839 = vmatprep.subr.mxu0 0.0
    %4840 = vmatpush1.msra.mxu0 0.0
    %4841 = vmatprep.mubr.f32.mxu0 0.0
    %4842 = vmatmul.mubr.f32.gmra.mrb[0].mxu0 %v4772
    %v4843 = vpop.f32.mrb[0].mxu0
    %v4844 = vadd.f32 %v4769, %v4843
    %v4845 = vpop.f32.mrb[0].mxu0
    %4846 = vmatprep.mubr.f32.mxu0 0.0
    %4847 = vmatmul.mubr.f32.gmra.mrb[0].mxu0 %v4775
    %v4848 = vpop.f32.mrb[0].mxu0
    %v4849 = vadd.f32 %v4769, %v4848
    %v4850 = vpop.f32.mrb[0].mxu0
    %4851 = vdwg.mxu0
    %v4852 = vmax.f32 %v4844, 0.0
    %v4853 = vmax.f32 %v4849, 0.0
    %v4854 = vld [vmem:[%s61] sm:$0xff]
    %v4855 = vld [vmem:[%s61 + $0x8] sm:$0xff]
    %v4856 = vld [vmem:[%s61 + $0x10] sm:$0xff]
    %v4857 = vld [vmem:[%s61 + $0x18] sm:$0xff]
    %v4858 = vld [vmem:[%s61 + $0x20] sm:$0xff]
    %v4859 = vld [vmem:[%s61 + $0x28] sm:$0xff]
    %v4860 = vld [vmem:[%s61 + $0x30] sm:$0xff]
    %v4861 = vld [vmem:[%s61 + $0x38] sm:$0xff]
    %v4862 = vld [vmem:[%s63] sm:$0x1]
    %v4864 = vlaneseq
    %v4865 = vshrl.u32 %v4864, 7
    %v4866 = vsub.s32 0, %v4865
    %v4867 = vrot.slane %v4862, %v4866
    %v4870 = vsel %vm2895, %v4852, 0
    %v4873 = vsel %vm2895, %v4853, 0
    %4875 = vmatprep.subr.mxu0 0.0
    %4876 = vmatpush1.msra.mxu0 %v4854
    %4877 = vmatprep.subr.mxu0 0.0
    %4878 = vmatpush1.msra.mxu0 %v4855
    %4879 = vmatprep.subr.mxu0 0.0
    %4880 = vmatpush1.msra.mxu0 %v4856
    %4881 = vmatprep.subr.mxu0 0.0
    %4882 = vmatpush1.msra.mxu0 %v4857
    %4883 = vmatprep.subr.mxu0 0.0
    %4884 = vmatpush1.msra.mxu0 %v4858
    %4885 = vmatprep.subr.mxu0 0.0
    %4886 = vmatpush1.msra.mxu0 %v4859
    %4887 = vmatprep.subr.mxu0 0.0
    %4888 = vmatpush1.msra.mxu0 %v4860
    %4889 = vmatprep.subr.mxu0 0.0
    %4890 = vmatpush1.msra.mxu0 %v4861
    %4891 = vmatprep.subr.mxu0 0.0
    %4892 = vmatpush1.msra.mxu0 0.0
    %4893 = vmatprep.subr.mxu0 0.0
    %4894 = vmatpush1.msra.mxu0 0.0
    %4895 = vmatprep.subr.mxu0 0.0
    %4896 = vmatpush1.msra.mxu0 0.0
    %4897 = vmatprep.subr.mxu0 0.0
    %4898 = vmatpush1.msra.mxu0 0.0
    %4899 = vmatprep.subr.mxu0 0.0
    %4900 = vmatpush1.msra.mxu0 0.0
    %4901 = vmatprep.subr.mxu0 0.0
    %4902 = vmatpush1.msra.mxu0 0.0
    %4903 = vmatprep.subr.mxu0 0.0
    %4904 = vmatpush1.msra.mxu0 0.0
    %4905 = vmatprep.subr.mxu0 0.0
    %4906 = vmatpush1.msra.mxu0 0.0
    %4907 = vmatprep.subr.mxu0 0.0
    %4908 = vmatpush1.msra.mxu0 0.0
    %4909 = vmatprep.subr.mxu0 0.0
    %4910 = vmatpush1.msra.mxu0 0.0
    %4911 = vmatprep.subr.mxu0 0.0
    %4912 = vmatpush1.msra.mxu0 0.0
    %4913 = vmatprep.subr.mxu0 0.0
    %4914 = vmatpush1.msra.mxu0 0.0
    %4915 = vmatprep.subr.mxu0 0.0
    %4916 = vmatpush1.msra.mxu0 0.0
    %4917 = vmatprep.subr.mxu0 0.0
    %4918 = vmatpush1.msra.mxu0 0.0
    %4919 = vmatprep.subr.mxu0 0.0
    %4920 = vmatpush1.msra.mxu0 0.0
    %4921 = vmatprep.subr.mxu0 0.0
    %4922 = vmatpush1.msra.mxu0 0.0
    %4923 = vmatprep.subr.mxu0 0.0
    %4924 = vmatpush1.msra.mxu0 0.0
    %4925 = vmatprep.subr.mxu0 0.0
    %4926 = vmatpush1.msra.mxu0 0.0
    %4927 = vmatprep.subr.mxu0 0.0
    %4928 = vmatpush1.msra.mxu0 0.0
    %4929 = vmatprep.subr.mxu0 0.0
    %4930 = vmatpush1.msra.mxu0 0.0
    %4931 = vmatprep.subr.mxu0 0.0
    %4932 = vmatpush1.msra.mxu0 0.0
    %4933 = vmatprep.subr.mxu0 0.0
    %4934 = vmatpush1.msra.mxu0 0.0
    %4935 = vmatprep.subr.mxu0 0.0
    %4936 = vmatpush1.msra.mxu0 0.0
    %4937 = vmatprep.subr.mxu0 0.0
    %4938 = vmatpush1.msra.mxu0 0.0
    %4939 = vmatprep.mubr.f32.mxu0 0.0
    %4940 = vmatmul.mubr.f32.gmra.mrb[0].mxu0 %v4870
    %v4941 = vpop.f32.mrb[0].mxu0
    %v4942 = vadd.f32 %v4867, %v4941
    %v4943 = vpop.f32.mrb[0].mxu0
    %4944 = vmatprep.mubr.f32.mxu0 0.0
    %4945 = vmatmul.mubr.f32.gmra.mrb[0].mxu0 %v4873
    %v4946 = vpop.f32.mrb[0].mxu0
    %v4947 = vadd.f32 %v4867, %v4946
    %v4948 = vpop.f32.mrb[0].mxu0
    %4949 = vdwg.mxu0
    %v4950 = vadd.f32 %v4758, %v4942
    %v4951 = vadd.f32 %v4759, %v4947
    %v4952 = vsel %vm223, %v4950, 0.0
    %4953 = vadd.xlane.f32.xlu0 %v4952
    %v4954 = vpop.xlane.xlu0 %4953
    %v4955 = vsel %vm223, %v4951, 0.0
    %4956 = vadd.xlane.f32.xlu0 %v4955
    %v4957 = vpop.xlane.xlu0 %4956
    %v4958 = vmul.f32 %v4954, %v2141
    %v4959 = vmul.f32 %v4957, %v2141
    %v4960 = vsub.f32 %v4950, %v4958
    %v4961 = vsub.f32 %v4951, %v4959
    %v4962 = vmul.f32 %v4960, %v4960
    %v4963 = vmul.f32 %v4961, %v4961
    %v4964 = vsel %vm223, %v4962, 0.0
    %4965 = vadd.xlane.f32.xlu0 %v4964
    %v4966 = vpop.xlane.xlu0 %4965
    %v4967 = vsel %vm223, %v4963, 0.0
    %4968 = vadd.xlane.f32.xlu0 %v4967
    %v4969 = vpop.xlane.xlu0 %4968
    %v4970 = vmul.f32 %v4966, %v2141
    %v4971 = vmul.f32 %v4969, %v2141
    %v4972 = vadd.f32 %v4970, 1e-05
    %v4973 = vadd.f32 %v4971, 1e-05
    %v4974 = vrsqrt.pop %v4972
    %v4975 = vrsqrt.pop %v4973
    %v4976 = vmul.f32 %v4960, %v4974
    %v4977 = vmul.f32 %v4961, %v4975
    %v4978 = vld [vmem:[%s73] sm:$0x1]
    %v4980 = vlaneseq
    %v4981 = vshrl.u32 %v4980, 7
    %v4982 = vsub.s32 0, %v4981
    %v4983 = vrot.slane %v4978, %v4982
    %v4985 = vmul.f32 %v4976, %v4983
    %v4986 = vmul.f32 %v4977, %v4983
    %v4987 = vld [vmem:[%s75] sm:$0x1]
    %v4989 = vlaneseq
    %v4990 = vshrl.u32 %v4989, 7
    %v4991 = vsub.s32 0, %v4990
    %v4992 = vrot.slane %v4987, %v4991
    %v4994 = vadd.f32 %v4985, %v4992
    %v4995 = vadd.f32 %v4986, %v4992
    %v4996 = vadd.f32 %v4994, %v188
    %v4997 = vadd.f32 %v4995, %v189
    %v4998 = vld [vmem:[%s53] sm:$0xff]
    %v4999 = vld [vmem:[%s53 + $0x8] sm:$0xff]
    %v5000 = vld [vmem:[%s41] sm:$0xff]
    %v5001 = vld [vmem:[%s41 + $0x8] sm:$0xff]
    %v5002 = vld [vmem:[%s41 + $0x10] sm:$0xff]
    %v5003 = vld [vmem:[%s41 + $0x18] sm:$0xff]
    %v5004 = vld [vmem:[%s43] sm:$0x1]
    %v5006 = vlaneseq
    %v5007 = vshrl.u32 %v5006, 7
    %v5008 = vsub.s32 0, %v5007
    %v5009 = vrot.slane %v5004, %v5008
    %5011 = vmatprep.subr.mxu0 0.0
    %5012 = vmatpush1.msra.mxu0 %v5000
    %5013 = vmatprep.subr.mxu0 0.0
    %5014 = vmatpush1.msra.mxu0 %v5001
    %5015 = vmatprep.subr.mxu0 0.0
    %5016 = vmatpush1.msra.mxu0 %v5002
    %5017 = vmatprep.subr.mxu0 0.0
    %5018 = vmatpush1.msra.mxu0 %v5003
    %5019 = vmatprep.subr.mxu0 0.0
    %5020 = vmatpush1.msra.mxu0 0.0
    %5021 = vmatprep.subr.mxu0 0.0
    %5022 = vmatpush1.msra.mxu0 0.0
    %5023 = vmatprep.subr.mxu0 0.0
    %5024 = vmatpush1.msra.mxu0 0.0
    %5025 = vmatprep.subr.mxu0 0.0
    %5026 = vmatpush1.msra.mxu0 0.0
    %5027 = vmatprep.subr.mxu0 0.0
    %5028 = vmatpush1.msra.mxu0 0.0
    %5029 = vmatprep.subr.mxu0 0.0
    %5030 = vmatpush1.msra.mxu0 0.0
    %5031 = vmatprep.subr.mxu0 0.0
    %5032 = vmatpush1.msra.mxu0 0.0
    %5033 = vmatprep.subr.mxu0 0.0
    %5034 = vmatpush1.msra.mxu0 0.0
    %5035 = vmatprep.subr.mxu0 0.0
    %5036 = vmatpush1.msra.mxu0 0.0
    %5037 = vmatprep.subr.mxu0 0.0
    %5038 = vmatpush1.msra.mxu0 0.0
    %5039 = vmatprep.subr.mxu0 0.0
    %5040 = vmatpush1.msra.mxu0 0.0
    %5041 = vmatprep.subr.mxu0 0.0
    %5042 = vmatpush1.msra.mxu0 0.0
    %5043 = vmatprep.subr.mxu0 0.0
    %5044 = vmatpush1.msra.mxu0 0.0
    %5045 = vmatprep.subr.mxu0 0.0
    %5046 = vmatpush1.msra.mxu0 0.0
    %5047 = vmatprep.subr.mxu0 0.0
    %5048 = vmatpush1.msra.mxu0 0.0
    %5049 = vmatprep.subr.mxu0 0.0
    %5050 = vmatpush1.msra.mxu0 0.0
    %5051 = vmatprep.subr.mxu0 0.0
    %5052 = vmatpush1.msra.mxu0 0.0
    %5053 = vmatprep.subr.mxu0 0.0
    %5054 = vmatpush1.msra.mxu0 0.0
    %5055 = vmatprep.subr.mxu0 0.0
    %5056 = vmatpush1.msra.mxu0 0.0
    %5057 = vmatprep.subr.mxu0 0.0
    %5058 = vmatpush1.msra.mxu0 0.0
    %5059 = vmatprep.subr.mxu0 0.0
    %5060 = vmatpush1.msra.mxu0 0.0
    %5061 = vmatprep.subr.mxu0 0.0
    %5062 = vmatpush1.msra.mxu0 0.0
    %5063 = vmatprep.subr.mxu0 0.0
    %5064 = vmatpush1.msra.mxu0 0.0
    %5065 = vmatprep.subr.mxu0 0.0
    %5066 = vmatpush1.msra.mxu0 0.0
    %5067 = vmatprep.subr.mxu0 0.0
    %5068 = vmatpush1.msra.mxu0 0.0
    %5069 = vmatprep.subr.mxu0 0.0
    %5070 = vmatpush1.msra.mxu0 0.0
    %5071 = vmatprep.subr.mxu0 0.0
    %5072 = vmatpush1.msra.mxu0 0.0
    %5073 = vmatprep.subr.mxu0 0.0
    %5074 = vmatpush1.msra.mxu0 0.0
    %5075 = vmatprep.mubr.f32.mxu0 0.0
    %5076 = vmatmul.mubr.f32.gmra.mrb[0].mxu0 %v2304
    %v5077 = vpop.f32.mrb[0].mxu0
    %v5078 = vadd.f32 %v5009, %v5077
    %v5079 = vpop.f32.mrb[0].mxu0
    %5080 = vmatprep.mubr.f32.mxu0 0.0
    %5081 = vmatmul.mubr.f32.gmra.mrb[0].mxu0 %v2307
    %v5082 = vpop.f32.mrb[0].mxu0
    %v5083 = vadd.f32 %v5009, %v5082
    %v5084 = vpop.f32.mrb[0].mxu0
    %5085 = vmatprep.mubr.f32.mxu0 0.0
    %5086 = vmatmul.mubr.f32.gmra.mrb[0].mxu0 %v2310
    %v5087 = vpop.f32.mrb[0].mxu0
    %v5088 = vadd.f32 %v5009, %v5087
    %v5089 = vpop.f32.mrb[0].mxu0
    %5090 = vmatprep.mubr.f32.mxu0 0.0
    %5091 = vmatmul.mubr.f32.gmra.mrb[0].mxu0 %v2313
    %v5092 = vpop.f32.mrb[0].mxu0
    %v5093 = vadd.f32 %v5009, %v5092
    %v5094 = vpop.f32.mrb[0].mxu0
    %5095 = vmatprep.mubr.f32.mxu0 0.0
    %5096 = vmatmul.mubr.f32.gmra.mrb[0].mxu0 %v2316
    %v5097 = vpop.f32.mrb[0].mxu0
    %v5098 = vadd.f32 %v5009, %v5097
    %v5099 = vpop.f32.mrb[0].mxu0
    %5100 = vmatprep.mubr.f32.mxu0 0.0
    %5101 = vmatmul.mubr.f32.gmra.mrb[0].mxu0 %v2319
    %v5102 = vpop.f32.mrb[0].mxu0
    %v5103 = vadd.f32 %v5009, %v5102
    %v5104 = vpop.f32.mrb[0].mxu0
    %5105 = vmatprep.mubr.f32.mxu0 0.0
    %5106 = vmatmul.mubr.f32.gmra.mrb[0].mxu0 %v2322
    %v5107 = vpop.f32.mrb[0].mxu0
    %v5108 = vadd.f32 %v5009, %v5107
    %v5109 = vpop.f32.mrb[0].mxu0
    %5110 = vmatprep.mubr.f32.mxu0 0.0
    %5111 = vmatmul.mubr.f32.gmra.mrb[0].mxu0 %v2325
    %v5112 = vpop.f32.mrb[0].mxu0
    %v5113 = vadd.f32 %v5009, %v5112
    %v5114 = vpop.f32.mrb[0].mxu0
    %5115 = vmatprep.mubr.f32.mxu0 0.0
    %5116 = vmatmul.mubr.f32.gmra.mrb[0].mxu0 %v2328
    %v5117 = vpop.f32.mrb[0].mxu0
    %v5118 = vadd.f32 %v5009, %v5117
    %v5119 = vpop.f32.mrb[0].mxu0
    %5120 = vmatprep.mubr.f32.mxu0 0.0
    %5121 = vmatmul.mubr.f32.gmra.mrb[0].mxu0 %v2331
    %v5122 = vpop.f32.mrb[0].mxu0
    %v5123 = vadd.f32 %v5009, %v5122
    %v5124 = vpop.f32.mrb[0].mxu0
    %5125 = vmatprep.mubr.f32.mxu0 0.0
    %5126 = vmatmul.mubr.f32.gmra.mrb[0].mxu0 %v2334
    %v5127 = vpop.f32.mrb[0].mxu0
    %v5128 = vadd.f32 %v5009, %v5127
    %v5129 = vpop.f32.mrb[0].mxu0
    %5130 = vmatprep.mubr.f32.mxu0 0.0
    %5131 = vmatmul.mubr.f32.gmra.mrb[0].mxu0 %v2337
    %v5132 = vpop.f32.mrb[0].mxu0
    %v5133 = vadd.f32 %v5009, %v5132
    %v5134 = vpop.f32.mrb[0].mxu0
    %5135 = vmatprep.mubr.f32.mxu0 0.0
    %5136 = vmatmul.mubr.f32.gmra.mrb[0].mxu0 %v2340
    %v5137 = vpop.f32.mrb[0].mxu0
    %v5138 = vadd.f32 %v5009, %v5137
    %v5139 = vpop.f32.mrb[0].mxu0
    %5140 = vmatprep.mubr.f32.mxu0 0.0
    %5141 = vmatmul.mubr.f32.gmra.mrb[0].mxu0 %v2343
    %v5142 = vpop.f32.mrb[0].mxu0
    %v5143 = vadd.f32 %v5009, %v5142
    %v5144 = vpop.f32.mrb[0].mxu0
    %5145 = vmatprep.mubr.f32.mxu0 0.0
    %5146 = vmatmul.mubr.f32.gmra.mrb[0].mxu0 %v2346
    %v5147 = vpop.f32.mrb[0].mxu0
    %v5148 = vadd.f32 %v5009, %v5147
    %v5149 = vpop.f32.mrb[0].mxu0
    %5150 = vmatprep.mubr.f32.mxu0 0.0
    %5151 = vmatmul.mubr.f32.gmra.mrb[0].mxu0 %v2349
    %v5152 = vpop.f32.mrb[0].mxu0
    %v5153 = vadd.f32 %v5009, %v5152
    %v5154 = vpop.f32.mrb[0].mxu0
    %5155 = vdwg.mxu0
    %v5156 = vld [vmem:[%s45] sm:$0xff]
    %v5157 = vld [vmem:[%s45 + $0x8] sm:$0xff]
    %v5158 = vld [vmem:[%s45 + $0x10] sm:$0xff]
    %v5159 = vld [vmem:[%s45 + $0x18] sm:$0xff]
    %v5160 = vld [vmem:[%s47] sm:$0x1]
    %v5162 = vlaneseq
    %v5163 = vshrl.u32 %v5162, 7
    %v5164 = vsub.s32 0, %v5163
    %v5165 = vrot.slane %v5160, %v5164
    %v5168 = vsel %vm223, %v4996, 0
    %v5171 = vsel %vm223, %v4997, 0
    %5173 = vmatprep.subr.mxu0 0.0
    %5174 = vmatpush1.msra.mxu0 %v5156
    %5175 = vmatprep.subr.mxu0 0.0
    %5176 = vmatpush1.msra.mxu0 %v5157
    %5177 = vmatprep.subr.mxu0 0.0
    %5178 = vmatpush1.msra.mxu0 %v5158
    %5179 = vmatprep.subr.mxu0 0.0
    %5180 = vmatpush1.msra.mxu0 %v5159
    %5181 = vmatprep.subr.mxu0 0.0
    %5182 = vmatpush1.msra.mxu0 0.0
    %5183 = vmatprep.subr.mxu0 0.0
    %5184 = vmatpush1.msra.mxu0 0.0
    %5185 = vmatprep.subr.mxu0 0.0
    %5186 = vmatpush1.msra.mxu0 0.0
    %5187 = vmatprep.subr.mxu0 0.0
    %5188 = vmatpush1.msra.mxu0 0.0
    %5189 = vmatprep.subr.mxu0 0.0
    %5190 = vmatpush1.msra.mxu0 0.0
    %5191 = vmatprep.subr.mxu0 0.0
    %5192 = vmatpush1.msra.mxu0 0.0
    %5193 = vmatprep.subr.mxu0 0.0
    %5194 = vmatpush1.msra.mxu0 0.0
    %5195 = vmatprep.subr.mxu0 0.0
    %5196 = vmatpush1.msra.mxu0 0.0
    %5197 = vmatprep.subr.mxu0 0.0
    %5198 = vmatpush1.msra.mxu0 0.0
    %5199 = vmatprep.subr.mxu0 0.0
    %5200 = vmatpush1.msra.mxu0 0.0
    %5201 = vmatprep.subr.mxu0 0.0
    %5202 = vmatpush1.msra.mxu0 0.0
    %5203 = vmatprep.subr.mxu0 0.0
    %5204 = vmatpush1.msra.mxu0 0.0
    %5205 = vmatprep.subr.mxu0 0.0
    %5206 = vmatpush1.msra.mxu0 0.0
    %5207 = vmatprep.subr.mxu0 0.0
    %5208 = vmatpush1.msra.mxu0 0.0
    %5209 = vmatprep.subr.mxu0 0.0
    %5210 = vmatpush1.msra.mxu0 0.0
    %5211 = vmatprep.subr.mxu0 0.0
    %5212 = vmatpush1.msra.mxu0 0.0
    %5213 = vmatprep.subr.mxu0 0.0
    %5214 = vmatpush1.msra.mxu0 0.0
    %5215 = vmatprep.subr.mxu0 0.0
    %5216 = vmatpush1.msra.mxu0 0.0
    %5217 = vmatprep.subr.mxu0 0.0
    %5218 = vmatpush1.msra.mxu0 0.0
    %5219 = vmatprep.subr.mxu0 0.0
    %5220 = vmatpush1.msra.mxu0 0.0
    %5221 = vmatprep.subr.mxu0 0.0
    %5222 = vmatpush1.msra.mxu0 0.0
    %5223 = vmatprep.subr.mxu0 0.0
    %5224 = vmatpush1.msra.mxu0 0.0
    %5225 = vmatprep.subr.mxu0 0.0
    %5226 = vmatpush1.msra.mxu0 0.0
    %5227 = vmatprep.subr.mxu0 0.0
    %5228 = vmatpush1.msra.mxu0 0.0
    %5229 = vmatprep.subr.mxu0 0.0
    %5230 = vmatpush1.msra.mxu0 0.0
    %5231 = vmatprep.subr.mxu0 0.0
    %5232 = vmatpush1.msra.mxu0 0.0
    %5233 = vmatprep.subr.mxu0 0.0
    %5234 = vmatpush1.msra.mxu0 0.0
    %5235 = vmatprep.subr.mxu0 0.0
    %5236 = vmatpush1.msra.mxu0 0.0
    %5237 = vmatprep.mubr.f32.mxu0 0.0
    %5238 = vmatmul.mubr.f32.gmra.mrb[0].mxu0 %v5168
    %v5239 = vpop.f32.mrb[0].mxu0
    %v5240 = vadd.f32 %v5165, %v5239
    %v5241 = vpop.f32.mrb[0].mxu0
    %5242 = vmatprep.mubr.f32.mxu0 0.0
    %5243 = vmatmul.mubr.f32.gmra.mrb[0].mxu0 %v5171
    %v5244 = vpop.f32.mrb[0].mxu0
    %v5245 = vadd.f32 %v5165, %v5244
    %v5246 = vpop.f32.mrb[0].mxu0
    %5247 = vdwg.mxu0
    %v5248 = vld [vmem:[%s49] sm:$0xff]
    %v5249 = vld [vmem:[%s49 + $0x8] sm:$0xff]
    %v5250 = vld [vmem:[%s49 + $0x10] sm:$0xff]
    %v5251 = vld [vmem:[%s49 + $0x18] sm:$0xff]
    %v5252 = vld [vmem:[%s51] sm:$0x1]
    %v5254 = vlaneseq
    %v5255 = vshrl.u32 %v5254, 7
    %v5256 = vsub.s32 0, %v5255
    %v5257 = vrot.slane %v5252, %v5256
    %v5260 = vsel %vm223, %v4994, 0
    %v5263 = vsel %vm223, %v4995, 0
    %5265 = vmatprep.subr.mxu0 0.0
    %5266 = vmatpush1.msra.mxu0 %v5248
    %5267 = vmatprep.subr.mxu0 0.0
    %5268 = vmatpush1.msra.mxu0 %v5249
    %5269 = vmatprep.subr.mxu0 0.0
    %5270 = vmatpush1.msra.mxu0 %v5250
    %5271 = vmatprep.subr.mxu0 0.0
    %5272 = vmatpush1.msra.mxu0 %v5251
    %5273 = vmatprep.subr.mxu0 0.0
    %5274 = vmatpush1.msra.mxu0 0.0
    %5275 = vmatprep.subr.mxu0 0.0
    %5276 = vmatpush1.msra.mxu0 0.0
    %5277 = vmatprep.subr.mxu0 0.0
    %5278 = vmatpush1.msra.mxu0 0.0
    %5279 = vmatprep.subr.mxu0 0.0
    %5280 = vmatpush1.msra.mxu0 0.0
    %5281 = vmatprep.subr.mxu0 0.0
    %5282 = vmatpush1.msra.mxu0 0.0
    %5283 = vmatprep.subr.mxu0 0.0
    %5284 = vmatpush1.msra.mxu0 0.0
    %5285 = vmatprep.subr.mxu0 0.0
    %5286 = vmatpush1.msra.mxu0 0.0
    %5287 = vmatprep.subr.mxu0 0.0
    %5288 = vmatpush1.msra.mxu0 0.0
    %5289 = vmatprep.subr.mxu0 0.0
    %5290 = vmatpush1.msra.mxu0 0.0
    %5291 = vmatprep.subr.mxu0 0.0
    %5292 = vmatpush1.msra.mxu0 0.0
    %5293 = vmatprep.subr.mxu0 0.0
    %5294 = vmatpush1.msra.mxu0 0.0
    %5295 = vmatprep.subr.mxu0 0.0
    %5296 = vmatpush1.msra.mxu0 0.0
    %5297 = vmatprep.subr.mxu0 0.0
    %5298 = vmatpush1.msra.mxu0 0.0
    %5299 = vmatprep.subr.mxu0 0.0
    %5300 = vmatpush1.msra.mxu0 0.0
    %5301 = vmatprep.subr.mxu0 0.0
    %5302 = vmatpush1.msra.mxu0 0.0
    %5303 = vmatprep.subr.mxu0 0.0
    %5304 = vmatpush1.msra.mxu0 0.0
    %5305 = vmatprep.subr.mxu0 0.0
    %5306 = vmatpush1.msra.mxu0 0.0
    %5307 = vmatprep.subr.mxu0 0.0
    %5308 = vmatpush1.msra.mxu0 0.0
    %5309 = vmatprep.subr.mxu0 0.0
    %5310 = vmatpush1.msra.mxu0 0.0
    %5311 = vmatprep.subr.mxu0 0.0
    %5312 = vmatpush1.msra.mxu0 0.0
    %5313 = vmatprep.subr.mxu0 0.0
    %5314 = vmatpush1.msra.mxu0 0.0
    %5315 = vmatprep.subr.mxu0 0.0
    %5316 = vmatpush1.msra.mxu0 0.0
    %5317 = vmatprep.subr.mxu0 0.0
    %5318 = vmatpush1.msra.mxu0 0.0
    %5319 = vmatprep.subr.mxu0 0.0
    %5320 = vmatpush1.msra.mxu0 0.0
    %5321 = vmatprep.subr.mxu0 0.0
    %5322 = vmatpush1.msra.mxu0 0.0
    %5323 = vmatprep.subr.mxu0 0.0
    %5324 = vmatpush1.msra.mxu0 0.0
    %5325 = vmatprep.subr.mxu0 0.0
    %5326 = vmatpush1.msra.mxu0 0.0
    %5327 = vmatprep.subr.mxu0 0.0
    %5328 = vmatpush1.msra.mxu0 0.0
    %5329 = vmatprep.mubr.f32.mxu0 0.0
    %5330 = vmatmul.mubr.f32.gmra.mrb[0].mxu0 %v5260
    %v5331 = vpop.f32.mrb[0].mxu0
    %v5332 = vadd.f32 %v5257, %v5331
    %v5333 = vpop.f32.mrb[0].mxu0
    %5334 = vmatprep.mubr.f32.mxu0 0.0
    %5335 = vmatmul.mubr.f32.gmra.mrb[0].mxu0 %v5263
    %v5336 = vpop.f32.mrb[0].mxu0
    %v5337 = vadd.f32 %v5257, %v5336
    %v5338 = vpop.f32.mrb[0].mxu0
    %5339 = vdwg.mxu0
    %v5341 = vsel %vm2700, %v5078, 0
    %v5344 = vsel %vm2700, %v5083, 0
    %v5347 = vsel %vm2700, %v5088, 0
    %v5350 = vsel %vm2700, %v5093, 0
    %v5353 = vsel %vm2700, %v5098, 0
    %v5356 = vsel %vm2700, %v5103, 0
    %v5359 = vsel %vm2700, %v5108, 0
    %v5362 = vsel %vm2700, %v5113, 0
    %v5365 = vsel %vm2700, %v5240, 0
    %5367 = vmatprep.subr.mxu0 0.0
    %5368 = vmatpush1.xpose.msra.mxu0 %v5365
    %5369 = vmatprep.subr.mxu0 0.0
    %5370 = vmatpush1.xpose.msra.mxu0 0.0
    %5371 = vmatprep.subr.mxu0 0.0
    %5372 = vmatpush1.xpose.msra.mxu0 0.0
    %5373 = vmatprep.subr.mxu0 0.0
    %5374 = vmatpush1.xpose.msra.mxu0 0.0
    %5375 = vmatprep.subr.mxu0 0.0
    %5376 = vmatpush1.xpose.msra.mxu0 0.0
    %5377 = vmatprep.subr.mxu0 0.0
    %5378 = vmatpush1.xpose.msra.mxu0 0.0
    %5379 = vmatprep.subr.mxu0 0.0
    %5380 = vmatpush1.xpose.msra.mxu0 0.0
    %5381 = vmatprep.subr.mxu0 0.0
    %5382 = vmatpush1.xpose.msra.mxu0 0.0
    %5383 = vmatprep.subr.mxu0 0.0
    %5384 = vmatpush1.xpose.msra.mxu0 0.0
    %5385 = vmatprep.subr.mxu0 0.0
    %5386 = vmatpush1.xpose.msra.mxu0 0.0
    %5387 = vmatprep.subr.mxu0 0.0
    %5388 = vmatpush1.xpose.msra.mxu0 0.0
    %5389 = vmatprep.subr.mxu0 0.0
    %5390 = vmatpush1.xpose.msra.mxu0 0.0
    %5391 = vmatprep.subr.mxu0 0.0
    %5392 = vmatpush1.xpose.msra.mxu0 0.0
    %5393 = vmatprep.subr.mxu0 0.0
    %5394 = vmatpush1.xpose.msra.mxu0 0.0
    %5395 = vmatprep.subr.mxu0 0.0
    %5396 = vmatpush1.xpose.msra.mxu0 0.0
    %5397 = vmatprep.subr.mxu0 0.0
    %5398 = vmatpush1.xpose.msra.mxu0 0.0
    %5399 = vmatprep.subr.mxu0 0.0
    %5400 = vmatpush1.xpose.msra.mxu0 0.0
    %5401 = vmatprep.subr.mxu0 0.0
    %5402 = vmatpush1.xpose.msra.mxu0 0.0
    %5403 = vmatprep.subr.mxu0 0.0
    %5404 = vmatpush1.xpose.msra.mxu0 0.0
    %5405 = vmatprep.subr.mxu0 0.0
    %5406 = vmatpush1.xpose.msra.mxu0 0.0
    %5407 = vmatprep.subr.mxu0 0.0
    %5408 = vmatpush1.xpose.msra.mxu0 0.0
    %5409 = vmatprep.subr.mxu0 0.0
    %5410 = vmatpush1.xpose.msra.mxu0 0.0
    %5411 = vmatprep.subr.mxu0 0.0
    %5412 = vmatpush1.xpose.msra.mxu0 0.0
    %5413 = vmatprep.subr.mxu0 0.0
    %5414 = vmatpush1.xpose.msra.mxu0 0.0
    %5415 = vmatprep.subr.mxu0 0.0
    %5416 = vmatpush1.xpose.msra.mxu0 0.0
    %5417 = vmatprep.subr.mxu0 0.0
    %5418 = vmatpush1.xpose.msra.mxu0 0.0
    %5419 = vmatprep.subr.mxu0 0.0
    %5420 = vmatpush1.xpose.msra.mxu0 0.0
    %5421 = vmatprep.subr.mxu0 0.0
    %5422 = vmatpush1.xpose.msra.mxu0 0.0
    %5423 = vmatprep.subr.mxu0 0.0
    %5424 = vmatpush1.xpose.msra.mxu0 0.0
    %5425 = vmatprep.subr.mxu0 0.0
    %5426 = vmatpush1.xpose.msra.mxu0 0.0
    %5427 = vmatprep.subr.mxu0 0.0
    %5428 = vmatpush1.xpose.msra.mxu0 0.0
    %5429 = vmatprep.subr.mxu0 0.0
    %5430 = vmatpush1.xpose.msra.mxu0 0.0
    %5431 = vmatprep.mubr.f32.mxu0 0.0
    %5432 = vmatmul.mubr.f32.gmra.mrb[0].mxu0 %v5341
    %v5433 = vpop.f32.mrb[0].mxu0
    %v5434 = vadd.f32 0.0, %v5433
    %v5435 = vpop.f32.mrb[0].mxu0
    %5436 = vmatprep.mubr.f32.mxu0 0.0
    %5437 = vmatmul.mubr.f32.gmra.mrb[0].mxu0 %v5344
    %v5438 = vpop.f32.mrb[0].mxu0
    %v5439 = vadd.f32 0.0, %v5438
    %v5440 = vpop.f32.mrb[0].mxu0
    %5441 = vmatprep.mubr.f32.mxu0 0.0
    %5442 = vmatmul.mubr.f32.gmra.mrb[0].mxu0 %v5347
    %v5443 = vpop.f32.mrb[0].mxu0
    %v5444 = vadd.f32 0.0, %v5443
    %v5445 = vpop.f32.mrb[0].mxu0
    %5446 = vmatprep.mubr.f32.mxu0 0.0
    %5447 = vmatmul.mubr.f32.gmra.mrb[0].mxu0 %v5350
    %v5448 = vpop.f32.mrb[0].mxu0
    %v5449 = vadd.f32 0.0, %v5448
    %v5450 = vpop.f32.mrb[0].mxu0
    %5451 = vmatprep.mubr.f32.mxu0 0.0
    %5452 = vmatmul.mubr.f32.gmra.mrb[0].mxu0 %v5353
    %v5453 = vpop.f32.mrb[0].mxu0
    %v5454 = vadd.f32 0.0, %v5453
    %v5455 = vpop.f32.mrb[0].mxu0
    %5456 = vmatprep.mubr.f32.mxu0 0.0
    %5457 = vmatmul.mubr.f32.gmra.mrb[0].mxu0 %v5356
    %v5458 = vpop.f32.mrb[0].mxu0
    %v5459 = vadd.f32 0.0, %v5458
    %v5460 = vpop.f32.mrb[0].mxu0
    %5461 = vmatprep.mubr.f32.mxu0 0.0
    %5462 = vmatmul.mubr.f32.gmra.mrb[0].mxu0 %v5359
    %v5463 = vpop.f32.mrb[0].mxu0
    %v5464 = vadd.f32 0.0, %v5463
    %v5465 = vpop.f32.mrb[0].mxu0
    %5466 = vmatprep.mubr.f32.mxu0 0.0
    %5467 = vmatmul.mubr.f32.gmra.mrb[0].mxu0 %v5362
    %v5468 = vpop.f32.mrb[0].mxu0
    %v5469 = vadd.f32 0.0, %v5468
    %v5470 = vpop.f32.mrb[0].mxu0
    %5471 = vdwg.mxu0
    %v5473 = vsel %vm2700, %v5118, 0
    %v5476 = vsel %vm2700, %v5123, 0
    %v5479 = vsel %vm2700, %v5128, 0
    %v5482 = vsel %vm2700, %v5133, 0
    %v5485 = vsel %vm2700, %v5138, 0
    %v5488 = vsel %vm2700, %v5143, 0
    %v5491 = vsel %vm2700, %v5148, 0
    %v5494 = vsel %vm2700, %v5153, 0
    %v5497 = vsel %vm2700, %v5245, 0
    %5499 = vmatprep.subr.mxu0 0.0
    %5500 = vmatpush1.xpose.msra.mxu0 %v5497
    %5501 = vmatprep.subr.mxu0 0.0
    %5502 = vmatpush1.xpose.msra.mxu0 0.0
    %5503 = vmatprep.subr.mxu0 0.0
    %5504 = vmatpush1.xpose.msra.mxu0 0.0
    %5505 = vmatprep.subr.mxu0 0.0
    %5506 = vmatpush1.xpose.msra.mxu0 0.0
    %5507 = vmatprep.subr.mxu0 0.0
    %5508 = vmatpush1.xpose.msra.mxu0 0.0
    %5509 = vmatprep.subr.mxu0 0.0
    %5510 = vmatpush1.xpose.msra.mxu0 0.0
    %5511 = vmatprep.subr.mxu0 0.0
    %5512 = vmatpush1.xpose.msra.mxu0 0.0
    %5513 = vmatprep.subr.mxu0 0.0
    %5514 = vmatpush1.xpose.msra.mxu0 0.0
    %5515 = vmatprep.subr.mxu0 0.0
    %5516 = vmatpush1.xpose.msra.mxu0 0.0
    %5517 = vmatprep.subr.mxu0 0.0
    %5518 = vmatpush1.xpose.msra.mxu0 0.0
    %5519 = vmatprep.subr.mxu0 0.0
    %5520 = vmatpush1.xpose.msra.mxu0 0.0
    %5521 = vmatprep.subr.mxu0 0.0
    %5522 = vmatpush1.xpose.msra.mxu0 0.0
    %5523 = vmatprep.subr.mxu0 0.0
    %5524 = vmatpush1.xpose.msra.mxu0 0.0
    %5525 = vmatprep.subr.mxu0 0.0
    %5526 = vmatpush1.xpose.msra.mxu0 0.0
    %5527 = vmatprep.subr.mxu0 0.0
    %5528 = vmatpush1.xpose.msra.mxu0 0.0
    %5529 = vmatprep.subr.mxu0 0.0
    %5530 = vmatpush1.xpose.msra.mxu0 0.0
    %5531 = vmatprep.subr.mxu0 0.0
    %5532 = vmatpush1.xpose.msra.mxu0 0.0
    %5533 = vmatprep.subr.mxu0 0.0
    %5534 = vmatpush1.xpose.msra.mxu0 0.0
    %5535 = vmatprep.subr.mxu0 0.0
    %5536 = vmatpush1.xpose.msra.mxu0 0.0
    %5537 = vmatprep.subr.mxu0 0.0
    %5538 = vmatpush1.xpose.msra.mxu0 0.0
    %5539 = vmatprep.subr.mxu0 0.0
    %5540 = vmatpush1.xpose.msra.mxu0 0.0
    %5541 = vmatprep.subr.mxu0 0.0
    %5542 = vmatpush1.xpose.msra.mxu0 0.0
    %5543 = vmatprep.subr.mxu0 0.0
    %5544 = vmatpush1.xpose.msra.mxu0 0.0
    %5545 = vmatprep.subr.mxu0 0.0
    %5546 = vmatpush1.xpose.msra.mxu0 0.0
    %5547 = vmatprep.subr.mxu0 0.0
    %5548 = vmatpush1.xpose.msra.mxu0 0.0
    %5549 = vmatprep.subr.mxu0 0.0
    %5550 = vmatpush1.xpose.msra.mxu0 0.0
    %5551 = vmatprep.subr.mxu0 0.0
    %5552 = vmatpush1.xpose.msra.mxu0 0.0
    %5553 = vmatprep.subr.mxu0 0.0
    %5554 = vmatpush1.xpose.msra.mxu0 0.0
    %5555 = vmatprep.subr.mxu0 0.0
    %5556 = vmatpush1.xpose.msra.mxu0 0.0
    %5557 = vmatprep.subr.mxu0 0.0
    %5558 = vmatpush1.xpose.msra.mxu0 0.0
    %5559 = vmatprep.subr.mxu0 0.0
    %5560 = vmatpush1.xpose.msra.mxu0 0.0
    %5561 = vmatprep.subr.mxu0 0.0
    %5562 = vmatpush1.xpose.msra.mxu0 0.0
    %5563 = vmatprep.mubr.f32.mxu0 0.0
    %5564 = vmatmul.mubr.f32.gmra.mrb[0].mxu0 %v5473
    %v5565 = vpop.f32.mrb[0].mxu0
    %v5566 = vadd.f32 0.0, %v5565
    %v5567 = vpop.f32.mrb[0].mxu0
    %5568 = vmatprep.mubr.f32.mxu0 0.0
    %5569 = vmatmul.mubr.f32.gmra.mrb[0].mxu0 %v5476
    %v5570 = vpop.f32.mrb[0].mxu0
    %v5571 = vadd.f32 0.0, %v5570
    %v5572 = vpop.f32.mrb[0].mxu0
    %5573 = vmatprep.mubr.f32.mxu0 0.0
    %5574 = vmatmul.mubr.f32.gmra.mrb[0].mxu0 %v5479
    %v5575 = vpop.f32.mrb[0].mxu0
    %v5576 = vadd.f32 0.0, %v5575
    %v5577 = vpop.f32.mrb[0].mxu0
    %5578 = vmatprep.mubr.f32.mxu0 0.0
    %5579 = vmatmul.mubr.f32.gmra.mrb[0].mxu0 %v5482
    %v5580 = vpop.f32.mrb[0].mxu0
    %v5581 = vadd.f32 0.0, %v5580
    %v5582 = vpop.f32.mrb[0].mxu0
    %5583 = vmatprep.mubr.f32.mxu0 0.0
    %5584 = vmatmul.mubr.f32.gmra.mrb[0].mxu0 %v5485
    %v5585 = vpop.f32.mrb[0].mxu0
    %v5586 = vadd.f32 0.0, %v5585
    %v5587 = vpop.f32.mrb[0].mxu0
    %5588 = vmatprep.mubr.f32.mxu0 0.0
    %5589 = vmatmul.mubr.f32.gmra.mrb[0].mxu0 %v5488
    %v5590 = vpop.f32.mrb[0].mxu0
    %v5591 = vadd.f32 0.0, %v5590
    %v5592 = vpop.f32.mrb[0].mxu0
    %5593 = vmatprep.mubr.f32.mxu0 0.0
    %5594 = vmatmul.mubr.f32.gmra.mrb[0].mxu0 %v5491
    %v5595 = vpop.f32.mrb[0].mxu0
    %v5596 = vadd.f32 0.0, %v5595
    %v5597 = vpop.f32.mrb[0].mxu0
    %5598 = vmatprep.mubr.f32.mxu0 0.0
    %5599 = vmatmul.mubr.f32.gmra.mrb[0].mxu0 %v5494
    %v5600 = vpop.f32.mrb[0].mxu0
    %v5601 = vadd.f32 0.0, %v5600
    %v5602 = vpop.f32.mrb[0].mxu0
    %5603 = vdwg.mxu0
    %v5604 = vsel %vm483, %v5434, -inf
    %5605 = vmax.xlane.f32.xlu0 %v5604
    %v5606 = vpop.xlane.xlu0 %5605
    %v5607 = vsel %vm483, %v5439, -inf
    %5608 = vmax.xlane.f32.xlu0 %v5607
    %v5609 = vpop.xlane.xlu0 %5608
    %v5610 = vsel %vm483, %v5444, -inf
    %5611 = vmax.xlane.f32.xlu0 %v5610
    %v5612 = vpop.xlane.xlu0 %5611
    %v5613 = vsel %vm483, %v5449, -inf
    %5614 = vmax.xlane.f32.xlu0 %v5613
    %v5615 = vpop.xlane.xlu0 %5614
    %v5616 = vsel %vm483, %v5454, -inf
    %5617 = vmax.xlane.f32.xlu0 %v5616
    %v5618 = vpop.xlane.xlu0 %5617
    %v5619 = vsel %vm483, %v5459, -inf
    %5620 = vmax.xlane.f32.xlu0 %v5619
    %v5621 = vpop.xlane.xlu0 %5620
    %v5622 = vsel %vm483, %v5464, -inf
    %5623 = vmax.xlane.f32.xlu0 %v5622
    %v5624 = vpop.xlane.xlu0 %5623
    %v5625 = vsel %vm483, %v5469, -inf
    %5626 = vmax.xlane.f32.xlu0 %v5625
    %v5627 = vpop.xlane.xlu0 %5626
    %v5628 = vsel %vm483, %v5566, -inf
    %5629 = vmax.xlane.f32.xlu0 %v5628
    %v5630 = vpop.xlane.xlu0 %5629
    %v5631 = vsel %vm483, %v5571, -inf
    %5632 = vmax.xlane.f32.xlu0 %v5631
    %v5633 = vpop.xlane.xlu0 %5632
    %v5634 = vsel %vm483, %v5576, -inf
    %5635 = vmax.xlane.f32.xlu0 %v5634
    %v5636 = vpop.xlane.xlu0 %5635
    %v5637 = vsel %vm483, %v5581, -inf
    %5638 = vmax.xlane.f32.xlu0 %v5637
    %v5639 = vpop.xlane.xlu0 %5638
    %v5640 = vsel %vm483, %v5586, -inf
    %5641 = vmax.xlane.f32.xlu0 %v5640
    %v5642 = vpop.xlane.xlu0 %5641
    %v5643 = vsel %vm483, %v5591, -inf
    %5644 = vmax.xlane.f32.xlu0 %v5643
    %v5645 = vpop.xlane.xlu0 %5644
    %v5646 = vsel %vm483, %v5596, -inf
    %5647 = vmax.xlane.f32.xlu0 %v5646
    %v5648 = vpop.xlane.xlu0 %5647
    %v5649 = vsel %vm483, %v5601, -inf
    %5650 = vmax.xlane.f32.xlu0 %v5649
    %v5651 = vpop.xlane.xlu0 %5650
    %v5652 = vsub.f32 %v5434, %v5606
    %v5653 = vsub.f32 %v5439, %v5609
    %v5654 = vsub.f32 %v5444, %v5612
    %v5655 = vsub.f32 %v5449, %v5615
    %v5656 = vsub.f32 %v5454, %v5618
    %v5657 = vsub.f32 %v5459, %v5621
    %v5658 = vsub.f32 %v5464, %v5624
    %v5659 = vsub.f32 %v5469, %v5627
    %v5660 = vsub.f32 %v5566, %v5630
    %v5661 = vsub.f32 %v5571, %v5633
    %v5662 = vsub.f32 %v5576, %v5636
    %v5663 = vsub.f32 %v5581, %v5639
    %v5664 = vsub.f32 %v5586, %v5642
    %v5665 = vsub.f32 %v5591, %v5645
    %v5666 = vsub.f32 %v5596, %v5648
    %v5667 = vsub.f32 %v5601, %v5651
    %v5668 = vmul.f32 %v5652, 1.442695
    %v5669 = vpow.pop %v5668
    %v5670 = vmul.f32 %v5653, 1.442695
    %v5671 = vpow.pop %v5670
    %v5672 = vmul.f32 %v5654, 1.442695
    %v5673 = vpow.pop %v5672
    %v5674 = vmul.f32 %v5655, 1.442695
    %v5675 = vpow.pop %v5674
    %v5676 = vmul.f32 %v5656, 1.442695
    %v5677 = vpow.pop %v5676
    %v5678 = vmul.f32 %v5657, 1.442695
    %v5679 = vpow.pop %v5678
    %v5680 = vmul.f32 %v5658, 1.442695
    %v5681 = vpow.pop %v5680
    %v5682 = vmul.f32 %v5659, 1.442695
    %v5683 = vpow.pop %v5682
    %v5684 = vmul.f32 %v5660, 1.442695
    %v5685 = vpow.pop %v5684
    %v5686 = vmul.f32 %v5661, 1.442695
    %v5687 = vpow.pop %v5686
    %v5688 = vmul.f32 %v5662, 1.442695
    %v5689 = vpow.pop %v5688
    %v5690 = vmul.f32 %v5663, 1.442695
    %v5691 = vpow.pop %v5690
    %v5692 = vmul.f32 %v5664, 1.442695
    %v5693 = vpow.pop %v5692
    %v5694 = vmul.f32 %v5665, 1.442695
    %v5695 = vpow.pop %v5694
    %v5696 = vmul.f32 %v5666, 1.442695
    %v5697 = vpow.pop %v5696
    %v5698 = vmul.f32 %v5667, 1.442695
    %v5699 = vpow.pop %v5698
    %v5700 = vsel %vm483, %v5669, 0.0
    %5701 = vadd.xlane.f32.xlu0 %v5700
    %v5702 = vpop.xlane.xlu0 %5701
    %v5703 = vsel %vm483, %v5671, 0.0
    %5704 = vadd.xlane.f32.xlu0 %v5703
    %v5705 = vpop.xlane.xlu0 %5704
    %v5706 = vsel %vm483, %v5673, 0.0
    %5707 = vadd.xlane.f32.xlu0 %v5706
    %v5708 = vpop.xlane.xlu0 %5707
    %v5709 = vsel %vm483, %v5675, 0.0
    %5710 = vadd.xlane.f32.xlu0 %v5709
    %v5711 = vpop.xlane.xlu0 %5710
    %v5712 = vsel %vm483, %v5677, 0.0
    %5713 = vadd.xlane.f32.xlu0 %v5712
    %v5714 = vpop.xlane.xlu0 %5713
    %v5715 = vsel %vm483, %v5679, 0.0
    %5716 = vadd.xlane.f32.xlu0 %v5715
    %v5717 = vpop.xlane.xlu0 %5716
    %v5718 = vsel %vm483, %v5681, 0.0
    %5719 = vadd.xlane.f32.xlu0 %v5718
    %v5720 = vpop.xlane.xlu0 %5719
    %v5721 = vsel %vm483, %v5683, 0.0
    %5722 = vadd.xlane.f32.xlu0 %v5721
    %v5723 = vpop.xlane.xlu0 %5722
    %v5724 = vsel %vm483, %v5685, 0.0
    %5725 = vadd.xlane.f32.xlu0 %v5724
    %v5726 = vpop.xlane.xlu0 %5725
    %v5727 = vsel %vm483, %v5687, 0.0
    %5728 = vadd.xlane.f32.xlu0 %v5727
    %v5729 = vpop.xlane.xlu0 %5728
    %v5730 = vsel %vm483, %v5689, 0.0
    %5731 = vadd.xlane.f32.xlu0 %v5730
    %v5732 = vpop.xlane.xlu0 %5731
    %v5733 = vsel %vm483, %v5691, 0.0
    %5734 = vadd.xlane.f32.xlu0 %v5733
    %v5735 = vpop.xlane.xlu0 %5734
    %v5736 = vsel %vm483, %v5693, 0.0
    %5737 = vadd.xlane.f32.xlu0 %v5736
    %v5738 = vpop.xlane.xlu0 %5737
    %v5739 = vsel %vm483, %v5695, 0.0
    %5740 = vadd.xlane.f32.xlu0 %v5739
    %v5741 = vpop.xlane.xlu0 %5740
    %v5742 = vsel %vm483, %v5697, 0.0
    %5743 = vadd.xlane.f32.xlu0 %v5742
    %v5744 = vpop.xlane.xlu0 %5743
    %v5745 = vsel %vm483, %v5699, 0.0
    %5746 = vadd.xlane.f32.xlu0 %v5745
    %v5747 = vpop.xlane.xlu0 %5746
    %v5748 = vrcp.pop %v5702
    %v5749 = vmul.f32 %v5669, %v5748
    %v5750 = vrcp.pop %v5705
    %v5751 = vmul.f32 %v5671, %v5750
    %v5752 = vrcp.pop %v5708
    %v5753 = vmul.f32 %v5673, %v5752
    %v5754 = vrcp.pop %v5711
    %v5755 = vmul.f32 %v5675, %v5754
    %v5756 = vrcp.pop %v5714
    %v5757 = vmul.f32 %v5677, %v5756
    %v5758 = vrcp.pop %v5717
    %v5759 = vmul.f32 %v5679, %v5758
    %v5760 = vrcp.pop %v5720
    %v5761 = vmul.f32 %v5681, %v5760
    %v5762 = vrcp.pop %v5723
    %v5763 = vmul.f32 %v5683, %v5762
    %v5764 = vrcp.pop %v5726
    %v5765 = vmul.f32 %v5685, %v5764
    %v5766 = vrcp.pop %v5729
    %v5767 = vmul.f32 %v5687, %v5766
    %v5768 = vrcp.pop %v5732
    %v5769 = vmul.f32 %v5689, %v5768
    %v5770 = vrcp.pop %v5735
    %v5771 = vmul.f32 %v5691, %v5770
    %v5772 = vrcp.pop %v5738
    %v5773 = vmul.f32 %v5693, %v5772
    %v5774 = vrcp.pop %v5741
    %v5775 = vmul.f32 %v5695, %v5774
    %v5776 = vrcp.pop %v5744
    %v5777 = vmul.f32 %v5697, %v5776
    %v5778 = vrcp.pop %v5747
    %v5779 = vmul.f32 %v5699, %v5778
    %v5781 = vsel %vm483, %v5749, 0
    %v5784 = vsel %vm483, %v5751, 0
    %v5787 = vsel %vm483, %v5753, 0
    %v5790 = vsel %vm483, %v5755, 0
    %v5793 = vsel %vm483, %v5757, 0
    %v5796 = vsel %vm483, %v5759, 0
    %v5799 = vsel %vm483, %v5761, 0
    %v5802 = vsel %vm483, %v5763, 0
    %5804 = vmatprep.subr.mxu0 0.0
    %5805 = vmatpush1.msra.mxu0 %v5332
    %5806 = vmatprep.subr.mxu0 0.0
    %5807 = vmatpush1.msra.mxu0 0.0
    %5808 = vmatprep.subr.mxu0 0.0
    %5809 = vmatpush1.msra.mxu0 0.0
    %5810 = vmatprep.subr.mxu0 0.0
    %5811 = vmatpush1.msra.mxu0 0.0
    %5812 = vmatprep.subr.mxu0 0.0
    %5813 = vmatpush1.msra.mxu0 0.0
    %5814 = vmatprep.subr.mxu0 0.0
    %5815 = vmatpush1.msra.mxu0 0.0
    %5816 = vmatprep.subr.mxu0 0.0
    %5817 = vmatpush1.msra.mxu0 0.0
    %5818 = vmatprep.subr.mxu0 0.0
    %5819 = vmatpush1.msra.mxu0 0.0
    %5820 = vmatprep.subr.mxu0 0.0
    %5821 = vmatpush1.msra.mxu0 0.0
    %5822 = vmatprep.subr.mxu0 0.0
    %5823 = vmatpush1.msra.mxu0 0.0
    %5824 = vmatprep.subr.mxu0 0.0
    %5825 = vmatpush1.msra.mxu0 0.0
    %5826 = vmatprep.subr.mxu0 0.0
    %5827 = vmatpush1.msra.mxu0 0.0
    %5828 = vmatprep.subr.mxu0 0.0
    %5829 = vmatpush1.msra.mxu0 0.0
    %5830 = vmatprep.subr.mxu0 0.0
    %5831 = vmatpush1.msra.mxu0 0.0
    %5832 = vmatprep.subr.mxu0 0.0
    %5833 = vmatpush1.msra.mxu0 0.0
    %5834 = vmatprep.subr.mxu0 0.0
    %5835 = vmatpush1.msra.mxu0 0.0
    %5836 = vmatprep.subr.mxu0 0.0
    %5837 = vmatpush1.msra.mxu0 0.0
    %5838 = vmatprep.subr.mxu0 0.0
    %5839 = vmatpush1.msra.mxu0 0.0
    %5840 = vmatprep.subr.mxu0 0.0
    %5841 = vmatpush1.msra.mxu0 0.0
    %5842 = vmatprep.subr.mxu0 0.0
    %5843 = vmatpush1.msra.mxu0 0.0
    %5844 = vmatprep.subr.mxu0 0.0
    %5845 = vmatpush1.msra.mxu0 0.0
    %5846 = vmatprep.subr.mxu0 0.0
    %5847 = vmatpush1.msra.mxu0 0.0
    %5848 = vmatprep.subr.mxu0 0.0
    %5849 = vmatpush1.msra.mxu0 0.0
    %5850 = vmatprep.subr.mxu0 0.0
    %5851 = vmatpush1.msra.mxu0 0.0
    %5852 = vmatprep.subr.mxu0 0.0
    %5853 = vmatpush1.msra.mxu0 0.0
    %5854 = vmatprep.subr.mxu0 0.0
    %5855 = vmatpush1.msra.mxu0 0.0
    %5856 = vmatprep.subr.mxu0 0.0
    %5857 = vmatpush1.msra.mxu0 0.0
    %5858 = vmatprep.subr.mxu0 0.0
    %5859 = vmatpush1.msra.mxu0 0.0
    %5860 = vmatprep.subr.mxu0 0.0
    %5861 = vmatpush1.msra.mxu0 0.0
    %5862 = vmatprep.subr.mxu0 0.0
    %5863 = vmatpush1.msra.mxu0 0.0
    %5864 = vmatprep.subr.mxu0 0.0
    %5865 = vmatpush1.msra.mxu0 0.0
    %5866 = vmatprep.subr.mxu0 0.0
    %5867 = vmatpush1.msra.mxu0 0.0
    %5868 = vmatprep.mubr.f32.mxu0 0.0
    %5869 = vmatmul.mubr.f32.gmra.mrb[0].mxu0 %v5781
    %v5870 = vpop.f32.mrb[0].mxu0
    %v5871 = vadd.f32 0.0, %v5870
    %v5872 = vpop.f32.mrb[0].mxu0
    %5873 = vmatprep.mubr.f32.mxu0 0.0
    %5874 = vmatmul.mubr.f32.gmra.mrb[0].mxu0 %v5784
    %v5875 = vpop.f32.mrb[0].mxu0
    %v5876 = vadd.f32 0.0, %v5875
    %v5877 = vpop.f32.mrb[0].mxu0
    %5878 = vmatprep.mubr.f32.mxu0 0.0
    %5879 = vmatmul.mubr.f32.gmra.mrb[0].mxu0 %v5787
    %v5880 = vpop.f32.mrb[0].mxu0
    %v5881 = vadd.f32 0.0, %v5880
    %v5882 = vpop.f32.mrb[0].mxu0
    %5883 = vmatprep.mubr.f32.mxu0 0.0
    %5884 = vmatmul.mubr.f32.gmra.mrb[0].mxu0 %v5790
    %v5885 = vpop.f32.mrb[0].mxu0
    %v5886 = vadd.f32 0.0, %v5885
    %v5887 = vpop.f32.mrb[0].mxu0
    %5888 = vmatprep.mubr.f32.mxu0 0.0
    %5889 = vmatmul.mubr.f32.gmra.mrb[0].mxu0 %v5793
    %v5890 = vpop.f32.mrb[0].mxu0
    %v5891 = vadd.f32 0.0, %v5890
    %v5892 = vpop.f32.mrb[0].mxu0
    %5893 = vmatprep.mubr.f32.mxu0 0.0
    %5894 = vmatmul.mubr.f32.gmra.mrb[0].mxu0 %v5796
    %v5895 = vpop.f32.mrb[0].mxu0
    %v5896 = vadd.f32 0.0, %v5895
    %v5897 = vpop.f32.mrb[0].mxu0
    %5898 = vmatprep.mubr.f32.mxu0 0.0
    %5899 = vmatmul.mubr.f32.gmra.mrb[0].mxu0 %v5799
    %v5900 = vpop.f32.mrb[0].mxu0
    %v5901 = vadd.f32 0.0, %v5900
    %v5902 = vpop.f32.mrb[0].mxu0
    %5903 = vmatprep.mubr.f32.mxu0 0.0
    %5904 = vmatmul.mubr.f32.gmra.mrb[0].mxu0 %v5802
    %v5905 = vpop.f32.mrb[0].mxu0
    %v5906 = vadd.f32 0.0, %v5905
    %v5907 = vpop.f32.mrb[0].mxu0
    %5908 = vdwg.mxu0
    %v5910 = vsel %vm483, %v5765, 0
    %v5913 = vsel %vm483, %v5767, 0
    %v5916 = vsel %vm483, %v5769, 0
    %v5919 = vsel %vm483, %v5771, 0
    %v5922 = vsel %vm483, %v5773, 0
    %v5925 = vsel %vm483, %v5775, 0
    %v5928 = vsel %vm483, %v5777, 0
    %v5931 = vsel %vm483, %v5779, 0
    %5933 = vmatprep.subr.mxu0 0.0
    %5934 = vmatpush1.msra.mxu0 %v5337
    %5935 = vmatprep.subr.mxu0 0.0
    %5936 = vmatpush1.msra.mxu0 0.0
    %5937 = vmatprep.subr.mxu0 0.0
    %5938 = vmatpush1.msra.mxu0 0.0
    %5939 = vmatprep.subr.mxu0 0.0
    %5940 = vmatpush1.msra.mxu0 0.0
    %5941 = vmatprep.subr.mxu0 0.0
    %5942 = vmatpush1.msra.mxu0 0.0
    %5943 = vmatprep.subr.mxu0 0.0
    %5944 = vmatpush1.msra.mxu0 0.0
    %5945 = vmatprep.subr.mxu0 0.0
    %5946 = vmatpush1.msra.mxu0 0.0
    %5947 = vmatprep.subr.mxu0 0.0
    %5948 = vmatpush1.msra.mxu0 0.0
    %5949 = vmatprep.subr.mxu0 0.0
    %5950 = vmatpush1.msra.mxu0 0.0
    %5951 = vmatprep.subr.mxu0 0.0
    %5952 = vmatpush1.msra.mxu0 0.0
    %5953 = vmatprep.subr.mxu0 0.0
    %5954 = vmatpush1.msra.mxu0 0.0
    %5955 = vmatprep.subr.mxu0 0.0
    %5956 = vmatpush1.msra.mxu0 0.0
    %5957 = vmatprep.subr.mxu0 0.0
    %5958 = vmatpush1.msra.mxu0 0.0
    %5959 = vmatprep.subr.mxu0 0.0
    %5960 = vmatpush1.msra.mxu0 0.0
    %5961 = vmatprep.subr.mxu0 0.0
    %5962 = vmatpush1.msra.mxu0 0.0
    %5963 = vmatprep.subr.mxu0 0.0
    %5964 = vmatpush1.msra.mxu0 0.0
    %5965 = vmatprep.subr.mxu0 0.0
    %5966 = vmatpush1.msra.mxu0 0.0
    %5967 = vmatprep.subr.mxu0 0.0
    %5968 = vmatpush1.msra.mxu0 0.0
    %5969 = vmatprep.subr.mxu0 0.0
    %5970 = vmatpush1.msra.mxu0 0.0
    %5971 = vmatprep.subr.mxu0 0.0
    %5972 = vmatpush1.msra.mxu0 0.0
    %5973 = vmatprep.subr.mxu0 0.0
    %5974 = vmatpush1.msra.mxu0 0.0
    %5975 = vmatprep.subr.mxu0 0.0
    %5976 = vmatpush1.msra.mxu0 0.0
    %5977 = vmatprep.subr.mxu0 0.0
    %5978 = vmatpush1.msra.mxu0 0.0
    %5979 = vmatprep.subr.mxu0 0.0
    %5980 = vmatpush1.msra.mxu0 0.0
    %5981 = vmatprep.subr.mxu0 0.0
    %5982 = vmatpush1.msra.mxu0 0.0
    %5983 = vmatprep.subr.mxu0 0.0
    %5984 = vmatpush1.msra.mxu0 0.0
    %5985 = vmatprep.subr.mxu0 0.0
    %5986 = vmatpush1.msra.mxu0 0.0
    %5987 = vmatprep.subr.mxu0 0.0
    %5988 = vmatpush1.msra.mxu0 0.0
    %5989 = vmatprep.subr.mxu0 0.0
    %5990 = vmatpush1.msra.mxu0 0.0
    %5991 = vmatprep.subr.mxu0 0.0
    %5992 = vmatpush1.msra.mxu0 0.0
    %5993 = vmatprep.subr.mxu0 0.0
    %5994 = vmatpush1.msra.mxu0 0.0
    %5995 = vmatprep.subr.mxu0 0.0
    %5996 = vmatpush1.msra.mxu0 0.0
    %5997 = vmatprep.mubr.f32.mxu0 0.0
    %5998 = vmatmul.mubr.f32.gmra.mrb[0].mxu0 %v5910
    %v5999 = vpop.f32.mrb[0].mxu0
    %v6000 = vadd.f32 0.0, %v5999
    %v6001 = vpop.f32.mrb[0].mxu0
    %6002 = vmatprep.mubr.f32.mxu0 0.0
    %6003 = vmatmul.mubr.f32.gmra.mrb[0].mxu0 %v5913
    %v6004 = vpop.f32.mrb[0].mxu0
    %v6005 = vadd.f32 0.0, %v6004
    %v6006 = vpop.f32.mrb[0].mxu0
    %6007 = vmatprep.mubr.f32.mxu0 0.0
    %6008 = vmatmul.mubr.f32.gmra.mrb[0].mxu0 %v5916
    %v6009 = vpop.f32.mrb[0].mxu0
    %v6010 = vadd.f32 0.0, %v6009
    %v6011 = vpop.f32.mrb[0].mxu0
    %6012 = vmatprep.mubr.f32.mxu0 0.0
    %6013 = vmatmul.mubr.f32.gmra.mrb[0].mxu0 %v5919
    %v6014 = vpop.f32.mrb[0].mxu0
    %v6015 = vadd.f32 0.0, %v6014
    %v6016 = vpop.f32.mrb[0].mxu0
    %6017 = vmatprep.mubr.f32.mxu0 0.0
    %6018 = vmatmul.mubr.f32.gmra.mrb[0].mxu0 %v5922
    %v6019 = vpop.f32.mrb[0].mxu0
    %v6020 = vadd.f32 0.0, %v6019
    %v6021 = vpop.f32.mrb[0].mxu0
    %6022 = vmatprep.mubr.f32.mxu0 0.0
    %6023 = vmatmul.mubr.f32.gmra.mrb[0].mxu0 %v5925
    %v6024 = vpop.f32.mrb[0].mxu0
    %v6025 = vadd.f32 0.0, %v6024
    %v6026 = vpop.f32.mrb[0].mxu0
    %6027 = vmatprep.mubr.f32.mxu0 0.0
    %6028 = vmatmul.mubr.f32.gmra.mrb[0].mxu0 %v5928
    %v6029 = vpop.f32.mrb[0].mxu0
    %v6030 = vadd.f32 0.0, %v6029
    %v6031 = vpop.f32.mrb[0].mxu0
    %6032 = vmatprep.mubr.f32.mxu0 0.0
    %6033 = vmatmul.mubr.f32.gmra.mrb[0].mxu0 %v5931
    %v6034 = vpop.f32.mrb[0].mxu0
    %v6035 = vadd.f32 0.0, %v6034
    %v6036 = vpop.f32.mrb[0].mxu0
    %6037 = vdwg.mxu0
    %6038 = vrot.lane.b32.xlu0 %v5078, 124
    %v6039 = vpop.permute.xlu0 %6038
    %6040 = vrot.lane.b32.xlu0 %v5083, 124
    %v6041 = vpop.permute.xlu0 %6040
    %6042 = vrot.lane.b32.xlu0 %v5088, 124
    %v6043 = vpop.permute.xlu0 %6042
    %6044 = vrot.lane.b32.xlu0 %v5093, 124
    %v6045 = vpop.permute.xlu0 %6044
    %6046 = vrot.lane.b32.xlu0 %v5098, 124
    %v6047 = vpop.permute.xlu0 %6046
    %6048 = vrot.lane.b32.xlu0 %v5103, 124
    %v6049 = vpop.permute.xlu0 %6048
    %6050 = vrot.lane.b32.xlu0 %v5108, 124
    %v6051 = vpop.permute.xlu0 %6050
    %6052 = vrot.lane.b32.xlu0 %v5113, 124
    %v6053 = vpop.permute.xlu0 %6052
    %6054 = vrot.lane.b32.xlu0 %v5240, 124
    %v6055 = vpop.permute.xlu0 %6054
    %v6056 = vsel %vm2700, %v6039, 0
    %v6058 = vsel %vm2700, %v6041, 0
    %v6060 = vsel %vm2700, %v6043, 0
    %v6062 = vsel %vm2700, %v6045, 0
    %v6064 = vsel %vm2700, %v6047, 0
    %v6066 = vsel %vm2700, %v6049, 0
    %v6068 = vsel %vm2700, %v6051, 0
    %v6070 = vsel %vm2700, %v6053, 0
    %v6072 = vsel %vm2700, %v6055, 0
    %6074 = vmatprep.subr.mxu0 0.0
    %6075 = vmatpush1.xpose.msra.mxu0 %v6072
    %6076 = vmatprep.subr.mxu0 0.0
    %6077 = vmatpush1.xpose.msra.mxu0 0.0
    %6078 = vmatprep.subr.mxu0 0.0
    %6079 = vmatpush1.xpose.msra.mxu0 0.0
    %6080 = vmatprep.subr.mxu0 0.0
    %6081 = vmatpush1.xpose.msra.mxu0 0.0
    %6082 = vmatprep.subr.mxu0 0.0
    %6083 = vmatpush1.xpose.msra.mxu0 0.0
    %6084 = vmatprep.subr.mxu0 0.0
    %6085 = vmatpush1.xpose.msra.mxu0 0.0
    %6086 = vmatprep.subr.mxu0 0.0
    %6087 = vmatpush1.xpose.msra.mxu0 0.0
    %6088 = vmatprep.subr.mxu0 0.0
    %6089 = vmatpush1.xpose.msra.mxu0 0.0
    %6090 = vmatprep.subr.mxu0 0.0
    %6091 = vmatpush1.xpose.msra.mxu0 0.0
    %6092 = vmatprep.subr.mxu0 0.0
    %6093 = vmatpush1.xpose.msra.mxu0 0.0
    %6094 = vmatprep.subr.mxu0 0.0
    %6095 = vmatpush1.xpose.msra.mxu0 0.0
    %6096 = vmatprep.subr.mxu0 0.0
    %6097 = vmatpush1.xpose.msra.mxu0 0.0
    %6098 = vmatprep.subr.mxu0 0.0
    %6099 = vmatpush1.xpose.msra.mxu0 0.0
    %6100 = vmatprep.subr.mxu0 0.0
    %6101 = vmatpush1.xpose.msra.mxu0 0.0
    %6102 = vmatprep.subr.mxu0 0.0
    %6103 = vmatpush1.xpose.msra.mxu0 0.0
    %6104 = vmatprep.subr.mxu0 0.0
    %6105 = vmatpush1.xpose.msra.mxu0 0.0
    %6106 = vmatprep.subr.mxu0 0.0
    %6107 = vmatpush1.xpose.msra.mxu0 0.0
    %6108 = vmatprep.subr.mxu0 0.0
    %6109 = vmatpush1.xpose.msra.mxu0 0.0
    %6110 = vmatprep.subr.mxu0 0.0
    %6111 = vmatpush1.xpose.msra.mxu0 0.0
    %6112 = vmatprep.subr.mxu0 0.0
    %6113 = vmatpush1.xpose.msra.mxu0 0.0
    %6114 = vmatprep.subr.mxu0 0.0
    %6115 = vmatpush1.xpose.msra.mxu0 0.0
    %6116 = vmatprep.subr.mxu0 0.0
    %6117 = vmatpush1.xpose.msra.mxu0 0.0
    %6118 = vmatprep.subr.mxu0 0.0
    %6119 = vmatpush1.xpose.msra.mxu0 0.0
    %6120 = vmatprep.subr.mxu0 0.0
    %6121 = vmatpush1.xpose.msra.mxu0 0.0
    %6122 = vmatprep.subr.mxu0 0.0
    %6123 = vmatpush1.xpose.msra.mxu0 0.0
    %6124 = vmatprep.subr.mxu0 0.0
    %6125 = vmatpush1.xpose.msra.mxu0 0.0
    %6126 = vmatprep.subr.mxu0 0.0
    %6127 = vmatpush1.xpose.msra.mxu0 0.0
    %6128 = vmatprep.subr.mxu0 0.0
    %6129 = vmatpush1.xpose.msra.mxu0 0.0
    %6130 = vmatprep.subr.mxu0 0.0
    %6131 = vmatpush1.xpose.msra.mxu0 0.0
    %6132 = vmatprep.subr.mxu0 0.0
    %6133 = vmatpush1.xpose.msra.mxu0 0.0
    %6134 = vmatprep.subr.mxu0 0.0
    %6135 = vmatpush1.xpose.msra.mxu0 0.0
    %6136 = vmatprep.subr.mxu0 0.0
    %6137 = vmatpush1.xpose.msra.mxu0 0.0
    %6138 = vmatprep.mubr.f32.mxu0 0.0
    %6139 = vmatmul.mubr.f32.gmra.mrb[0].mxu0 %v6056
    %v6140 = vpop.f32.mrb[0].mxu0
    %v6141 = vadd.f32 0.0, %v6140
    %v6142 = vpop.f32.mrb[0].mxu0
    %6143 = vmatprep.mubr.f32.mxu0 0.0
    %6144 = vmatmul.mubr.f32.gmra.mrb[0].mxu0 %v6058
    %v6145 = vpop.f32.mrb[0].mxu0
    %v6146 = vadd.f32 0.0, %v6145
    %v6147 = vpop.f32.mrb[0].mxu0
    %6148 = vmatprep.mubr.f32.mxu0 0.0
    %6149 = vmatmul.mubr.f32.gmra.mrb[0].mxu0 %v6060
    %v6150 = vpop.f32.mrb[0].mxu0
    %v6151 = vadd.f32 0.0, %v6150
    %v6152 = vpop.f32.mrb[0].mxu0
    %6153 = vmatprep.mubr.f32.mxu0 0.0
    %6154 = vmatmul.mubr.f32.gmra.mrb[0].mxu0 %v6062
    %v6155 = vpop.f32.mrb[0].mxu0
    %v6156 = vadd.f32 0.0, %v6155
    %v6157 = vpop.f32.mrb[0].mxu0
    %6158 = vmatprep.mubr.f32.mxu0 0.0
    %6159 = vmatmul.mubr.f32.gmra.mrb[0].mxu0 %v6064
    %v6160 = vpop.f32.mrb[0].mxu0
    %v6161 = vadd.f32 0.0, %v6160
    %v6162 = vpop.f32.mrb[0].mxu0
    %6163 = vmatprep.mubr.f32.mxu0 0.0
    %6164 = vmatmul.mubr.f32.gmra.mrb[0].mxu0 %v6066
    %v6165 = vpop.f32.mrb[0].mxu0
    %v6166 = vadd.f32 0.0, %v6165
    %v6167 = vpop.f32.mrb[0].mxu0
    %6168 = vmatprep.mubr.f32.mxu0 0.0
    %6169 = vmatmul.mubr.f32.gmra.mrb[0].mxu0 %v6068
    %v6170 = vpop.f32.mrb[0].mxu0
    %v6171 = vadd.f32 0.0, %v6170
    %v6172 = vpop.f32.mrb[0].mxu0
    %6173 = vmatprep.mubr.f32.mxu0 0.0
    %6174 = vmatmul.mubr.f32.gmra.mrb[0].mxu0 %v6070
    %v6175 = vpop.f32.mrb[0].mxu0
    %v6176 = vadd.f32 0.0, %v6175
    %v6177 = vpop.f32.mrb[0].mxu0
    %6178 = vdwg.mxu0
    %6179 = vrot.lane.b32.xlu0 %v5118, 124
    %v6180 = vpop.permute.xlu0 %6179
    %6181 = vrot.lane.b32.xlu0 %v5123, 124
    %v6182 = vpop.permute.xlu0 %6181
    %6183 = vrot.lane.b32.xlu0 %v5128, 124
    %v6184 = vpop.permute.xlu0 %6183
    %6185 = vrot.lane.b32.xlu0 %v5133, 124
    %v6186 = vpop.permute.xlu0 %6185
    %6187 = vrot.lane.b32.xlu0 %v5138, 124
    %v6188 = vpop.permute.xlu0 %6187
    %6189 = vrot.lane.b32.xlu0 %v5143, 124
    %v6190 = vpop.permute.xlu0 %6189
    %6191 = vrot.lane.b32.xlu0 %v5148, 124
    %v6192 = vpop.permute.xlu0 %6191
    %6193 = vrot.lane.b32.xlu0 %v5153, 124
    %v6194 = vpop.permute.xlu0 %6193
    %6195 = vrot.lane.b32.xlu0 %v5245, 124
    %v6196 = vpop.permute.xlu0 %6195
    %v6197 = vsel %vm2700, %v6180, 0
    %v6199 = vsel %vm2700, %v6182, 0
    %v6201 = vsel %vm2700, %v6184, 0
    %v6203 = vsel %vm2700, %v6186, 0
    %v6205 = vsel %vm2700, %v6188, 0
    %v6207 = vsel %vm2700, %v6190, 0
    %v6209 = vsel %vm2700, %v6192, 0
    %v6211 = vsel %vm2700, %v6194, 0
    %v6213 = vsel %vm2700, %v6196, 0
    %6215 = vmatprep.subr.mxu0 0.0
    %6216 = vmatpush1.xpose.msra.mxu0 %v6213
    %6217 = vmatprep.subr.mxu0 0.0
    %6218 = vmatpush1.xpose.msra.mxu0 0.0
    %6219 = vmatprep.subr.mxu0 0.0
    %6220 = vmatpush1.xpose.msra.mxu0 0.0
    %6221 = vmatprep.subr.mxu0 0.0
    %6222 = vmatpush1.xpose.msra.mxu0 0.0
    %6223 = vmatprep.subr.mxu0 0.0
    %6224 = vmatpush1.xpose.msra.mxu0 0.0
    %6225 = vmatprep.subr.mxu0 0.0
    %6226 = vmatpush1.xpose.msra.mxu0 0.0
    %6227 = vmatprep.subr.mxu0 0.0
    %6228 = vmatpush1.xpose.msra.mxu0 0.0
    %6229 = vmatprep.subr.mxu0 0.0
    %6230 = vmatpush1.xpose.msra.mxu0 0.0
    %6231 = vmatprep.subr.mxu0 0.0
    %6232 = vmatpush1.xpose.msra.mxu0 0.0
    %6233 = vmatprep.subr.mxu0 0.0
    %6234 = vmatpush1.xpose.msra.mxu0 0.0
    %6235 = vmatprep.subr.mxu0 0.0
    %6236 = vmatpush1.xpose.msra.mxu0 0.0
    %6237 = vmatprep.subr.mxu0 0.0
    %6238 = vmatpush1.xpose.msra.mxu0 0.0
    %6239 = vmatprep.subr.mxu0 0.0
    %6240 = vmatpush1.xpose.msra.mxu0 0.0
    %6241 = vmatprep.subr.mxu0 0.0
    %6242 = vmatpush1.xpose.msra.mxu0 0.0
    %6243 = vmatprep.subr.mxu0 0.0
    %6244 = vmatpush1.xpose.msra.mxu0 0.0
    %6245 = vmatprep.subr.mxu0 0.0
    %6246 = vmatpush1.xpose.msra.mxu0 0.0
    %6247 = vmatprep.subr.mxu0 0.0
    %6248 = vmatpush1.xpose.msra.mxu0 0.0
    %6249 = vmatprep.subr.mxu0 0.0
    %6250 = vmatpush1.xpose.msra.mxu0 0.0
    %6251 = vmatprep.subr.mxu0 0.0
    %6252 = vmatpush1.xpose.msra.mxu0 0.0
    %6253 = vmatprep.subr.mxu0 0.0
    %6254 = vmatpush1.xpose.msra.mxu0 0.0
    %6255 = vmatprep.subr.mxu0 0.0
    %6256 = vmatpush1.xpose.msra.mxu0 0.0
    %6257 = vmatprep.subr.mxu0 0.0
    %6258 = vmatpush1.xpose.msra.mxu0 0.0
    %6259 = vmatprep.subr.mxu0 0.0
    %6260 = vmatpush1.xpose.msra.mxu0 0.0
    %6261 = vmatprep.subr.mxu0 0.0
    %6262 = vmatpush1.xpose.msra.mxu0 0.0
    %6263 = vmatprep.subr.mxu0 0.0
    %6264 = vmatpush1.xpose.msra.mxu0 0.0
    %6265 = vmatprep.subr.mxu0 0.0
    %6266 = vmatpush1.xpose.msra.mxu0 0.0
    %6267 = vmatprep.subr.mxu0 0.0
    %6268 = vmatpush1.xpose.msra.mxu0 0.0
    %6269 = vmatprep.subr.mxu0 0.0
    %6270 = vmatpush1.xpose.msra.mxu0 0.0
    %6271 = vmatprep.subr.mxu0 0.0
    %6272 = vmatpush1.xpose.msra.mxu0 0.0
    %6273 = vmatprep.subr.mxu0 0.0
    %6274 = vmatpush1.xpose.msra.mxu0 0.0
    %6275 = vmatprep.subr.mxu0 0.0
    %6276 = vmatpush1.xpose.msra.mxu0 0.0
    %6277 = vmatprep.subr.mxu0 0.0
    %6278 = vmatpush1.xpose.msra.mxu0 0.0
    %6279 = vmatprep.mubr.f32.mxu0 0.0
    %6280 = vmatmul.mubr.f32.gmra.mrb[0].mxu0 %v6197
    %v6281 = vpop.f32.mrb[0].mxu0
    %v6282 = vadd.f32 0.0, %v6281
    %v6283 = vpop.f32.mrb[0].mxu0
    %6284 = vmatprep.mubr.f32.mxu0 0.0
    %6285 = vmatmul.mubr.f32.gmra.mrb[0].mxu0 %v6199
    %v6286 = vpop.f32.mrb[0].mxu0
    %v6287 = vadd.f32 0.0, %v6286
    %v6288 = vpop.f32.mrb[0].mxu0
    %6289 = vmatprep.mubr.f32.mxu0 0.0
    %6290 = vmatmul.mubr.f32.gmra.mrb[0].mxu0 %v6201
    %v6291 = vpop.f32.mrb[0].mxu0
    %v6292 = vadd.f32 0.0, %v6291
    %v6293 = vpop.f32.mrb[0].mxu0
    %6294 = vmatprep.mubr.f32.mxu0 0.0
    %6295 = vmatmul.mubr.f32.gmra.mrb[0].mxu0 %v6203
    %v6296 = vpop.f32.mrb[0].mxu0
    %v6297 = vadd.f32 0.0, %v6296
    %v6298 = vpop.f32.mrb[0].mxu0
    %6299 = vmatprep.mubr.f32.mxu0 0.0
    %6300 = vmatmul.mubr.f32.gmra.mrb[0].mxu0 %v6205
    %v6301 = vpop.f32.mrb[0].mxu0
    %v6302 = vadd.f32 0.0, %v6301
    %v6303 = vpop.f32.mrb[0].mxu0
    %6304 = vmatprep.mubr.f32.mxu0 0.0
    %6305 = vmatmul.mubr.f32.gmra.mrb[0].mxu0 %v6207
    %v6306 = vpop.f32.mrb[0].mxu0
    %v6307 = vadd.f32 0.0, %v6306
    %v6308 = vpop.f32.mrb[0].mxu0
    %6309 = vmatprep.mubr.f32.mxu0 0.0
    %6310 = vmatmul.mubr.f32.gmra.mrb[0].mxu0 %v6209
    %v6311 = vpop.f32.mrb[0].mxu0
    %v6312 = vadd.f32 0.0, %v6311
    %v6313 = vpop.f32.mrb[0].mxu0
    %6314 = vmatprep.mubr.f32.mxu0 0.0
    %6315 = vmatmul.mubr.f32.gmra.mrb[0].mxu0 %v6211
    %v6316 = vpop.f32.mrb[0].mxu0
    %v6317 = vadd.f32 0.0, %v6316
    %v6318 = vpop.f32.mrb[0].mxu0
    %6319 = vdwg.mxu0
    %v6320 = vsel %vm483, %v6141, -inf
    %6321 = vmax.xlane.f32.xlu0 %v6320
    %v6322 = vpop.xlane.xlu0 %6321
    %v6323 = vsel %vm483, %v6146, -inf
    %6324 = vmax.xlane.f32.xlu0 %v6323
    %v6325 = vpop.xlane.xlu0 %6324
    %v6326 = vsel %vm483, %v6151, -inf
    %6327 = vmax.xlane.f32.xlu0 %v6326
    %v6328 = vpop.xlane.xlu0 %6327
    %v6329 = vsel %vm483, %v6156, -inf
    %6330 = vmax.xlane.f32.xlu0 %v6329
    %v6331 = vpop.xlane.xlu0 %6330
    %v6332 = vsel %vm483, %v6161, -inf
    %6333 = vmax.xlane.f32.xlu0 %v6332
    %v6334 = vpop.xlane.xlu0 %6333
    %v6335 = vsel %vm483, %v6166, -inf
    %6336 = vmax.xlane.f32.xlu0 %v6335
    %v6337 = vpop.xlane.xlu0 %6336
    %v6338 = vsel %vm483, %v6171, -inf
    %6339 = vmax.xlane.f32.xlu0 %v6338
    %v6340 = vpop.xlane.xlu0 %6339
    %v6341 = vsel %vm483, %v6176, -inf
    %6342 = vmax.xlane.f32.xlu0 %v6341
    %v6343 = vpop.xlane.xlu0 %6342
    %v6344 = vsel %vm483, %v6282, -inf
    %6345 = vmax.xlane.f32.xlu0 %v6344
    %v6346 = vpop.xlane.xlu0 %6345
    %v6347 = vsel %vm483, %v6287, -inf
    %6348 = vmax.xlane.f32.xlu0 %v6347
    %v6349 = vpop.xlane.xlu0 %6348
    %v6350 = vsel %vm483, %v6292, -inf
    %6351 = vmax.xlane.f32.xlu0 %v6350
    %v6352 = vpop.xlane.xlu0 %6351
    %v6353 = vsel %vm483, %v6297, -inf
    %6354 = vmax.xlane.f32.xlu0 %v6353
    %v6355 = vpop.xlane.xlu0 %6354
    %v6356 = vsel %vm483, %v6302, -inf
    %6357 = vmax.xlane.f32.xlu0 %v6356
    %v6358 = vpop.xlane.xlu0 %6357
    %v6359 = vsel %vm483, %v6307, -inf
    %6360 = vmax.xlane.f32.xlu0 %v6359
    %v6361 = vpop.xlane.xlu0 %6360
    %v6362 = vsel %vm483, %v6312, -inf
    %6363 = vmax.xlane.f32.xlu0 %v6362
    %v6364 = vpop.xlane.xlu0 %6363
    %v6365 = vsel %vm483, %v6317, -inf
    %6366 = vmax.xlane.f32.xlu0 %v6365
    %v6367 = vpop.xlane.xlu0 %6366
    %v6368 = vsub.f32 %v6141, %v6322
    %v6369 = vsub.f32 %v6146, %v6325
    %v6370 = vsub.f32 %v6151, %v6328
    %v6371 = vsub.f32 %v6156, %v6331
    %v6372 = vsub.f32 %v6161, %v6334
    %v6373 = vsub.f32 %v6166, %v6337
    %v6374 = vsub.f32 %v6171, %v6340
    %v6375 = vsub.f32 %v6176, %v6343
    %v6376 = vsub.f32 %v6282, %v6346
    %v6377 = vsub.f32 %v6287, %v6349
    %v6378 = vsub.f32 %v6292, %v6352
    %v6379 = vsub.f32 %v6297, %v6355
    %v6380 = vsub.f32 %v6302, %v6358
    %v6381 = vsub.f32 %v6307, %v6361
    %v6382 = vsub.f32 %v6312, %v6364
    %v6383 = vsub.f32 %v6317, %v6367
    %v6384 = vmul.f32 %v6368, 1.442695
    %v6385 = vpow.pop %v6384
    %v6386 = vmul.f32 %v6369, 1.442695
    %v6387 = vpow.pop %v6386
    %v6388 = vmul.f32 %v6370, 1.442695
    %v6389 = vpow.pop %v6388
    %v6390 = vmul.f32 %v6371, 1.442695
    %v6391 = vpow.pop %v6390
    %v6392 = vmul.f32 %v6372, 1.442695
    %v6393 = vpow.pop %v6392
    %v6394 = vmul.f32 %v6373, 1.442695
    %v6395 = vpow.pop %v6394
    %v6396 = vmul.f32 %v6374, 1.442695
    %v6397 = vpow.pop %v6396
    %v6398 = vmul.f32 %v6375, 1.442695
    %v6399 = vpow.pop %v6398
    %v6400 = vmul.f32 %v6376, 1.442695
    %v6401 = vpow.pop %v6400
    %v6402 = vmul.f32 %v6377, 1.442695
    %v6403 = vpow.pop %v6402
    %v6404 = vmul.f32 %v6378, 1.442695
    %v6405 = vpow.pop %v6404
    %v6406 = vmul.f32 %v6379, 1.442695
    %v6407 = vpow.pop %v6406
    %v6408 = vmul.f32 %v6380, 1.442695
    %v6409 = vpow.pop %v6408
    %v6410 = vmul.f32 %v6381, 1.442695
    %v6411 = vpow.pop %v6410
    %v6412 = vmul.f32 %v6382, 1.442695
    %v6413 = vpow.pop %v6412
    %v6414 = vmul.f32 %v6383, 1.442695
    %v6415 = vpow.pop %v6414
    %v6416 = vsel %vm483, %v6385, 0.0
    %6417 = vadd.xlane.f32.xlu0 %v6416
    %v6418 = vpop.xlane.xlu0 %6417
    %v6419 = vsel %vm483, %v6387, 0.0
    %6420 = vadd.xlane.f32.xlu0 %v6419
    %v6421 = vpop.xlane.xlu0 %6420
    %v6422 = vsel %vm483, %v6389, 0.0
    %6423 = vadd.xlane.f32.xlu0 %v6422
    %v6424 = vpop.xlane.xlu0 %6423
    %v6425 = vsel %vm483, %v6391, 0.0
    %6426 = vadd.xlane.f32.xlu0 %v6425
    %v6427 = vpop.xlane.xlu0 %6426
    %v6428 = vsel %vm483, %v6393, 0.0
    %6429 = vadd.xlane.f32.xlu0 %v6428
    %v6430 = vpop.xlane.xlu0 %6429
    %v6431 = vsel %vm483, %v6395, 0.0
    %6432 = vadd.xlane.f32.xlu0 %v6431
    %v6433 = vpop.xlane.xlu0 %6432
    %v6434 = vsel %vm483, %v6397, 0.0
    %6435 = vadd.xlane.f32.xlu0 %v6434
    %v6436 = vpop.xlane.xlu0 %6435
    %v6437 = vsel %vm483, %v6399, 0.0
    %6438 = vadd.xlane.f32.xlu0 %v6437
    %v6439 = vpop.xlane.xlu0 %6438
    %v6440 = vsel %vm483, %v6401, 0.0
    %6441 = vadd.xlane.f32.xlu0 %v6440
    %v6442 = vpop.xlane.xlu0 %6441
    %v6443 = vsel %vm483, %v6403, 0.0
    %6444 = vadd.xlane.f32.xlu0 %v6443
    %v6445 = vpop.xlane.xlu0 %6444
    %v6446 = vsel %vm483, %v6405, 0.0
    %6447 = vadd.xlane.f32.xlu0 %v6446
    %v6448 = vpop.xlane.xlu0 %6447
    %v6449 = vsel %vm483, %v6407, 0.0
    %6450 = vadd.xlane.f32.xlu0 %v6449
    %v6451 = vpop.xlane.xlu0 %6450
    %v6452 = vsel %vm483, %v6409, 0.0
    %6453 = vadd.xlane.f32.xlu0 %v6452
    %v6454 = vpop.xlane.xlu0 %6453
    %v6455 = vsel %vm483, %v6411, 0.0
    %6456 = vadd.xlane.f32.xlu0 %v6455
    %v6457 = vpop.xlane.xlu0 %6456
    %v6458 = vsel %vm483, %v6413, 0.0
    %6459 = vadd.xlane.f32.xlu0 %v6458
    %v6460 = vpop.xlane.xlu0 %6459
    %v6461 = vsel %vm483, %v6415, 0.0
    %6462 = vadd.xlane.f32.xlu0 %v6461
    %v6463 = vpop.xlane.xlu0 %6462
    %v6464 = vrcp.pop %v6418
    %v6465 = vmul.f32 %v6385, %v6464
    %v6466 = vrcp.pop %v6421
    %v6467 = vmul.f32 %v6387, %v6466
    %v6468 = vrcp.pop %v6424
    %v6469 = vmul.f32 %v6389, %v6468
    %v6470 = vrcp.pop %v6427
    %v6471 = vmul.f32 %v6391, %v6470
    %v6472 = vrcp.pop %v6430
    %v6473 = vmul.f32 %v6393, %v6472
    %v6474 = vrcp.pop %v6433
    %v6475 = vmul.f32 %v6395, %v6474
    %v6476 = vrcp.pop %v6436
    %v6477 = vmul.f32 %v6397, %v6476
    %v6478 = vrcp.pop %v6439
    %v6479 = vmul.f32 %v6399, %v6478
    %v6480 = vrcp.pop %v6442
    %v6481 = vmul.f32 %v6401, %v6480
    %v6482 = vrcp.pop %v6445
    %v6483 = vmul.f32 %v6403, %v6482
    %v6484 = vrcp.pop %v6448
    %v6485 = vmul.f32 %v6405, %v6484
    %v6486 = vrcp.pop %v6451
    %v6487 = vmul.f32 %v6407, %v6486
    %v6488 = vrcp.pop %v6454
    %v6489 = vmul.f32 %v6409, %v6488
    %v6490 = vrcp.pop %v6457
    %v6491 = vmul.f32 %v6411, %v6490
    %v6492 = vrcp.pop %v6460
    %v6493 = vmul.f32 %v6413, %v6492
    %v6494 = vrcp.pop %v6463
    %v6495 = vmul.f32 %v6415, %v6494
    %6497 = vrot.lane.b32.xlu0 %v5332, 124
    %v6498 = vpop.permute.xlu0 %6497
    %v6501 = vsel %vm483, %v6465, 0
    %v6504 = vsel %vm483, %v6467, 0
    %v6507 = vsel %vm483, %v6469, 0
    %v6510 = vsel %vm483, %v6471, 0
    %v6513 = vsel %vm483, %v6473, 0
    %v6516 = vsel %vm483, %v6475, 0
    %v6519 = vsel %vm483, %v6477, 0
    %v6522 = vsel %vm483, %v6479, 0
    %6524 = vmatprep.subr.mxu0 0.0
    %6525 = vmatpush1.msra.mxu0 %v6498
    %6526 = vmatprep.subr.mxu0 0.0
    %6527 = vmatpush1.msra.mxu0 0.0
    %6528 = vmatprep.subr.mxu0 0.0
    %6529 = vmatpush1.msra.mxu0 0.0
    %6530 = vmatprep.subr.mxu0 0.0
    %6531 = vmatpush1.msra.mxu0 0.0
    %6532 = vmatprep.subr.mxu0 0.0
    %6533 = vmatpush1.msra.mxu0 0.0
    %6534 = vmatprep.subr.mxu0 0.0
    %6535 = vmatpush1.msra.mxu0 0.0
    %6536 = vmatprep.subr.mxu0 0.0
    %6537 = vmatpush1.msra.mxu0 0.0
    %6538 = vmatprep.subr.mxu0 0.0
    %6539 = vmatpush1.msra.mxu0 0.0
    %6540 = vmatprep.subr.mxu0 0.0
    %6541 = vmatpush1.msra.mxu0 0.0
    %6542 = vmatprep.subr.mxu0 0.0
    %6543 = vmatpush1.msra.mxu0 0.0
    %6544 = vmatprep.subr.mxu0 0.0
    %6545 = vmatpush1.msra.mxu0 0.0
    %6546 = vmatprep.subr.mxu0 0.0
    %6547 = vmatpush1.msra.mxu0 0.0
    %6548 = vmatprep.subr.mxu0 0.0
    %6549 = vmatpush1.msra.mxu0 0.0
    %6550 = vmatprep.subr.mxu0 0.0
    %6551 = vmatpush1.msra.mxu0 0.0
    %6552 = vmatprep.subr.mxu0 0.0
    %6553 = vmatpush1.msra.mxu0 0.0
    %6554 = vmatprep.subr.mxu0 0.0
    %6555 = vmatpush1.msra.mxu0 0.0
    %6556 = vmatprep.subr.mxu0 0.0
    %6557 = vmatpush1.msra.mxu0 0.0
    %6558 = vmatprep.subr.mxu0 0.0
    %6559 = vmatpush1.msra.mxu0 0.0
    %6560 = vmatprep.subr.mxu0 0.0
    %6561 = vmatpush1.msra.mxu0 0.0
    %6562 = vmatprep.subr.mxu0 0.0
    %6563 = vmatpush1.msra.mxu0 0.0
    %6564 = vmatprep.subr.mxu0 0.0
    %6565 = vmatpush1.msra.mxu0 0.0
    %6566 = vmatprep.subr.mxu0 0.0
    %6567 = vmatpush1.msra.mxu0 0.0
    %6568 = vmatprep.subr.mxu0 0.0
    %6569 = vmatpush1.msra.mxu0 0.0
    %6570 = vmatprep.subr.mxu0 0.0
    %6571 = vmatpush1.msra.mxu0 0.0
    %6572 = vmatprep.subr.mxu0 0.0
    %6573 = vmatpush1.msra.mxu0 0.0
    %6574 = vmatprep.subr.mxu0 0.0
    %6575 = vmatpush1.msra.mxu0 0.0
    %6576 = vmatprep.subr.mxu0 0.0
    %6577 = vmatpush1.msra.mxu0 0.0
    %6578 = vmatprep.subr.mxu0 0.0
    %6579 = vmatpush1.msra.mxu0 0.0
    %6580 = vmatprep.subr.mxu0 0.0
    %6581 = vmatpush1.msra.mxu0 0.0
    %6582 = vmatprep.subr.mxu0 0.0
    %6583 = vmatpush1.msra.mxu0 0.0
    %6584 = vmatprep.subr.mxu0 0.0
    %6585 = vmatpush1.msra.mxu0 0.0
    %6586 = vmatprep.subr.mxu0 0.0
    %6587 = vmatpush1.msra.mxu0 0.0
    %6588 = vmatprep.mubr.f32.mxu0 0.0
    %6589 = vmatmul.mubr.f32.gmra.mrb[0].mxu0 %v6501
    %v6590 = vpop.f32.mrb[0].mxu0
    %v6591 = vadd.f32 0.0, %v6590
    %v6592 = vpop.f32.mrb[0].mxu0
    %6593 = vmatprep.mubr.f32.mxu0 0.0
    %6594 = vmatmul.mubr.f32.gmra.mrb[0].mxu0 %v6504
    %v6595 = vpop.f32.mrb[0].mxu0
    %v6596 = vadd.f32 0.0, %v6595
    %v6597 = vpop.f32.mrb[0].mxu0
    %6598 = vmatprep.mubr.f32.mxu0 0.0
    %6599 = vmatmul.mubr.f32.gmra.mrb[0].mxu0 %v6507
    %v6600 = vpop.f32.mrb[0].mxu0
    %v6601 = vadd.f32 0.0, %v6600
    %v6602 = vpop.f32.mrb[0].mxu0
    %6603 = vmatprep.mubr.f32.mxu0 0.0
    %6604 = vmatmul.mubr.f32.gmra.mrb[0].mxu0 %v6510
    %v6605 = vpop.f32.mrb[0].mxu0
    %v6606 = vadd.f32 0.0, %v6605
    %v6607 = vpop.f32.mrb[0].mxu0
    %6608 = vmatprep.mubr.f32.mxu0 0.0
    %6609 = vmatmul.mubr.f32.gmra.mrb[0].mxu0 %v6513
    %v6610 = vpop.f32.mrb[0].mxu0
    %v6611 = vadd.f32 0.0, %v6610
    %v6612 = vpop.f32.mrb[0].mxu0
    %6613 = vmatprep.mubr.f32.mxu0 0.0
    %6614 = vmatmul.mubr.f32.gmra.mrb[0].mxu0 %v6516
    %v6615 = vpop.f32.mrb[0].mxu0
    %v6616 = vadd.f32 0.0, %v6615
    %v6617 = vpop.f32.mrb[0].mxu0
    %6618 = vmatprep.mubr.f32.mxu0 0.0
    %6619 = vmatmul.mubr.f32.gmra.mrb[0].mxu0 %v6519
    %v6620 = vpop.f32.mrb[0].mxu0
    %v6621 = vadd.f32 0.0, %v6620
    %v6622 = vpop.f32.mrb[0].mxu0
    %6623 = vmatprep.mubr.f32.mxu0 0.0
    %6624 = vmatmul.mubr.f32.gmra.mrb[0].mxu0 %v6522
    %v6625 = vpop.f32.mrb[0].mxu0
    %v6626 = vadd.f32 0.0, %v6625
    %v6627 = vpop.f32.mrb[0].mxu0
    %6628 = vdwg.mxu0
    %6630 = vrot.lane.b32.xlu0 %v5337, 124
    %v6631 = vpop.permute.xlu0 %6630
    %v6634 = vsel %vm483, %v6481, 0
    %v6637 = vsel %vm483, %v6483, 0
    %v6640 = vsel %vm483, %v6485, 0
    %v6643 = vsel %vm483, %v6487, 0
    %v6646 = vsel %vm483, %v6489, 0
    %v6649 = vsel %vm483, %v6491, 0
    %v6652 = vsel %vm483, %v6493, 0
    %v6655 = vsel %vm483, %v6495, 0
    %6657 = vmatprep.subr.mxu0 0.0
    %6658 = vmatpush1.msra.mxu0 %v6631
    %6659 = vmatprep.subr.mxu0 0.0
    %6660 = vmatpush1.msra.mxu0 0.0
    %6661 = vmatprep.subr.mxu0 0.0
    %6662 = vmatpush1.msra.mxu0 0.0
    %6663 = vmatprep.subr.mxu0 0.0
    %6664 = vmatpush1.msra.mxu0 0.0
    %6665 = vmatprep.subr.mxu0 0.0
    %6666 = vmatpush1.msra.mxu0 0.0
    %6667 = vmatprep.subr.mxu0 0.0
    %6668 = vmatpush1.msra.mxu0 0.0
    %6669 = vmatprep.subr.mxu0 0.0
    %6670 = vmatpush1.msra.mxu0 0.0
    %6671 = vmatprep.subr.mxu0 0.0
    %6672 = vmatpush1.msra.mxu0 0.0
    %6673 = vmatprep.subr.mxu0 0.0
    %6674 = vmatpush1.msra.mxu0 0.0
    %6675 = vmatprep.subr.mxu0 0.0
    %6676 = vmatpush1.msra.mxu0 0.0
    %6677 = vmatprep.subr.mxu0 0.0
    %6678 = vmatpush1.msra.mxu0 0.0
    %6679 = vmatprep.subr.mxu0 0.0
    %6680 = vmatpush1.msra.mxu0 0.0
    %6681 = vmatprep.subr.mxu0 0.0
    %6682 = vmatpush1.msra.mxu0 0.0
    %6683 = vmatprep.subr.mxu0 0.0
    %6684 = vmatpush1.msra.mxu0 0.0
    %6685 = vmatprep.subr.mxu0 0.0
    %6686 = vmatpush1.msra.mxu0 0.0
    %6687 = vmatprep.subr.mxu0 0.0
    %6688 = vmatpush1.msra.mxu0 0.0
    %6689 = vmatprep.subr.mxu0 0.0
    %6690 = vmatpush1.msra.mxu0 0.0
    %6691 = vmatprep.subr.mxu0 0.0
    %6692 = vmatpush1.msra.mxu0 0.0
    %6693 = vmatprep.subr.mxu0 0.0
    %6694 = vmatpush1.msra.mxu0 0.0
    %6695 = vmatprep.subr.mxu0 0.0
    %6696 = vmatpush1.msra.mxu0 0.0
    %6697 = vmatprep.subr.mxu0 0.0
    %6698 = vmatpush1.msra.mxu0 0.0
    %6699 = vmatprep.subr.mxu0 0.0
    %6700 = vmatpush1.msra.mxu0 0.0
    %6701 = vmatprep.subr.mxu0 0.0
    %6702 = vmatpush1.msra.mxu0 0.0
    %6703 = vmatprep.subr.mxu0 0.0
    %6704 = vmatpush1.msra.mxu0 0.0
    %6705 = vmatprep.subr.mxu0 0.0
    %6706 = vmatpush1.msra.mxu0 0.0
    %6707 = vmatprep.subr.mxu0 0.0
    %6708 = vmatpush1.msra.mxu0 0.0
    %6709 = vmatprep.subr.mxu0 0.0
    %6710 = vmatpush1.msra.mxu0 0.0
    %6711 = vmatprep.subr.mxu0 0.0
    %6712 = vmatpush1.msra.mxu0 0.0
    %6713 = vmatprep.subr.mxu0 0.0
    %6714 = vmatpush1.msra.mxu0 0.0
    %6715 = vmatprep.subr.mxu0 0.0
    %6716 = vmatpush1.msra.mxu0 0.0
    %6717 = vmatprep.subr.mxu0 0.0
    %6718 = vmatpush1.msra.mxu0 0.0
    %6719 = vmatprep.subr.mxu0 0.0
    %6720 = vmatpush1.msra.mxu0 0.0
    %6721 = vmatprep.mubr.f32.mxu0 0.0
    %6722 = vmatmul.mubr.f32.gmra.mrb[0].mxu0 %v6634
    %v6723 = vpop.f32.mrb[0].mxu0
    %v6724 = vadd.f32 0.0, %v6723
    %v6725 = vpop.f32.mrb[0].mxu0
    %6726 = vmatprep.mubr.f32.mxu0 0.0
    %6727 = vmatmul.mubr.f32.gmra.mrb[0].mxu0 %v6637
    %v6728 = vpop.f32.mrb[0].mxu0
    %v6729 = vadd.f32 0.0, %v6728
    %v6730 = vpop.f32.mrb[0].mxu0
    %6731 = vmatprep.mubr.f32.mxu0 0.0
    %6732 = vmatmul.mubr.f32.gmra.mrb[0].mxu0 %v6640
    %v6733 = vpop.f32.mrb[0].mxu0
    %v6734 = vadd.f32 0.0, %v6733
    %v6735 = vpop.f32.mrb[0].mxu0
    %6736 = vmatprep.mubr.f32.mxu0 0.0
    %6737 = vmatmul.mubr.f32.gmra.mrb[0].mxu0 %v6643
    %v6738 = vpop.f32.mrb[0].mxu0
    %v6739 = vadd.f32 0.0, %v6738
    %v6740 = vpop.f32.mrb[0].mxu0
    %6741 = vmatprep.mubr.f32.mxu0 0.0
    %6742 = vmatmul.mubr.f32.gmra.mrb[0].mxu0 %v6646
    %v6743 = vpop.f32.mrb[0].mxu0
    %v6744 = vadd.f32 0.0, %v6743
    %v6745 = vpop.f32.mrb[0].mxu0
    %6746 = vmatprep.mubr.f32.mxu0 0.0
    %6747 = vmatmul.mubr.f32.gmra.mrb[0].mxu0 %v6649
    %v6748 = vpop.f32.mrb[0].mxu0
    %v6749 = vadd.f32 0.0, %v6748
    %v6750 = vpop.f32.mrb[0].mxu0
    %6751 = vmatprep.mubr.f32.mxu0 0.0
    %6752 = vmatmul.mubr.f32.gmra.mrb[0].mxu0 %v6652
    %v6753 = vpop.f32.mrb[0].mxu0
    %v6754 = vadd.f32 0.0, %v6753
    %v6755 = vpop.f32.mrb[0].mxu0
    %6756 = vmatprep.mubr.f32.mxu0 0.0
    %6757 = vmatmul.mubr.f32.gmra.mrb[0].mxu0 %v6655
    %v6758 = vpop.f32.mrb[0].mxu0
    %v6759 = vadd.f32 0.0, %v6758
    %v6760 = vpop.f32.mrb[0].mxu0
    %6761 = vdwg.mxu0
    %v6763 = vrot.slane %v4998, 4
    %v6765 = vsel %vm2700, %v6591, 0
    %v6768 = vsel %vm2700, %v6596, 0
    %v6771 = vsel %vm2700, %v6601, 0
    %v6774 = vsel %vm2700, %v6606, 0
    %v6777 = vsel %vm2700, %v6611, 0
    %v6780 = vsel %vm2700, %v6616, 0
    %v6783 = vsel %vm2700, %v6621, 0
    %v6786 = vsel %vm2700, %v6626, 0
    %v6789 = vsel %vm2700, %v6724, 0
    %v6792 = vsel %vm2700, %v6729, 0
    %v6795 = vsel %vm2700, %v6734, 0
    %v6798 = vsel %vm2700, %v6739, 0
    %v6801 = vsel %vm2700, %v6744, 0
    %v6804 = vsel %vm2700, %v6749, 0
    %v6807 = vsel %vm2700, %v6754, 0
    %v6810 = vsel %vm2700, %v6759, 0
    %v6812 = vsel %vm3516, %v6763, 0
    %6814 = vmatprep.subr.mxu0 0.0
    %6815 = vmatpush1.msra.mxu0 %v6812
    %6816 = vmatprep.subr.mxu0 0.0
    %6817 = vmatpush1.msra.mxu0 0.0
    %6818 = vmatprep.subr.mxu0 0.0
    %6819 = vmatpush1.msra.mxu0 0.0
    %6820 = vmatprep.subr.mxu0 0.0
    %6821 = vmatpush1.msra.mxu0 0.0
    %6822 = vmatprep.subr.mxu0 0.0
    %6823 = vmatpush1.msra.mxu0 0.0
    %6824 = vmatprep.subr.mxu0 0.0
    %6825 = vmatpush1.msra.mxu0 0.0
    %6826 = vmatprep.subr.mxu0 0.0
    %6827 = vmatpush1.msra.mxu0 0.0
    %6828 = vmatprep.subr.mxu0 0.0
    %6829 = vmatpush1.msra.mxu0 0.0
    %6830 = vmatprep.subr.mxu0 0.0
    %6831 = vmatpush1.msra.mxu0 0.0
    %6832 = vmatprep.subr.mxu0 0.0
    %6833 = vmatpush1.msra.mxu0 0.0
    %6834 = vmatprep.subr.mxu0 0.0
    %6835 = vmatpush1.msra.mxu0 0.0
    %6836 = vmatprep.subr.mxu0 0.0
    %6837 = vmatpush1.msra.mxu0 0.0
    %6838 = vmatprep.subr.mxu0 0.0
    %6839 = vmatpush1.msra.mxu0 0.0
    %6840 = vmatprep.subr.mxu0 0.0
    %6841 = vmatpush1.msra.mxu0 0.0
    %6842 = vmatprep.subr.mxu0 0.0
    %6843 = vmatpush1.msra.mxu0 0.0
    %6844 = vmatprep.subr.mxu0 0.0
    %6845 = vmatpush1.msra.mxu0 0.0
    %6846 = vmatprep.subr.mxu0 0.0
    %6847 = vmatpush1.msra.mxu0 0.0
    %6848 = vmatprep.subr.mxu0 0.0
    %6849 = vmatpush1.msra.mxu0 0.0
    %6850 = vmatprep.subr.mxu0 0.0
    %6851 = vmatpush1.msra.mxu0 0.0
    %6852 = vmatprep.subr.mxu0 0.0
    %6853 = vmatpush1.msra.mxu0 0.0
    %6854 = vmatprep.subr.mxu0 0.0
    %6855 = vmatpush1.msra.mxu0 0.0
    %6856 = vmatprep.subr.mxu0 0.0
    %6857 = vmatpush1.msra.mxu0 0.0
    %6858 = vmatprep.subr.mxu0 0.0
    %6859 = vmatpush1.msra.mxu0 0.0
    %6860 = vmatprep.subr.mxu0 0.0
    %6861 = vmatpush1.msra.mxu0 0.0
    %6862 = vmatprep.subr.mxu0 0.0
    %6863 = vmatpush1.msra.mxu0 0.0
    %6864 = vmatprep.subr.mxu0 0.0
    %6865 = vmatpush1.msra.mxu0 0.0
    %6866 = vmatprep.subr.mxu0 0.0
    %6867 = vmatpush1.msra.mxu0 0.0
    %6868 = vmatprep.subr.mxu0 0.0
    %6869 = vmatpush1.msra.mxu0 0.0
    %6870 = vmatprep.subr.mxu0 0.0
    %6871 = vmatpush1.msra.mxu0 0.0
    %6872 = vmatprep.subr.mxu0 0.0
    %6873 = vmatpush1.msra.mxu0 0.0
    %6874 = vmatprep.subr.mxu0 0.0
    %6875 = vmatpush1.msra.mxu0 0.0
    %6876 = vmatprep.subr.mxu0 0.0
    %6877 = vmatpush1.msra.mxu0 0.0
    %6878 = vmatprep.mubr.f32.mxu0 0.0
    %6879 = vmatmul.mubr.f32.gmra.mrb[0].mxu0 %v6765
    %v6880 = vpop.f32.mrb[0].mxu0
    %v6881 = vadd.f32 0.0, %v6880
    %v6882 = vpop.f32.mrb[0].mxu0
    %6883 = vmatprep.mubr.f32.mxu0 0.0
    %6884 = vmatmul.mubr.f32.gmra.mrb[0].mxu0 %v6768
    %v6885 = vpop.f32.mrb[0].mxu0
    %v6886 = vadd.f32 0.0, %v6885
    %v6887 = vpop.f32.mrb[0].mxu0
    %6888 = vmatprep.mubr.f32.mxu0 0.0
    %6889 = vmatmul.mubr.f32.gmra.mrb[0].mxu0 %v6771
    %v6890 = vpop.f32.mrb[0].mxu0
    %v6891 = vadd.f32 0.0, %v6890
    %v6892 = vpop.f32.mrb[0].mxu0
    %6893 = vmatprep.mubr.f32.mxu0 0.0
    %6894 = vmatmul.mubr.f32.gmra.mrb[0].mxu0 %v6774
    %v6895 = vpop.f32.mrb[0].mxu0
    %v6896 = vadd.f32 0.0, %v6895
    %v6897 = vpop.f32.mrb[0].mxu0
    %6898 = vmatprep.mubr.f32.mxu0 0.0
    %6899 = vmatmul.mubr.f32.gmra.mrb[0].mxu0 %v6777
    %v6900 = vpop.f32.mrb[0].mxu0
    %v6901 = vadd.f32 0.0, %v6900
    %v6902 = vpop.f32.mrb[0].mxu0
    %6903 = vmatprep.mubr.f32.mxu0 0.0
    %6904 = vmatmul.mubr.f32.gmra.mrb[0].mxu0 %v6780
    %v6905 = vpop.f32.mrb[0].mxu0
    %v6906 = vadd.f32 0.0, %v6905
    %v6907 = vpop.f32.mrb[0].mxu0
    %6908 = vmatprep.mubr.f32.mxu0 0.0
    %6909 = vmatmul.mubr.f32.gmra.mrb[0].mxu0 %v6783
    %v6910 = vpop.f32.mrb[0].mxu0
    %v6911 = vadd.f32 0.0, %v6910
    %v6912 = vpop.f32.mrb[0].mxu0
    %6913 = vmatprep.mubr.f32.mxu0 0.0
    %6914 = vmatmul.mubr.f32.gmra.mrb[0].mxu0 %v6786
    %v6915 = vpop.f32.mrb[0].mxu0
    %v6916 = vadd.f32 0.0, %v6915
    %v6917 = vpop.f32.mrb[0].mxu0
    %6918 = vmatprep.mubr.f32.mxu0 0.0
    %6919 = vmatmul.mubr.f32.gmra.mrb[0].mxu0 %v6789
    %v6920 = vpop.f32.mrb[0].mxu0
    %v6921 = vadd.f32 0.0, %v6920
    %v6922 = vpop.f32.mrb[0].mxu0
    %6923 = vmatprep.mubr.f32.mxu0 0.0
    %6924 = vmatmul.mubr.f32.gmra.mrb[0].mxu0 %v6792
    %v6925 = vpop.f32.mrb[0].mxu0
    %v6926 = vadd.f32 0.0, %v6925
    %v6927 = vpop.f32.mrb[0].mxu0
    %6928 = vmatprep.mubr.f32.mxu0 0.0
    %6929 = vmatmul.mubr.f32.gmra.mrb[0].mxu0 %v6795
    %v6930 = vpop.f32.mrb[0].mxu0
    %v6931 = vadd.f32 0.0, %v6930
    %v6932 = vpop.f32.mrb[0].mxu0
    %6933 = vmatprep.mubr.f32.mxu0 0.0
    %6934 = vmatmul.mubr.f32.gmra.mrb[0].mxu0 %v6798
    %v6935 = vpop.f32.mrb[0].mxu0
    %v6936 = vadd.f32 0.0, %v6935
    %v6937 = vpop.f32.mrb[0].mxu0
    %6938 = vmatprep.mubr.f32.mxu0 0.0
    %6939 = vmatmul.mubr.f32.gmra.mrb[0].mxu0 %v6801
    %v6940 = vpop.f32.mrb[0].mxu0
    %v6941 = vadd.f32 0.0, %v6940
    %v6942 = vpop.f32.mrb[0].mxu0
    %6943 = vmatprep.mubr.f32.mxu0 0.0
    %6944 = vmatmul.mubr.f32.gmra.mrb[0].mxu0 %v6804
    %v6945 = vpop.f32.mrb[0].mxu0
    %v6946 = vadd.f32 0.0, %v6945
    %v6947 = vpop.f32.mrb[0].mxu0
    %6948 = vmatprep.mubr.f32.mxu0 0.0
    %6949 = vmatmul.mubr.f32.gmra.mrb[0].mxu0 %v6807
    %v6950 = vpop.f32.mrb[0].mxu0
    %v6951 = vadd.f32 0.0, %v6950
    %v6952 = vpop.f32.mrb[0].mxu0
    %6953 = vmatprep.mubr.f32.mxu0 0.0
    %6954 = vmatmul.mubr.f32.gmra.mrb[0].mxu0 %v6810
    %v6955 = vpop.f32.mrb[0].mxu0
    %v6956 = vadd.f32 0.0, %v6955
    %v6957 = vpop.f32.mrb[0].mxu0
    %6958 = vdwg.mxu0
    %v6960 = vsel %vm2700, %v5871, 0
    %v6963 = vsel %vm2700, %v5876, 0
    %v6966 = vsel %vm2700, %v5881, 0
    %v6969 = vsel %vm2700, %v5886, 0
    %v6972 = vsel %vm2700, %v5891, 0
    %v6975 = vsel %vm2700, %v5896, 0
    %v6978 = vsel %vm2700, %v5901, 0
    %v6981 = vsel %vm2700, %v5906, 0
    %v6984 = vsel %vm2700, %v6000, 0
    %v6987 = vsel %vm2700, %v6005, 0
    %v6990 = vsel %vm2700, %v6010, 0
    %v6993 = vsel %vm2700, %v6015, 0
    %v6996 = vsel %vm2700, %v6020, 0
    %v6999 = vsel %vm2700, %v6025, 0
    %v7002 = vsel %vm2700, %v6030, 0
    %v7005 = vsel %vm2700, %v6035, 0
    %v7007 = vsel %vm3516, %v4998, 0
    %7009 = vmatprep.subr.mxu0 0.0
    %7010 = vmatpush1.msra.mxu0 %v7007
    %7011 = vmatprep.subr.mxu0 0.0
    %7012 = vmatpush1.msra.mxu0 0.0
    %7013 = vmatprep.subr.mxu0 0.0
    %7014 = vmatpush1.msra.mxu0 0.0
    %7015 = vmatprep.subr.mxu0 0.0
    %7016 = vmatpush1.msra.mxu0 0.0
    %7017 = vmatprep.subr.mxu0 0.0
    %7018 = vmatpush1.msra.mxu0 0.0
    %7019 = vmatprep.subr.mxu0 0.0
    %7020 = vmatpush1.msra.mxu0 0.0
    %7021 = vmatprep.subr.mxu0 0.0
    %7022 = vmatpush1.msra.mxu0 0.0
    %7023 = vmatprep.subr.mxu0 0.0
    %7024 = vmatpush1.msra.mxu0 0.0
    %7025 = vmatprep.subr.mxu0 0.0
    %7026 = vmatpush1.msra.mxu0 0.0
    %7027 = vmatprep.subr.mxu0 0.0
    %7028 = vmatpush1.msra.mxu0 0.0
    %7029 = vmatprep.subr.mxu0 0.0
    %7030 = vmatpush1.msra.mxu0 0.0
    %7031 = vmatprep.subr.mxu0 0.0
    %7032 = vmatpush1.msra.mxu0 0.0
    %7033 = vmatprep.subr.mxu0 0.0
    %7034 = vmatpush1.msra.mxu0 0.0
    %7035 = vmatprep.subr.mxu0 0.0
    %7036 = vmatpush1.msra.mxu0 0.0
    %7037 = vmatprep.subr.mxu0 0.0
    %7038 = vmatpush1.msra.mxu0 0.0
    %7039 = vmatprep.subr.mxu0 0.0
    %7040 = vmatpush1.msra.mxu0 0.0
    %7041 = vmatprep.subr.mxu0 0.0
    %7042 = vmatpush1.msra.mxu0 0.0
    %7043 = vmatprep.subr.mxu0 0.0
    %7044 = vmatpush1.msra.mxu0 0.0
    %7045 = vmatprep.subr.mxu0 0.0
    %7046 = vmatpush1.msra.mxu0 0.0
    %7047 = vmatprep.subr.mxu0 0.0
    %7048 = vmatpush1.msra.mxu0 0.0
    %7049 = vmatprep.subr.mxu0 0.0
    %7050 = vmatpush1.msra.mxu0 0.0
    %7051 = vmatprep.subr.mxu0 0.0
    %7052 = vmatpush1.msra.mxu0 0.0
    %7053 = vmatprep.subr.mxu0 0.0
    %7054 = vmatpush1.msra.mxu0 0.0
    %7055 = vmatprep.subr.mxu0 0.0
    %7056 = vmatpush1.msra.mxu0 0.0
    %7057 = vmatprep.subr.mxu0 0.0
    %7058 = vmatpush1.msra.mxu0 0.0
    %7059 = vmatprep.subr.mxu0 0.0
    %7060 = vmatpush1.msra.mxu0 0.0
    %7061 = vmatprep.subr.mxu0 0.0
    %7062 = vmatpush1.msra.mxu0 0.0
    %7063 = vmatprep.subr.mxu0 0.0
    %7064 = vmatpush1.msra.mxu0 0.0
    %7065 = vmatprep.subr.mxu0 0.0
    %7066 = vmatpush1.msra.mxu0 0.0
    %7067 = vmatprep.subr.mxu0 0.0
    %7068 = vmatpush1.msra.mxu0 0.0
    %7069 = vmatprep.subr.mxu0 0.0
    %7070 = vmatpush1.msra.mxu0 0.0
    %7071 = vmatprep.subr.mxu0 0.0
    %7072 = vmatpush1.msra.mxu0 0.0
    %7073 = vmatprep.mubr.f32.mxu0 0.0
    %7074 = vmatmul.mubr.f32.gmra.mrb[0].mxu0 %v6960
    %v7075 = vpop.f32.mrb[0].mxu0
    %v7076 = vadd.f32 %v6881, %v7075
    %v7077 = vpop.f32.mrb[0].mxu0
    %7078 = vmatprep.mubr.f32.mxu0 0.0
    %7079 = vmatmul.mubr.f32.gmra.mrb[0].mxu0 %v6963
    %v7080 = vpop.f32.mrb[0].mxu0
    %v7081 = vadd.f32 %v6886, %v7080
    %v7082 = vpop.f32.mrb[0].mxu0
    %7083 = vmatprep.mubr.f32.mxu0 0.0
    %7084 = vmatmul.mubr.f32.gmra.mrb[0].mxu0 %v6966
    %v7085 = vpop.f32.mrb[0].mxu0
    %v7086 = vadd.f32 %v6891, %v7085
    %v7087 = vpop.f32.mrb[0].mxu0
    %7088 = vmatprep.mubr.f32.mxu0 0.0
    %7089 = vmatmul.mubr.f32.gmra.mrb[0].mxu0 %v6969
    %v7090 = vpop.f32.mrb[0].mxu0
    %v7091 = vadd.f32 %v6896, %v7090
    %v7092 = vpop.f32.mrb[0].mxu0
    %7093 = vmatprep.mubr.f32.mxu0 0.0
    %7094 = vmatmul.mubr.f32.gmra.mrb[0].mxu0 %v6972
    %v7095 = vpop.f32.mrb[0].mxu0
    %v7096 = vadd.f32 %v6901, %v7095
    %v7097 = vpop.f32.mrb[0].mxu0
    %7098 = vmatprep.mubr.f32.mxu0 0.0
    %7099 = vmatmul.mubr.f32.gmra.mrb[0].mxu0 %v6975
    %v7100 = vpop.f32.mrb[0].mxu0
    %v7101 = vadd.f32 %v6906, %v7100
    %v7102 = vpop.f32.mrb[0].mxu0
    %7103 = vmatprep.mubr.f32.mxu0 0.0
    %7104 = vmatmul.mubr.f32.gmra.mrb[0].mxu0 %v6978
    %v7105 = vpop.f32.mrb[0].mxu0
    %v7106 = vadd.f32 %v6911, %v7105
    %v7107 = vpop.f32.mrb[0].mxu0
    %7108 = vmatprep.mubr.f32.mxu0 0.0
    %7109 = vmatmul.mubr.f32.gmra.mrb[0].mxu0 %v6981
    %v7110 = vpop.f32.mrb[0].mxu0
    %v7111 = vadd.f32 %v6916, %v7110
    %v7112 = vpop.f32.mrb[0].mxu0
    %7113 = vmatprep.mubr.f32.mxu0 0.0
    %7114 = vmatmul.mubr.f32.gmra.mrb[0].mxu0 %v6984
    %v7115 = vpop.f32.mrb[0].mxu0
    %v7116 = vadd.f32 %v6921, %v7115
    %v7117 = vpop.f32.mrb[0].mxu0
    %7118 = vmatprep.mubr.f32.mxu0 0.0
    %7119 = vmatmul.mubr.f32.gmra.mrb[0].mxu0 %v6987
    %v7120 = vpop.f32.mrb[0].mxu0
    %v7121 = vadd.f32 %v6926, %v7120
    %v7122 = vpop.f32.mrb[0].mxu0
    %7123 = vmatprep.mubr.f32.mxu0 0.0
    %7124 = vmatmul.mubr.f32.gmra.mrb[0].mxu0 %v6990
    %v7125 = vpop.f32.mrb[0].mxu0
    %v7126 = vadd.f32 %v6931, %v7125
    %v7127 = vpop.f32.mrb[0].mxu0
    %7128 = vmatprep.mubr.f32.mxu0 0.0
    %7129 = vmatmul.mubr.f32.gmra.mrb[0].mxu0 %v6993
    %v7130 = vpop.f32.mrb[0].mxu0
    %v7131 = vadd.f32 %v6936, %v7130
    %v7132 = vpop.f32.mrb[0].mxu0
    %7133 = vmatprep.mubr.f32.mxu0 0.0
    %7134 = vmatmul.mubr.f32.gmra.mrb[0].mxu0 %v6996
    %v7135 = vpop.f32.mrb[0].mxu0
    %v7136 = vadd.f32 %v6941, %v7135
    %v7137 = vpop.f32.mrb[0].mxu0
    %7138 = vmatprep.mubr.f32.mxu0 0.0
    %7139 = vmatmul.mubr.f32.gmra.mrb[0].mxu0 %v6999
    %v7140 = vpop.f32.mrb[0].mxu0
    %v7141 = vadd.f32 %v6946, %v7140
    %v7142 = vpop.f32.mrb[0].mxu0
    %7143 = vmatprep.mubr.f32.mxu0 0.0
    %7144 = vmatmul.mubr.f32.gmra.mrb[0].mxu0 %v7002
    %v7145 = vpop.f32.mrb[0].mxu0
    %v7146 = vadd.f32 %v6951, %v7145
    %v7147 = vpop.f32.mrb[0].mxu0
    %7148 = vmatprep.mubr.f32.mxu0 0.0
    %7149 = vmatmul.mubr.f32.gmra.mrb[0].mxu0 %v7005
    %v7150 = vpop.f32.mrb[0].mxu0
    %v7151 = vadd.f32 %v6956, %v7150
    %v7152 = vpop.f32.mrb[0].mxu0
    %7153 = vdwg.mxu0
    %7154 = vrot.lane.b32.xlu0 %v5078, 120
    %v7155 = vpop.permute.xlu0 %7154
    %7156 = vrot.lane.b32.xlu0 %v5083, 120
    %v7157 = vpop.permute.xlu0 %7156
    %7158 = vrot.lane.b32.xlu0 %v5088, 120
    %v7159 = vpop.permute.xlu0 %7158
    %7160 = vrot.lane.b32.xlu0 %v5093, 120
    %v7161 = vpop.permute.xlu0 %7160
    %7162 = vrot.lane.b32.xlu0 %v5098, 120
    %v7163 = vpop.permute.xlu0 %7162
    %7164 = vrot.lane.b32.xlu0 %v5103, 120
    %v7165 = vpop.permute.xlu0 %7164
    %7166 = vrot.lane.b32.xlu0 %v5108, 120
    %v7167 = vpop.permute.xlu0 %7166
    %7168 = vrot.lane.b32.xlu0 %v5113, 120
    %v7169 = vpop.permute.xlu0 %7168
    %7170 = vrot.lane.b32.xlu0 %v5240, 120
    %v7171 = vpop.permute.xlu0 %7170
    %v7172 = vsel %vm2700, %v7155, 0
    %v7174 = vsel %vm2700, %v7157, 0
    %v7176 = vsel %vm2700, %v7159, 0
    %v7178 = vsel %vm2700, %v7161, 0
    %v7180 = vsel %vm2700, %v7163, 0
    %v7182 = vsel %vm2700, %v7165, 0
    %v7184 = vsel %vm2700, %v7167, 0
    %v7186 = vsel %vm2700, %v7169, 0
    %v7188 = vsel %vm2700, %v7171, 0
    %7190 = vmatprep.subr.mxu0 0.0
    %7191 = vmatpush1.xpose.msra.mxu0 %v7188
    %7192 = vmatprep.subr.mxu0 0.0
    %7193 = vmatpush1.xpose.msra.mxu0 0.0
    %7194 = vmatprep.subr.mxu0 0.0
    %7195 = vmatpush1.xpose.msra.mxu0 0.0
    %7196 = vmatprep.subr.mxu0 0.0
    %7197 = vmatpush1.xpose.msra.mxu0 0.0
    %7198 = vmatprep.subr.mxu0 0.0
    %7199 = vmatpush1.xpose.msra.mxu0 0.0
    %7200 = vmatprep.subr.mxu0 0.0
    %7201 = vmatpush1.xpose.msra.mxu0 0.0
    %7202 = vmatprep.subr.mxu0 0.0
    %7203 = vmatpush1.xpose.msra.mxu0 0.0
    %7204 = vmatprep.subr.mxu0 0.0
    %7205 = vmatpush1.xpose.msra.mxu0 0.0
    %7206 = vmatprep.subr.mxu0 0.0
    %7207 = vmatpush1.xpose.msra.mxu0 0.0
    %7208 = vmatprep.subr.mxu0 0.0
    %7209 = vmatpush1.xpose.msra.mxu0 0.0
    %7210 = vmatprep.subr.mxu0 0.0
    %7211 = vmatpush1.xpose.msra.mxu0 0.0
    %7212 = vmatprep.subr.mxu0 0.0
    %7213 = vmatpush1.xpose.msra.mxu0 0.0
    %7214 = vmatprep.subr.mxu0 0.0
    %7215 = vmatpush1.xpose.msra.mxu0 0.0
    %7216 = vmatprep.subr.mxu0 0.0
    %7217 = vmatpush1.xpose.msra.mxu0 0.0
    %7218 = vmatprep.subr.mxu0 0.0
    %7219 = vmatpush1.xpose.msra.mxu0 0.0
    %7220 = vmatprep.subr.mxu0 0.0
    %7221 = vmatpush1.xpose.msra.mxu0 0.0
    %7222 = vmatprep.subr.mxu0 0.0
    %7223 = vmatpush1.xpose.msra.mxu0 0.0
    %7224 = vmatprep.subr.mxu0 0.0
    %7225 = vmatpush1.xpose.msra.mxu0 0.0
    %7226 = vmatprep.subr.mxu0 0.0
    %7227 = vmatpush1.xpose.msra.mxu0 0.0
    %7228 = vmatprep.subr.mxu0 0.0
    %7229 = vmatpush1.xpose.msra.mxu0 0.0
    %7230 = vmatprep.subr.mxu0 0.0
    %7231 = vmatpush1.xpose.msra.mxu0 0.0
    %7232 = vmatprep.subr.mxu0 0.0
    %7233 = vmatpush1.xpose.msra.mxu0 0.0
    %7234 = vmatprep.subr.mxu0 0.0
    %7235 = vmatpush1.xpose.msra.mxu0 0.0
    %7236 = vmatprep.subr.mxu0 0.0
    %7237 = vmatpush1.xpose.msra.mxu0 0.0
    %7238 = vmatprep.subr.mxu0 0.0
    %7239 = vmatpush1.xpose.msra.mxu0 0.0
    %7240 = vmatprep.subr.mxu0 0.0
    %7241 = vmatpush1.xpose.msra.mxu0 0.0
    %7242 = vmatprep.subr.mxu0 0.0
    %7243 = vmatpush1.xpose.msra.mxu0 0.0
    %7244 = vmatprep.subr.mxu0 0.0
    %7245 = vmatpush1.xpose.msra.mxu0 0.0
    %7246 = vmatprep.subr.mxu0 0.0
    %7247 = vmatpush1.xpose.msra.mxu0 0.0
    %7248 = vmatprep.subr.mxu0 0.0
    %7249 = vmatpush1.xpose.msra.mxu0 0.0
    %7250 = vmatprep.subr.mxu0 0.0
    %7251 = vmatpush1.xpose.msra.mxu0 0.0
    %7252 = vmatprep.subr.mxu0 0.0
    %7253 = vmatpush1.xpose.msra.mxu0 0.0
    %7254 = vmatprep.mubr.f32.mxu0 0.0
    %7255 = vmatmul.mubr.f32.gmra.mrb[0].mxu0 %v7172
    %v7256 = vpop.f32.mrb[0].mxu0
    %v7257 = vadd.f32 0.0, %v7256
    %v7258 = vpop.f32.mrb[0].mxu0
    %7259 = vmatprep.mubr.f32.mxu0 0.0
    %7260 = vmatmul.mubr.f32.gmra.mrb[0].mxu0 %v7174
    %v7261 = vpop.f32.mrb[0].mxu0
    %v7262 = vadd.f32 0.0, %v7261
    %v7263 = vpop.f32.mrb[0].mxu0
    %7264 = vmatprep.mubr.f32.mxu0 0.0
    %7265 = vmatmul.mubr.f32.gmra.mrb[0].mxu0 %v7176
    %v7266 = vpop.f32.mrb[0].mxu0
    %v7267 = vadd.f32 0.0, %v7266
    %v7268 = vpop.f32.mrb[0].mxu0
    %7269 = vmatprep.mubr.f32.mxu0 0.0
    %7270 = vmatmul.mubr.f32.gmra.mrb[0].mxu0 %v7178
    %v7271 = vpop.f32.mrb[0].mxu0
    %v7272 = vadd.f32 0.0, %v7271
    %v7273 = vpop.f32.mrb[0].mxu0
    %7274 = vmatprep.mubr.f32.mxu0 0.0
    %7275 = vmatmul.mubr.f32.gmra.mrb[0].mxu0 %v7180
    %v7276 = vpop.f32.mrb[0].mxu0
    %v7277 = vadd.f32 0.0, %v7276
    %v7278 = vpop.f32.mrb[0].mxu0
    %7279 = vmatprep.mubr.f32.mxu0 0.0
    %7280 = vmatmul.mubr.f32.gmra.mrb[0].mxu0 %v7182
    %v7281 = vpop.f32.mrb[0].mxu0
    %v7282 = vadd.f32 0.0, %v7281
    %v7283 = vpop.f32.mrb[0].mxu0
    %7284 = vmatprep.mubr.f32.mxu0 0.0
    %7285 = vmatmul.mubr.f32.gmra.mrb[0].mxu0 %v7184
    %v7286 = vpop.f32.mrb[0].mxu0
    %v7287 = vadd.f32 0.0, %v7286
    %v7288 = vpop.f32.mrb[0].mxu0
    %7289 = vmatprep.mubr.f32.mxu0 0.0
    %7290 = vmatmul.mubr.f32.gmra.mrb[0].mxu0 %v7186
    %v7291 = vpop.f32.mrb[0].mxu0
    %v7292 = vadd.f32 0.0, %v7291
    %v7293 = vpop.f32.mrb[0].mxu0
    %7294 = vdwg.mxu0
    %7295 = vrot.lane.b32.xlu0 %v5118, 120
    %v7296 = vpop.permute.xlu0 %7295
    %7297 = vrot.lane.b32.xlu0 %v5123, 120
    %v7298 = vpop.permute.xlu0 %7297
    %7299 = vrot.lane.b32.xlu0 %v5128, 120
    %v7300 = vpop.permute.xlu0 %7299
    %7301 = vrot.lane.b32.xlu0 %v5133, 120
    %v7302 = vpop.permute.xlu0 %7301
    %7303 = vrot.lane.b32.xlu0 %v5138, 120
    %v7304 = vpop.permute.xlu0 %7303
    %7305 = vrot.lane.b32.xlu0 %v5143, 120
    %v7306 = vpop.permute.xlu0 %7305
    %7307 = vrot.lane.b32.xlu0 %v5148, 120
    %v7308 = vpop.permute.xlu0 %7307
    %7309 = vrot.lane.b32.xlu0 %v5153, 120
    %v7310 = vpop.permute.xlu0 %7309
    %7311 = vrot.lane.b32.xlu0 %v5245, 120
    %v7312 = vpop.permute.xlu0 %7311
    %v7313 = vsel %vm2700, %v7296, 0
    %v7315 = vsel %vm2700, %v7298, 0
    %v7317 = vsel %vm2700, %v7300, 0
    %v7319 = vsel %vm2700, %v7302, 0
    %v7321 = vsel %vm2700, %v7304, 0
    %v7323 = vsel %vm2700, %v7306, 0
    %v7325 = vsel %vm2700, %v7308, 0
    %v7327 = vsel %vm2700, %v7310, 0
    %v7329 = vsel %vm2700, %v7312, 0
    %7331 = vmatprep.subr.mxu0 0.0
    %7332 = vmatpush1.xpose.msra.mxu0 %v7329
    %7333 = vmatprep.subr.mxu0 0.0
    %7334 = vmatpush1.xpose.msra.mxu0 0.0
    %7335 = vmatprep.subr.mxu0 0.0
    %7336 = vmatpush1.xpose.msra.mxu0 0.0
    %7337 = vmatprep.subr.mxu0 0.0
    %7338 = vmatpush1.xpose.msra.mxu0 0.0
    %7339 = vmatprep.subr.mxu0 0.0
    %7340 = vmatpush1.xpose.msra.mxu0 0.0
    %7341 = vmatprep.subr.mxu0 0.0
    %7342 = vmatpush1.xpose.msra.mxu0 0.0
    %7343 = vmatprep.subr.mxu0 0.0
    %7344 = vmatpush1.xpose.msra.mxu0 0.0
    %7345 = vmatprep.subr.mxu0 0.0
    %7346 = vmatpush1.xpose.msra.mxu0 0.0
    %7347 = vmatprep.subr.mxu0 0.0
    %7348 = vmatpush1.xpose.msra.mxu0 0.0
    %7349 = vmatprep.subr.mxu0 0.0
    %7350 = vmatpush1.xpose.msra.mxu0 0.0
    %7351 = vmatprep.subr.mxu0 0.0
    %7352 = vmatpush1.xpose.msra.mxu0 0.0
    %7353 = vmatprep.subr.mxu0 0.0
    %7354 = vmatpush1.xpose.msra.mxu0 0.0
    %7355 = vmatprep.subr.mxu0 0.0
    %7356 = vmatpush1.xpose.msra.mxu0 0.0
    %7357 = vmatprep.subr.mxu0 0.0
    %7358 = vmatpush1.xpose.msra.mxu0 0.0
    %7359 = vmatprep.subr.mxu0 0.0
    %7360 = vmatpush1.xpose.msra.mxu0 0.0
    %7361 = vmatprep.subr.mxu0 0.0
    %7362 = vmatpush1.xpose.msra.mxu0 0.0
    %7363 = vmatprep.subr.mxu0 0.0
    %7364 = vmatpush1.xpose.msra.mxu0 0.0
    %7365 = vmatprep.subr.mxu0 0.0
    %7366 = vmatpush1.xpose.msra.mxu0 0.0
    %7367 = vmatprep.subr.mxu0 0.0
    %7368 = vmatpush1.xpose.msra.mxu0 0.0
    %7369 = vmatprep.subr.mxu0 0.0
    %7370 = vmatpush1.xpose.msra.mxu0 0.0
    %7371 = vmatprep.subr.mxu0 0.0
    %7372 = vmatpush1.xpose.msra.mxu0 0.0
    %7373 = vmatprep.subr.mxu0 0.0
    %7374 = vmatpush1.xpose.msra.mxu0 0.0
    %7375 = vmatprep.subr.mxu0 0.0
    %7376 = vmatpush1.xpose.msra.mxu0 0.0
    %7377 = vmatprep.subr.mxu0 0.0
    %7378 = vmatpush1.xpose.msra.mxu0 0.0
    %7379 = vmatprep.subr.mxu0 0.0
    %7380 = vmatpush1.xpose.msra.mxu0 0.0
    %7381 = vmatprep.subr.mxu0 0.0
    %7382 = vmatpush1.xpose.msra.mxu0 0.0
    %7383 = vmatprep.subr.mxu0 0.0
    %7384 = vmatpush1.xpose.msra.mxu0 0.0
    %7385 = vmatprep.subr.mxu0 0.0
    %7386 = vmatpush1.xpose.msra.mxu0 0.0
    %7387 = vmatprep.subr.mxu0 0.0
    %7388 = vmatpush1.xpose.msra.mxu0 0.0
    %7389 = vmatprep.subr.mxu0 0.0
    %7390 = vmatpush1.xpose.msra.mxu0 0.0
    %7391 = vmatprep.subr.mxu0 0.0
    %7392 = vmatpush1.xpose.msra.mxu0 0.0
    %7393 = vmatprep.subr.mxu0 0.0
    %7394 = vmatpush1.xpose.msra.mxu0 0.0
    %7395 = vmatprep.mubr.f32.mxu0 0.0
    %7396 = vmatmul.mubr.f32.gmra.mrb[0].mxu0 %v7313
    %v7397 = vpop.f32.mrb[0].mxu0
    %v7398 = vadd.f32 0.0, %v7397
    %v7399 = vpop.f32.mrb[0].mxu0
    %7400 = vmatprep.mubr.f32.mxu0 0.0
    %7401 = vmatmul.mubr.f32.gmra.mrb[0].mxu0 %v7315
    %v7402 = vpop.f32.mrb[0].mxu0
    %v7403 = vadd.f32 0.0, %v7402
    %v7404 = vpop.f32.mrb[0].mxu0
    %7405 = vmatprep.mubr.f32.mxu0 0.0
    %7406 = vmatmul.mubr.f32.gmra.mrb[0].mxu0 %v7317
    %v7407 = vpop.f32.mrb[0].mxu0
    %v7408 = vadd.f32 0.0, %v7407
    %v7409 = vpop.f32.mrb[0].mxu0
    %7410 = vmatprep.mubr.f32.mxu0 0.0
    %7411 = vmatmul.mubr.f32.gmra.mrb[0].mxu0 %v7319
    %v7412 = vpop.f32.mrb[0].mxu0
    %v7413 = vadd.f32 0.0, %v7412
    %v7414 = vpop.f32.mrb[0].mxu0
    %7415 = vmatprep.mubr.f32.mxu0 0.0
    %7416 = vmatmul.mubr.f32.gmra.mrb[0].mxu0 %v7321
    %v7417 = vpop.f32.mrb[0].mxu0
    %v7418 = vadd.f32 0.0, %v7417
    %v7419 = vpop.f32.mrb[0].mxu0
    %7420 = vmatprep.mubr.f32.mxu0 0.0
    %7421 = vmatmul.mubr.f32.gmra.mrb[0].mxu0 %v7323
    %v7422 = vpop.f32.mrb[0].mxu0
    %v7423 = vadd.f32 0.0, %v7422
    %v7424 = vpop.f32.mrb[0].mxu0
    %7425 = vmatprep.mubr.f32.mxu0 0.0
    %7426 = vmatmul.mubr.f32.gmra.mrb[0].mxu0 %v7325
    %v7427 = vpop.f32.mrb[0].mxu0
    %v7428 = vadd.f32 0.0, %v7427
    %v7429 = vpop.f32.mrb[0].mxu0
    %7430 = vmatprep.mubr.f32.mxu0 0.0
    %7431 = vmatmul.mubr.f32.gmra.mrb[0].mxu0 %v7327
    %v7432 = vpop.f32.mrb[0].mxu0
    %v7433 = vadd.f32 0.0, %v7432
    %v7434 = vpop.f32.mrb[0].mxu0
    %7435 = vdwg.mxu0
    %v7436 = vsel %vm483, %v7257, -inf
    %7437 = vmax.xlane.f32.xlu0 %v7436
    %v7438 = vpop.xlane.xlu0 %7437
    %v7439 = vsel %vm483, %v7262, -inf
    %7440 = vmax.xlane.f32.xlu0 %v7439
    %v7441 = vpop.xlane.xlu0 %7440
    %v7442 = vsel %vm483, %v7267, -inf
    %7443 = vmax.xlane.f32.xlu0 %v7442
    %v7444 = vpop.xlane.xlu0 %7443
    %v7445 = vsel %vm483, %v7272, -inf
    %7446 = vmax.xlane.f32.xlu0 %v7445
    %v7447 = vpop.xlane.xlu0 %7446
    %v7448 = vsel %vm483, %v7277, -inf
    %7449 = vmax.xlane.f32.xlu0 %v7448
    %v7450 = vpop.xlane.xlu0 %7449
    %v7451 = vsel %vm483, %v7282, -inf
    %7452 = vmax.xlane.f32.xlu0 %v7451
    %v7453 = vpop.xlane.xlu0 %7452
    %v7454 = vsel %vm483, %v7287, -inf
    %7455 = vmax.xlane.f32.xlu0 %v7454
    %v7456 = vpop.xlane.xlu0 %7455
    %v7457 = vsel %vm483, %v7292, -inf
    %7458 = vmax.xlane.f32.xlu0 %v7457
    %v7459 = vpop.xlane.xlu0 %7458
    %v7460 = vsel %vm483, %v7398, -inf
    %7461 = vmax.xlane.f32.xlu0 %v7460
    %v7462 = vpop.xlane.xlu0 %7461
    %v7463 = vsel %vm483, %v7403, -inf
    %7464 = vmax.xlane.f32.xlu0 %v7463
    %v7465 = vpop.xlane.xlu0 %7464
    %v7466 = vsel %vm483, %v7408, -inf
    %7467 = vmax.xlane.f32.xlu0 %v7466
    %v7468 = vpop.xlane.xlu0 %7467
    %v7469 = vsel %vm483, %v7413, -inf
    %7470 = vmax.xlane.f32.xlu0 %v7469
    %v7471 = vpop.xlane.xlu0 %7470
    %v7472 = vsel %vm483, %v7418, -inf
    %7473 = vmax.xlane.f32.xlu0 %v7472
    %v7474 = vpop.xlane.xlu0 %7473
    %v7475 = vsel %vm483, %v7423, -inf
    %7476 = vmax.xlane.f32.xlu0 %v7475
    %v7477 = vpop.xlane.xlu0 %7476
    %v7478 = vsel %vm483, %v7428, -inf
    %7479 = vmax.xlane.f32.xlu0 %v7478
    %v7480 = vpop.xlane.xlu0 %7479
    %v7481 = vsel %vm483, %v7433, -inf
    %7482 = vmax.xlane.f32.xlu0 %v7481
    %v7483 = vpop.xlane.xlu0 %7482
    %v7484 = vsub.f32 %v7257, %v7438
    %v7485 = vsub.f32 %v7262, %v7441
    %v7486 = vsub.f32 %v7267, %v7444
    %v7487 = vsub.f32 %v7272, %v7447
    %v7488 = vsub.f32 %v7277, %v7450
    %v7489 = vsub.f32 %v7282, %v7453
    %v7490 = vsub.f32 %v7287, %v7456
    %v7491 = vsub.f32 %v7292, %v7459
    %v7492 = vsub.f32 %v7398, %v7462
    %v7493 = vsub.f32 %v7403, %v7465
    %v7494 = vsub.f32 %v7408, %v7468
    %v7495 = vsub.f32 %v7413, %v7471
    %v7496 = vsub.f32 %v7418, %v7474
    %v7497 = vsub.f32 %v7423, %v7477
    %v7498 = vsub.f32 %v7428, %v7480
    %v7499 = vsub.f32 %v7433, %v7483
    %v7500 = vmul.f32 %v7484, 1.442695
    %v7501 = vpow.pop %v7500
    %v7502 = vmul.f32 %v7485, 1.442695
    %v7503 = vpow.pop %v7502
    %v7504 = vmul.f32 %v7486, 1.442695
    %v7505 = vpow.pop %v7504
    %v7506 = vmul.f32 %v7487, 1.442695
    %v7507 = vpow.pop %v7506
    %v7508 = vmul.f32 %v7488, 1.442695
    %v7509 = vpow.pop %v7508
    %v7510 = vmul.f32 %v7489, 1.442695
    %v7511 = vpow.pop %v7510
    %v7512 = vmul.f32 %v7490, 1.442695
    %v7513 = vpow.pop %v7512
    %v7514 = vmul.f32 %v7491, 1.442695
    %v7515 = vpow.pop %v7514
    %v7516 = vmul.f32 %v7492, 1.442695
    %v7517 = vpow.pop %v7516
    %v7518 = vmul.f32 %v7493, 1.442695
    %v7519 = vpow.pop %v7518
    %v7520 = vmul.f32 %v7494, 1.442695
    %v7521 = vpow.pop %v7520
    %v7522 = vmul.f32 %v7495, 1.442695
    %v7523 = vpow.pop %v7522
    %v7524 = vmul.f32 %v7496, 1.442695
    %v7525 = vpow.pop %v7524
    %v7526 = vmul.f32 %v7497, 1.442695
    %v7527 = vpow.pop %v7526
    %v7528 = vmul.f32 %v7498, 1.442695
    %v7529 = vpow.pop %v7528
    %v7530 = vmul.f32 %v7499, 1.442695
    %v7531 = vpow.pop %v7530
    %v7532 = vsel %vm483, %v7501, 0.0
    %7533 = vadd.xlane.f32.xlu0 %v7532
    %v7534 = vpop.xlane.xlu0 %7533
    %v7535 = vsel %vm483, %v7503, 0.0
    %7536 = vadd.xlane.f32.xlu0 %v7535
    %v7537 = vpop.xlane.xlu0 %7536
    %v7538 = vsel %vm483, %v7505, 0.0
    %7539 = vadd.xlane.f32.xlu0 %v7538
    %v7540 = vpop.xlane.xlu0 %7539
    %v7541 = vsel %vm483, %v7507, 0.0
    %7542 = vadd.xlane.f32.xlu0 %v7541
    %v7543 = vpop.xlane.xlu0 %7542
    %v7544 = vsel %vm483, %v7509, 0.0
    %7545 = vadd.xlane.f32.xlu0 %v7544
    %v7546 = vpop.xlane.xlu0 %7545
    %v7547 = vsel %vm483, %v7511, 0.0
    %7548 = vadd.xlane.f32.xlu0 %v7547
    %v7549 = vpop.xlane.xlu0 %7548
    %v7550 = vsel %vm483, %v7513, 0.0
    %7551 = vadd.xlane.f32.xlu0 %v7550
    %v7552 = vpop.xlane.xlu0 %7551
    %v7553 = vsel %vm483, %v7515, 0.0
    %7554 = vadd.xlane.f32.xlu0 %v7553
    %v7555 = vpop.xlane.xlu0 %7554
    %v7556 = vsel %vm483, %v7517, 0.0
    %7557 = vadd.xlane.f32.xlu0 %v7556
    %v7558 = vpop.xlane.xlu0 %7557
    %v7559 = vsel %vm483, %v7519, 0.0
    %7560 = vadd.xlane.f32.xlu0 %v7559
    %v7561 = vpop.xlane.xlu0 %7560
    %v7562 = vsel %vm483, %v7521, 0.0
    %7563 = vadd.xlane.f32.xlu0 %v7562
    %v7564 = vpop.xlane.xlu0 %7563
    %v7565 = vsel %vm483, %v7523, 0.0
    %7566 = vadd.xlane.f32.xlu0 %v7565
    %v7567 = vpop.xlane.xlu0 %7566
    %v7568 = vsel %vm483, %v7525, 0.0
    %7569 = vadd.xlane.f32.xlu0 %v7568
    %v7570 = vpop.xlane.xlu0 %7569
    %v7571 = vsel %vm483, %v7527, 0.0
    %7572 = vadd.xlane.f32.xlu0 %v7571
    %v7573 = vpop.xlane.xlu0 %7572
    %v7574 = vsel %vm483, %v7529, 0.0
    %7575 = vadd.xlane.f32.xlu0 %v7574
    %v7576 = vpop.xlane.xlu0 %7575
    %v7577 = vsel %vm483, %v7531, 0.0
    %7578 = vadd.xlane.f32.xlu0 %v7577
    %v7579 = vpop.xlane.xlu0 %7578
    %v7580 = vrcp.pop %v7534
    %v7581 = vmul.f32 %v7501, %v7580
    %v7582 = vrcp.pop %v7537
    %v7583 = vmul.f32 %v7503, %v7582
    %v7584 = vrcp.pop %v7540
    %v7585 = vmul.f32 %v7505, %v7584
    %v7586 = vrcp.pop %v7543
    %v7587 = vmul.f32 %v7507, %v7586
    %v7588 = vrcp.pop %v7546
    %v7589 = vmul.f32 %v7509, %v7588
    %v7590 = vrcp.pop %v7549
    %v7591 = vmul.f32 %v7511, %v7590
    %v7592 = vrcp.pop %v7552
    %v7593 = vmul.f32 %v7513, %v7592
    %v7594 = vrcp.pop %v7555
    %v7595 = vmul.f32 %v7515, %v7594
    %v7596 = vrcp.pop %v7558
    %v7597 = vmul.f32 %v7517, %v7596
    %v7598 = vrcp.pop %v7561
    %v7599 = vmul.f32 %v7519, %v7598
    %v7600 = vrcp.pop %v7564
    %v7601 = vmul.f32 %v7521, %v7600
    %v7602 = vrcp.pop %v7567
    %v7603 = vmul.f32 %v7523, %v7602
    %v7604 = vrcp.pop %v7570
    %v7605 = vmul.f32 %v7525, %v7604
    %v7606 = vrcp.pop %v7573
    %v7607 = vmul.f32 %v7527, %v7606
    %v7608 = vrcp.pop %v7576
    %v7609 = vmul.f32 %v7529, %v7608
    %v7610 = vrcp.pop %v7579
    %v7611 = vmul.f32 %v7531, %v7610
    %7612 = vrot.lane.b32.xlu0 %v5332, 120
    %v7613 = vpop.permute.xlu0 %7612
    %v7616 = vsel %vm483, %v7581, 0
    %v7619 = vsel %vm483, %v7583, 0
    %v7622 = vsel %vm483, %v7585, 0
    %v7625 = vsel %vm483, %v7587, 0
    %v7628 = vsel %vm483, %v7589, 0
    %v7631 = vsel %vm483, %v7591, 0
    %v7634 = vsel %vm483, %v7593, 0
    %v7637 = vsel %vm483, %v7595, 0
    %7639 = vmatprep.subr.mxu0 0.0
    %7640 = vmatpush1.msra.mxu0 %v7613
    %7641 = vmatprep.subr.mxu0 0.0
    %7642 = vmatpush1.msra.mxu0 0.0
    %7643 = vmatprep.subr.mxu0 0.0
    %7644 = vmatpush1.msra.mxu0 0.0
    %7645 = vmatprep.subr.mxu0 0.0
    %7646 = vmatpush1.msra.mxu0 0.0
    %7647 = vmatprep.subr.mxu0 0.0
    %7648 = vmatpush1.msra.mxu0 0.0
    %7649 = vmatprep.subr.mxu0 0.0
    %7650 = vmatpush1.msra.mxu0 0.0
    %7651 = vmatprep.subr.mxu0 0.0
    %7652 = vmatpush1.msra.mxu0 0.0
    %7653 = vmatprep.subr.mxu0 0.0
    %7654 = vmatpush1.msra.mxu0 0.0
    %7655 = vmatprep.subr.mxu0 0.0
    %7656 = vmatpush1.msra.mxu0 0.0
    %7657 = vmatprep.subr.mxu0 0.0
    %7658 = vmatpush1.msra.mxu0 0.0
    %7659 = vmatprep.subr.mxu0 0.0
    %7660 = vmatpush1.msra.mxu0 0.0
    %7661 = vmatprep.subr.mxu0 0.0
    %7662 = vmatpush1.msra.mxu0 0.0
    %7663 = vmatprep.subr.mxu0 0.0
    %7664 = vmatpush1.msra.mxu0 0.0
    %7665 = vmatprep.subr.mxu0 0.0
    %7666 = vmatpush1.msra.mxu0 0.0
    %7667 = vmatprep.subr.mxu0 0.0
    %7668 = vmatpush1.msra.mxu0 0.0
    %7669 = vmatprep.subr.mxu0 0.0
    %7670 = vmatpush1.msra.mxu0 0.0
    %7671 = vmatprep.subr.mxu0 0.0
    %7672 = vmatpush1.msra.mxu0 0.0
    %7673 = vmatprep.subr.mxu0 0.0
    %7674 = vmatpush1.msra.mxu0 0.0
    %7675 = vmatprep.subr.mxu0 0.0
    %7676 = vmatpush1.msra.mxu0 0.0
    %7677 = vmatprep.subr.mxu0 0.0
    %7678 = vmatpush1.msra.mxu0 0.0
    %7679 = vmatprep.subr.mxu0 0.0
    %7680 = vmatpush1.msra.mxu0 0.0
    %7681 = vmatprep.subr.mxu0 0.0
    %7682 = vmatpush1.msra.mxu0 0.0
    %7683 = vmatprep.subr.mxu0 0.0
    %7684 = vmatpush1.msra.mxu0 0.0
    %7685 = vmatprep.subr.mxu0 0.0
    %7686 = vmatpush1.msra.mxu0 0.0
    %7687 = vmatprep.subr.mxu0 0.0
    %7688 = vmatpush1.msra.mxu0 0.0
    %7689 = vmatprep.subr.mxu0 0.0
    %7690 = vmatpush1.msra.mxu0 0.0
    %7691 = vmatprep.subr.mxu0 0.0
    %7692 = vmatpush1.msra.mxu0 0.0
    %7693 = vmatprep.subr.mxu0 0.0
    %7694 = vmatpush1.msra.mxu0 0.0
    %7695 = vmatprep.subr.mxu0 0.0
    %7696 = vmatpush1.msra.mxu0 0.0
    %7697 = vmatprep.subr.mxu0 0.0
    %7698 = vmatpush1.msra.mxu0 0.0
    %7699 = vmatprep.subr.mxu0 0.0
    %7700 = vmatpush1.msra.mxu0 0.0
    %7701 = vmatprep.subr.mxu0 0.0
    %7702 = vmatpush1.msra.mxu0 0.0
    %7703 = vmatprep.mubr.f32.mxu0 0.0
    %7704 = vmatmul.mubr.f32.gmra.mrb[0].mxu0 %v7616
    %v7705 = vpop.f32.mrb[0].mxu0
    %v7706 = vadd.f32 0.0, %v7705
    %v7707 = vpop.f32.mrb[0].mxu0
    %7708 = vmatprep.mubr.f32.mxu0 0.0
    %7709 = vmatmul.mubr.f32.gmra.mrb[0].mxu0 %v7619
    %v7710 = vpop.f32.mrb[0].mxu0
    %v7711 = vadd.f32 0.0, %v7710
    %v7712 = vpop.f32.mrb[0].mxu0
    %7713 = vmatprep.mubr.f32.mxu0 0.0
    %7714 = vmatmul.mubr.f32.gmra.mrb[0].mxu0 %v7622
    %v7715 = vpop.f32.mrb[0].mxu0
    %v7716 = vadd.f32 0.0, %v7715
    %v7717 = vpop.f32.mrb[0].mxu0
    %7718 = vmatprep.mubr.f32.mxu0 0.0
    %7719 = vmatmul.mubr.f32.gmra.mrb[0].mxu0 %v7625
    %v7720 = vpop.f32.mrb[0].mxu0
    %v7721 = vadd.f32 0.0, %v7720
    %v7722 = vpop.f32.mrb[0].mxu0
    %7723 = vmatprep.mubr.f32.mxu0 0.0
    %7724 = vmatmul.mubr.f32.gmra.mrb[0].mxu0 %v7628
    %v7725 = vpop.f32.mrb[0].mxu0
    %v7726 = vadd.f32 0.0, %v7725
    %v7727 = vpop.f32.mrb[0].mxu0
    %7728 = vmatprep.mubr.f32.mxu0 0.0
    %7729 = vmatmul.mubr.f32.gmra.mrb[0].mxu0 %v7631
    %v7730 = vpop.f32.mrb[0].mxu0
    %v7731 = vadd.f32 0.0, %v7730
    %v7732 = vpop.f32.mrb[0].mxu0
    %7733 = vmatprep.mubr.f32.mxu0 0.0
    %7734 = vmatmul.mubr.f32.gmra.mrb[0].mxu0 %v7634
    %v7735 = vpop.f32.mrb[0].mxu0
    %v7736 = vadd.f32 0.0, %v7735
    %v7737 = vpop.f32.mrb[0].mxu0
    %7738 = vmatprep.mubr.f32.mxu0 0.0
    %7739 = vmatmul.mubr.f32.gmra.mrb[0].mxu0 %v7637
    %v7740 = vpop.f32.mrb[0].mxu0
    %v7741 = vadd.f32 0.0, %v7740
    %v7742 = vpop.f32.mrb[0].mxu0
    %7743 = vdwg.mxu0
    %7744 = vrot.lane.b32.xlu0 %v5337, 120
    %v7745 = vpop.permute.xlu0 %7744
    %v7748 = vsel %vm483, %v7597, 0
    %v7751 = vsel %vm483, %v7599, 0
    %v7754 = vsel %vm483, %v7601, 0
    %v7757 = vsel %vm483, %v7603, 0
    %v7760 = vsel %vm483, %v7605, 0
    %v7763 = vsel %vm483, %v7607, 0
    %v7766 = vsel %vm483, %v7609, 0
    %v7769 = vsel %vm483, %v7611, 0
    %7771 = vmatprep.subr.mxu0 0.0
    %7772 = vmatpush1.msra.mxu0 %v7745
    %7773 = vmatprep.subr.mxu0 0.0
    %7774 = vmatpush1.msra.mxu0 0.0
    %7775 = vmatprep.subr.mxu0 0.0
    %7776 = vmatpush1.msra.mxu0 0.0
    %7777 = vmatprep.subr.mxu0 0.0
    %7778 = vmatpush1.msra.mxu0 0.0
    %7779 = vmatprep.subr.mxu0 0.0
    %7780 = vmatpush1.msra.mxu0 0.0
    %7781 = vmatprep.subr.mxu0 0.0
    %7782 = vmatpush1.msra.mxu0 0.0
    %7783 = vmatprep.subr.mxu0 0.0
    %7784 = vmatpush1.msra.mxu0 0.0
    %7785 = vmatprep.subr.mxu0 0.0
    %7786 = vmatpush1.msra.mxu0 0.0
    %7787 = vmatprep.subr.mxu0 0.0
    %7788 = vmatpush1.msra.mxu0 0.0
    %7789 = vmatprep.subr.mxu0 0.0
    %7790 = vmatpush1.msra.mxu0 0.0
    %7791 = vmatprep.subr.mxu0 0.0
    %7792 = vmatpush1.msra.mxu0 0.0
    %7793 = vmatprep.subr.mxu0 0.0
    %7794 = vmatpush1.msra.mxu0 0.0
    %7795 = vmatprep.subr.mxu0 0.0
    %7796 = vmatpush1.msra.mxu0 0.0
    %7797 = vmatprep.subr.mxu0 0.0
    %7798 = vmatpush1.msra.mxu0 0.0
    %7799 = vmatprep.subr.mxu0 0.0
    %7800 = vmatpush1.msra.mxu0 0.0
    %7801 = vmatprep.subr.mxu0 0.0
    %7802 = vmatpush1.msra.mxu0 0.0
    %7803 = vmatprep.subr.mxu0 0.0
    %7804 = vmatpush1.msra.mxu0 0.0
    %7805 = vmatprep.subr.mxu0 0.0
    %7806 = vmatpush1.msra.mxu0 0.0
    %7807 = vmatprep.subr.mxu0 0.0
    %7808 = vmatpush1.msra.mxu0 0.0
    %7809 = vmatprep.subr.mxu0 0.0
    %7810 = vmatpush1.msra.mxu0 0.0
    %7811 = vmatprep.subr.mxu0 0.0
    %7812 = vmatpush1.msra.mxu0 0.0
    %7813 = vmatprep.subr.mxu0 0.0
    %7814 = vmatpush1.msra.mxu0 0.0
    %7815 = vmatprep.subr.mxu0 0.0
    %7816 = vmatpush1.msra.mxu0 0.0
    %7817 = vmatprep.subr.mxu0 0.0
    %7818 = vmatpush1.msra.mxu0 0.0
    %7819 = vmatprep.subr.mxu0 0.0
    %7820 = vmatpush1.msra.mxu0 0.0
    %7821 = vmatprep.subr.mxu0 0.0
    %7822 = vmatpush1.msra.mxu0 0.0
    %7823 = vmatprep.subr.mxu0 0.0
    %7824 = vmatpush1.msra.mxu0 0.0
    %7825 = vmatprep.subr.mxu0 0.0
    %7826 = vmatpush1.msra.mxu0 0.0
    %7827 = vmatprep.subr.mxu0 0.0
    %7828 = vmatpush1.msra.mxu0 0.0
    %7829 = vmatprep.subr.mxu0 0.0
    %7830 = vmatpush1.msra.mxu0 0.0
    %7831 = vmatprep.subr.mxu0 0.0
    %7832 = vmatpush1.msra.mxu0 0.0
    %7833 = vmatprep.subr.mxu0 0.0
    %7834 = vmatpush1.msra.mxu0 0.0
    %7835 = vmatprep.mubr.f32.mxu0 0.0
    %7836 = vmatmul.mubr.f32.gmra.mrb[0].mxu0 %v7748
    %v7837 = vpop.f32.mrb[0].mxu0
    %v7838 = vadd.f32 0.0, %v7837
    %v7839 = vpop.f32.mrb[0].mxu0
    %7840 = vmatprep.mubr.f32.mxu0 0.0
    %7841 = vmatmul.mubr.f32.gmra.mrb[0].mxu0 %v7751
    %v7842 = vpop.f32.mrb[0].mxu0
    %v7843 = vadd.f32 0.0, %v7842
    %v7844 = vpop.f32.mrb[0].mxu0
    %7845 = vmatprep.mubr.f32.mxu0 0.0
    %7846 = vmatmul.mubr.f32.gmra.mrb[0].mxu0 %v7754
    %v7847 = vpop.f32.mrb[0].mxu0
    %v7848 = vadd.f32 0.0, %v7847
    %v7849 = vpop.f32.mrb[0].mxu0
    %7850 = vmatprep.mubr.f32.mxu0 0.0
    %7851 = vmatmul.mubr.f32.gmra.mrb[0].mxu0 %v7757
    %v7852 = vpop.f32.mrb[0].mxu0
    %v7853 = vadd.f32 0.0, %v7852
    %v7854 = vpop.f32.mrb[0].mxu0
    %7855 = vmatprep.mubr.f32.mxu0 0.0
    %7856 = vmatmul.mubr.f32.gmra.mrb[0].mxu0 %v7760
    %v7857 = vpop.f32.mrb[0].mxu0
    %v7858 = vadd.f32 0.0, %v7857
    %v7859 = vpop.f32.mrb[0].mxu0
    %7860 = vmatprep.mubr.f32.mxu0 0.0
    %7861 = vmatmul.mubr.f32.gmra.mrb[0].mxu0 %v7763
    %v7862 = vpop.f32.mrb[0].mxu0
    %v7863 = vadd.f32 0.0, %v7862
    %v7864 = vpop.f32.mrb[0].mxu0
    %7865 = vmatprep.mubr.f32.mxu0 0.0
    %7866 = vmatmul.mubr.f32.gmra.mrb[0].mxu0 %v7766
    %v7867 = vpop.f32.mrb[0].mxu0
    %v7868 = vadd.f32 0.0, %v7867
    %v7869 = vpop.f32.mrb[0].mxu0
    %7870 = vmatprep.mubr.f32.mxu0 0.0
    %7871 = vmatmul.mubr.f32.gmra.mrb[0].mxu0 %v7769
    %v7872 = vpop.f32.mrb[0].mxu0
    %v7873 = vadd.f32 0.0, %v7872
    %v7874 = vpop.f32.mrb[0].mxu0
    %7875 = vdwg.mxu0
    %v7877 = vsel %vm2700, %v7706, 0
    %v7880 = vsel %vm2700, %v7711, 0
    %v7883 = vsel %vm2700, %v7716, 0
    %v7886 = vsel %vm2700, %v7721, 0
    %v7889 = vsel %vm2700, %v7726, 0
    %v7892 = vsel %vm2700, %v7731, 0
    %v7895 = vsel %vm2700, %v7736, 0
    %v7898 = vsel %vm2700, %v7741, 0
    %v7901 = vsel %vm2700, %v7838, 0
    %v7904 = vsel %vm2700, %v7843, 0
    %v7907 = vsel %vm2700, %v7848, 0
    %v7910 = vsel %vm2700, %v7853, 0
    %v7913 = vsel %vm2700, %v7858, 0
    %v7916 = vsel %vm2700, %v7863, 0
    %v7919 = vsel %vm2700, %v7868, 0
    %v7922 = vsel %vm2700, %v7873, 0
    %v7925 = vsel %vm3516, %v4999, 0
    %7927 = vmatprep.subr.mxu0 0.0
    %7928 = vmatpush1.msra.mxu0 %v7925
    %7929 = vmatprep.subr.mxu0 0.0
    %7930 = vmatpush1.msra.mxu0 0.0
    %7931 = vmatprep.subr.mxu0 0.0
    %7932 = vmatpush1.msra.mxu0 0.0
    %7933 = vmatprep.subr.mxu0 0.0
    %7934 = vmatpush1.msra.mxu0 0.0
    %7935 = vmatprep.subr.mxu0 0.0
    %7936 = vmatpush1.msra.mxu0 0.0
    %7937 = vmatprep.subr.mxu0 0.0
    %7938 = vmatpush1.msra.mxu0 0.0
    %7939 = vmatprep.subr.mxu0 0.0
    %7940 = vmatpush1.msra.mxu0 0.0
    %7941 = vmatprep.subr.mxu0 0.0
    %7942 = vmatpush1.msra.mxu0 0.0
    %7943 = vmatprep.subr.mxu0 0.0
    %7944 = vmatpush1.msra.mxu0 0.0
    %7945 = vmatprep.subr.mxu0 0.0
    %7946 = vmatpush1.msra.mxu0 0.0
    %7947 = vmatprep.subr.mxu0 0.0
    %7948 = vmatpush1.msra.mxu0 0.0
    %7949 = vmatprep.subr.mxu0 0.0
    %7950 = vmatpush1.msra.mxu0 0.0
    %7951 = vmatprep.subr.mxu0 0.0
    %7952 = vmatpush1.msra.mxu0 0.0
    %7953 = vmatprep.subr.mxu0 0.0
    %7954 = vmatpush1.msra.mxu0 0.0
    %7955 = vmatprep.subr.mxu0 0.0
    %7956 = vmatpush1.msra.mxu0 0.0
    %7957 = vmatprep.subr.mxu0 0.0
    %7958 = vmatpush1.msra.mxu0 0.0
    %7959 = vmatprep.subr.mxu0 0.0
    %7960 = vmatpush1.msra.mxu0 0.0
    %7961 = vmatprep.subr.mxu0 0.0
    %7962 = vmatpush1.msra.mxu0 0.0
    %7963 = vmatprep.subr.mxu0 0.0
    %7964 = vmatpush1.msra.mxu0 0.0
    %7965 = vmatprep.subr.mxu0 0.0
    %7966 = vmatpush1.msra.mxu0 0.0
    %7967 = vmatprep.subr.mxu0 0.0
    %7968 = vmatpush1.msra.mxu0 0.0
    %7969 = vmatprep.subr.mxu0 0.0
    %7970 = vmatpush1.msra.mxu0 0.0
    %7971 = vmatprep.subr.mxu0 0.0
    %7972 = vmatpush1.msra.mxu0 0.0
    %7973 = vmatprep.subr.mxu0 0.0
    %7974 = vmatpush1.msra.mxu0 0.0
    %7975 = vmatprep.subr.mxu0 0.0
    %7976 = vmatpush1.msra.mxu0 0.0
    %7977 = vmatprep.subr.mxu0 0.0
    %7978 = vmatpush1.msra.mxu0 0.0
    %7979 = vmatprep.subr.mxu0 0.0
    %7980 = vmatpush1.msra.mxu0 0.0
    %7981 = vmatprep.subr.mxu0 0.0
    %7982 = vmatpush1.msra.mxu0 0.0
    %7983 = vmatprep.subr.mxu0 0.0
    %7984 = vmatpush1.msra.mxu0 0.0
    %7985 = vmatprep.subr.mxu0 0.0
    %7986 = vmatpush1.msra.mxu0 0.0
    %7987 = vmatprep.subr.mxu0 0.0
    %7988 = vmatpush1.msra.mxu0 0.0
    %7989 = vmatprep.subr.mxu0 0.0
    %7990 = vmatpush1.msra.mxu0 0.0
    %7991 = vmatprep.mubr.f32.mxu0 0.0
    %7992 = vmatmul.mubr.f32.gmra.mrb[0].mxu0 %v7877
    %v7993 = vpop.f32.mrb[0].mxu0
    %v7994 = vadd.f32 0.0, %v7993
    %v7995 = vpop.f32.mrb[0].mxu0
    %7996 = vmatprep.mubr.f32.mxu0 0.0
    %7997 = vmatmul.mubr.f32.gmra.mrb[0].mxu0 %v7880
    %v7998 = vpop.f32.mrb[0].mxu0
    %v7999 = vadd.f32 0.0, %v7998
    %v8000 = vpop.f32.mrb[0].mxu0
    %8001 = vmatprep.mubr.f32.mxu0 0.0
    %8002 = vmatmul.mubr.f32.gmra.mrb[0].mxu0 %v7883
    %v8003 = vpop.f32.mrb[0].mxu0
    %v8004 = vadd.f32 0.0, %v8003
    %v8005 = vpop.f32.mrb[0].mxu0
    %8006 = vmatprep.mubr.f32.mxu0 0.0
    %8007 = vmatmul.mubr.f32.gmra.mrb[0].mxu0 %v7886
    %v8008 = vpop.f32.mrb[0].mxu0
    %v8009 = vadd.f32 0.0, %v8008
    %v8010 = vpop.f32.mrb[0].mxu0
    %8011 = vmatprep.mubr.f32.mxu0 0.0
    %8012 = vmatmul.mubr.f32.gmra.mrb[0].mxu0 %v7889
    %v8013 = vpop.f32.mrb[0].mxu0
    %v8014 = vadd.f32 0.0, %v8013
    %v8015 = vpop.f32.mrb[0].mxu0
    %8016 = vmatprep.mubr.f32.mxu0 0.0
    %8017 = vmatmul.mubr.f32.gmra.mrb[0].mxu0 %v7892
    %v8018 = vpop.f32.mrb[0].mxu0
    %v8019 = vadd.f32 0.0, %v8018
    %v8020 = vpop.f32.mrb[0].mxu0
    %8021 = vmatprep.mubr.f32.mxu0 0.0
    %8022 = vmatmul.mubr.f32.gmra.mrb[0].mxu0 %v7895
    %v8023 = vpop.f32.mrb[0].mxu0
    %v8024 = vadd.f32 0.0, %v8023
    %v8025 = vpop.f32.mrb[0].mxu0
    %8026 = vmatprep.mubr.f32.mxu0 0.0
    %8027 = vmatmul.mubr.f32.gmra.mrb[0].mxu0 %v7898
    %v8028 = vpop.f32.mrb[0].mxu0
    %v8029 = vadd.f32 0.0, %v8028
    %v8030 = vpop.f32.mrb[0].mxu0
    %8031 = vmatprep.mubr.f32.mxu0 0.0
    %8032 = vmatmul.mubr.f32.gmra.mrb[0].mxu0 %v7901
    %v8033 = vpop.f32.mrb[0].mxu0
    %v8034 = vadd.f32 0.0, %v8033
    %v8035 = vpop.f32.mrb[0].mxu0
    %8036 = vmatprep.mubr.f32.mxu0 0.0
    %8037 = vmatmul.mubr.f32.gmra.mrb[0].mxu0 %v7904
    %v8038 = vpop.f32.mrb[0].mxu0
    %v8039 = vadd.f32 0.0, %v8038
    %v8040 = vpop.f32.mrb[0].mxu0
    %8041 = vmatprep.mubr.f32.mxu0 0.0
    %8042 = vmatmul.mubr.f32.gmra.mrb[0].mxu0 %v7907
    %v8043 = vpop.f32.mrb[0].mxu0
    %v8044 = vadd.f32 0.0, %v8043
    %v8045 = vpop.f32.mrb[0].mxu0
    %8046 = vmatprep.mubr.f32.mxu0 0.0
    %8047 = vmatmul.mubr.f32.gmra.mrb[0].mxu0 %v7910
    %v8048 = vpop.f32.mrb[0].mxu0
    %v8049 = vadd.f32 0.0, %v8048
    %v8050 = vpop.f32.mrb[0].mxu0
    %8051 = vmatprep.mubr.f32.mxu0 0.0
    %8052 = vmatmul.mubr.f32.gmra.mrb[0].mxu0 %v7913
    %v8053 = vpop.f32.mrb[0].mxu0
    %v8054 = vadd.f32 0.0, %v8053
    %v8055 = vpop.f32.mrb[0].mxu0
    %8056 = vmatprep.mubr.f32.mxu0 0.0
    %8057 = vmatmul.mubr.f32.gmra.mrb[0].mxu0 %v7916
    %v8058 = vpop.f32.mrb[0].mxu0
    %v8059 = vadd.f32 0.0, %v8058
    %v8060 = vpop.f32.mrb[0].mxu0
    %8061 = vmatprep.mubr.f32.mxu0 0.0
    %8062 = vmatmul.mubr.f32.gmra.mrb[0].mxu0 %v7919
    %v8063 = vpop.f32.mrb[0].mxu0
    %v8064 = vadd.f32 0.0, %v8063
    %v8065 = vpop.f32.mrb[0].mxu0
    %8066 = vmatprep.mubr.f32.mxu0 0.0
    %8067 = vmatmul.mubr.f32.gmra.mrb[0].mxu0 %v7922
    %v8068 = vpop.f32.mrb[0].mxu0
    %v8069 = vadd.f32 0.0, %v8068
    %v8070 = vpop.f32.mrb[0].mxu0
    %8071 = vdwg.mxu0
    %v8072 = vadd.f32 %v7076, %v7994
    %v8073 = vadd.f32 %v7081, %v7999
    %v8074 = vadd.f32 %v7086, %v8004
    %v8075 = vadd.f32 %v7091, %v8009
    %v8076 = vadd.f32 %v7096, %v8014
    %v8077 = vadd.f32 %v7101, %v8019
    %v8078 = vadd.f32 %v7106, %v8024
    %v8079 = vadd.f32 %v7111, %v8029
    %v8080 = vadd.f32 %v7116, %v8034
    %v8081 = vadd.f32 %v7121, %v8039
    %v8082 = vadd.f32 %v7126, %v8044
    %v8083 = vadd.f32 %v7131, %v8049
    %v8084 = vadd.f32 %v7136, %v8054
    %v8085 = vadd.f32 %v7141, %v8059
    %v8086 = vadd.f32 %v7146, %v8064
    %v8087 = vadd.f32 %v7151, %v8069
    %8088 = vrot.lane.b32.xlu0 %v5078, 116
    %v8089 = vpop.permute.xlu0 %8088
    %8090 = vrot.lane.b32.xlu0 %v5083, 116
    %v8091 = vpop.permute.xlu0 %8090
    %8092 = vrot.lane.b32.xlu0 %v5088, 116
    %v8093 = vpop.permute.xlu0 %8092
    %8094 = vrot.lane.b32.xlu0 %v5093, 116
    %v8095 = vpop.permute.xlu0 %8094
    %8096 = vrot.lane.b32.xlu0 %v5098, 116
    %v8097 = vpop.permute.xlu0 %8096
    %8098 = vrot.lane.b32.xlu0 %v5103, 116
    %v8099 = vpop.permute.xlu0 %8098
    %8100 = vrot.lane.b32.xlu0 %v5108, 116
    %v8101 = vpop.permute.xlu0 %8100
    %8102 = vrot.lane.b32.xlu0 %v5113, 116
    %v8103 = vpop.permute.xlu0 %8102
    %8104 = vrot.lane.b32.xlu0 %v5240, 116
    %v8105 = vpop.permute.xlu0 %8104
    %v8106 = vsel %vm2700, %v8089, 0
    %v8108 = vsel %vm2700, %v8091, 0
    %v8110 = vsel %vm2700, %v8093, 0
    %v8112 = vsel %vm2700, %v8095, 0
    %v8114 = vsel %vm2700, %v8097, 0
    %v8116 = vsel %vm2700, %v8099, 0
    %v8118 = vsel %vm2700, %v8101, 0
    %v8120 = vsel %vm2700, %v8103, 0
    %v8122 = vsel %vm2700, %v8105, 0
    %8124 = vmatprep.subr.mxu0 0.0
    %8125 = vmatpush1.xpose.msra.mxu0 %v8122
    %8126 = vmatprep.subr.mxu0 0.0
    %8127 = vmatpush1.xpose.msra.mxu0 0.0
    %8128 = vmatprep.subr.mxu0 0.0
    %8129 = vmatpush1.xpose.msra.mxu0 0.0
    %8130 = vmatprep.subr.mxu0 0.0
    %8131 = vmatpush1.xpose.msra.mxu0 0.0
    %8132 = vmatprep.subr.mxu0 0.0
    %8133 = vmatpush1.xpose.msra.mxu0 0.0
    %8134 = vmatprep.subr.mxu0 0.0
    %8135 = vmatpush1.xpose.msra.mxu0 0.0
    %8136 = vmatprep.subr.mxu0 0.0
    %8137 = vmatpush1.xpose.msra.mxu0 0.0
    %8138 = vmatprep.subr.mxu0 0.0
    %8139 = vmatpush1.xpose.msra.mxu0 0.0
    %8140 = vmatprep.subr.mxu0 0.0
    %8141 = vmatpush1.xpose.msra.mxu0 0.0
    %8142 = vmatprep.subr.mxu0 0.0
    %8143 = vmatpush1.xpose.msra.mxu0 0.0
    %8144 = vmatprep.subr.mxu0 0.0
    %8145 = vmatpush1.xpose.msra.mxu0 0.0
    %8146 = vmatprep.subr.mxu0 0.0
    %8147 = vmatpush1.xpose.msra.mxu0 0.0
    %8148 = vmatprep.subr.mxu0 0.0
    %8149 = vmatpush1.xpose.msra.mxu0 0.0
    %8150 = vmatprep.subr.mxu0 0.0
    %8151 = vmatpush1.xpose.msra.mxu0 0.0
    %8152 = vmatprep.subr.mxu0 0.0
    %8153 = vmatpush1.xpose.msra.mxu0 0.0
    %8154 = vmatprep.subr.mxu0 0.0
    %8155 = vmatpush1.xpose.msra.mxu0 0.0
    %8156 = vmatprep.subr.mxu0 0.0
    %8157 = vmatpush1.xpose.msra.mxu0 0.0
    %8158 = vmatprep.subr.mxu0 0.0
    %8159 = vmatpush1.xpose.msra.mxu0 0.0
    %8160 = vmatprep.subr.mxu0 0.0
    %8161 = vmatpush1.xpose.msra.mxu0 0.0
    %8162 = vmatprep.subr.mxu0 0.0
    %8163 = vmatpush1.xpose.msra.mxu0 0.0
    %8164 = vmatprep.subr.mxu0 0.0
    %8165 = vmatpush1.xpose.msra.mxu0 0.0
    %8166 = vmatprep.subr.mxu0 0.0
    %8167 = vmatpush1.xpose.msra.mxu0 0.0
    %8168 = vmatprep.subr.mxu0 0.0
    %8169 = vmatpush1.xpose.msra.mxu0 0.0
    %8170 = vmatprep.subr.mxu0 0.0
    %8171 = vmatpush1.xpose.msra.mxu0 0.0
    %8172 = vmatprep.subr.mxu0 0.0
    %8173 = vmatpush1.xpose.msra.mxu0 0.0
    %8174 = vmatprep.subr.mxu0 0.0
    %8175 = vmatpush1.xpose.msra.mxu0 0.0
    %8176 = vmatprep.subr.mxu0 0.0
    %8177 = vmatpush1.xpose.msra.mxu0 0.0
    %8178 = vmatprep.subr.mxu0 0.0
    %8179 = vmatpush1.xpose.msra.mxu0 0.0
    %8180 = vmatprep.subr.mxu0 0.0
    %8181 = vmatpush1.xpose.msra.mxu0 0.0
    %8182 = vmatprep.subr.mxu0 0.0
    %8183 = vmatpush1.xpose.msra.mxu0 0.0
    %8184 = vmatprep.subr.mxu0 0.0
    %8185 = vmatpush1.xpose.msra.mxu0 0.0
    %8186 = vmatprep.subr.mxu0 0.0
    %8187 = vmatpush1.xpose.msra.mxu0 0.0
    %8188 = vmatprep.mubr.f32.mxu0 0.0
    %8189 = vmatmul.mubr.f32.gmra.mrb[0].mxu0 %v8106
    %v8190 = vpop.f32.mrb[0].mxu0
    %v8191 = vadd.f32 0.0, %v8190
    %v8192 = vpop.f32.mrb[0].mxu0
    %8193 = vmatprep.mubr.f32.mxu0 0.0
    %8194 = vmatmul.mubr.f32.gmra.mrb[0].mxu0 %v8108
    %v8195 = vpop.f32.mrb[0].mxu0
    %v8196 = vadd.f32 0.0, %v8195
    %v8197 = vpop.f32.mrb[0].mxu0
    %8198 = vmatprep.mubr.f32.mxu0 0.0
    %8199 = vmatmul.mubr.f32.gmra.mrb[0].mxu0 %v8110
    %v8200 = vpop.f32.mrb[0].mxu0
    %v8201 = vadd.f32 0.0, %v8200
    %v8202 = vpop.f32.mrb[0].mxu0
    %8203 = vmatprep.mubr.f32.mxu0 0.0
    %8204 = vmatmul.mubr.f32.gmra.mrb[0].mxu0 %v8112
    %v8205 = vpop.f32.mrb[0].mxu0
    %v8206 = vadd.f32 0.0, %v8205
    %v8207 = vpop.f32.mrb[0].mxu0
    %8208 = vmatprep.mubr.f32.mxu0 0.0
    %8209 = vmatmul.mubr.f32.gmra.mrb[0].mxu0 %v8114
    %v8210 = vpop.f32.mrb[0].mxu0
    %v8211 = vadd.f32 0.0, %v8210
    %v8212 = vpop.f32.mrb[0].mxu0
    %8213 = vmatprep.mubr.f32.mxu0 0.0
    %8214 = vmatmul.mubr.f32.gmra.mrb[0].mxu0 %v8116
    %v8215 = vpop.f32.mrb[0].mxu0
    %v8216 = vadd.f32 0.0, %v8215
    %v8217 = vpop.f32.mrb[0].mxu0
    %8218 = vmatprep.mubr.f32.mxu0 0.0
    %8219 = vmatmul.mubr.f32.gmra.mrb[0].mxu0 %v8118
    %v8220 = vpop.f32.mrb[0].mxu0
    %v8221 = vadd.f32 0.0, %v8220
    %v8222 = vpop.f32.mrb[0].mxu0
    %8223 = vmatprep.mubr.f32.mxu0 0.0
    %8224 = vmatmul.mubr.f32.gmra.mrb[0].mxu0 %v8120
    %v8225 = vpop.f32.mrb[0].mxu0
    %v8226 = vadd.f32 0.0, %v8225
    %v8227 = vpop.f32.mrb[0].mxu0
    %8228 = vdwg.mxu0
    %8229 = vrot.lane.b32.xlu0 %v5118, 116
    %v8230 = vpop.permute.xlu0 %8229
    %8231 = vrot.lane.b32.xlu0 %v5123, 116
    %v8232 = vpop.permute.xlu0 %8231
    %8233 = vrot.lane.b32.xlu0 %v5128, 116
    %v8234 = vpop.permute.xlu0 %8233
    %8235 = vrot.lane.b32.xlu0 %v5133, 116
    %v8236 = vpop.permute.xlu0 %8235
    %8237 = vrot.lane.b32.xlu0 %v5138, 116
    %v8238 = vpop.permute.xlu0 %8237
    %8239 = vrot.lane.b32.xlu0 %v5143, 116
    %v8240 = vpop.permute.xlu0 %8239
    %8241 = vrot.lane.b32.xlu0 %v5148, 116
    %v8242 = vpop.permute.xlu0 %8241
    %8243 = vrot.lane.b32.xlu0 %v5153, 116
    %v8244 = vpop.permute.xlu0 %8243
    %8245 = vrot.lane.b32.xlu0 %v5245, 116
    %v8246 = vpop.permute.xlu0 %8245
    %v8247 = vsel %vm2700, %v8230, 0
    %v8249 = vsel %vm2700, %v8232, 0
    %v8251 = vsel %vm2700, %v8234, 0
    %v8253 = vsel %vm2700, %v8236, 0
    %v8255 = vsel %vm2700, %v8238, 0
    %v8257 = vsel %vm2700, %v8240, 0
    %v8259 = vsel %vm2700, %v8242, 0
    %v8261 = vsel %vm2700, %v8244, 0
    %v8263 = vsel %vm2700, %v8246, 0
    %8265 = vmatprep.subr.mxu0 0.0
    %8266 = vmatpush1.xpose.msra.mxu0 %v8263
    %8267 = vmatprep.subr.mxu0 0.0
    %8268 = vmatpush1.xpose.msra.mxu0 0.0
    %8269 = vmatprep.subr.mxu0 0.0
    %8270 = vmatpush1.xpose.msra.mxu0 0.0
    %8271 = vmatprep.subr.mxu0 0.0
    %8272 = vmatpush1.xpose.msra.mxu0 0.0
    %8273 = vmatprep.subr.mxu0 0.0
    %8274 = vmatpush1.xpose.msra.mxu0 0.0
    %8275 = vmatprep.subr.mxu0 0.0
    %8276 = vmatpush1.xpose.msra.mxu0 0.0
    %8277 = vmatprep.subr.mxu0 0.0
    %8278 = vmatpush1.xpose.msra.mxu0 0.0
    %8279 = vmatprep.subr.mxu0 0.0
    %8280 = vmatpush1.xpose.msra.mxu0 0.0
    %8281 = vmatprep.subr.mxu0 0.0
    %8282 = vmatpush1.xpose.msra.mxu0 0.0
    %8283 = vmatprep.subr.mxu0 0.0
    %8284 = vmatpush1.xpose.msra.mxu0 0.0
    %8285 = vmatprep.subr.mxu0 0.0
    %8286 = vmatpush1.xpose.msra.mxu0 0.0
    %8287 = vmatprep.subr.mxu0 0.0
    %8288 = vmatpush1.xpose.msra.mxu0 0.0
    %8289 = vmatprep.subr.mxu0 0.0
    %8290 = vmatpush1.xpose.msra.mxu0 0.0
    %8291 = vmatprep.subr.mxu0 0.0
    %8292 = vmatpush1.xpose.msra.mxu0 0.0
    %8293 = vmatprep.subr.mxu0 0.0
    %8294 = vmatpush1.xpose.msra.mxu0 0.0
    %8295 = vmatprep.subr.mxu0 0.0
    %8296 = vmatpush1.xpose.msra.mxu0 0.0
    %8297 = vmatprep.subr.mxu0 0.0
    %8298 = vmatpush1.xpose.msra.mxu0 0.0
    %8299 = vmatprep.subr.mxu0 0.0
    %8300 = vmatpush1.xpose.msra.mxu0 0.0
    %8301 = vmatprep.subr.mxu0 0.0
    %8302 = vmatpush1.xpose.msra.mxu0 0.0
    %8303 = vmatprep.subr.mxu0 0.0
    %8304 = vmatpush1.xpose.msra.mxu0 0.0
    %8305 = vmatprep.subr.mxu0 0.0
    %8306 = vmatpush1.xpose.msra.mxu0 0.0
    %8307 = vmatprep.subr.mxu0 0.0
    %8308 = vmatpush1.xpose.msra.mxu0 0.0
    %8309 = vmatprep.subr.mxu0 0.0
    %8310 = vmatpush1.xpose.msra.mxu0 0.0
    %8311 = vmatprep.subr.mxu0 0.0
    %8312 = vmatpush1.xpose.msra.mxu0 0.0
    %8313 = vmatprep.subr.mxu0 0.0
    %8314 = vmatpush1.xpose.msra.mxu0 0.0
    %8315 = vmatprep.subr.mxu0 0.0
    %8316 = vmatpush1.xpose.msra.mxu0 0.0
    %8317 = vmatprep.subr.mxu0 0.0
    %8318 = vmatpush1.xpose.msra.mxu0 0.0
    %8319 = vmatprep.subr.mxu0 0.0
    %8320 = vmatpush1.xpose.msra.mxu0 0.0
    %8321 = vmatprep.subr.mxu0 0.0
    %8322 = vmatpush1.xpose.msra.mxu0 0.0
    %8323 = vmatprep.subr.mxu0 0.0
    %8324 = vmatpush1.xpose.msra.mxu0 0.0
    %8325 = vmatprep.subr.mxu0 0.0
    %8326 = vmatpush1.xpose.msra.mxu0 0.0
    %8327 = vmatprep.subr.mxu0 0.0
    %8328 = vmatpush1.xpose.msra.mxu0 0.0
    %8329 = vmatprep.mubr.f32.mxu0 0.0
    %8330 = vmatmul.mubr.f32.gmra.mrb[0].mxu0 %v8247
    %v8331 = vpop.f32.mrb[0].mxu0
    %v8332 = vadd.f32 0.0, %v8331
    %v8333 = vpop.f32.mrb[0].mxu0
    %8334 = vmatprep.mubr.f32.mxu0 0.0
    %8335 = vmatmul.mubr.f32.gmra.mrb[0].mxu0 %v8249
    %v8336 = vpop.f32.mrb[0].mxu0
    %v8337 = vadd.f32 0.0, %v8336
    %v8338 = vpop.f32.mrb[0].mxu0
    %8339 = vmatprep.mubr.f32.mxu0 0.0
    %8340 = vmatmul.mubr.f32.gmra.mrb[0].mxu0 %v8251
    %v8341 = vpop.f32.mrb[0].mxu0
    %v8342 = vadd.f32 0.0, %v8341
    %v8343 = vpop.f32.mrb[0].mxu0
    %8344 = vmatprep.mubr.f32.mxu0 0.0
    %8345 = vmatmul.mubr.f32.gmra.mrb[0].mxu0 %v8253
    %v8346 = vpop.f32.mrb[0].mxu0
    %v8347 = vadd.f32 0.0, %v8346
    %v8348 = vpop.f32.mrb[0].mxu0
    %8349 = vmatprep.mubr.f32.mxu0 0.0
    %8350 = vmatmul.mubr.f32.gmra.mrb[0].mxu0 %v8255
    %v8351 = vpop.f32.mrb[0].mxu0
    %v8352 = vadd.f32 0.0, %v8351
    %v8353 = vpop.f32.mrb[0].mxu0
    %8354 = vmatprep.mubr.f32.mxu0 0.0
    %8355 = vmatmul.mubr.f32.gmra.mrb[0].mxu0 %v8257
    %v8356 = vpop.f32.mrb[0].mxu0
    %v8357 = vadd.f32 0.0, %v8356
    %v8358 = vpop.f32.mrb[0].mxu0
    %8359 = vmatprep.mubr.f32.mxu0 0.0
    %8360 = vmatmul.mubr.f32.gmra.mrb[0].mxu0 %v8259
    %v8361 = vpop.f32.mrb[0].mxu0
    %v8362 = vadd.f32 0.0, %v8361
    %v8363 = vpop.f32.mrb[0].mxu0
    %8364 = vmatprep.mubr.f32.mxu0 0.0
    %8365 = vmatmul.mubr.f32.gmra.mrb[0].mxu0 %v8261
    %v8366 = vpop.f32.mrb[0].mxu0
    %v8367 = vadd.f32 0.0, %v8366
    %v8368 = vpop.f32.mrb[0].mxu0
    %8369 = vdwg.mxu0
    %v8370 = vsel %vm483, %v8191, -inf
    %8371 = vmax.xlane.f32.xlu0 %v8370
    %v8372 = vpop.xlane.xlu0 %8371
    %v8373 = vsel %vm483, %v8196, -inf
    %8374 = vmax.xlane.f32.xlu0 %v8373
    %v8375 = vpop.xlane.xlu0 %8374
    %v8376 = vsel %vm483, %v8201, -inf
    %8377 = vmax.xlane.f32.xlu0 %v8376
    %v8378 = vpop.xlane.xlu0 %8377
    %v8379 = vsel %vm483, %v8206, -inf
    %8380 = vmax.xlane.f32.xlu0 %v8379
    %v8381 = vpop.xlane.xlu0 %8380
    %v8382 = vsel %vm483, %v8211, -inf
    %8383 = vmax.xlane.f32.xlu0 %v8382
    %v8384 = vpop.xlane.xlu0 %8383
    %v8385 = vsel %vm483, %v8216, -inf
    %8386 = vmax.xlane.f32.xlu0 %v8385
    %v8387 = vpop.xlane.xlu0 %8386
    %v8388 = vsel %vm483, %v8221, -inf
    %8389 = vmax.xlane.f32.xlu0 %v8388
    %v8390 = vpop.xlane.xlu0 %8389
    %v8391 = vsel %vm483, %v8226, -inf
    %8392 = vmax.xlane.f32.xlu0 %v8391
    %v8393 = vpop.xlane.xlu0 %8392
    %v8394 = vsel %vm483, %v8332, -inf
    %8395 = vmax.xlane.f32.xlu0 %v8394
    %v8396 = vpop.xlane.xlu0 %8395
    %v8397 = vsel %vm483, %v8337, -inf
    %8398 = vmax.xlane.f32.xlu0 %v8397
    %v8399 = vpop.xlane.xlu0 %8398
    %v8400 = vsel %vm483, %v8342, -inf
    %8401 = vmax.xlane.f32.xlu0 %v8400
    %v8402 = vpop.xlane.xlu0 %8401
    %v8403 = vsel %vm483, %v8347, -inf
    %8404 = vmax.xlane.f32.xlu0 %v8403
    %v8405 = vpop.xlane.xlu0 %8404
    %v8406 = vsel %vm483, %v8352, -inf
    %8407 = vmax.xlane.f32.xlu0 %v8406
    %v8408 = vpop.xlane.xlu0 %8407
    %v8409 = vsel %vm483, %v8357, -inf
    %8410 = vmax.xlane.f32.xlu0 %v8409
    %v8411 = vpop.xlane.xlu0 %8410
    %v8412 = vsel %vm483, %v8362, -inf
    %8413 = vmax.xlane.f32.xlu0 %v8412
    %v8414 = vpop.xlane.xlu0 %8413
    %v8415 = vsel %vm483, %v8367, -inf
    %8416 = vmax.xlane.f32.xlu0 %v8415
    %v8417 = vpop.xlane.xlu0 %8416
    %v8418 = vsub.f32 %v8191, %v8372
    %v8419 = vsub.f32 %v8196, %v8375
    %v8420 = vsub.f32 %v8201, %v8378
    %v8421 = vsub.f32 %v8206, %v8381
    %v8422 = vsub.f32 %v8211, %v8384
    %v8423 = vsub.f32 %v8216, %v8387
    %v8424 = vsub.f32 %v8221, %v8390
    %v8425 = vsub.f32 %v8226, %v8393
    %v8426 = vsub.f32 %v8332, %v8396
    %v8427 = vsub.f32 %v8337, %v8399
    %v8428 = vsub.f32 %v8342, %v8402
    %v8429 = vsub.f32 %v8347, %v8405
    %v8430 = vsub.f32 %v8352, %v8408
    %v8431 = vsub.f32 %v8357, %v8411
    %v8432 = vsub.f32 %v8362, %v8414
    %v8433 = vsub.f32 %v8367, %v8417
    %v8434 = vmul.f32 %v8418, 1.442695
    %v8435 = vpow.pop %v8434
    %v8436 = vmul.f32 %v8419, 1.442695
    %v8437 = vpow.pop %v8436
    %v8438 = vmul.f32 %v8420, 1.442695
    %v8439 = vpow.pop %v8438
    %v8440 = vmul.f32 %v8421, 1.442695
    %v8441 = vpow.pop %v8440
    %v8442 = vmul.f32 %v8422, 1.442695
    %v8443 = vpow.pop %v8442
    %v8444 = vmul.f32 %v8423, 1.442695
    %v8445 = vpow.pop %v8444
    %v8446 = vmul.f32 %v8424, 1.442695
    %v8447 = vpow.pop %v8446
    %v8448 = vmul.f32 %v8425, 1.442695
    %v8449 = vpow.pop %v8448
    %v8450 = vmul.f32 %v8426, 1.442695
    %v8451 = vpow.pop %v8450
    %v8452 = vmul.f32 %v8427, 1.442695
    %v8453 = vpow.pop %v8452
    %v8454 = vmul.f32 %v8428, 1.442695
    %v8455 = vpow.pop %v8454
    %v8456 = vmul.f32 %v8429, 1.442695
    %v8457 = vpow.pop %v8456
    %v8458 = vmul.f32 %v8430, 1.442695
    %v8459 = vpow.pop %v8458
    %v8460 = vmul.f32 %v8431, 1.442695
    %v8461 = vpow.pop %v8460
    %v8462 = vmul.f32 %v8432, 1.442695
    %v8463 = vpow.pop %v8462
    %v8464 = vmul.f32 %v8433, 1.442695
    %v8465 = vpow.pop %v8464
    %v8466 = vsel %vm483, %v8435, 0.0
    %8467 = vadd.xlane.f32.xlu0 %v8466
    %v8468 = vpop.xlane.xlu0 %8467
    %v8469 = vsel %vm483, %v8437, 0.0
    %8470 = vadd.xlane.f32.xlu0 %v8469
    %v8471 = vpop.xlane.xlu0 %8470
    %v8472 = vsel %vm483, %v8439, 0.0
    %8473 = vadd.xlane.f32.xlu0 %v8472
    %v8474 = vpop.xlane.xlu0 %8473
    %v8475 = vsel %vm483, %v8441, 0.0
    %8476 = vadd.xlane.f32.xlu0 %v8475
    %v8477 = vpop.xlane.xlu0 %8476
    %v8478 = vsel %vm483, %v8443, 0.0
    %8479 = vadd.xlane.f32.xlu0 %v8478
    %v8480 = vpop.xlane.xlu0 %8479
    %v8481 = vsel %vm483, %v8445, 0.0
    %8482 = vadd.xlane.f32.xlu0 %v8481
    %v8483 = vpop.xlane.xlu0 %8482
    %v8484 = vsel %vm483, %v8447, 0.0
    %8485 = vadd.xlane.f32.xlu0 %v8484
    %v8486 = vpop.xlane.xlu0 %8485
    %v8487 = vsel %vm483, %v8449, 0.0
    %8488 = vadd.xlane.f32.xlu0 %v8487
    %v8489 = vpop.xlane.xlu0 %8488
    %v8490 = vsel %vm483, %v8451, 0.0
    %8491 = vadd.xlane.f32.xlu0 %v8490
    %v8492 = vpop.xlane.xlu0 %8491
    %v8493 = vsel %vm483, %v8453, 0.0
    %8494 = vadd.xlane.f32.xlu0 %v8493
    %v8495 = vpop.xlane.xlu0 %8494
    %v8496 = vsel %vm483, %v8455, 0.0
    %8497 = vadd.xlane.f32.xlu0 %v8496
    %v8498 = vpop.xlane.xlu0 %8497
    %v8499 = vsel %vm483, %v8457, 0.0
    %8500 = vadd.xlane.f32.xlu0 %v8499
    %v8501 = vpop.xlane.xlu0 %8500
    %v8502 = vsel %vm483, %v8459, 0.0
    %8503 = vadd.xlane.f32.xlu0 %v8502
    %v8504 = vpop.xlane.xlu0 %8503
    %v8505 = vsel %vm483, %v8461, 0.0
    %8506 = vadd.xlane.f32.xlu0 %v8505
    %v8507 = vpop.xlane.xlu0 %8506
    %v8508 = vsel %vm483, %v8463, 0.0
    %8509 = vadd.xlane.f32.xlu0 %v8508
    %v8510 = vpop.xlane.xlu0 %8509
    %v8511 = vsel %vm483, %v8465, 0.0
    %8512 = vadd.xlane.f32.xlu0 %v8511
    %v8513 = vpop.xlane.xlu0 %8512
    %v8514 = vrcp.pop %v8468
    %v8515 = vmul.f32 %v8435, %v8514
    %v8516 = vrcp.pop %v8471
    %v8517 = vmul.f32 %v8437, %v8516
    %v8518 = vrcp.pop %v8474
    %v8519 = vmul.f32 %v8439, %v8518
    %v8520 = vrcp.pop %v8477
    %v8521 = vmul.f32 %v8441, %v8520
    %v8522 = vrcp.pop %v8480
    %v8523 = vmul.f32 %v8443, %v8522
    %v8524 = vrcp.pop %v8483
    %v8525 = vmul.f32 %v8445, %v8524
    %v8526 = vrcp.pop %v8486
    %v8527 = vmul.f32 %v8447, %v8526
    %v8528 = vrcp.pop %v8489
    %v8529 = vmul.f32 %v8449, %v8528
    %v8530 = vrcp.pop %v8492
    %v8531 = vmul.f32 %v8451, %v8530
    %v8532 = vrcp.pop %v8495
    %v8533 = vmul.f32 %v8453, %v8532
    %v8534 = vrcp.pop %v8498
    %v8535 = vmul.f32 %v8455, %v8534
    %v8536 = vrcp.pop %v8501
    %v8537 = vmul.f32 %v8457, %v8536
    %v8538 = vrcp.pop %v8504
    %v8539 = vmul.f32 %v8459, %v8538
    %v8540 = vrcp.pop %v8507
    %v8541 = vmul.f32 %v8461, %v8540
    %v8542 = vrcp.pop %v8510
    %v8543 = vmul.f32 %v8463, %v8542
    %v8544 = vrcp.pop %v8513
    %v8545 = vmul.f32 %v8465, %v8544
    %8546 = vrot.lane.b32.xlu0 %v5332, 116
    %v8547 = vpop.permute.xlu0 %8546
    %v8550 = vsel %vm483, %v8515, 0
    %v8553 = vsel %vm483, %v8517, 0
    %v8556 = vsel %vm483, %v8519, 0
    %v8559 = vsel %vm483, %v8521, 0
    %v8562 = vsel %vm483, %v8523, 0
    %v8565 = vsel %vm483, %v8525, 0
    %v8568 = vsel %vm483, %v8527, 0
    %v8571 = vsel %vm483, %v8529, 0
    %8573 = vmatprep.subr.mxu0 0.0
    %8574 = vmatpush1.msra.mxu0 %v8547
    %8575 = vmatprep.subr.mxu0 0.0
    %8576 = vmatpush1.msra.mxu0 0.0
    %8577 = vmatprep.subr.mxu0 0.0
    %8578 = vmatpush1.msra.mxu0 0.0
    %8579 = vmatprep.subr.mxu0 0.0
    %8580 = vmatpush1.msra.mxu0 0.0
    %8581 = vmatprep.subr.mxu0 0.0
    %8582 = vmatpush1.msra.mxu0 0.0
    %8583 = vmatprep.subr.mxu0 0.0
    %8584 = vmatpush1.msra.mxu0 0.0
    %8585 = vmatprep.subr.mxu0 0.0
    %8586 = vmatpush1.msra.mxu0 0.0
    %8587 = vmatprep.subr.mxu0 0.0
    %8588 = vmatpush1.msra.mxu0 0.0
    %8589 = vmatprep.subr.mxu0 0.0
    %8590 = vmatpush1.msra.mxu0 0.0
    %8591 = vmatprep.subr.mxu0 0.0
    %8592 = vmatpush1.msra.mxu0 0.0
    %8593 = vmatprep.subr.mxu0 0.0
    %8594 = vmatpush1.msra.mxu0 0.0
    %8595 = vmatprep.subr.mxu0 0.0
    %8596 = vmatpush1.msra.mxu0 0.0
    %8597 = vmatprep.subr.mxu0 0.0
    %8598 = vmatpush1.msra.mxu0 0.0
    %8599 = vmatprep.subr.mxu0 0.0
    %8600 = vmatpush1.msra.mxu0 0.0
    %8601 = vmatprep.subr.mxu0 0.0
    %8602 = vmatpush1.msra.mxu0 0.0
    %8603 = vmatprep.subr.mxu0 0.0
    %8604 = vmatpush1.msra.mxu0 0.0
    %8605 = vmatprep.subr.mxu0 0.0
    %8606 = vmatpush1.msra.mxu0 0.0
    %8607 = vmatprep.subr.mxu0 0.0
    %8608 = vmatpush1.msra.mxu0 0.0
    %8609 = vmatprep.subr.mxu0 0.0
    %8610 = vmatpush1.msra.mxu0 0.0
    %8611 = vmatprep.subr.mxu0 0.0
    %8612 = vmatpush1.msra.mxu0 0.0
    %8613 = vmatprep.subr.mxu0 0.0
    %8614 = vmatpush1.msra.mxu0 0.0
    %8615 = vmatprep.subr.mxu0 0.0
    %8616 = vmatpush1.msra.mxu0 0.0
    %8617 = vmatprep.subr.mxu0 0.0
    %8618 = vmatpush1.msra.mxu0 0.0
    %8619 = vmatprep.subr.mxu0 0.0
    %8620 = vmatpush1.msra.mxu0 0.0
    %8621 = vmatprep.subr.mxu0 0.0
    %8622 = vmatpush1.msra.mxu0 0.0
    %8623 = vmatprep.subr.mxu0 0.0
    %8624 = vmatpush1.msra.mxu0 0.0
    %8625 = vmatprep.subr.mxu0 0.0
    %8626 = vmatpush1.msra.mxu0 0.0
    %8627 = vmatprep.subr.mxu0 0.0
    %8628 = vmatpush1.msra.mxu0 0.0
    %8629 = vmatprep.subr.mxu0 0.0
    %8630 = vmatpush1.msra.mxu0 0.0
    %8631 = vmatprep.subr.mxu0 0.0
    %8632 = vmatpush1.msra.mxu0 0.0
    %8633 = vmatprep.subr.mxu0 0.0
    %8634 = vmatpush1.msra.mxu0 0.0
    %8635 = vmatprep.subr.mxu0 0.0
    %8636 = vmatpush1.msra.mxu0 0.0
    %8637 = vmatprep.mubr.f32.mxu0 0.0
    %8638 = vmatmul.mubr.f32.gmra.mrb[0].mxu0 %v8550
    %v8639 = vpop.f32.mrb[0].mxu0
    %v8640 = vadd.f32 0.0, %v8639
    %v8641 = vpop.f32.mrb[0].mxu0
    %8642 = vmatprep.mubr.f32.mxu0 0.0
    %8643 = vmatmul.mubr.f32.gmra.mrb[0].mxu0 %v8553
    %v8644 = vpop.f32.mrb[0].mxu0
    %v8645 = vadd.f32 0.0, %v8644
    %v8646 = vpop.f32.mrb[0].mxu0
    %8647 = vmatprep.mubr.f32.mxu0 0.0
    %8648 = vmatmul.mubr.f32.gmra.mrb[0].mxu0 %v8556
    %v8649 = vpop.f32.mrb[0].mxu0
    %v8650 = vadd.f32 0.0, %v8649
    %v8651 = vpop.f32.mrb[0].mxu0
    %8652 = vmatprep.mubr.f32.mxu0 0.0
    %8653 = vmatmul.mubr.f32.gmra.mrb[0].mxu0 %v8559
    %v8654 = vpop.f32.mrb[0].mxu0
    %v8655 = vadd.f32 0.0, %v8654
    %v8656 = vpop.f32.mrb[0].mxu0
    %8657 = vmatprep.mubr.f32.mxu0 0.0
    %8658 = vmatmul.mubr.f32.gmra.mrb[0].mxu0 %v8562
    %v8659 = vpop.f32.mrb[0].mxu0
    %v8660 = vadd.f32 0.0, %v8659
    %v8661 = vpop.f32.mrb[0].mxu0
    %8662 = vmatprep.mubr.f32.mxu0 0.0
    %8663 = vmatmul.mubr.f32.gmra.mrb[0].mxu0 %v8565
    %v8664 = vpop.f32.mrb[0].mxu0
    %v8665 = vadd.f32 0.0, %v8664
    %v8666 = vpop.f32.mrb[0].mxu0
    %8667 = vmatprep.mubr.f32.mxu0 0.0
    %8668 = vmatmul.mubr.f32.gmra.mrb[0].mxu0 %v8568
    %v8669 = vpop.f32.mrb[0].mxu0
    %v8670 = vadd.f32 0.0, %v8669
    %v8671 = vpop.f32.mrb[0].mxu0
    %8672 = vmatprep.mubr.f32.mxu0 0.0
    %8673 = vmatmul.mubr.f32.gmra.mrb[0].mxu0 %v8571
    %v8674 = vpop.f32.mrb[0].mxu0
    %v8675 = vadd.f32 0.0, %v8674
    %v8676 = vpop.f32.mrb[0].mxu0
    %8677 = vdwg.mxu0
    %8678 = vrot.lane.b32.xlu0 %v5337, 116
    %v8679 = vpop.permute.xlu0 %8678
    %v8682 = vsel %vm483, %v8531, 0
    %v8685 = vsel %vm483, %v8533, 0
    %v8688 = vsel %vm483, %v8535, 0
    %v8691 = vsel %vm483, %v8537, 0
    %v8694 = vsel %vm483, %v8539, 0
    %v8697 = vsel %vm483, %v8541, 0
    %v8700 = vsel %vm483, %v8543, 0
    %v8703 = vsel %vm483, %v8545, 0
    %8705 = vmatprep.subr.mxu0 0.0
    %8706 = vmatpush1.msra.mxu0 %v8679
    %8707 = vmatprep.subr.mxu0 0.0
    %8708 = vmatpush1.msra.mxu0 0.0
    %8709 = vmatprep.subr.mxu0 0.0
    %8710 = vmatpush1.msra.mxu0 0.0
    %8711 = vmatprep.subr.mxu0 0.0
    %8712 = vmatpush1.msra.mxu0 0.0
    %8713 = vmatprep.subr.mxu0 0.0
    %8714 = vmatpush1.msra.mxu0 0.0
    %8715 = vmatprep.subr.mxu0 0.0
    %8716 = vmatpush1.msra.mxu0 0.0
    %8717 = vmatprep.subr.mxu0 0.0
    %8718 = vmatpush1.msra.mxu0 0.0
    %8719 = vmatprep.subr.mxu0 0.0
    %8720 = vmatpush1.msra.mxu0 0.0
    %8721 = vmatprep.subr.mxu0 0.0
    %8722 = vmatpush1.msra.mxu0 0.0
    %8723 = vmatprep.subr.mxu0 0.0
    %8724 = vmatpush1.msra.mxu0 0.0
    %8725 = vmatprep.subr.mxu0 0.0
    %8726 = vmatpush1.msra.mxu0 0.0
    %8727 = vmatprep.subr.mxu0 0.0
    %8728 = vmatpush1.msra.mxu0 0.0
    %8729 = vmatprep.subr.mxu0 0.0
    %8730 = vmatpush1.msra.mxu0 0.0
    %8731 = vmatprep.subr.mxu0 0.0
    %8732 = vmatpush1.msra.mxu0 0.0
    %8733 = vmatprep.subr.mxu0 0.0
    %8734 = vmatpush1.msra.mxu0 0.0
    %8735 = vmatprep.subr.mxu0 0.0
    %8736 = vmatpush1.msra.mxu0 0.0
    %8737 = vmatprep.subr.mxu0 0.0
    %8738 = vmatpush1.msra.mxu0 0.0
    %8739 = vmatprep.subr.mxu0 0.0
    %8740 = vmatpush1.msra.mxu0 0.0
    %8741 = vmatprep.subr.mxu0 0.0
    %8742 = vmatpush1.msra.mxu0 0.0
    %8743 = vmatprep.subr.mxu0 0.0
    %8744 = vmatpush1.msra.mxu0 0.0
    %8745 = vmatprep.subr.mxu0 0.0
    %8746 = vmatpush1.msra.mxu0 0.0
    %8747 = vmatprep.subr.mxu0 0.0
    %8748 = vmatpush1.msra.mxu0 0.0
    %8749 = vmatprep.subr.mxu0 0.0
    %8750 = vmatpush1.msra.mxu0 0.0
    %8751 = vmatprep.subr.mxu0 0.0
    %8752 = vmatpush1.msra.mxu0 0.0
    %8753 = vmatprep.subr.mxu0 0.0
    %8754 = vmatpush1.msra.mxu0 0.0
    %8755 = vmatprep.subr.mxu0 0.0
    %8756 = vmatpush1.msra.mxu0 0.0
    %8757 = vmatprep.subr.mxu0 0.0
    %8758 = vmatpush1.msra.mxu0 0.0
    %8759 = vmatprep.subr.mxu0 0.0
    %8760 = vmatpush1.msra.mxu0 0.0
    %8761 = vmatprep.subr.mxu0 0.0
    %8762 = vmatpush1.msra.mxu0 0.0
    %8763 = vmatprep.subr.mxu0 0.0
    %8764 = vmatpush1.msra.mxu0 0.0
    %8765 = vmatprep.subr.mxu0 0.0
    %8766 = vmatpush1.msra.mxu0 0.0
    %8767 = vmatprep.subr.mxu0 0.0
    %8768 = vmatpush1.msra.mxu0 0.0
    %8769 = vmatprep.mubr.f32.mxu0 0.0
    %8770 = vmatmul.mubr.f32.gmra.mrb[0].mxu0 %v8682
    %v8771 = vpop.f32.mrb[0].mxu0
    %v8772 = vadd.f32 0.0, %v8771
    %v8773 = vpop.f32.mrb[0].mxu0
    %8774 = vmatprep.mubr.f32.mxu0 0.0
    %8775 = vmatmul.mubr.f32.gmra.mrb[0].mxu0 %v8685
    %v8776 = vpop.f32.mrb[0].mxu0
    %v8777 = vadd.f32 0.0, %v8776
    %v8778 = vpop.f32.mrb[0].mxu0
    %8779 = vmatprep.mubr.f32.mxu0 0.0
    %8780 = vmatmul.mubr.f32.gmra.mrb[0].mxu0 %v8688
    %v8781 = vpop.f32.mrb[0].mxu0
    %v8782 = vadd.f32 0.0, %v8781
    %v8783 = vpop.f32.mrb[0].mxu0
    %8784 = vmatprep.mubr.f32.mxu0 0.0
    %8785 = vmatmul.mubr.f32.gmra.mrb[0].mxu0 %v8691
    %v8786 = vpop.f32.mrb[0].mxu0
    %v8787 = vadd.f32 0.0, %v8786
    %v8788 = vpop.f32.mrb[0].mxu0
    %8789 = vmatprep.mubr.f32.mxu0 0.0
    %8790 = vmatmul.mubr.f32.gmra.mrb[0].mxu0 %v8694
    %v8791 = vpop.f32.mrb[0].mxu0
    %v8792 = vadd.f32 0.0, %v8791
    %v8793 = vpop.f32.mrb[0].mxu0
    %8794 = vmatprep.mubr.f32.mxu0 0.0
    %8795 = vmatmul.mubr.f32.gmra.mrb[0].mxu0 %v8697
    %v8796 = vpop.f32.mrb[0].mxu0
    %v8797 = vadd.f32 0.0, %v8796
    %v8798 = vpop.f32.mrb[0].mxu0
    %8799 = vmatprep.mubr.f32.mxu0 0.0
    %8800 = vmatmul.mubr.f32.gmra.mrb[0].mxu0 %v8700
    %v8801 = vpop.f32.mrb[0].mxu0
    %v8802 = vadd.f32 0.0, %v8801
    %v8803 = vpop.f32.mrb[0].mxu0
    %8804 = vmatprep.mubr.f32.mxu0 0.0
    %8805 = vmatmul.mubr.f32.gmra.mrb[0].mxu0 %v8703
    %v8806 = vpop.f32.mrb[0].mxu0
    %v8807 = vadd.f32 0.0, %v8806
    %v8808 = vpop.f32.mrb[0].mxu0
    %8809 = vdwg.mxu0
    %v8810 = vrot.slane %v4999, 4
    %v8812 = vsel %vm2700, %v8640, 0
    %v8815 = vsel %vm2700, %v8645, 0
    %v8818 = vsel %vm2700, %v8650, 0
    %v8821 = vsel %vm2700, %v8655, 0
    %v8824 = vsel %vm2700, %v8660, 0
    %v8827 = vsel %vm2700, %v8665, 0
    %v8830 = vsel %vm2700, %v8670, 0
    %v8833 = vsel %vm2700, %v8675, 0
    %v8836 = vsel %vm2700, %v8772, 0
    %v8839 = vsel %vm2700, %v8777, 0
    %v8842 = vsel %vm2700, %v8782, 0
    %v8845 = vsel %vm2700, %v8787, 0
    %v8848 = vsel %vm2700, %v8792, 0
    %v8851 = vsel %vm2700, %v8797, 0
    %v8854 = vsel %vm2700, %v8802, 0
    %v8857 = vsel %vm2700, %v8807, 0
    %v8859 = vsel %vm3516, %v8810, 0
    %8861 = vmatprep.subr.mxu0 0.0
    %8862 = vmatpush1.msra.mxu0 %v8859
    %8863 = vmatprep.subr.mxu0 0.0
    %8864 = vmatpush1.msra.mxu0 0.0
    %8865 = vmatprep.subr.mxu0 0.0
    %8866 = vmatpush1.msra.mxu0 0.0
    %8867 = vmatprep.subr.mxu0 0.0
    %8868 = vmatpush1.msra.mxu0 0.0
    %8869 = vmatprep.subr.mxu0 0.0
    %8870 = vmatpush1.msra.mxu0 0.0
    %8871 = vmatprep.subr.mxu0 0.0
    %8872 = vmatpush1.msra.mxu0 0.0
    %8873 = vmatprep.subr.mxu0 0.0
    %8874 = vmatpush1.msra.mxu0 0.0
    %8875 = vmatprep.subr.mxu0 0.0
    %8876 = vmatpush1.msra.mxu0 0.0
    %8877 = vmatprep.subr.mxu0 0.0
    %8878 = vmatpush1.msra.mxu0 0.0
    %8879 = vmatprep.subr.mxu0 0.0
    %8880 = vmatpush1.msra.mxu0 0.0
    %8881 = vmatprep.subr.mxu0 0.0
    %8882 = vmatpush1.msra.mxu0 0.0
    %8883 = vmatprep.subr.mxu0 0.0
    %8884 = vmatpush1.msra.mxu0 0.0
    %8885 = vmatprep.subr.mxu0 0.0
    %8886 = vmatpush1.msra.mxu0 0.0
    %8887 = vmatprep.subr.mxu0 0.0
    %8888 = vmatpush1.msra.mxu0 0.0
    %8889 = vmatprep.subr.mxu0 0.0
    %8890 = vmatpush1.msra.mxu0 0.0
    %8891 = vmatprep.subr.mxu0 0.0
    %8892 = vmatpush1.msra.mxu0 0.0
    %8893 = vmatprep.subr.mxu0 0.0
    %8894 = vmatpush1.msra.mxu0 0.0
    %8895 = vmatprep.subr.mxu0 0.0
    %8896 = vmatpush1.msra.mxu0 0.0
    %8897 = vmatprep.subr.mxu0 0.0
    %8898 = vmatpush1.msra.mxu0 0.0
    %8899 = vmatprep.subr.mxu0 0.0
    %8900 = vmatpush1.msra.mxu0 0.0
    %8901 = vmatprep.subr.mxu0 0.0
    %8902 = vmatpush1.msra.mxu0 0.0
    %8903 = vmatprep.subr.mxu0 0.0
    %8904 = vmatpush1.msra.mxu0 0.0
    %8905 = vmatprep.subr.mxu0 0.0
    %8906 = vmatpush1.msra.mxu0 0.0
    %8907 = vmatprep.subr.mxu0 0.0
    %8908 = vmatpush1.msra.mxu0 0.0
    %8909 = vmatprep.subr.mxu0 0.0
    %8910 = vmatpush1.msra.mxu0 0.0
    %8911 = vmatprep.subr.mxu0 0.0
    %8912 = vmatpush1.msra.mxu0 0.0
    %8913 = vmatprep.subr.mxu0 0.0
    %8914 = vmatpush1.msra.mxu0 0.0
    %8915 = vmatprep.subr.mxu0 0.0
    %8916 = vmatpush1.msra.mxu0 0.0
    %8917 = vmatprep.subr.mxu0 0.0
    %8918 = vmatpush1.msra.mxu0 0.0
    %8919 = vmatprep.subr.mxu0 0.0
    %8920 = vmatpush1.msra.mxu0 0.0
    %8921 = vmatprep.subr.mxu0 0.0
    %8922 = vmatpush1.msra.mxu0 0.0
    %8923 = vmatprep.subr.mxu0 0.0
    %8924 = vmatpush1.msra.mxu0 0.0
    %8925 = vmatprep.mubr.f32.mxu0 0.0
    %8926 = vmatmul.mubr.f32.gmra.mrb[0].mxu0 %v8812
    %v8927 = vpop.f32.mrb[0].mxu0
    %v8928 = vadd.f32 0.0, %v8927
    %v8929 = vpop.f32.mrb[0].mxu0
    %8930 = vmatprep.mubr.f32.mxu0 0.0
    %8931 = vmatmul.mubr.f32.gmra.mrb[0].mxu0 %v8815
    %v8932 = vpop.f32.mrb[0].mxu0
    %v8933 = vadd.f32 0.0, %v8932
    %v8934 = vpop.f32.mrb[0].mxu0
    %8935 = vmatprep.mubr.f32.mxu0 0.0
    %8936 = vmatmul.mubr.f32.gmra.mrb[0].mxu0 %v8818
    %v8937 = vpop.f32.mrb[0].mxu0
    %v8938 = vadd.f32 0.0, %v8937
    %v8939 = vpop.f32.mrb[0].mxu0
    %8940 = vmatprep.mubr.f32.mxu0 0.0
    %8941 = vmatmul.mubr.f32.gmra.mrb[0].mxu0 %v8821
    %v8942 = vpop.f32.mrb[0].mxu0
    %v8943 = vadd.f32 0.0, %v8942
    %v8944 = vpop.f32.mrb[0].mxu0
    %8945 = vmatprep.mubr.f32.mxu0 0.0
    %8946 = vmatmul.mubr.f32.gmra.mrb[0].mxu0 %v8824
    %v8947 = vpop.f32.mrb[0].mxu0
    %v8948 = vadd.f32 0.0, %v8947
    %v8949 = vpop.f32.mrb[0].mxu0
    %8950 = vmatprep.mubr.f32.mxu0 0.0
    %8951 = vmatmul.mubr.f32.gmra.mrb[0].mxu0 %v8827
    %v8952 = vpop.f32.mrb[0].mxu0
    %v8953 = vadd.f32 0.0, %v8952
    %v8954 = vpop.f32.mrb[0].mxu0
    %8955 = vmatprep.mubr.f32.mxu0 0.0
    %8956 = vmatmul.mubr.f32.gmra.mrb[0].mxu0 %v8830
    %v8957 = vpop.f32.mrb[0].mxu0
    %v8958 = vadd.f32 0.0, %v8957
    %v8959 = vpop.f32.mrb[0].mxu0
    %8960 = vmatprep.mubr.f32.mxu0 0.0
    %8961 = vmatmul.mubr.f32.gmra.mrb[0].mxu0 %v8833
    %v8962 = vpop.f32.mrb[0].mxu0
    %v8963 = vadd.f32 0.0, %v8962
    %v8964 = vpop.f32.mrb[0].mxu0
    %8965 = vmatprep.mubr.f32.mxu0 0.0
    %8966 = vmatmul.mubr.f32.gmra.mrb[0].mxu0 %v8836
    %v8967 = vpop.f32.mrb[0].mxu0
    %v8968 = vadd.f32 0.0, %v8967
    %v8969 = vpop.f32.mrb[0].mxu0
    %8970 = vmatprep.mubr.f32.mxu0 0.0
    %8971 = vmatmul.mubr.f32.gmra.mrb[0].mxu0 %v8839
    %v8972 = vpop.f32.mrb[0].mxu0
    %v8973 = vadd.f32 0.0, %v8972
    %v8974 = vpop.f32.mrb[0].mxu0
    %8975 = vmatprep.mubr.f32.mxu0 0.0
    %8976 = vmatmul.mubr.f32.gmra.mrb[0].mxu0 %v8842
    %v8977 = vpop.f32.mrb[0].mxu0
    %v8978 = vadd.f32 0.0, %v8977
    %v8979 = vpop.f32.mrb[0].mxu0
    %8980 = vmatprep.mubr.f32.mxu0 0.0
    %8981 = vmatmul.mubr.f32.gmra.mrb[0].mxu0 %v8845
    %v8982 = vpop.f32.mrb[0].mxu0
    %v8983 = vadd.f32 0.0, %v8982
    %v8984 = vpop.f32.mrb[0].mxu0
    %8985 = vmatprep.mubr.f32.mxu0 0.0
    %8986 = vmatmul.mubr.f32.gmra.mrb[0].mxu0 %v8848
    %v8987 = vpop.f32.mrb[0].mxu0
    %v8988 = vadd.f32 0.0, %v8987
    %v8989 = vpop.f32.mrb[0].mxu0
    %8990 = vmatprep.mubr.f32.mxu0 0.0
    %8991 = vmatmul.mubr.f32.gmra.mrb[0].mxu0 %v8851
    %v8992 = vpop.f32.mrb[0].mxu0
    %v8993 = vadd.f32 0.0, %v8992
    %v8994 = vpop.f32.mrb[0].mxu0
    %8995 = vmatprep.mubr.f32.mxu0 0.0
    %8996 = vmatmul.mubr.f32.gmra.mrb[0].mxu0 %v8854
    %v8997 = vpop.f32.mrb[0].mxu0
    %v8998 = vadd.f32 0.0, %v8997
    %v8999 = vpop.f32.mrb[0].mxu0
    %9000 = vmatprep.mubr.f32.mxu0 0.0
    %9001 = vmatmul.mubr.f32.gmra.mrb[0].mxu0 %v8857
    %v9002 = vpop.f32.mrb[0].mxu0
    %v9003 = vadd.f32 0.0, %v9002
    %v9004 = vpop.f32.mrb[0].mxu0
    %9005 = vdwg.mxu0
    %v9006 = vadd.f32 %v8072, %v8928
    %v9007 = vadd.f32 %v8073, %v8933
    %v9008 = vadd.f32 %v8074, %v8938
    %v9009 = vadd.f32 %v8075, %v8943
    %v9010 = vadd.f32 %v8076, %v8948
    %v9011 = vadd.f32 %v8077, %v8953
    %v9012 = vadd.f32 %v8078, %v8958
    %v9013 = vadd.f32 %v8079, %v8963
    %v9014 = vadd.f32 %v8080, %v8968
    %v9015 = vadd.f32 %v8081, %v8973
    %v9016 = vadd.f32 %v8082, %v8978
    %v9017 = vadd.f32 %v8083, %v8983
    %v9018 = vadd.f32 %v8084, %v8988
    %v9019 = vadd.f32 %v8085, %v8993
    %v9020 = vadd.f32 %v8086, %v8998
    %v9021 = vadd.f32 %v8087, %v9003
    %v9022 = vld [vmem:[%s55] sm:$0x1]
    %v9024 = vlaneseq
    %v9025 = vshrl.u32 %v9024, 7
    %v9026 = vsub.s32 0, %v9025
    %v9027 = vrot.slane %v9022, %v9026
    %v9029 = vadd.f32 %v9006, %v9027
    %v9030 = vadd.f32 %v9007, %v9027
    %v9031 = vadd.f32 %v9008, %v9027
    %v9032 = vadd.f32 %v9009, %v9027
    %v9033 = vadd.f32 %v9010, %v9027
    %v9034 = vadd.f32 %v9011, %v9027
    %v9035 = vadd.f32 %v9012, %v9027
    %v9036 = vadd.f32 %v9013, %v9027
    %v9037 = vadd.f32 %v9014, %v9027
    %v9038 = vadd.f32 %v9015, %v9027
    %v9039 = vadd.f32 %v9016, %v9027
    %v9040 = vadd.f32 %v9017, %v9027
    %v9041 = vadd.f32 %v9018, %v9027
    %v9042 = vadd.f32 %v9019, %v9027
    %v9043 = vadd.f32 %v9020, %v9027
    %v9044 = vadd.f32 %v9021, %v9027
    %v9045 = vadd.f32 %v172, %v9029
    %v9046 = vadd.f32 %v173, %v9030
    %v9047 = vadd.f32 %v174, %v9031
    %v9048 = vadd.f32 %v175, %v9032
    %v9049 = vadd.f32 %v176, %v9033
    %v9050 = vadd.f32 %v177, %v9034
    %v9051 = vadd.f32 %v178, %v9035
    %v9052 = vadd.f32 %v179, %v9036
    %v9053 = vadd.f32 %v180, %v9037
    %v9054 = vadd.f32 %v181, %v9038
    %v9055 = vadd.f32 %v182, %v9039
    %v9056 = vadd.f32 %v183, %v9040
    %v9057 = vadd.f32 %v184, %v9041
    %v9058 = vadd.f32 %v185, %v9042
    %v9059 = vadd.f32 %v186, %v9043
    %v9060 = vadd.f32 %v187, %v9044
    %v9061 = vsel %vm223, %v9045, 0.0
    %9062 = vadd.xlane.f32.xlu0 %v9061
    %v9063 = vpop.xlane.xlu0 %9062
    %v9064 = vsel %vm223, %v9046, 0.0
    %9065 = vadd.xlane.f32.xlu0 %v9064
    %v9066 = vpop.xlane.xlu0 %9065
    %v9067 = vsel %vm223, %v9047, 0.0
    %9068 = vadd.xlane.f32.xlu0 %v9067
    %v9069 = vpop.xlane.xlu0 %9068
    %v9070 = vsel %vm223, %v9048, 0.0
    %9071 = vadd.xlane.f32.xlu0 %v9070
    %v9072 = vpop.xlane.xlu0 %9071
    %v9073 = vsel %vm223, %v9049, 0.0
    %9074 = vadd.xlane.f32.xlu0 %v9073
    %v9075 = vpop.xlane.xlu0 %9074
    %v9076 = vsel %vm223, %v9050, 0.0
    %9077 = vadd.xlane.f32.xlu0 %v9076
    %v9078 = vpop.xlane.xlu0 %9077
    %v9079 = vsel %vm223, %v9051, 0.0
    %9080 = vadd.xlane.f32.xlu0 %v9079
    %v9081 = vpop.xlane.xlu0 %9080
    %v9082 = vsel %vm223, %v9052, 0.0
    %9083 = vadd.xlane.f32.xlu0 %v9082
    %v9084 = vpop.xlane.xlu0 %9083
    %v9085 = vsel %vm223, %v9053, 0.0
    %9086 = vadd.xlane.f32.xlu0 %v9085
    %v9087 = vpop.xlane.xlu0 %9086
    %v9088 = vsel %vm223, %v9054, 0.0
    %9089 = vadd.xlane.f32.xlu0 %v9088
    %v9090 = vpop.xlane.xlu0 %9089
    %v9091 = vsel %vm223, %v9055, 0.0
    %9092 = vadd.xlane.f32.xlu0 %v9091
    %v9093 = vpop.xlane.xlu0 %9092
    %v9094 = vsel %vm223, %v9056, 0.0
    %9095 = vadd.xlane.f32.xlu0 %v9094
    %v9096 = vpop.xlane.xlu0 %9095
    %v9097 = vsel %vm223, %v9057, 0.0
    %9098 = vadd.xlane.f32.xlu0 %v9097
    %v9099 = vpop.xlane.xlu0 %9098
    %v9100 = vsel %vm223, %v9058, 0.0
    %9101 = vadd.xlane.f32.xlu0 %v9100
    %v9102 = vpop.xlane.xlu0 %9101
    %v9103 = vsel %vm223, %v9059, 0.0
    %9104 = vadd.xlane.f32.xlu0 %v9103
    %v9105 = vpop.xlane.xlu0 %9104
    %v9106 = vsel %vm223, %v9060, 0.0
    %9107 = vadd.xlane.f32.xlu0 %v9106
    %v9108 = vpop.xlane.xlu0 %9107
    %v9109 = vmul.f32 %v9063, %v2141
    %v9110 = vmul.f32 %v9066, %v2141
    %v9111 = vmul.f32 %v9069, %v2141
    %v9112 = vmul.f32 %v9072, %v2141
    %v9113 = vmul.f32 %v9075, %v2141
    %v9114 = vmul.f32 %v9078, %v2141
    %v9115 = vmul.f32 %v9081, %v2141
    %v9116 = vmul.f32 %v9084, %v2141
    %v9117 = vmul.f32 %v9087, %v2141
    %v9118 = vmul.f32 %v9090, %v2141
    %v9119 = vmul.f32 %v9093, %v2141
    %v9120 = vmul.f32 %v9096, %v2141
    %v9121 = vmul.f32 %v9099, %v2141
    %v9122 = vmul.f32 %v9102, %v2141
    %v9123 = vmul.f32 %v9105, %v2141
    %v9124 = vmul.f32 %v9108, %v2141
    %v9125 = vsub.f32 %v9045, %v9109
    %v9126 = vsub.f32 %v9046, %v9110
    %v9127 = vsub.f32 %v9047, %v9111
    %v9128 = vsub.f32 %v9048, %v9112
    %v9129 = vsub.f32 %v9049, %v9113
    %v9130 = vsub.f32 %v9050, %v9114
    %v9131 = vsub.f32 %v9051, %v9115
    %v9132 = vsub.f32 %v9052, %v9116
    %v9133 = vsub.f32 %v9053, %v9117
    %v9134 = vsub.f32 %v9054, %v9118
    %v9135 = vsub.f32 %v9055, %v9119
    %v9136 = vsub.f32 %v9056, %v9120
    %v9137 = vsub.f32 %v9057, %v9121
    %v9138 = vsub.f32 %v9058, %v9122
    %v9139 = vsub.f32 %v9059, %v9123
    %v9140 = vsub.f32 %v9060, %v9124
    %v9141 = vmul.f32 %v9125, %v9125
    %v9142 = vmul.f32 %v9126, %v9126
    %v9143 = vmul.f32 %v9127, %v9127
    %v9144 = vmul.f32 %v9128, %v9128
    %v9145 = vmul.f32 %v9129, %v9129
    %v9146 = vmul.f32 %v9130, %v9130
    %v9147 = vmul.f32 %v9131, %v9131
    %v9148 = vmul.f32 %v9132, %v9132
    %v9149 = vmul.f32 %v9133, %v9133
    %v9150 = vmul.f32 %v9134, %v9134
    %v9151 = vmul.f32 %v9135, %v9135
    %v9152 = vmul.f32 %v9136, %v9136
    %v9153 = vmul.f32 %v9137, %v9137
    %v9154 = vmul.f32 %v9138, %v9138
    %v9155 = vmul.f32 %v9139, %v9139
    %v9156 = vmul.f32 %v9140, %v9140
    %v9157 = vsel %vm223, %v9141, 0.0
    %9158 = vadd.xlane.f32.xlu0 %v9157
    %v9159 = vpop.xlane.xlu0 %9158
    %v9160 = vsel %vm223, %v9142, 0.0
    %9161 = vadd.xlane.f32.xlu0 %v9160
    %v9162 = vpop.xlane.xlu0 %9161
    %v9163 = vsel %vm223, %v9143, 0.0
    %9164 = vadd.xlane.f32.xlu0 %v9163
    %v9165 = vpop.xlane.xlu0 %9164
    %v9166 = vsel %vm223, %v9144, 0.0
    %9167 = vadd.xlane.f32.xlu0 %v9166
    %v9168 = vpop.xlane.xlu0 %9167
    %v9169 = vsel %vm223, %v9145, 0.0
    %9170 = vadd.xlane.f32.xlu0 %v9169
    %v9171 = vpop.xlane.xlu0 %9170
    %v9172 = vsel %vm223, %v9146, 0.0
    %9173 = vadd.xlane.f32.xlu0 %v9172
    %v9174 = vpop.xlane.xlu0 %9173
    %v9175 = vsel %vm223, %v9147, 0.0
    %9176 = vadd.xlane.f32.xlu0 %v9175
    %v9177 = vpop.xlane.xlu0 %9176
    %v9178 = vsel %vm223, %v9148, 0.0
    %9179 = vadd.xlane.f32.xlu0 %v9178
    %v9180 = vpop.xlane.xlu0 %9179
    %v9181 = vsel %vm223, %v9149, 0.0
    %9182 = vadd.xlane.f32.xlu0 %v9181
    %v9183 = vpop.xlane.xlu0 %9182
    %v9184 = vsel %vm223, %v9150, 0.0
    %9185 = vadd.xlane.f32.xlu0 %v9184
    %v9186 = vpop.xlane.xlu0 %9185
    %v9187 = vsel %vm223, %v9151, 0.0
    %9188 = vadd.xlane.f32.xlu0 %v9187
    %v9189 = vpop.xlane.xlu0 %9188
    %v9190 = vsel %vm223, %v9152, 0.0
    %9191 = vadd.xlane.f32.xlu0 %v9190
    %v9192 = vpop.xlane.xlu0 %9191
    %v9193 = vsel %vm223, %v9153, 0.0
    %9194 = vadd.xlane.f32.xlu0 %v9193
    %v9195 = vpop.xlane.xlu0 %9194
    %v9196 = vsel %vm223, %v9154, 0.0
    %9197 = vadd.xlane.f32.xlu0 %v9196
    %v9198 = vpop.xlane.xlu0 %9197
    %v9199 = vsel %vm223, %v9155, 0.0
    %9200 = vadd.xlane.f32.xlu0 %v9199
    %v9201 = vpop.xlane.xlu0 %9200
    %v9202 = vsel %vm223, %v9156, 0.0
    %9203 = vadd.xlane.f32.xlu0 %v9202
    %v9204 = vpop.xlane.xlu0 %9203
    %v9205 = vmul.f32 %v9159, %v2141
    %v9206 = vmul.f32 %v9162, %v2141
    %v9207 = vmul.f32 %v9165, %v2141
    %v9208 = vmul.f32 %v9168, %v2141
    %v9209 = vmul.f32 %v9171, %v2141
    %v9210 = vmul.f32 %v9174, %v2141
    %v9211 = vmul.f32 %v9177, %v2141
    %v9212 = vmul.f32 %v9180, %v2141
    %v9213 = vmul.f32 %v9183, %v2141
    %v9214 = vmul.f32 %v9186, %v2141
    %v9215 = vmul.f32 %v9189, %v2141
    %v9216 = vmul.f32 %v9192, %v2141
    %v9217 = vmul.f32 %v9195, %v2141
    %v9218 = vmul.f32 %v9198, %v2141
    %v9219 = vmul.f32 %v9201, %v2141
    %v9220 = vmul.f32 %v9204, %v2141
    %v9221 = vadd.f32 %v9205, 1e-05
    %v9222 = vadd.f32 %v9206, 1e-05
    %v9223 = vadd.f32 %v9207, 1e-05
    %v9224 = vadd.f32 %v9208, 1e-05
    %v9225 = vadd.f32 %v9209, 1e-05
    %v9226 = vadd.f32 %v9210, 1e-05
    %v9227 = vadd.f32 %v9211, 1e-05
    %v9228 = vadd.f32 %v9212, 1e-05
    %v9229 = vadd.f32 %v9213, 1e-05
    %v9230 = vadd.f32 %v9214, 1e-05
    %v9231 = vadd.f32 %v9215, 1e-05
    %v9232 = vadd.f32 %v9216, 1e-05
    %v9233 = vadd.f32 %v9217, 1e-05
    %v9234 = vadd.f32 %v9218, 1e-05
    %v9235 = vadd.f32 %v9219, 1e-05
    %v9236 = vadd.f32 %v9220, 1e-05
    %v9237 = vrsqrt.pop %v9221
    %v9238 = vrsqrt.pop %v9222
    %v9239 = vrsqrt.pop %v9223
    %v9240 = vrsqrt.pop %v9224
    %v9241 = vrsqrt.pop %v9225
    %v9242 = vrsqrt.pop %v9226
    %v9243 = vrsqrt.pop %v9227
    %v9244 = vrsqrt.pop %v9228
    %v9245 = vrsqrt.pop %v9229
    %v9246 = vrsqrt.pop %v9230
    %v9247 = vrsqrt.pop %v9231
    %v9248 = vrsqrt.pop %v9232
    %v9249 = vrsqrt.pop %v9233
    %v9250 = vrsqrt.pop %v9234
    %v9251 = vrsqrt.pop %v9235
    %v9252 = vrsqrt.pop %v9236
    %v9253 = vmul.f32 %v9125, %v9237
    %v9254 = vmul.f32 %v9126, %v9238
    %v9255 = vmul.f32 %v9127, %v9239
    %v9256 = vmul.f32 %v9128, %v9240
    %v9257 = vmul.f32 %v9129, %v9241
    %v9258 = vmul.f32 %v9130, %v9242
    %v9259 = vmul.f32 %v9131, %v9243
    %v9260 = vmul.f32 %v9132, %v9244
    %v9261 = vmul.f32 %v9133, %v9245
    %v9262 = vmul.f32 %v9134, %v9246
    %v9263 = vmul.f32 %v9135, %v9247
    %v9264 = vmul.f32 %v9136, %v9248
    %v9265 = vmul.f32 %v9137, %v9249
    %v9266 = vmul.f32 %v9138, %v9250
    %v9267 = vmul.f32 %v9139, %v9251
    %v9268 = vmul.f32 %v9140, %v9252
    %v9269 = vld [vmem:[%s77] sm:$0x1]
    %v9271 = vlaneseq
    %v9272 = vshrl.u32 %v9271, 7
    %v9273 = vsub.s32 0, %v9272
    %v9274 = vrot.slane %v9269, %v9273
    %v9276 = vmul.f32 %v9253, %v9274
    %v9277 = vmul.f32 %v9254, %v9274
    %v9278 = vmul.f32 %v9255, %v9274
    %v9279 = vmul.f32 %v9256, %v9274
    %v9280 = vmul.f32 %v9257, %v9274
    %v9281 = vmul.f32 %v9258, %v9274
    %v9282 = vmul.f32 %v9259, %v9274
    %v9283 = vmul.f32 %v9260, %v9274
    %v9284 = vmul.f32 %v9261, %v9274
    %v9285 = vmul.f32 %v9262, %v9274
    %v9286 = vmul.f32 %v9263, %v9274
    %v9287 = vmul.f32 %v9264, %v9274
    %v9288 = vmul.f32 %v9265, %v9274
    %v9289 = vmul.f32 %v9266, %v9274
    %v9290 = vmul.f32 %v9267, %v9274
    %v9291 = vmul.f32 %v9268, %v9274
    %v9292 = vld [vmem:[%s79] sm:$0x1]
    %v9294 = vlaneseq
    %v9295 = vshrl.u32 %v9294, 7
    %v9296 = vsub.s32 0, %v9295
    %v9297 = vrot.slane %v9292, %v9296
    %v9299 = vadd.f32 %v9276, %v9297
    %v9300 = vadd.f32 %v9277, %v9297
    %v9301 = vadd.f32 %v9278, %v9297
    %v9302 = vadd.f32 %v9279, %v9297
    %v9303 = vadd.f32 %v9280, %v9297
    %v9304 = vadd.f32 %v9281, %v9297
    %v9305 = vadd.f32 %v9282, %v9297
    %v9306 = vadd.f32 %v9283, %v9297
    %v9307 = vadd.f32 %v9284, %v9297
    %v9308 = vadd.f32 %v9285, %v9297
    %v9309 = vadd.f32 %v9286, %v9297
    %v9310 = vadd.f32 %v9287, %v9297
    %v9311 = vadd.f32 %v9288, %v9297
    %v9312 = vadd.f32 %v9289, %v9297
    %v9313 = vadd.f32 %v9290, %v9297
    %v9314 = vadd.f32 %v9291, %v9297
    %9315 = vst.msk [vmem:[#allocation2] sm:$0xff] %vm223, %v4994
    %9316 = vst.msk [vmem:[#allocation2 + $0x8] sm:$0xff] %vm223, %v4995
    %9317 = vst.msk [vmem:[%s83] sm:$0xff] %vm223, %v9299
    %9318 = vst.msk [vmem:[%s83 + $0x8] sm:$0xff] %vm223, %v9300
    %9319 = vst.msk [vmem:[%s83 + $0x10] sm:$0xff] %vm223, %v9301
    %9320 = vst.msk [vmem:[%s83 + $0x18] sm:$0xff] %vm223, %v9302
    %9321 = vst.msk [vmem:[%s83 + $0x20] sm:$0xff] %vm223, %v9303
    %9322 = vst.msk [vmem:[%s83 + $0x28] sm:$0xff] %vm223, %v9304
    %9323 = vst.msk [vmem:[%s83 + $0x30] sm:$0xff] %vm223, %v9305
    %9324 = vst.msk [vmem:[%s83 + $0x38] sm:$0xff] %vm223, %v9306
    %9325 = vst.msk [vmem:[%s83 + $0x40] sm:$0xff] %vm223, %v9307
    %9326 = vst.msk [vmem:[%s83 + $0x48] sm:$0xff] %vm223, %v9308
    %9327 = vst.msk [vmem:[%s83 + $0x50] sm:$0xff] %vm223, %v9309
    %9328 = vst.msk [vmem:[%s83 + $0x58] sm:$0xff] %vm223, %v9310
    %9329 = vst.msk [vmem:[%s83 + $0x60] sm:$0xff] %vm223, %v9311
    %9330 = vst.msk [vmem:[%s83 + $0x68] sm:$0xff] %vm223, %v9312
    %9331 = vst.msk [vmem:[%s83 + $0x70] sm:$0xff] %vm223, %v9313
    %9332 = vst.msk [vmem:[%s83 + $0x78] sm:$0xff] %vm223, %v9314
    // Predicated region
    $region162: #{two_way_attention_block.1} parent=1 // pred_check
      _
    $region163: #{two_way_attention_block.1} parent=1 // pred_check_branch
      %9334 = sbr.rel (0) target = $region165
    $region164: #{two_way_attention_block.1} parent=1 // pred_region
      %s9336 = ssub.s32 256, 256
      %9337 = vsyncadd [#allocation3], %s9336
      %s9338 = sshll.u32 [#allocation2], 4
      %s9339 = int_to_ptr.vmem [resolvable:$true] %s9338
      %9344 = dma.vmem_to_hbm [thread:$0]  %s9339, 256, %s81, [#allocation3], 128, 128, 8
    $region165: #{two_way_attention_block.1} parent=1 // pred_fallthru
      _
    // Predicated region
    $region166: #{two_way_attention_block.1} parent=1 // pred_check
      _
    $region167: #{two_way_attention_block.1} parent=1 // pred_check_branch
      %9346 = sbr.rel (0) target = $region169
    $region168: #{two_way_attention_block.1} parent=1 // pred_region
      _
    $region169: #{two_way_attention_block.1} parent=1 // pred_fallthru
      _
    // Predicated region
    $region170: #{two_way_attention_block.1} parent=1 // pred_check
      _
    $region171: #{two_way_attention_block.1} parent=1 // pred_check_branch
      %9348 = sbr.rel (0) target = $region173
    $region172: #{two_way_attention_block.1} parent=1 // pred_region
      %9349 = dma.done [#allocation3], 256
    $region173: #{two_way_attention_block.1} parent=1 // pred_fallthru
      _
    // Predicated region
    $region174: #{two_way_attention_block.1} parent=1 // pred_check
      _
    $region175: #{two_way_attention_block.1} parent=1 // pred_check_branch
      %9351 = sbr.rel (0) target = $region177
    $region176: #{two_way_attention_block.1} parent=1 // pred_region
      _
    $region177: #{two_way_attention_block.1} parent=1 // pred_fallthru
      _
    %9352 = vsyncpa [#allocation3], 1

</llo_original>
